<compile_context>
chip_gen: v6e
topology: v6e:2x2x1
jax: 0.10.0
libtpu: 0.0.40
codegen_flags: <defaults>
</compile_context>

<pallas_src>
import functools
import math

import jax
import jax.numpy as jnp
from jax.experimental import pallas as pl
from jax.experimental.pallas import tpu as pltpu


def _round_up(x, m):
    return (x + m - 1) // m * m


# ----------------------------------------------------------------------------
# Kernel 1: fused "stem"
#   xd       = up_w^T @ (x  @ dd_w) + (up_b ⊗ colsum(dd_w) + dd_b)   (GCN_UP + Dim_Down)
#   F_joints = np_w^T @ (fj @ dp_w) + (colsum(np_w) ⊗ dp_b + np_b)   (Dim_Project + Num_Project)
# Gridded over batch ("parallel"); weights/bias terms are prepacked bf16/f32.
# ----------------------------------------------------------------------------
def _stem_kernel(x_ref, fj_ref, dd_w_ref, up_wt_ref, bx_ref,
                 dp_w_ref, np_wt_ref, bf_ref, xd_ref, fjo_ref):
    x = x_ref[0]                                                     # (Jp, featp) bf16
    t = jnp.dot(x, dd_w_ref[...], preferred_element_type=jnp.float32)
    xd = jnp.dot(up_wt_ref[...], t.astype(jnp.bfloat16),
                 preferred_element_type=jnp.float32) + bx_ref[...]
    xd_ref[0] = xd.astype(xd_ref.dtype)

    fj = fj_ref[0]                                                   # (Jpf, C) bf16
    u = jnp.dot(fj, dp_w_ref[...], preferred_element_type=jnp.float32)
    fo = jnp.dot(np_wt_ref[...], u.astype(jnp.bfloat16),
                 preferred_element_type=jnp.float32) + bf_ref[...]
    fjo_ref[0] = fo.astype(fjo_ref.dtype)


def stem_forward(x_pad, fj_pad, pp):
    B = x_pad.shape[0]
    T, Dp = pp["bias_x"].shape
    Jp, featp = x_pad.shape[1], x_pad.shape[2]
    Jpf, C = fj_pad.shape[1], fj_pad.shape[2]

    flops = B * 2 * (Jp * featp * Dp + T * Jp * Dp + Jpf * C * Dp + T * Jpf * Dp)
    bytes_accessed = (x_pad.size + fj_pad.size) * 2 + 2 * B * T * Dp * 4
    for n in ("dd_w", "up_wt", "dp_w", "np_wt"):
        bytes_accessed += int(pp[n].size) * 2
    bytes_accessed += (pp["bias_x"].size + pp["bias_f"].size) * 4

    return pl.pallas_call(
        _stem_kernel,
        out_shape=(jax.ShapeDtypeStruct((B, T, Dp), jnp.float32),
                   jax.ShapeDtypeStruct((B, T, Dp), jnp.float32)),
        grid_spec=pltpu.PrefetchScalarGridSpec(
            num_scalar_prefetch=0,
            grid=(B,),
            in_specs=[
                pl.BlockSpec((1, Jp, featp), lambda b: (b, 0, 0)),
                pl.BlockSpec((1, Jpf, C), lambda b: (b, 0, 0)),
                pl.BlockSpec(pp["dd_w"].shape, lambda b: (0, 0)),
                pl.BlockSpec(pp["up_wt"].shape, lambda b: (0, 0)),
                pl.BlockSpec(pp["bias_x"].shape, lambda b: (0, 0)),
                pl.BlockSpec(pp["dp_w"].shape, lambda b: (0, 0)),
                pl.BlockSpec(pp["np_wt"].shape, lambda b: (0, 0)),
                pl.BlockSpec(pp["bias_f"].shape, lambda b: (0, 0)),
            ],
            out_specs=[pl.BlockSpec((1, T, Dp), lambda b: (b, 0, 0)),
                       pl.BlockSpec((1, T, Dp), lambda b: (b, 0, 0))],
        ),
        compiler_params=pltpu.CompilerParams(dimension_semantics=("parallel",)),
        cost_estimate=pl.CostEstimate(flops=int(flops), transcendentals=0,
                                      bytes_accessed=int(bytes_accessed)),
    )(x_pad, fj_pad, pp["dd_w"], pp["up_wt"], pp["bias_x"],
      pp["dp_w"], pp["np_wt"], pp["bias_f"])


# ----------------------------------------------------------------------------
# Kernel 2: fused transformer encoder (all layers) + final F_joints residual.
#   grid = (batch "parallel", layer "arbitrary"); the activation is carried in the
#   resident output block; per-layer weights stream via BlockSpec pipelining.
# ----------------------------------------------------------------------------
def _ln(x, g, b, eps):
    mean = jnp.mean(x, axis=-1, keepdims=True)
    diff = x - mean
    var = jnp.mean(diff * diff, axis=-1, keepdims=True)
    return diff * jax.lax.rsqrt(var + eps) * g + b


def _encoder_kernel(x_ref, fj_ref,
                    wqkv_ref, bqkv_ref, wo_ref, bo_ref, ln1g_ref, ln1b_ref,
                    w1_ref, b1_ref, w2_ref, b2_ref, ln2g_ref, ln2b_ref,
                    o_ref, attn_scr, *, n_heads, eps):
    l = pl.program_id(1)
    last = pl.num_programs(1) - 1

    @pl.when(l == 0)
    def _():                                  # load the encoder input into the carry
        o_ref[...] = x_ref[...]

    h = o_ref[0]                              # (T, D) f32 carry
    T, D = h.shape
    dh = D // n_heads
    scale = 1.0 / math.sqrt(dh)

    # --- MHSA ---
    qkv = jnp.dot(h.astype(jnp.bfloat16), wqkv_ref[0],
                  preferred_element_type=jnp.float32) + bqkv_ref[0]
    q = qkv[:, 0:D].astype(jnp.bfloat16)
    k = qkv[:, D:2 * D].astype(jnp.bfloat16)
    v = qkv[:, 2 * D:3 * D].astype(jnp.bfloat16)

    for hh in range(n_heads):                 # unrolled; heads written lane-dense
        lo = hh * dh
        qh = q[:, lo:lo + dh]
        kh = k[:, lo:lo + dh]
        vh = v[:, lo:lo + dh]
        s = jax.lax.dot_general(qh, kh, (((1,), (1,)), ((), ())),
                                preferred_element_type=jnp.float32) * scale
        m = jnp.max(s, axis=-1, keepdims=True)
        p = jnp.exp(s - m)
        denom = jnp.sum(p, axis=-1, keepdims=True)
        oh = jnp.dot(p.astype(jnp.bfloat16), vh, preferred_element_type=jnp.float32)
        attn_scr[:, lo:lo + dh] = oh * pl.reciprocal(denom, approx=True)
    attn = attn_scr[...]                      # (T, D)

    h1 = jnp.dot(attn.astype(jnp.bfloat16), wo_ref[0],
                 preferred_element_type=jnp.float32) + bo_ref[0] + h
    h1 = _ln(h1, ln1g_ref[0], ln1b_ref[0], eps)

    # --- FFN ---
    f = jnp.dot(h1.astype(jnp.bfloat16), w1_ref[0],
                preferred_element_type=jnp.float32) + b1_ref[0]
    f = jnp.maximum(f, 0.0)
    f2 = jnp.dot(f.astype(jnp.bfloat16), w2_ref[0],
                 preferred_element_type=jnp.float32) + b2_ref[0] + h1
    h2 = _ln(f2, ln2g_ref[0], ln2b_ref[0], eps)

    @pl.when(l != last)
    def _():
        o_ref[0] = h2.astype(o_ref.dtype)

    @pl.when(l == last)
    def _():                                  # fuse the projected-feature residual
        o_ref[0] = (h2 + fj_ref[0]).astype(o_ref.dtype)


def transformer_encoder(xd, fjo, lp, *, n_heads, eps=1e-5):
    B, T, D = xd.shape
    L = lp["wqkv"].shape[0]
    Hf = lp["w1"].shape[-1]

    names = ["wqkv", "bqkv", "wo", "bo", "ln1_g", "ln1_b",
             "w1", "b1", "w2", "b2", "ln2_g", "ln2_b"]
    w_args = [lp[n] for n in names]

    def wspec(a):
        return pl.BlockSpec((1,) + a.shape[1:], lambda b, l: (l, 0, 0))

    in_specs = [pl.BlockSpec((1, T, D), lambda b, l: (b, 0, 0)),
                pl.BlockSpec((1, T, D), lambda b, l: (b, 0, 0))]
    in_specs += [wspec(a) for a in w_args]

    flops = B * L * (2 * T * D * 3 * D + 4 * T * T * D + 2 * T * D * D
                     + 2 * T * D * Hf + 2 * T * Hf * D)
    wbytes = sum(int(a.size) * a.dtype.itemsize for a in w_args)
    bytes_accessed = B * wbytes + 3 * B * T * D * 4

    return pl.pallas_call(
        functools.partial(_encoder_kernel, n_heads=n_heads, eps=eps),
        out_shape=jax.ShapeDtypeStruct((B, T, D), jnp.float32),
        grid_spec=pltpu.PrefetchScalarGridSpec(
            num_scalar_prefetch=0,
            grid=(B, L),
            in_specs=in_specs,
            out_specs=pl.BlockSpec((1, T, D), lambda b, l: (b, 0, 0)),
            scratch_shapes=[pltpu.VMEM((T, D), jnp.float32)],
        ),
        compiler_params=pltpu.CompilerParams(
            dimension_semantics=("parallel", "arbitrary")),
        cost_estimate=pl.CostEstimate(
            flops=int(flops),
            transcendentals=int(B * L * n_heads * T * T),
            bytes_accessed=int(bytes_accessed)),
    )(xd, fjo, *w_args)


# ----------------------------------------------------------------------------
# project(): bilinear grid_sample at 21 points (align_corners=False, zeros pad).
# Plain-JAX glue — tiny data-dependent gather, no natural Pallas tiling.
# ----------------------------------------------------------------------------
def grid_sample_points(img_feat, joints):
    """img_feat: [B, C, H, W], joints: [B, J, >=2] with xy in [0, 1] -> [B, J, C]."""
    B, C, H, W = img_feat.shape
    v = joints[..., :2] / 0.5 - 1.0                    # -> [-1, 1], (x, y) order
    gx = (v[..., 0] + 1.0) * (W * 0.5) - 0.5
    gy = (v[..., 1] + 1.0) * (H * 0.5) - 0.5
    x0 = jnp.floor(gx)
    y0 = jnp.floor(gy)
    x1 = x0 + 1.0
    y1 = y0 + 1.0
    wx1 = gx - x0
    wx0 = 1.0 - wx1
    wy1 = gy - y0
    wy0 = 1.0 - wy1

    flat = jnp.transpose(img_feat.reshape(B, C, H * W), (0, 2, 1))  # [B, HW, C]

    def corner(ix, iy, w):
        valid = (ix >= 0) & (ix <= W - 1) & (iy >= 0) & (iy <= H - 1)
        idx = (jnp.clip(iy, 0, H - 1) * W + jnp.clip(ix, 0, W - 1)).astype(jnp.int32)
        vals = jax.vmap(lambda f, i: jnp.take(f, i, axis=0))(flat, idx)  # [B, J, C]
        return vals * (w * valid.astype(flat.dtype))[..., None]

    return (corner(x0, y0, wx0 * wy0) + corner(x1, y0, wx1 * wy0)
            + corner(x0, y1, wx0 * wy1) + corner(x1, y1, wx1 * wy1))


# ----------------------------------------------------------------------------
# Parameters (deterministic, synthetic; linear weights stored as [in, out]) and
# one-time prepacking (pad / transpose / bf16-cast / bias folding / layer stacking).
# ----------------------------------------------------------------------------
def init_params(key, *, joint_num, num_up, feat, feat_down, joint_feat,
                n_depths, n_headers):
    del n_headers  # head count is static config, not a parameter

    def linear_init(k, fan_in, fan_out):
        k1, k2 = jax.random.split(k)
        w = jax.random.normal(k1, (fan_in, fan_out), jnp.float32) / jnp.sqrt(fan_in)
        b = 0.01 * jax.random.normal(k2, (fan_out,), jnp.float32)
        return w, b

    keys = jax.random.split(key, 4 + n_depths)
    p = {}
    p["up_w"], p["up_b"] = linear_init(keys[0], joint_num, num_up)      # GCN_UP.fc
    p["dd_w"], p["dd_b"] = linear_init(keys[1], feat, feat_down)        # Dim_Down
    p["dp_w"], p["dp_b"] = linear_init(keys[2], joint_feat, feat_down)  # Dim_Project
    p["np_w"], p["np_b"] = linear_init(keys[3], 21, num_up)             # Num_Project

    layers = []
    for i in range(n_depths):
        lk = jax.random.split(keys[4 + i], 4)
        layer = {}
        layer["wqkv"], layer["bqkv"] = linear_init(lk[0], feat_down, 3 * feat_down)
        layer["wo"], layer["bo"] = linear_init(lk[1], feat_down, feat_down)
        layer["w1"], layer["b1"] = linear_init(lk[2], feat_down, 4 * feat_down)
        layer["w2"], layer["b2"] = linear_init(lk[3], 4 * feat_down, feat_down)
        layer["ln1_g"] = jnp.ones((feat_down,), jnp.float32)
        layer["ln1_b"] = jnp.zeros((feat_down,), jnp.float32)
        layer["ln2_g"] = jnp.ones((feat_down,), jnp.float32)
        layer["ln2_b"] = jnp.zeros((feat_down,), jnp.float32)
        layers.append(layer)
    p["layers"] = layers
    return p


def prepack_params(p, *, n_headers):
    feat, feat_down = p["dd_w"].shape
    joint_num, num_up = p["up_w"].shape
    # TODO(synk): masked LayerNorm / head handling for feat_down not a multiple of 128.
    assert feat_down % 128 == 0, "feat_down must be lane aligned (128)"
    assert feat_down % n_headers == 0

    Jp = _round_up(joint_num, 8)
    Jpf = _round_up(21, 8)
    featp = _round_up(feat, 128)

    pp = {}
    pp["dd_w"] = jnp.pad(p["dd_w"], ((0, featp - feat), (0, 0))).astype(jnp.bfloat16)
    pp["up_wt"] = jnp.pad(p["up_w"].T, ((0, 0), (0, Jp - joint_num))).astype(jnp.bfloat16)
    pp["bias_x"] = (p["up_b"][:, None] * jnp.sum(p["dd_w"], axis=0)[None, :]
                    + p["dd_b"][None, :]).astype(jnp.float32)
    pp["dp_w"] = p["dp_w"].astype(jnp.bfloat16)
    pp["np_wt"] = jnp.pad(p["np_w"].T, ((0, 0), (0, Jpf - 21))).astype(jnp.bfloat16)
    pp["bias_f"] = (jnp.sum(p["np_w"], axis=0)[:, None] * p["dp_b"][None, :]
                    + p["np_b"][:, None]).astype(jnp.float32)

    def stack(name):
        return jnp.stack([lyr[name] for lyr in p["layers"]], axis=0)

    lp = {}
    lp["wqkv"] = stack("wqkv").astype(jnp.bfloat16)
    lp["bqkv"] = stack("bqkv")[:, None, :].astype(jnp.float32)
    lp["wo"] = stack("wo").astype(jnp.bfloat16)
    lp["bo"] = stack("bo")[:, None, :].astype(jnp.float32)
    lp["w1"] = stack("w1").astype(jnp.bfloat16)
    lp["b1"] = stack("b1")[:, None, :].astype(jnp.float32)
    lp["w2"] = stack("w2").astype(jnp.bfloat16)
    lp["b2"] = stack("b2")[:, None, :].astype(jnp.float32)
    lp["ln1_g"] = stack("ln1_g")[:, None, :].astype(jnp.float32)
    lp["ln1_b"] = stack("ln1_b")[:, None, :].astype(jnp.float32)
    lp["ln2_g"] = stack("ln2_g")[:, None, :].astype(jnp.float32)
    lp["ln2_b"] = stack("ln2_b")[:, None, :].astype(jnp.float32)
    pp["layers"] = lp
    return pp


# ----------------------------------------------------------------------------
# Forward pass (matches PyTorch Mesh_Regressor_blocks.forward, PE=False)
# ----------------------------------------------------------------------------
def mesh_regressor_forward(pp, x, joint, F_img, pe=None, *, n_heads=8):
    # TODO(synk): PE=True branch (Dim_Down -> feat_down-3, concat with pe) not exercised.
    B, J, feat = x.shape
    Jp = pp["up_wt"].shape[1]
    featp = pp["dd_w"].shape[0]
    Jpf = pp["np_wt"].shape[1]

    x_pad = jnp.pad(x, ((0, 0), (0, Jp - J), (0, featp - feat))).astype(jnp.bfloat16)

    fj = grid_sample_points(F_img, joint)                               # [B, 21, C]
    fj_pad = jnp.pad(fj, ((0, 0), (0, Jpf - fj.shape[1]), (0, 0))).astype(jnp.bfloat16)

    xd, fjo = stem_forward(x_pad, fj_pad, pp)                           # [B, num_up, feat_down]
    # TODO(synk): Transformer class body not in the spec — post-LN MHSA + ReLU FFN assumed.
    return transformer_encoder(xd, fjo, pp["layers"], n_heads=n_heads)


# ----------------------------------------------------------------------------
if __name__ == "__main__":
    key = jax.random.PRNGKey(0)
    k_params, k_x, k_joint, k_F = jax.random.split(key, 4)

    B = 2
    joint_num = 21       # input graph nodes (and the 21 projected joints)
    num_up = 64          # up-sampled node count
    feat = 256           # input per-node feature dim
    feat_down = 128      # transformer width (divisible by n_headers, lane aligned)
    joint_feat = 64      # channels of the image feature map F
    feat_size = 8        # spatial size of F
    n_depths = 2
    n_headers = 8

    raw = init_params(k_params, joint_num=joint_num, num_up=num_up, feat=feat,
                      feat_down=feat_down, joint_feat=joint_feat,
                      n_depths=n_depths, n_headers=n_headers)
    packed = prepack_params(raw, n_headers=n_headers)   # one-time weight prepacking

    x = jax.random.normal(k_x, (B, joint_num, feat), jnp.float32)
    joint = jax.random.uniform(k_joint, (B, 21, 3), jnp.float32)        # coords in [0, 1]
    F_img = jax.random.normal(k_F, (B, joint_feat, feat_size, feat_size), jnp.float32)

    fwd = jax.jit(functools.partial(mesh_regressor_forward, n_heads=n_headers))
    out = fwd(packed, x, joint, F_img)
    out = jax.block_until_ready(out)

    assert out.shape == (B, num_up, feat_down), out.shape
    assert bool(jnp.all(jnp.isfinite(out)))
    print("KERNEL_OK")
</pallas_src>

<mosaic_0001>
module attributes {stable_mosaic.version = 11 : i64} {
  func.func @_stem_kernel(%arg0: i32, %arg1: memref<1x24x256xbf16, #tpu.memory_space<vmem>>, %arg2: memref<1x24x64xbf16, #tpu.memory_space<vmem>>, %arg3: memref<256x128xbf16, #tpu.memory_space<vmem>>, %arg4: memref<64x24xbf16, #tpu.memory_space<vmem>>, %arg5: memref<64x128xf32, #tpu.memory_space<vmem>>, %arg6: memref<64x128xbf16, #tpu.memory_space<vmem>>, %arg7: memref<64x24xbf16, #tpu.memory_space<vmem>>, %arg8: memref<64x128xf32, #tpu.memory_space<vmem>>, %arg9: memref<1x64x128xf32, #tpu.memory_space<vmem>>, %arg10: memref<1x64x128xf32, #tpu.memory_space<vmem>>) attributes {dimension_semantics = [#tpu.dimension_semantics<parallel>], iteration_bounds = array<i64: 2>, scalar_prefetch = 0 : i64, scratch_operands = 0 : i64, tpu.core_type = #tpu.core_type<tc>, window_params = [{transform_indices = @transform_0, window_bounds = array<i64: 1, 24, 256>}, {transform_indices = @transform_1, window_bounds = array<i64: 1, 24, 64>}, {pipeline_mode = #tpu.pipeline_mode<synchronous>, transform_indices = @transform_2, window_bounds = array<i64: 256, 128>}, {pipeline_mode = #tpu.pipeline_mode<synchronous>, transform_indices = @transform_3, window_bounds = array<i64: 64, 24>}, {pipeline_mode = #tpu.pipeline_mode<synchronous>, transform_indices = @transform_4, window_bounds = array<i64: 64, 128>}, {pipeline_mode = #tpu.pipeline_mode<synchronous>, transform_indices = @transform_5, window_bounds = array<i64: 64, 128>}, {pipeline_mode = #tpu.pipeline_mode<synchronous>, transform_indices = @transform_6, window_bounds = array<i64: 64, 24>}, {pipeline_mode = #tpu.pipeline_mode<synchronous>, transform_indices = @transform_7, window_bounds = array<i64: 64, 128>}, {transform_indices = @transform_8, window_bounds = array<i64: 1, 64, 128>}, {transform_indices = @transform_9, window_bounds = array<i64: 1, 64, 128>}]} {
    %c0 = arith.constant 0 : index
    %c0_0 = arith.constant 0 : index
    %c0_1 = arith.constant 0 : index
    %0 = vector.load %arg1[%c0, %c0_0, %c0_1] : memref<1x24x256xbf16, #tpu.memory_space<vmem>>, vector<1x24x256xbf16>
    %1 = vector.shape_cast %0 : vector<1x24x256xbf16> to vector<24x256xbf16>
    %c0_2 = arith.constant 0 : index
    %c0_3 = arith.constant 0 : index
    %2 = vector.load %arg3[%c0_2, %c0_3] : memref<256x128xbf16, #tpu.memory_space<vmem>>, vector<256x128xbf16>
    %cst = arith.constant dense<0.000000e+00> : vector<24x128xf32>
    %3 = tpu.matmul %1, %2, %cst {dimension_numbers = #tpu.dot_dimension_numbers<[1], [0], [0], [1], [0, 0, 1, 1], [], []>} : vector<24x256xbf16>, vector<256x128xbf16>, vector<24x128xf32> -> vector<24x128xf32>
    %c0_4 = arith.constant 0 : index
    %c0_5 = arith.constant 0 : index
    %4 = vector.load %arg4[%c0_4, %c0_5] : memref<64x24xbf16, #tpu.memory_space<vmem>>, vector<64x24xbf16>
    %5 = arith.truncf %3 : vector<24x128xf32> to vector<24x128xbf16>
    %cst_6 = arith.constant dense<0.000000e+00> : vector<64x128xf32>
    %6 = tpu.matmul %4, %5, %cst_6 {dimension_numbers = #tpu.dot_dimension_numbers<[1], [0], [0], [1], [0, 0, 1, 1], [], []>} : vector<64x24xbf16>, vector<24x128xbf16>, vector<64x128xf32> -> vector<64x128xf32>
    %c0_7 = arith.constant 0 : index
    %c0_8 = arith.constant 0 : index
    %7 = vector.load %arg5[%c0_7, %c0_8] : memref<64x128xf32, #tpu.memory_space<vmem>>, vector<64x128xf32>
    %8 = arith.addf %6, %7 : vector<64x128xf32>
    %c0_9 = arith.constant 0 : index
    %c0_10 = arith.constant 0 : index
    %c0_11 = arith.constant 0 : index
    %9 = vector.load %arg9[%c0_9, %c0_10, %c0_11] : memref<1x64x128xf32, #tpu.memory_space<vmem>>, vector<1x64x128xf32>
    %10 = vector.shape_cast %9 : vector<1x64x128xf32> to vector<64x128xf32>
    %11 = vector.shape_cast %8 : vector<64x128xf32> to vector<1x64x128xf32>
    tpu.vector_store %arg9[%c0_9, %c0_10, %c0_11], %11 {strides = array<i32>} : memref<1x64x128xf32, #tpu.memory_space<vmem>>, vector<1x64x128xf32>,
    %c0_12 = arith.constant 0 : index
    %c0_13 = arith.constant 0 : index
    %c0_14 = arith.constant 0 : index
    %12 = vector.load %arg2[%c0_12, %c0_13, %c0_14] : memref<1x24x64xbf16, #tpu.memory_space<vmem>>, vector<1x24x64xbf16>
    %13 = vector.shape_cast %12 : vector<1x24x64xbf16> to vector<24x64xbf16>
    %c0_15 = arith.constant 0 : index
    %c0_16 = arith.constant 0 : index
    %14 = vector.load %arg6[%c0_15, %c0_16] : memref<64x128xbf16, #tpu.memory_space<vmem>>, vector<64x128xbf16>
    %cst_17 = arith.constant dense<0.000000e+00> : vector<24x128xf32>
    %15 = tpu.matmul %13, %14, %cst_17 {dimension_numbers = #tpu.dot_dimension_numbers<[1], [0], [0], [1], [0, 0, 1, 1], [], []>} : vector<24x64xbf16>, vector<64x128xbf16>, vector<24x128xf32> -> vector<24x128xf32>
    %c0_18 = arith.constant 0 : index
    %c0_19 = arith.constant 0 : index
    %16 = vector.load %arg7[%c0_18, %c0_19] : memref<64x24xbf16, #tpu.memory_space<vmem>>, vector<64x24xbf16>
    %17 = arith.truncf %15 : vector<24x128xf32> to vector<24x128xbf16>
    %cst_20 = arith.constant dense<0.000000e+00> : vector<64x128xf32>
    %18 = tpu.matmul %16, %17, %cst_20 {dimension_numbers = #tpu.dot_dimension_numbers<[1], [0], [0], [1], [0, 0, 1, 1], [], []>} : vector<64x24xbf16>, vector<24x128xbf16>, vector<64x128xf32> -> vector<64x128xf32>
    %c0_21 = arith.constant 0 : index
    %c0_22 = arith.constant 0 : index
    %19 = vector.load %arg8[%c0_21, %c0_22] : memref<64x128xf32, #tpu.memory_space<vmem>>, vector<64x128xf32>
    %20 = arith.addf %18, %19 : vector<64x128xf32>
    %c0_23 = arith.constant 0 : index
    %c0_24 = arith.constant 0 : index
    %c0_25 = arith.constant 0 : index
    %21 = vector.load %arg10[%c0_23, %c0_24, %c0_25] : memref<1x64x128xf32, #tpu.memory_space<vmem>>, vector<1x64x128xf32>
    %22 = vector.shape_cast %21 : vector<1x64x128xf32> to vector<64x128xf32>
    %23 = vector.shape_cast %20 : vector<64x128xf32> to vector<1x64x128xf32>
    tpu.vector_store %arg10[%c0_23, %c0_24, %c0_25], %23 {strides = array<i32>} : memref<1x64x128xf32, #tpu.memory_space<vmem>>, vector<1x64x128xf32>,
    return
  }
  func.func @transform_0(%arg0: i32) -> (i32, i32, i32) {
    %c0_i32 = arith.constant 0 : i32
    %c0_i32_0 = arith.constant 0 : i32
    %c0_i32_1 = arith.constant 0 : i32
    return %arg0, %c0_i32, %c0_i32_0 : i32, i32, i32
  }
  func.func @transform_1(%arg0: i32) -> (i32, i32, i32) {
    %c0_i32 = arith.constant 0 : i32
    %c0_i32_0 = arith.constant 0 : i32
    %c0_i32_1 = arith.constant 0 : i32
    return %arg0, %c0_i32, %c0_i32_0 : i32, i32, i32
  }
  func.func @transform_2(%arg0: i32) -> (i32, i32) {
    %c0_i32 = arith.constant 0 : i32
    %c0_i32_0 = arith.constant 0 : i32
    %c0_i32_1 = arith.constant 0 : i32
    return %c0_i32, %c0_i32_0 : i32, i32
  }
  func.func @transform_3(%arg0: i32) -> (i32, i32) {
    %c0_i32 = arith.constant 0 : i32
    %c0_i32_0 = arith.constant 0 : i32
    %c0_i32_1 = arith.constant 0 : i32
    return %c0_i32, %c0_i32_0 : i32, i32
  }
  func.func @transform_4(%arg0: i32) -> (i32, i32) {
    %c0_i32 = arith.constant 0 : i32
    %c0_i32_0 = arith.constant 0 : i32
    %c0_i32_1 = arith.constant 0 : i32
    return %c0_i32, %c0_i32_0 : i32, i32
  }
  func.func @transform_5(%arg0: i32) -> (i32, i32) {
    %c0_i32 = arith.constant 0 : i32
    %c0_i32_0 = arith.constant 0 : i32
    %c0_i32_1 = arith.constant 0 : i32
    return %c0_i32, %c0_i32_0 : i32, i32
  }
  func.func @transform_6(%arg0: i32) -> (i32, i32) {
    %c0_i32 = arith.constant 0 : i32
    %c0_i32_0 = arith.constant 0 : i32
    %c0_i32_1 = arith.constant 0 : i32
    return %c0_i32, %c0_i32_0 : i32, i32
  }
  func.func @transform_7(%arg0: i32) -> (i32, i32) {
    %c0_i32 = arith.constant 0 : i32
    %c0_i32_0 = arith.constant 0 : i32
    %c0_i32_1 = arith.constant 0 : i32
    return %c0_i32, %c0_i32_0 : i32, i32
  }
  func.func @transform_8(%arg0: i32) -> (i32, i32, i32) {
    %c0_i32 = arith.constant 0 : i32
    %c0_i32_0 = arith.constant 0 : i32
    %c0_i32_1 = arith.constant 0 : i32
    return %arg0, %c0_i32, %c0_i32_0 : i32, i32, i32
  }
  func.func @transform_9(%arg0: i32) -> (i32, i32, i32) {
    %c0_i32 = arith.constant 0 : i32
    %c0_i32_0 = arith.constant 0 : i32
    %c0_i32_1 = arith.constant 0 : i32
    return %arg0, %c0_i32, %c0_i32_0 : i32, i32, i32
  }
}

module attributes {stable_mosaic.version = 11 : i64} {
  func.func @_encoder_kernel(%arg0: i32, %arg1: i32, %arg2: memref<1x64x128xf32, #tpu.memory_space<vmem>>, %arg3: memref<1x64x128xf32, #tpu.memory_space<vmem>>, %arg4: memref<1x128x384xbf16, #tpu.memory_space<vmem>>, %arg5: memref<1x1x384xf32, #tpu.memory_space<vmem>>, %arg6: memref<1x128x128xbf16, #tpu.memory_space<vmem>>, %arg7: memref<1x1x128xf32, #tpu.memory_space<vmem>>, %arg8: memref<1x1x128xf32, #tpu.memory_space<vmem>>, %arg9: memref<1x1x128xf32, #tpu.memory_space<vmem>>, %arg10: memref<1x128x512xbf16, #tpu.memory_space<vmem>>, %arg11: memref<1x1x512xf32, #tpu.memory_space<vmem>>, %arg12: memref<1x512x128xbf16, #tpu.memory_space<vmem>>, %arg13: memref<1x1x128xf32, #tpu.memory_space<vmem>>, %arg14: memref<1x1x128xf32, #tpu.memory_space<vmem>>, %arg15: memref<1x1x128xf32, #tpu.memory_space<vmem>>, %arg16: memref<1x64x128xf32, #tpu.memory_space<vmem>>, %arg17: memref<64x128xf32, #tpu.memory_space<vmem>>) attributes {dimension_semantics = [#tpu.dimension_semantics<parallel>, #tpu.dimension_semantics<arbitrary>], iteration_bounds = array<i64: 2, 2>, scalar_prefetch = 0 : i64, scratch_operands = 1 : i64, tpu.core_type = #tpu.core_type<tc>, window_params = [{transform_indices = @transform_0, window_bounds = array<i64: 1, 64, 128>}, {transform_indices = @transform_1, window_bounds = array<i64: 1, 64, 128>}, {transform_indices = @transform_2, window_bounds = array<i64: 1, 128, 384>}, {transform_indices = @transform_3, window_bounds = array<i64: 1, 1, 384>}, {transform_indices = @transform_4, window_bounds = array<i64: 1, 128, 128>}, {transform_indices = @transform_5, window_bounds = array<i64: 1, 1, 128>}, {transform_indices = @transform_6, window_bounds = array<i64: 1, 1, 128>}, {transform_indices = @transform_7, window_bounds = array<i64: 1, 1, 128>}, {transform_indices = @transform_8, window_bounds = array<i64: 1, 128, 512>}, {transform_indices = @transform_9, window_bounds = array<i64: 1, 1, 512>}, {transform_indices = @transform_10, window_bounds = array<i64: 1, 512, 128>}, {transform_indices = @transform_11, window_bounds = array<i64: 1, 1, 128>}, {transform_indices = @transform_12, window_bounds = array<i64: 1, 1, 128>}, {transform_indices = @transform_13, window_bounds = array<i64: 1, 1, 128>}, {transform_indices = @transform_14, window_bounds = array<i64: 1, 64, 128>}]} {
    %c0_i32 = arith.constant 0 : i32
    %0 = arith.cmpi eq, %arg1, %c0_i32 : i32
    %1 = arith.extui %0 : i1 to i32
    %c0_i32_0 = arith.constant 0 : i32
    %2 = arith.cmpi ne, %1, %c0_i32_0 : i32
    scf.if %2 {
      %c0_107 = arith.constant 0 : index
      %c0_108 = arith.constant 0 : index
      %c0_109 = arith.constant 0 : index
      %254 = vector.load %arg2[%c0_107, %c0_108, %c0_109] : memref<1x64x128xf32, #tpu.memory_space<vmem>>, vector<1x64x128xf32>
      %c0_110 = arith.constant 0 : index
      %c0_111 = arith.constant 0 : index
      %c0_112 = arith.constant 0 : index
      %255 = vector.load %arg16[%c0_110, %c0_111, %c0_112] : memref<1x64x128xf32, #tpu.memory_space<vmem>>, vector<1x64x128xf32>
      tpu.vector_store %arg16[%c0_110, %c0_111, %c0_112], %254 {strides = array<i32>} : memref<1x64x128xf32, #tpu.memory_space<vmem>>, vector<1x64x128xf32>,
    } else {
    }
    %c0 = arith.constant 0 : index
    %c0_1 = arith.constant 0 : index
    %c0_2 = arith.constant 0 : index
    %3 = vector.load %arg16[%c0, %c0_1, %c0_2] : memref<1x64x128xf32, #tpu.memory_space<vmem>>, vector<1x64x128xf32>
    %4 = vector.shape_cast %3 : vector<1x64x128xf32> to vector<64x128xf32>
    %5 = arith.truncf %4 : vector<64x128xf32> to vector<64x128xbf16>
    %c0_3 = arith.constant 0 : index
    %c0_4 = arith.constant 0 : index
    %c0_5 = arith.constant 0 : index
    %6 = vector.load %arg4[%c0_3, %c0_4, %c0_5] : memref<1x128x384xbf16, #tpu.memory_space<vmem>>, vector<1x128x384xbf16>
    %7 = vector.shape_cast %6 : vector<1x128x384xbf16> to vector<128x384xbf16>
    %cst = arith.constant dense<0.000000e+00> : vector<64x384xf32>
    %8 = tpu.matmul %5, %7, %cst {dimension_numbers = #tpu.dot_dimension_numbers<[1], [0], [0], [1], [0, 0, 1, 1], [], []>} : vector<64x128xbf16>, vector<128x384xbf16>, vector<64x384xf32> -> vector<64x384xf32>
    %c0_6 = arith.constant 0 : index
    %c0_7 = arith.constant 0 : index
    %c0_8 = arith.constant 0 : index
    %9 = vector.load %arg5[%c0_6, %c0_7, %c0_8] : memref<1x1x384xf32, #tpu.memory_space<vmem>>, vector<1x1x384xf32>
    %10 = vector.shape_cast %9 : vector<1x1x384xf32> to vector<1x384xf32>
    %11 = vector.broadcast %10 : vector<1x384xf32> to vector<64x384xf32>
    %12 = arith.addf %8, %11 : vector<64x384xf32>
    %13 = vector.extract_strided_slice %12 {offsets = [0, 0], sizes = [64, 128], strides = [1, 1]} : vector<64x384xf32> to vector<64x128xf32>
    %14 = arith.truncf %13 : vector<64x128xf32> to vector<64x128xbf16>
    %15 = vector.extract_strided_slice %12 {offsets = [0, 128], sizes = [64, 128], strides = [1, 1]} : vector<64x384xf32> to vector<64x128xf32>
    %16 = arith.truncf %15 : vector<64x128xf32> to vector<64x128xbf16>
    %17 = vector.extract_strided_slice %12 {offsets = [0, 256], sizes = [64, 128], strides = [1, 1]} : vector<64x384xf32> to vector<64x128xf32>
    %18 = arith.truncf %17 : vector<64x128xf32> to vector<64x128xbf16>
    %19 = vector.extract_strided_slice %14 {offsets = [0, 0], sizes = [64, 16], strides = [1, 1]} : vector<64x128xbf16> to vector<64x16xbf16>
    %20 = vector.extract_strided_slice %16 {offsets = [0, 0], sizes = [64, 16], strides = [1, 1]} : vector<64x128xbf16> to vector<64x16xbf16>
    %21 = vector.extract_strided_slice %18 {offsets = [0, 0], sizes = [64, 16], strides = [1, 1]} : vector<64x128xbf16> to vector<64x16xbf16>
    %cst_9 = arith.constant dense<0.000000e+00> : vector<64x64xf32>
    %22 = tpu.matmul %19, %20, %cst_9 {dimension_numbers = #tpu.dot_dimension_numbers<[1], [1], [0], [0], [0, 0, 1, 0], [], []>} : vector<64x16xbf16>, vector<64x16xbf16>, vector<64x64xf32> -> vector<64x64xf32>
    %cst_10 = arith.constant 2.500000e-01 : f32
    %23 = vector.broadcast %cst_10 : f32 to vector<64x64xf32>
    %24 = arith.mulf %22, %23 : vector<64x64xf32>
    %cst_11 = arith.constant dense<0xFF800000> : vector<64xf32>
    %25 = vector.multi_reduction <maximumf>, %24, %cst_11 [1] : vector<64x64xf32> to vector<64xf32>
    %26 = vector.shape_cast %25 : vector<64xf32> to vector<64x1xf32>
    %27 = vector.broadcast %26 : vector<64x1xf32> to vector<64x64xf32>
    %28 = arith.subf %24, %27 : vector<64x64xf32>
    %29 = math.exp %28 : vector<64x64xf32>
    %cst_12 = arith.constant dense<0.000000e+00> : vector<64xf32>
    %30 = vector.multi_reduction <add>, %29, %cst_12 [1] : vector<64x64xf32> to vector<64xf32>
    %31 = vector.shape_cast %30 : vector<64xf32> to vector<64x1xf32>
    %32 = arith.truncf %29 : vector<64x64xf32> to vector<64x64xbf16>
    %cst_13 = arith.constant dense<0.000000e+00> : vector<64x16xf32>
    %33 = tpu.matmul %32, %21, %cst_13 {dimension_numbers = #tpu.dot_dimension_numbers<[1], [0], [0], [1], [0, 0, 1, 1], [], []>} : vector<64x64xbf16>, vector<64x16xbf16>, vector<64x16xf32> -> vector<64x16xf32>
    %34 = tpu.reciprocal %31 {approx = true} : vector<64x1xf32> -> vector<64x1xf32>
    %35 = vector.broadcast %34 : vector<64x1xf32> to vector<64x16xf32>
    %36 = arith.mulf %33, %35 : vector<64x16xf32>
    %c0_14 = arith.constant 0 : index
    %c0_15 = arith.constant 0 : index
    %37 = vector.load %arg17[%c0_14, %c0_15] : memref<64x128xf32, #tpu.memory_space<vmem>>, vector<64x16xf32>
    tpu.vector_store %arg17[%c0_14, %c0_15], %36 {strides = array<i32>} : memref<64x128xf32, #tpu.memory_space<vmem>>, vector<64x16xf32>,
    %38 = vector.extract_strided_slice %14 {offsets = [0, 16], sizes = [64, 16], strides = [1, 1]} : vector<64x128xbf16> to vector<64x16xbf16>
    %39 = vector.extract_strided_slice %16 {offsets = [0, 16], sizes = [64, 16], strides = [1, 1]} : vector<64x128xbf16> to vector<64x16xbf16>
    %40 = vector.extract_strided_slice %18 {offsets = [0, 16], sizes = [64, 16], strides = [1, 1]} : vector<64x128xbf16> to vector<64x16xbf16>
    %cst_16 = arith.constant dense<0.000000e+00> : vector<64x64xf32>
    %41 = tpu.matmul %38, %39, %cst_16 {dimension_numbers = #tpu.dot_dimension_numbers<[1], [1], [0], [0], [0, 0, 1, 0], [], []>} : vector<64x16xbf16>, vector<64x16xbf16>, vector<64x64xf32> -> vector<64x64xf32>
    %cst_17 = arith.constant 2.500000e-01 : f32
    %42 = vector.broadcast %cst_17 : f32 to vector<64x64xf32>
    %43 = arith.mulf %41, %42 : vector<64x64xf32>
    %cst_18 = arith.constant dense<0xFF800000> : vector<64xf32>
    %44 = vector.multi_reduction <maximumf>, %43, %cst_18 [1] : vector<64x64xf32> to vector<64xf32>
    %45 = vector.shape_cast %44 : vector<64xf32> to vector<64x1xf32>
    %46 = vector.broadcast %45 : vector<64x1xf32> to vector<64x64xf32>
    %47 = arith.subf %43, %46 : vector<64x64xf32>
    %48 = math.exp %47 : vector<64x64xf32>
    %cst_19 = arith.constant dense<0.000000e+00> : vector<64xf32>
    %49 = vector.multi_reduction <add>, %48, %cst_19 [1] : vector<64x64xf32> to vector<64xf32>
    %50 = vector.shape_cast %49 : vector<64xf32> to vector<64x1xf32>
    %51 = arith.truncf %48 : vector<64x64xf32> to vector<64x64xbf16>
    %cst_20 = arith.constant dense<0.000000e+00> : vector<64x16xf32>
    %52 = tpu.matmul %51, %40, %cst_20 {dimension_numbers = #tpu.dot_dimension_numbers<[1], [0], [0], [1], [0, 0, 1, 1], [], []>} : vector<64x64xbf16>, vector<64x16xbf16>, vector<64x16xf32> -> vector<64x16xf32>
    %53 = tpu.reciprocal %50 {approx = true} : vector<64x1xf32> -> vector<64x1xf32>
    %54 = vector.broadcast %53 : vector<64x1xf32> to vector<64x16xf32>
    %55 = arith.mulf %52, %54 : vector<64x16xf32>
    %c0_21 = arith.constant 0 : index
    %c16 = arith.constant 16 : index
    %56 = vector.load %arg17[%c0_21, %c16] : memref<64x128xf32, #tpu.memory_space<vmem>>, vector<64x16xf32>
    tpu.vector_store %arg17[%c0_21, %c16], %55 {strides = array<i32>} : memref<64x128xf32, #tpu.memory_space<vmem>>, vector<64x16xf32>,
    %57 = vector.extract_strided_slice %14 {offsets = [0, 32], sizes = [64, 16], strides = [1, 1]} : vector<64x128xbf16> to vector<64x16xbf16>
    %58 = vector.extract_strided_slice %16 {offsets = [0, 32], sizes = [64, 16], strides = [1, 1]} : vector<64x128xbf16> to vector<64x16xbf16>
    %59 = vector.extract_strided_slice %18 {offsets = [0, 32], sizes = [64, 16], strides = [1, 1]} : vector<64x128xbf16> to vector<64x16xbf16>
    %cst_22 = arith.constant dense<0.000000e+00> : vector<64x64xf32>
    %60 = tpu.matmul %57, %58, %cst_22 {dimension_numbers = #tpu.dot_dimension_numbers<[1], [1], [0], [0], [0, 0, 1, 0], [], []>} : vector<64x16xbf16>, vector<64x16xbf16>, vector<64x64xf32> -> vector<64x64xf32>
    %cst_23 = arith.constant 2.500000e-01 : f32
    %61 = vector.broadcast %cst_23 : f32 to vector<64x64xf32>
    %62 = arith.mulf %60, %61 : vector<64x64xf32>
    %cst_24 = arith.constant dense<0xFF800000> : vector<64xf32>
    %63 = vector.multi_reduction <maximumf>, %62, %cst_24 [1] : vector<64x64xf32> to vector<64xf32>
    %64 = vector.shape_cast %63 : vector<64xf32> to vector<64x1xf32>
    %65 = vector.broadcast %64 : vector<64x1xf32> to vector<64x64xf32>
    %66 = arith.subf %62, %65 : vector<64x64xf32>
    %67 = math.exp %66 : vector<64x64xf32>
    %cst_25 = arith.constant dense<0.000000e+00> : vector<64xf32>
    %68 = vector.multi_reduction <add>, %67, %cst_25 [1] : vector<64x64xf32> to vector<64xf32>
    %69 = vector.shape_cast %68 : vector<64xf32> to vector<64x1xf32>
    %70 = arith.truncf %67 : vector<64x64xf32> to vector<64x64xbf16>
    %cst_26 = arith.constant dense<0.000000e+00> : vector<64x16xf32>
    %71 = tpu.matmul %70, %59, %cst_26 {dimension_numbers = #tpu.dot_dimension_numbers<[1], [0], [0], [1], [0, 0, 1, 1], [], []>} : vector<64x64xbf16>, vector<64x16xbf16>, vector<64x16xf32> -> vector<64x16xf32>
    %72 = tpu.reciprocal %69 {approx = true} : vector<64x1xf32> -> vector<64x1xf32>
    %73 = vector.broadcast %72 : vector<64x1xf32> to vector<64x16xf32>
    %74 = arith.mulf %71, %73 : vector<64x16xf32>
    %c0_27 = arith.constant 0 : index
    %c32 = arith.constant 32 : index
    %75 = vector.load %arg17[%c0_27, %c32] : memref<64x128xf32, #tpu.memory_space<vmem>>, vector<64x16xf32>
    tpu.vector_store %arg17[%c0_27, %c32], %74 {strides = array<i32>} : memref<64x128xf32, #tpu.memory_space<vmem>>, vector<64x16xf32>,
    %76 = vector.extract_strided_slice %14 {offsets = [0, 48], sizes = [64, 16], strides = [1, 1]} : vector<64x128xbf16> to vector<64x16xbf16>
    %77 = vector.extract_strided_slice %16 {offsets = [0, 48], sizes = [64, 16], strides = [1, 1]} : vector<64x128xbf16> to vector<64x16xbf16>
    %78 = vector.extract_strided_slice %18 {offsets = [0, 48], sizes = [64, 16], strides = [1, 1]} : vector<64x128xbf16> to vector<64x16xbf16>
    %cst_28 = arith.constant dense<0.000000e+00> : vector<64x64xf32>
    %79 = tpu.matmul %76, %77, %cst_28 {dimension_numbers = #tpu.dot_dimension_numbers<[1], [1], [0], [0], [0, 0, 1, 0], [], []>} : vector<64x16xbf16>, vector<64x16xbf16>, vector<64x64xf32> -> vector<64x64xf32>
    %cst_29 = arith.constant 2.500000e-01 : f32
    %80 = vector.broadcast %cst_29 : f32 to vector<64x64xf32>
    %81 = arith.mulf %79, %80 : vector<64x64xf32>
    %cst_30 = arith.constant dense<0xFF800000> : vector<64xf32>
    %82 = vector.multi_reduction <maximumf>, %81, %cst_30 [1] : vector<64x64xf32> to vector<64xf32>
    %83 = vector.shape_cast %82 : vector<64xf32> to vector<64x1xf32>
    %84 = vector.broadcast %83 : vector<64x1xf32> to vector<64x64xf32>
    %85 = arith.subf %81, %84 : vector<64x64xf32>
    %86 = math.exp %85 : vector<64x64xf32>
    %cst_31 = arith.constant dense<0.000000e+00> : vector<64xf32>
    %87 = vector.multi_reduction <add>, %86, %cst_31 [1] : vector<64x64xf32> to vector<64xf32>
    %88 = vector.shape_cast %87 : vector<64xf32> to vector<64x1xf32>
    %89 = arith.truncf %86 : vector<64x64xf32> to vector<64x64xbf16>
    %cst_32 = arith.constant dense<0.000000e+00> : vector<64x16xf32>
    %90 = tpu.matmul %89, %78, %cst_32 {dimension_numbers = #tpu.dot_dimension_numbers<[1], [0], [0], [1], [0, 0, 1, 1], [], []>} : vector<64x64xbf16>, vector<64x16xbf16>, vector<64x16xf32> -> vector<64x16xf32>
    %91 = tpu.reciprocal %88 {approx = true} : vector<64x1xf32> -> vector<64x1xf32>
    %92 = vector.broadcast %91 : vector<64x1xf32> to vector<64x16xf32>
    %93 = arith.mulf %90, %92 : vector<64x16xf32>
    %c0_33 = arith.constant 0 : index
    %c48 = arith.constant 48 : index
    %94 = vector.load %arg17[%c0_33, %c48] : memref<64x128xf32, #tpu.memory_space<vmem>>, vector<64x16xf32>
    tpu.vector_store %arg17[%c0_33, %c48], %93 {strides = array<i32>} : memref<64x128xf32, #tpu.memory_space<vmem>>, vector<64x16xf32>,
    %95 = vector.extract_strided_slice %14 {offsets = [0, 64], sizes = [64, 16], strides = [1, 1]} : vector<64x128xbf16> to vector<64x16xbf16>
    %96 = vector.extract_strided_slice %16 {offsets = [0, 64], sizes = [64, 16], strides = [1, 1]} : vector<64x128xbf16> to vector<64x16xbf16>
    %97 = vector.extract_strided_slice %18 {offsets = [0, 64], sizes = [64, 16], strides = [1, 1]} : vector<64x128xbf16> to vector<64x16xbf16>
    %cst_34 = arith.constant dense<0.000000e+00> : vector<64x64xf32>
    %98 = tpu.matmul %95, %96, %cst_34 {dimension_numbers = #tpu.dot_dimension_numbers<[1], [1], [0], [0], [0, 0, 1, 0], [], []>} : vector<64x16xbf16>, vector<64x16xbf16>, vector<64x64xf32> -> vector<64x64xf32>
    %cst_35 = arith.constant 2.500000e-01 : f32
    %99 = vector.broadcast %cst_35 : f32 to vector<64x64xf32>
    %100 = arith.mulf %98, %99 : vector<64x64xf32>
    %cst_36 = arith.constant dense<0xFF800000> : vector<64xf32>
    %101 = vector.multi_reduction <maximumf>, %100, %cst_36 [1] : vector<64x64xf32> to vector<64xf32>
    %102 = vector.shape_cast %101 : vector<64xf32> to vector<64x1xf32>
    %103 = vector.broadcast %102 : vector<64x1xf32> to vector<64x64xf32>
    %104 = arith.subf %100, %103 : vector<64x64xf32>
    %105 = math.exp %104 : vector<64x64xf32>
    %cst_37 = arith.constant dense<0.000000e+00> : vector<64xf32>
    %106 = vector.multi_reduction <add>, %105, %cst_37 [1] : vector<64x64xf32> to vector<64xf32>
    %107 = vector.shape_cast %106 : vector<64xf32> to vector<64x1xf32>
    %108 = arith.truncf %105 : vector<64x64xf32> to vector<64x64xbf16>
    %cst_38 = arith.constant dense<0.000000e+00> : vector<64x16xf32>
    %109 = tpu.matmul %108, %97, %cst_38 {dimension_numbers = #tpu.dot_dimension_numbers<[1], [0], [0], [1], [0, 0, 1, 1], [], []>} : vector<64x64xbf16>, vector<64x16xbf16>, vector<64x16xf32> -> vector<64x16xf32>
    %110 = tpu.reciprocal %107 {approx = true} : vector<64x1xf32> -> vector<64x1xf32>
    %111 = vector.broadcast %110 : vector<64x1xf32> to vector<64x16xf32>
    %112 = arith.mulf %109, %111 : vector<64x16xf32>
    %c0_39 = arith.constant 0 : index
    %c64 = arith.constant 64 : index
    %113 = vector.load %arg17[%c0_39, %c64] : memref<64x128xf32, #tpu.memory_space<vmem>>, vector<64x16xf32>
    tpu.vector_store %arg17[%c0_39, %c64], %112 {strides = array<i32>} : memref<64x128xf32, #tpu.memory_space<vmem>>, vector<64x16xf32>,
    %114 = vector.extract_strided_slice %14 {offsets = [0, 80], sizes = [64, 16], strides = [1, 1]} : vector<64x128xbf16> to vector<64x16xbf16>
    %115 = vector.extract_strided_slice %16 {offsets = [0, 80], sizes = [64, 16], strides = [1, 1]} : vector<64x128xbf16> to vector<64x16xbf16>
    %116 = vector.extract_strided_slice %18 {offsets = [0, 80], sizes = [64, 16], strides = [1, 1]} : vector<64x128xbf16> to vector<64x16xbf16>
    %cst_40 = arith.constant dense<0.000000e+00> : vector<64x64xf32>
    %117 = tpu.matmul %114, %115, %cst_40 {dimension_numbers = #tpu.dot_dimension_numbers<[1], [1], [0], [0], [0, 0, 1, 0], [], []>} : vector<64x16xbf16>, vector<64x16xbf16>, vector<64x64xf32> -> vector<64x64xf32>
    %cst_41 = arith.constant 2.500000e-01 : f32
    %118 = vector.broadcast %cst_41 : f32 to vector<64x64xf32>
    %119 = arith.mulf %117, %118 : vector<64x64xf32>
    %cst_42 = arith.constant dense<0xFF800000> : vector<64xf32>
    %120 = vector.multi_reduction <maximumf>, %119, %cst_42 [1] : vector<64x64xf32> to vector<64xf32>
    %121 = vector.shape_cast %120 : vector<64xf32> to vector<64x1xf32>
    %122 = vector.broadcast %121 : vector<64x1xf32> to vector<64x64xf32>
    %123 = arith.subf %119, %122 : vector<64x64xf32>
    %124 = math.exp %123 : vector<64x64xf32>
    %cst_43 = arith.constant dense<0.000000e+00> : vector<64xf32>
    %125 = vector.multi_reduction <add>, %124, %cst_43 [1] : vector<64x64xf32> to vector<64xf32>
    %126 = vector.shape_cast %125 : vector<64xf32> to vector<64x1xf32>
    %127 = arith.truncf %124 : vector<64x64xf32> to vector<64x64xbf16>
    %cst_44 = arith.constant dense<0.000000e+00> : vector<64x16xf32>
    %128 = tpu.matmul %127, %116, %cst_44 {dimension_numbers = #tpu.dot_dimension_numbers<[1], [0], [0], [1], [0, 0, 1, 1], [], []>} : vector<64x64xbf16>, vector<64x16xbf16>, vector<64x16xf32> -> vector<64x16xf32>
    %129 = tpu.reciprocal %126 {approx = true} : vector<64x1xf32> -> vector<64x1xf32>
    %130 = vector.broadcast %129 : vector<64x1xf32> to vector<64x16xf32>
    %131 = arith.mulf %128, %130 : vector<64x16xf32>
    %c0_45 = arith.constant 0 : index
    %c80 = arith.constant 80 : index
    %132 = vector.load %arg17[%c0_45, %c80] : memref<64x128xf32, #tpu.memory_space<vmem>>, vector<64x16xf32>
    tpu.vector_store %arg17[%c0_45, %c80], %131 {strides = array<i32>} : memref<64x128xf32, #tpu.memory_space<vmem>>, vector<64x16xf32>,
    %133 = vector.extract_strided_slice %14 {offsets = [0, 96], sizes = [64, 16], strides = [1, 1]} : vector<64x128xbf16> to vector<64x16xbf16>
    %134 = vector.extract_strided_slice %16 {offsets = [0, 96], sizes = [64, 16], strides = [1, 1]} : vector<64x128xbf16> to vector<64x16xbf16>
    %135 = vector.extract_strided_slice %18 {offsets = [0, 96], sizes = [64, 16], strides = [1, 1]} : vector<64x128xbf16> to vector<64x16xbf16>
    %cst_46 = arith.constant dense<0.000000e+00> : vector<64x64xf32>
    %136 = tpu.matmul %133, %134, %cst_46 {dimension_numbers = #tpu.dot_dimension_numbers<[1], [1], [0], [0], [0, 0, 1, 0], [], []>} : vector<64x16xbf16>, vector<64x16xbf16>, vector<64x64xf32> -> vector<64x64xf32>
    %cst_47 = arith.constant 2.500000e-01 : f32
    %137 = vector.broadcast %cst_47 : f32 to vector<64x64xf32>
    %138 = arith.mulf %136, %137 : vector<64x64xf32>
    %cst_48 = arith.constant dense<0xFF800000> : vector<64xf32>
    %139 = vector.multi_reduction <maximumf>, %138, %cst_48 [1] : vector<64x64xf32> to vector<64xf32>
    %140 = vector.shape_cast %139 : vector<64xf32> to vector<64x1xf32>
    %141 = vector.broadcast %140 : vector<64x1xf32> to vector<64x64xf32>
    %142 = arith.subf %138, %141 : vector<64x64xf32>
    %143 = math.exp %142 : vector<64x64xf32>
    %cst_49 = arith.constant dense<0.000000e+00> : vector<64xf32>
    %144 = vector.multi_reduction <add>, %143, %cst_49 [1] : vector<64x64xf32> to vector<64xf32>
    %145 = vector.shape_cast %144 : vector<64xf32> to vector<64x1xf32>
    %146 = arith.truncf %143 : vector<64x64xf32> to vector<64x64xbf16>
    %cst_50 = arith.constant dense<0.000000e+00> : vector<64x16xf32>
    %147 = tpu.matmul %146, %135, %cst_50 {dimension_numbers = #tpu.dot_dimension_numbers<[1], [0], [0], [1], [0, 0, 1, 1], [], []>} : vector<64x64xbf16>, vector<64x16xbf16>, vector<64x16xf32> -> vector<64x16xf32>
    %148 = tpu.reciprocal %145 {approx = true} : vector<64x1xf32> -> vector<64x1xf32>
    %149 = vector.broadcast %148 : vector<64x1xf32> to vector<64x16xf32>
    %150 = arith.mulf %147, %149 : vector<64x16xf32>
    %c0_51 = arith.constant 0 : index
    %c96 = arith.constant 96 : index
    %151 = vector.load %arg17[%c0_51, %c96] : memref<64x128xf32, #tpu.memory_space<vmem>>, vector<64x16xf32>
    tpu.vector_store %arg17[%c0_51, %c96], %150 {strides = array<i32>} : memref<64x128xf32, #tpu.memory_space<vmem>>, vector<64x16xf32>,
    %152 = vector.extract_strided_slice %14 {offsets = [0, 112], sizes = [64, 16], strides = [1, 1]} : vector<64x128xbf16> to vector<64x16xbf16>
    %153 = vector.extract_strided_slice %16 {offsets = [0, 112], sizes = [64, 16], strides = [1, 1]} : vector<64x128xbf16> to vector<64x16xbf16>
    %154 = vector.extract_strided_slice %18 {offsets = [0, 112], sizes = [64, 16], strides = [1, 1]} : vector<64x128xbf16> to vector<64x16xbf16>
    %cst_52 = arith.constant dense<0.000000e+00> : vector<64x64xf32>
    %155 = tpu.matmul %152, %153, %cst_52 {dimension_numbers = #tpu.dot_dimension_numbers<[1], [1], [0], [0], [0, 0, 1, 0], [], []>} : vector<64x16xbf16>, vector<64x16xbf16>, vector<64x64xf32> -> vector<64x64xf32>
    %cst_53 = arith.constant 2.500000e-01 : f32
    %156 = vector.broadcast %cst_53 : f32 to vector<64x64xf32>
    %157 = arith.mulf %155, %156 : vector<64x64xf32>
    %cst_54 = arith.constant dense<0xFF800000> : vector<64xf32>
    %158 = vector.multi_reduction <maximumf>, %157, %cst_54 [1] : vector<64x64xf32> to vector<64xf32>
    %159 = vector.shape_cast %158 : vector<64xf32> to vector<64x1xf32>
    %160 = vector.broadcast %159 : vector<64x1xf32> to vector<64x64xf32>
    %161 = arith.subf %157, %160 : vector<64x64xf32>
    %162 = math.exp %161 : vector<64x64xf32>
    %cst_55 = arith.constant dense<0.000000e+00> : vector<64xf32>
    %163 = vector.multi_reduction <add>, %162, %cst_55 [1] : vector<64x64xf32> to vector<64xf32>
    %164 = vector.shape_cast %163 : vector<64xf32> to vector<64x1xf32>
    %165 = arith.truncf %162 : vector<64x64xf32> to vector<64x64xbf16>
    %cst_56 = arith.constant dense<0.000000e+00> : vector<64x16xf32>
    %166 = tpu.matmul %165, %154, %cst_56 {dimension_numbers = #tpu.dot_dimension_numbers<[1], [0], [0], [1], [0, 0, 1, 1], [], []>} : vector<64x64xbf16>, vector<64x16xbf16>, vector<64x16xf32> -> vector<64x16xf32>
    %167 = tpu.reciprocal %164 {approx = true} : vector<64x1xf32> -> vector<64x1xf32>
    %168 = vector.broadcast %167 : vector<64x1xf32> to vector<64x16xf32>
    %169 = arith.mulf %166, %168 : vector<64x16xf32>
    %c0_57 = arith.constant 0 : index
    %c112 = arith.constant 112 : index
    %170 = vector.load %arg17[%c0_57, %c112] : memref<64x128xf32, #tpu.memory_space<vmem>>, vector<64x16xf32>
    tpu.vector_store %arg17[%c0_57, %c112], %169 {strides = array<i32>} : memref<64x128xf32, #tpu.memory_space<vmem>>, vector<64x16xf32>,
    %c0_58 = arith.constant 0 : index
    %c0_59 = arith.constant 0 : index
    %171 = vector.load %arg17[%c0_58, %c0_59] : memref<64x128xf32, #tpu.memory_space<vmem>>, vector<64x128xf32>
    %172 = arith.truncf %171 : vector<64x128xf32> to vector<64x128xbf16>
    %c0_60 = arith.constant 0 : index
    %c0_61 = arith.constant 0 : index
    %c0_62 = arith.constant 0 : index
    %173 = vector.load %arg6[%c0_60, %c0_61, %c0_62] : memref<1x128x128xbf16, #tpu.memory_space<vmem>>, vector<1x128x128xbf16>
    %174 = vector.shape_cast %173 : vector<1x128x128xbf16> to vector<128x128xbf16>
    %cst_63 = arith.constant dense<0.000000e+00> : vector<64x128xf32>
    %175 = tpu.matmul %172, %174, %cst_63 {dimension_numbers = #tpu.dot_dimension_numbers<[1], [0], [0], [1], [0, 0, 1, 1], [], []>} : vector<64x128xbf16>, vector<128x128xbf16>, vector<64x128xf32> -> vector<64x128xf32>
    %c0_64 = arith.constant 0 : index
    %c0_65 = arith.constant 0 : index
    %c0_66 = arith.constant 0 : index
    %176 = vector.load %arg7[%c0_64, %c0_65, %c0_66] : memref<1x1x128xf32, #tpu.memory_space<vmem>>, vector<1x1x128xf32>
    %177 = vector.shape_cast %176 : vector<1x1x128xf32> to vector<1x128xf32>
    %178 = vector.broadcast %177 : vector<1x128xf32> to vector<64x128xf32>
    %179 = arith.addf %175, %178 : vector<64x128xf32>
    %180 = arith.addf %179, %4 : vector<64x128xf32>
    %c0_67 = arith.constant 0 : index
    %c0_68 = arith.constant 0 : index
    %c0_69 = arith.constant 0 : index
    %181 = vector.load %arg8[%c0_67, %c0_68, %c0_69] : memref<1x1x128xf32, #tpu.memory_space<vmem>>, vector<1x1x128xf32>
    %182 = vector.shape_cast %181 : vector<1x1x128xf32> to vector<1x128xf32>
    %c0_70 = arith.constant 0 : index
    %c0_71 = arith.constant 0 : index
    %c0_72 = arith.constant 0 : index
    %183 = vector.load %arg9[%c0_70, %c0_71, %c0_72] : memref<1x1x128xf32, #tpu.memory_space<vmem>>, vector<1x1x128xf32>
    %184 = vector.shape_cast %183 : vector<1x1x128xf32> to vector<1x128xf32>
    %cst_73 = arith.constant dense<0.000000e+00> : vector<64xf32>
    %185 = vector.multi_reduction <add>, %180, %cst_73 [1] : vector<64x128xf32> to vector<64xf32>
    %186 = vector.shape_cast %185 : vector<64xf32> to vector<64x1xf32>
    %cst_74 = arith.constant 1.280000e+02 : f32
    %187 = vector.broadcast %cst_74 : f32 to vector<64x1xf32>
    %188 = arith.divf %186, %187 : vector<64x1xf32>
    %189 = vector.broadcast %188 : vector<64x1xf32> to vector<64x128xf32>
    %190 = arith.subf %180, %189 : vector<64x128xf32>
    %191 = arith.mulf %190, %190 : vector<64x128xf32>
    %cst_75 = arith.constant dense<0.000000e+00> : vector<64xf32>
    %192 = vector.multi_reduction <add>, %191, %cst_75 [1] : vector<64x128xf32> to vector<64xf32>
    %193 = vector.shape_cast %192 : vector<64xf32> to vector<64x1xf32>
    %cst_76 = arith.constant 1.280000e+02 : f32
    %194 = vector.broadcast %cst_76 : f32 to vector<64x1xf32>
    %195 = arith.divf %193, %194 : vector<64x1xf32>
    %cst_77 = arith.constant 9.99999974E-6 : f32
    %196 = vector.broadcast %cst_77 : f32 to vector<64x1xf32>
    %197 = arith.addf %195, %196 : vector<64x1xf32>
    %198 = math.rsqrt %197 : vector<64x1xf32>
    %199 = vector.broadcast %198 : vector<64x1xf32> to vector<64x128xf32>
    %200 = arith.mulf %190, %199 : vector<64x128xf32>
    %201 = vector.broadcast %182 : vector<1x128xf32> to vector<64x128xf32>
    %202 = arith.mulf %200, %201 : vector<64x128xf32>
    %203 = vector.broadcast %184 : vector<1x128xf32> to vector<64x128xf32>
    %204 = arith.addf %202, %203 : vector<64x128xf32>
    %205 = arith.truncf %204 : vector<64x128xf32> to vector<64x128xbf16>
    %c0_78 = arith.constant 0 : index
    %c0_79 = arith.constant 0 : index
    %c0_80 = arith.constant 0 : index
    %206 = vector.load %arg10[%c0_78, %c0_79, %c0_80] : memref<1x128x512xbf16, #tpu.memory_space<vmem>>, vector<1x128x512xbf16>
    %207 = vector.shape_cast %206 : vector<1x128x512xbf16> to vector<128x512xbf16>
    %cst_81 = arith.constant dense<0.000000e+00> : vector<64x512xf32>
    %208 = tpu.matmul %205, %207, %cst_81 {dimension_numbers = #tpu.dot_dimension_numbers<[1], [0], [0], [1], [0, 0, 1, 1], [], []>} : vector<64x128xbf16>, vector<128x512xbf16>, vector<64x512xf32> -> vector<64x512xf32>
    %c0_82 = arith.constant 0 : index
    %c0_83 = arith.constant 0 : index
    %c0_84 = arith.constant 0 : index
    %209 = vector.load %arg11[%c0_82, %c0_83, %c0_84] : memref<1x1x512xf32, #tpu.memory_space<vmem>>, vector<1x1x512xf32>
    %210 = vector.shape_cast %209 : vector<1x1x512xf32> to vector<1x512xf32>
    %211 = vector.broadcast %210 : vector<1x512xf32> to vector<64x512xf32>
    %212 = arith.addf %208, %211 : vector<64x512xf32>
    %cst_85 = arith.constant 0.000000e+00 : f32
    %213 = vector.broadcast %cst_85 : f32 to vector<64x512xf32>
    %214 = arith.maximumf %212, %213 : vector<64x512xf32>
    %215 = arith.truncf %214 : vector<64x512xf32> to vector<64x512xbf16>
    %c0_86 = arith.constant 0 : index
    %c0_87 = arith.constant 0 : index
    %c0_88 = arith.constant 0 : index
    %216 = vector.load %arg12[%c0_86, %c0_87, %c0_88] : memref<1x512x128xbf16, #tpu.memory_space<vmem>>, vector<1x512x128xbf16>
    %217 = vector.shape_cast %216 : vector<1x512x128xbf16> to vector<512x128xbf16>
    %cst_89 = arith.constant dense<0.000000e+00> : vector<64x128xf32>
    %218 = tpu.matmul %215, %217, %cst_89 {dimension_numbers = #tpu.dot_dimension_numbers<[1], [0], [0], [1], [0, 0, 1, 1], [], []>} : vector<64x512xbf16>, vector<512x128xbf16>, vector<64x128xf32> -> vector<64x128xf32>
    %c0_90 = arith.constant 0 : index
    %c0_91 = arith.constant 0 : index
    %c0_92 = arith.constant 0 : index
    %219 = vector.load %arg13[%c0_90, %c0_91, %c0_92] : memref<1x1x128xf32, #tpu.memory_space<vmem>>, vector<1x1x128xf32>
    %220 = vector.shape_cast %219 : vector<1x1x128xf32> to vector<1x128xf32>
    %221 = vector.broadcast %220 : vector<1x128xf32> to vector<64x128xf32>
    %222 = arith.addf %218, %221 : vector<64x128xf32>
    %223 = arith.addf %222, %204 : vector<64x128xf32>
    %c0_93 = arith.constant 0 : index
    %c0_94 = arith.constant 0 : index
    %c0_95 = arith.constant 0 : index
    %224 = vector.load %arg14[%c0_93, %c0_94, %c0_95] : memref<1x1x128xf32, #tpu.memory_space<vmem>>, vector<1x1x128xf32>
    %225 = vector.shape_cast %224 : vector<1x1x128xf32> to vector<1x128xf32>
    %c0_96 = arith.constant 0 : index
    %c0_97 = arith.constant 0 : index
    %c0_98 = arith.constant 0 : index
    %226 = vector.load %arg15[%c0_96, %c0_97, %c0_98] : memref<1x1x128xf32, #tpu.memory_space<vmem>>, vector<1x1x128xf32>
    %227 = vector.shape_cast %226 : vector<1x1x128xf32> to vector<1x128xf32>
    %cst_99 = arith.constant dense<0.000000e+00> : vector<64xf32>
    %228 = vector.multi_reduction <add>, %223, %cst_99 [1] : vector<64x128xf32> to vector<64xf32>
    %229 = vector.shape_cast %228 : vector<64xf32> to vector<64x1xf32>
    %cst_100 = arith.constant 1.280000e+02 : f32
    %230 = vector.broadcast %cst_100 : f32 to vector<64x1xf32>
    %231 = arith.divf %229, %230 : vector<64x1xf32>
    %232 = vector.broadcast %231 : vector<64x1xf32> to vector<64x128xf32>
    %233 = arith.subf %223, %232 : vector<64x128xf32>
    %234 = arith.mulf %233, %233 : vector<64x128xf32>
    %cst_101 = arith.constant dense<0.000000e+00> : vector<64xf32>
    %235 = vector.multi_reduction <add>, %234, %cst_101 [1] : vector<64x128xf32> to vector<64xf32>
    %236 = vector.shape_cast %235 : vector<64xf32> to vector<64x1xf32>
    %cst_102 = arith.constant 1.280000e+02 : f32
    %237 = vector.broadcast %cst_102 : f32 to vector<64x1xf32>
    %238 = arith.divf %236, %237 : vector<64x1xf32>
    %cst_103 = arith.constant 9.99999974E-6 : f32
    %239 = vector.broadcast %cst_103 : f32 to vector<64x1xf32>
    %240 = arith.addf %238, %239 : vector<64x1xf32>
    %241 = math.rsqrt %240 : vector<64x1xf32>
    %242 = vector.broadcast %241 : vector<64x1xf32> to vector<64x128xf32>
    %243 = arith.mulf %233, %242 : vector<64x128xf32>
    %244 = vector.broadcast %225 : vector<1x128xf32> to vector<64x128xf32>
    %245 = arith.mulf %243, %244 : vector<64x128xf32>
    %246 = vector.broadcast %227 : vector<1x128xf32> to vector<64x128xf32>
    %247 = arith.addf %245, %246 : vector<64x128xf32>
    %c1_i32 = arith.constant 1 : i32
    %248 = arith.cmpi ne, %arg1, %c1_i32 : i32
    %249 = arith.extui %248 : i1 to i32
    %c0_i32_104 = arith.constant 0 : i32
    %250 = arith.cmpi ne, %249, %c0_i32_104 : i32
    scf.if %250 {
      %c0_107 = arith.constant 0 : index
      %c0_108 = arith.constant 0 : index
      %c0_109 = arith.constant 0 : index
      %254 = vector.load %arg16[%c0_107, %c0_108, %c0_109] : memref<1x64x128xf32, #tpu.memory_space<vmem>>, vector<1x64x128xf32>
      %255 = vector.shape_cast %254 : vector<1x64x128xf32> to vector<64x128xf32>
      %256 = vector.shape_cast %247 : vector<64x128xf32> to vector<1x64x128xf32>
      tpu.vector_store %arg16[%c0_107, %c0_108, %c0_109], %256 {strides = array<i32>} : memref<1x64x128xf32, #tpu.memory_space<vmem>>, vector<1x64x128xf32>,
    } else {
    }
    %c1_i32_105 = arith.constant 1 : i32
    %251 = arith.cmpi eq, %arg1, %c1_i32_105 : i32
    %252 = arith.extui %251 : i1 to i32
    %c0_i32_106 = arith.constant 0 : i32
    %253 = arith.cmpi ne, %252, %c0_i32_106 : i32
    scf.if %253 {
      %c0_107 = arith.constant 0 : index
      %c0_108 = arith.constant 0 : index
      %c0_109 = arith.constant 0 : index
      %254 = vector.load %arg3[%c0_107, %c0_108, %c0_109] : memref<1x64x128xf32, #tpu.memory_space<vmem>>, vector<1x64x128xf32>
      %255 = vector.shape_cast %254 : vector<1x64x128xf32> to vector<64x128xf32>
      %256 = arith.addf %247, %255 : vector<64x128xf32>
      %c0_110 = arith.constant 0 : index
      %c0_111 = arith.constant 0 : index
      %c0_112 = arith.constant 0 : index
      %257 = vector.load %arg16[%c0_110, %c0_111, %c0_112] : memref<1x64x128xf32, #tpu.memory_space<vmem>>, vector<1x64x128xf32>
      %258 = vector.shape_cast %257 : vector<1x64x128xf32> to vector<64x128xf32>
      %259 = vector.shape_cast %256 : vector<64x128xf32> to vector<1x64x128xf32>
      tpu.vector_store %arg16[%c0_110, %c0_111, %c0_112], %259 {strides = array<i32>} : memref<1x64x128xf32, #tpu.memory_space<vmem>>, vector<1x64x128xf32>,
    } else {
    }
    return
  }
  func.func @transform_0(%arg0: i32, %arg1: i32) -> (i32, i32, i32) {
    %c0_i32 = arith.constant 0 : i32
    %c0_i32_0 = arith.constant 0 : i32
    %c0_i32_1 = arith.constant 0 : i32
    return %arg0, %c0_i32, %c0_i32_0 : i32, i32, i32
  }
  func.func @transform_1(%arg0: i32, %arg1: i32) -> (i32, i32, i32) {
    %c0_i32 = arith.constant 0 : i32
    %c0_i32_0 = arith.constant 0 : i32
    %c0_i32_1 = arith.constant 0 : i32
    return %arg0, %c0_i32, %c0_i32_0 : i32, i32, i32
  }
  func.func @transform_2(%arg0: i32, %arg1: i32) -> (i32, i32, i32) {
    %c0_i32 = arith.constant 0 : i32
    %c0_i32_0 = arith.constant 0 : i32
    %c0_i32_1 = arith.constant 0 : i32
    return %arg1, %c0_i32, %c0_i32_0 : i32, i32, i32
  }
  func.func @transform_3(%arg0: i32, %arg1: i32) -> (i32, i32, i32) {
    %c0_i32 = arith.constant 0 : i32
    %c0_i32_0 = arith.constant 0 : i32
    %c0_i32_1 = arith.constant 0 : i32
    return %arg1, %c0_i32, %c0_i32_0 : i32, i32, i32
  }
  func.func @transform_4(%arg0: i32, %arg1: i32) -> (i32, i32, i32) {
    %c0_i32 = arith.constant 0 : i32
    %c0_i32_0 = arith.constant 0 : i32
    %c0_i32_1 = arith.constant 0 : i32
    return %arg1, %c0_i32, %c0_i32_0 : i32, i32, i32
  }
  func.func @transform_5(%arg0: i32, %arg1: i32) -> (i32, i32, i32) {
    %c0_i32 = arith.constant 0 : i32
    %c0_i32_0 = arith.constant 0 : i32
    %c0_i32_1 = arith.constant 0 : i32
    return %arg1, %c0_i32, %c0_i32_0 : i32, i32, i32
  }
  func.func @transform_6(%arg0: i32, %arg1: i32) -> (i32, i32, i32) {
    %c0_i32 = arith.constant 0 : i32
    %c0_i32_0 = arith.constant 0 : i32
    %c0_i32_1 = arith.constant 0 : i32
    return %arg1, %c0_i32, %c0_i32_0 : i32, i32, i32
  }
  func.func @transform_7(%arg0: i32, %arg1: i32) -> (i32, i32, i32) {
    %c0_i32 = arith.constant 0 : i32
    %c0_i32_0 = arith.constant 0 : i32
    %c0_i32_1 = arith.constant 0 : i32
    return %arg1, %c0_i32, %c0_i32_0 : i32, i32, i32
  }
  func.func @transform_8(%arg0: i32, %arg1: i32) -> (i32, i32, i32) {
    %c0_i32 = arith.constant 0 : i32
    %c0_i32_0 = arith.constant 0 : i32
    %c0_i32_1 = arith.constant 0 : i32
    return %arg1, %c0_i32, %c0_i32_0 : i32, i32, i32
  }
  func.func @transform_9(%arg0: i32, %arg1: i32) -> (i32, i32, i32) {
    %c0_i32 = arith.constant 0 : i32
    %c0_i32_0 = arith.constant 0 : i32
    %c0_i32_1 = arith.constant 0 : i32
    return %arg1, %c0_i32, %c0_i32_0 : i32, i32, i32
  }
  func.func @transform_10(%arg0: i32, %arg1: i32) -> (i32, i32, i32) {
    %c0_i32 = arith.constant 0 : i32
    %c0_i32_0 = arith.constant 0 : i32
    %c0_i32_1 = arith.constant 0 : i32
    return %arg1, %c0_i32, %c0_i32_0 : i32, i32, i32
  }
  func.func @transform_11(%arg0: i32, %arg1: i32) -> (i32, i32, i32) {
    %c0_i32 = arith.constant 0 : i32
    %c0_i32_0 = arith.constant 0 : i32
    %c0_i32_1 = arith.constant 0 : i32
    return %arg1, %c0_i32, %c0_i32_0 : i32, i32, i32
  }
  func.func @transform_12(%arg0: i32, %arg1: i32) -> (i32, i32, i32) {
    %c0_i32 = arith.constant 0 : i32
    %c0_i32_0 = arith.constant 0 : i32
    %c0_i32_1 = arith.constant 0 : i32
    return %arg1, %c0_i32, %c0_i32_0 : i32, i32, i32
  }
  func.func @transform_13(%arg0: i32, %arg1: i32) -> (i32, i32, i32) {
    %c0_i32 = arith.constant 0 : i32
    %c0_i32_0 = arith.constant 0 : i32
    %c0_i32_1 = arith.constant 0 : i32
    return %arg1, %c0_i32, %c0_i32_0 : i32, i32, i32
  }
  func.func @transform_14(%arg0: i32, %arg1: i32) -> (i32, i32, i32) {
    %c0_i32 = arith.constant 0 : i32
    %c0_i32_0 = arith.constant 0 : i32
    %c0_i32_1 = arith.constant 0 : i32
    return %arg0, %c0_i32, %c0_i32_0 : i32, i32, i32
  }
}

</mosaic_0001>

<llo_original>
// kernel: mesh_regressor_forward.2
$region0: #{mesh_regressor_forward.2}
  #allocation0 [shape = 'u32[]', space=smem, size = 0x4, offset = 0x4, fixed_abs, tag = 'smem constant byte address 0x4 - core index']
  #allocation1 [shape = 'u32[144,128]{1,0:T(1,128)}', space=vmem, size = 0x12000, scoped, tag = 'internal scratch']
  %s0 = inlined_call_operand.vmem [shape: bf16[2,24,256], index: 0, kind: input, shape index: {}]
  %s1 = inlined_call_operand.vmem [shape: bf16[2,24,64], index: 1, kind: input, shape index: {}]
  %s2 = inlined_call_operand.vmem [shape: bf16[256,128], index: 2, kind: input, shape index: {}]
  %s3 = inlined_call_operand.vmem [shape: bf16[64,24], index: 3, kind: input, shape index: {}]
  %s4 = inlined_call_operand.vmem [shape: f32[64,128], index: 4, kind: input, shape index: {}]
  %s5 = inlined_call_operand.vmem [shape: bf16[64,128], index: 5, kind: input, shape index: {}]
  %s6 = inlined_call_operand.vmem [shape: bf16[64,24], index: 6, kind: input, shape index: {}]
  %s7 = inlined_call_operand.vmem [shape: f32[64,128], index: 7, kind: input, shape index: {}]
  %s8 = inlined_call_operand.vmem [shape: f32[2,64,128], index: 8, kind: output, shape index: {0}]
  %s9 = inlined_call_operand.vmem [shape: f32[2,64,128], index: 9, kind: output, shape index: {1}]
  %10 = xla_tuple %s8, %s9
  %s11 = sld [smem:[#allocation0]]
  $region73: #{mesh_regressor_forward.2} parent=0
    _
  %s13 = ssub.s32 1, %s11
  %s14 = scalar_select 0, %s13, %s11
  loop: start=0, step=1, limit=4
  $region2: #{mesh_regressor_forward.2} parent=0 // loop_pre_header
    _
  $region3: #{mesh_regressor_forward.2} parent=0 // loop_header
    %s16 = sphi 0, %s20
    %p17 = scmp.ge.s32.totalorder %s16, 4
    %s26 = sphi 0, %s28
    %s29 = sphi 0, %s26
    %s30 = sphi 0, %s29
    %s46 = sphi 0, %s30
    %s52 = sphi 0, %s54
    %s55 = sphi 0, %s52
    %s56 = sphi 0, %s55
    %s72 = sphi 0, %s56
    %s76 = sphi 0, %s76
    %s78 = sphi 0, %s76
    %s79 = sphi 0, %s78
    %s93 = sphi 0, %s79
    %s97 = sphi 0, %s97
    %s99 = sphi 0, %s97
    %s100 = sphi 0, %s99
    %s114 = sphi 0, %s100
    %s118 = sphi 0, %s118
    %s120 = sphi 0, %s118
    %s121 = sphi 0, %s120
    %s135 = sphi 0, %s121
    %s139 = sphi 0, %s139
    %s141 = sphi 0, %s139
    %s142 = sphi 0, %s141
    %s156 = sphi 0, %s142
    %s160 = sphi 0, %s160
    %s162 = sphi 0, %s160
    %s163 = sphi 0, %s162
    %s177 = sphi 0, %s163
    %s181 = sphi 0, %s181
    %s183 = sphi 0, %s181
    %s184 = sphi 0, %s183
    %s198 = sphi 0, %s184
    %s204 = sphi 0, %s206
    %s207 = sphi 0, %s204
    %s208 = sphi 0, %s207
    %s224 = sphi 0, %s208
    %s230 = sphi 0, %s232
    %s233 = sphi 0, %s230
    %s234 = sphi 0, %s233
    %s250 = sphi 0, %s234
  $region4: #{mesh_regressor_forward.2} parent=0 // loop_header_branch
    %19 = sbr.rel (%p17) target = $region8
  $region5: #{mesh_regressor_forward.2} parent=0 // loop_body
    %s21 = ssub.s32 %s16, 1
    %s22 = ssub.s32 %s16, 2
    %s23 = sadd.s32 %s16, 1
    %s24 = ssub.s32 %s16, %s23
    %p25 = scmp.eq.s32.totalorder %s24, 0
    %s27 = sadd.s32 %s26, 1
    %s28 = scalar_select %p25, %s26, %s27
    %p31 = pneg %p25
    %p32 = scmp.eq.s32.totalorder %s16, 1
    %p33 = por %p31, %p32
    %p34 = scmp.ne.s32.totalorder %s26, %s29
    %p35 = scmp.eq.s32.totalorder %s16, 0
    %p36 = por %p34, %p35
    %p37 = scmp.ne.s32.totalorder %s26, %s29
    %p38 = scmp.eq.s32.totalorder %s21, 1
    %p39 = por %p37, %p38
    %p40 = scmp.ne.s32.totalorder %s29, %s30
    %p41 = scmp.eq.s32.totalorder %s21, 0
    %p42 = por %p40, %p41
    %p43 = scmp.ne.s32.totalorder %s29, %s30
    %p44 = scmp.eq.s32.totalorder %s22, 1
    %p45 = por %p43, %p44
    %p47 = scmp.ne.s32.totalorder %s30, %s46
    %p48 = scmp.eq.s32.totalorder %s22, 0
    %p49 = por %p47, %p48
    %s50 = ssub.s32 %s16, %s23
    %p51 = scmp.eq.s32.totalorder %s50, 0
    %s53 = sadd.s32 %s52, 1
    %s54 = scalar_select %p51, %s52, %s53
    %p57 = pneg %p51
    %p58 = scmp.eq.s32.totalorder %s16, 1
    %p59 = por %p57, %p58
    %p60 = scmp.ne.s32.totalorder %s52, %s55
    %p61 = scmp.eq.s32.totalorder %s16, 0
    %p62 = por %p60, %p61
    %p63 = scmp.ne.s32.totalorder %s52, %s55
    %p64 = scmp.eq.s32.totalorder %s21, 1
    %p65 = por %p63, %p64
    %p66 = scmp.ne.s32.totalorder %s55, %s56
    %p67 = scmp.eq.s32.totalorder %s21, 0
    %p68 = por %p66, %p67
    %p69 = scmp.ne.s32.totalorder %s55, %s56
    %p70 = scmp.eq.s32.totalorder %s22, 1
    %p71 = por %p69, %p70
    %p73 = scmp.ne.s32.totalorder %s56, %s72
    %p74 = scmp.eq.s32.totalorder %s22, 0
    %p75 = por %p73, %p74
    %s77 = sadd.s32 %s76, 1
    %p80 = scmp.eq.s32.totalorder %s16, 1
    %p81 = scmp.ne.s32.totalorder %s76, %s78
    %p82 = scmp.eq.s32.totalorder %s16, 0
    %p83 = por %p81, %p82
    %p84 = scmp.ne.s32.totalorder %s76, %s78
    %p85 = scmp.eq.s32.totalorder %s21, 1
    %p86 = por %p84, %p85
    %p87 = scmp.ne.s32.totalorder %s78, %s79
    %p88 = scmp.eq.s32.totalorder %s21, 0
    %p89 = por %p87, %p88
    %p90 = scmp.ne.s32.totalorder %s78, %s79
    %p91 = scmp.eq.s32.totalorder %s22, 1
    %p92 = por %p90, %p91
    %p94 = scmp.ne.s32.totalorder %s79, %s93
    %p95 = scmp.eq.s32.totalorder %s22, 0
    %p96 = por %p94, %p95
    %s98 = sadd.s32 %s97, 1
    %p101 = scmp.eq.s32.totalorder %s16, 1
    %p102 = scmp.ne.s32.totalorder %s97, %s99
    %p103 = scmp.eq.s32.totalorder %s16, 0
    %p104 = por %p102, %p103
    %p105 = scmp.ne.s32.totalorder %s97, %s99
    %p106 = scmp.eq.s32.totalorder %s21, 1
    %p107 = por %p105, %p106
    %p108 = scmp.ne.s32.totalorder %s99, %s100
    %p109 = scmp.eq.s32.totalorder %s21, 0
    %p110 = por %p108, %p109
    %p111 = scmp.ne.s32.totalorder %s99, %s100
    %p112 = scmp.eq.s32.totalorder %s22, 1
    %p113 = por %p111, %p112
    %p115 = scmp.ne.s32.totalorder %s100, %s114
    %p116 = scmp.eq.s32.totalorder %s22, 0
    %p117 = por %p115, %p116
    %s119 = sadd.s32 %s118, 1
    %p122 = scmp.eq.s32.totalorder %s16, 1
    %p123 = scmp.ne.s32.totalorder %s118, %s120
    %p124 = scmp.eq.s32.totalorder %s16, 0
    %p125 = por %p123, %p124
    %p126 = scmp.ne.s32.totalorder %s118, %s120
    %p127 = scmp.eq.s32.totalorder %s21, 1
    %p128 = por %p126, %p127
    %p129 = scmp.ne.s32.totalorder %s120, %s121
    %p130 = scmp.eq.s32.totalorder %s21, 0
    %p131 = por %p129, %p130
    %p132 = scmp.ne.s32.totalorder %s120, %s121
    %p133 = scmp.eq.s32.totalorder %s22, 1
    %p134 = por %p132, %p133
    %p136 = scmp.ne.s32.totalorder %s121, %s135
    %p137 = scmp.eq.s32.totalorder %s22, 0
    %p138 = por %p136, %p137
    %s140 = sadd.s32 %s139, 1
    %p143 = scmp.eq.s32.totalorder %s16, 1
    %p144 = scmp.ne.s32.totalorder %s139, %s141
    %p145 = scmp.eq.s32.totalorder %s16, 0
    %p146 = por %p144, %p145
    %p147 = scmp.ne.s32.totalorder %s139, %s141
    %p148 = scmp.eq.s32.totalorder %s21, 1
    %p149 = por %p147, %p148
    %p150 = scmp.ne.s32.totalorder %s141, %s142
    %p151 = scmp.eq.s32.totalorder %s21, 0
    %p152 = por %p150, %p151
    %p153 = scmp.ne.s32.totalorder %s141, %s142
    %p154 = scmp.eq.s32.totalorder %s22, 1
    %p155 = por %p153, %p154
    %p157 = scmp.ne.s32.totalorder %s142, %s156
    %p158 = scmp.eq.s32.totalorder %s22, 0
    %p159 = por %p157, %p158
    %s161 = sadd.s32 %s160, 1
    %p164 = scmp.eq.s32.totalorder %s16, 1
    %p165 = scmp.ne.s32.totalorder %s160, %s162
    %p166 = scmp.eq.s32.totalorder %s16, 0
    %p167 = por %p165, %p166
    %p168 = scmp.ne.s32.totalorder %s160, %s162
    %p169 = scmp.eq.s32.totalorder %s21, 1
    %p170 = por %p168, %p169
    %p171 = scmp.ne.s32.totalorder %s162, %s163
    %p172 = scmp.eq.s32.totalorder %s21, 0
    %p173 = por %p171, %p172
    %p174 = scmp.ne.s32.totalorder %s162, %s163
    %p175 = scmp.eq.s32.totalorder %s22, 1
    %p176 = por %p174, %p175
    %p178 = scmp.ne.s32.totalorder %s163, %s177
    %p179 = scmp.eq.s32.totalorder %s22, 0
    %p180 = por %p178, %p179
    %s182 = sadd.s32 %s181, 1
    %p185 = scmp.eq.s32.totalorder %s16, 1
    %p186 = scmp.ne.s32.totalorder %s181, %s183
    %p187 = scmp.eq.s32.totalorder %s16, 0
    %p188 = por %p186, %p187
    %p189 = scmp.ne.s32.totalorder %s181, %s183
    %p190 = scmp.eq.s32.totalorder %s21, 1
    %p191 = por %p189, %p190
    %p192 = scmp.ne.s32.totalorder %s183, %s184
    %p193 = scmp.eq.s32.totalorder %s21, 0
    %p194 = por %p192, %p193
    %p195 = scmp.ne.s32.totalorder %s183, %s184
    %p196 = scmp.eq.s32.totalorder %s22, 1
    %p197 = por %p195, %p196
    %p199 = scmp.ne.s32.totalorder %s184, %s198
    %p200 = scmp.eq.s32.totalorder %s22, 0
    %p201 = por %p199, %p200
    %s202 = ssub.s32 %s16, %s23
    %p203 = scmp.eq.s32.totalorder %s202, 0
    %s205 = sadd.s32 %s204, 1
    %s206 = scalar_select %p203, %s204, %s205
    %p209 = pneg %p203
    %p210 = scmp.eq.s32.totalorder %s16, 1
    %p211 = por %p209, %p210
    %p212 = scmp.ne.s32.totalorder %s204, %s207
    %p213 = scmp.eq.s32.totalorder %s16, 0
    %p214 = por %p212, %p213
    %p215 = scmp.ne.s32.totalorder %s204, %s207
    %p216 = scmp.eq.s32.totalorder %s21, 1
    %p217 = por %p215, %p216
    %p218 = scmp.ne.s32.totalorder %s207, %s208
    %p219 = scmp.eq.s32.totalorder %s21, 0
    %p220 = por %p218, %p219
    %p221 = scmp.ne.s32.totalorder %s207, %s208
    %p222 = scmp.eq.s32.totalorder %s22, 1
    %p223 = por %p221, %p222
    %p225 = scmp.ne.s32.totalorder %s208, %s224
    %p226 = scmp.eq.s32.totalorder %s22, 0
    %p227 = por %p225, %p226
    %s228 = ssub.s32 %s16, %s23
    %p229 = scmp.eq.s32.totalorder %s228, 0
    %s231 = sadd.s32 %s230, 1
    %s232 = scalar_select %p229, %s230, %s231
    %p235 = pneg %p229
    %p236 = scmp.eq.s32.totalorder %s16, 1
    %p237 = por %p235, %p236
    %p238 = scmp.ne.s32.totalorder %s230, %s233
    %p239 = scmp.eq.s32.totalorder %s16, 0
    %p240 = por %p238, %p239
    %p241 = scmp.ne.s32.totalorder %s230, %s233
    %p242 = scmp.eq.s32.totalorder %s21, 1
    %p243 = por %p241, %p242
    %p244 = scmp.ne.s32.totalorder %s233, %s234
    %p245 = scmp.eq.s32.totalorder %s21, 0
    %p246 = por %p244, %p245
    %p247 = scmp.ne.s32.totalorder %s233, %s234
    %p248 = scmp.eq.s32.totalorder %s22, 1
    %p249 = por %p247, %p248
    %p251 = scmp.ne.s32.totalorder %s234, %s250
    %p252 = scmp.eq.s32.totalorder %s22, 0
    %p253 = por %p251, %p252
    %p254 = scmp.le.s32.totalorder 1, %s16
    %p255 = scmp.lt.s32.totalorder %s16, 3
    %p256 = pnand %p254, %p255
    %p257 = pneg %p256
    // Predicated region
    $region9: #{mesh_regressor_forward.2} parent=5 // pred_check
      _
    $region10: #{mesh_regressor_forward.2} parent=5 // pred_check_branch
      %259 = sbr.rel (%p256) target = $region12
    $region11: #{mesh_regressor_forward.2} parent=5 // pred_region
      %s260 = ssub.s32 %s16, 1
      // Predicated region
      $region13: #{mesh_regressor_forward.2} parent=11 // pred_check
        %p261 = pneg %p89
      $region14: #{mesh_regressor_forward.2} parent=11 // pred_check_branch
        %263 = sbr.rel (%p261) target = $region16
      $region15: #{mesh_regressor_forward.2} parent=11 // pred_region
        _
      $region16: #{mesh_regressor_forward.2} parent=11 // pred_fallthru
        _
      // Predicated region
      $region17: #{mesh_regressor_forward.2} parent=11 // pred_check
        %p264 = pneg %p110
      $region18: #{mesh_regressor_forward.2} parent=11 // pred_check_branch
        %266 = sbr.rel (%p264) target = $region20
      $region19: #{mesh_regressor_forward.2} parent=11 // pred_region
        _
      $region20: #{mesh_regressor_forward.2} parent=11 // pred_fallthru
        _
      // Predicated region
      $region21: #{mesh_regressor_forward.2} parent=11 // pred_check
        %p267 = pneg %p131
      $region22: #{mesh_regressor_forward.2} parent=11 // pred_check_branch
        %269 = sbr.rel (%p267) target = $region24
      $region23: #{mesh_regressor_forward.2} parent=11 // pred_region
        _
      $region24: #{mesh_regressor_forward.2} parent=11 // pred_fallthru
        _
      // Predicated region
      $region25: #{mesh_regressor_forward.2} parent=11 // pred_check
        %p270 = pneg %p152
      $region26: #{mesh_regressor_forward.2} parent=11 // pred_check_branch
        %272 = sbr.rel (%p270) target = $region28
      $region27: #{mesh_regressor_forward.2} parent=11 // pred_region
        _
      $region28: #{mesh_regressor_forward.2} parent=11 // pred_fallthru
        _
      // Predicated region
      $region29: #{mesh_regressor_forward.2} parent=11 // pred_check
        %p273 = pneg %p173
      $region30: #{mesh_regressor_forward.2} parent=11 // pred_check_branch
        %275 = sbr.rel (%p273) target = $region32
      $region31: #{mesh_regressor_forward.2} parent=11 // pred_region
        _
      $region32: #{mesh_regressor_forward.2} parent=11 // pred_fallthru
        _
      // Predicated region
      $region33: #{mesh_regressor_forward.2} parent=11 // pred_check
        %p276 = pneg %p194
      $region34: #{mesh_regressor_forward.2} parent=11 // pred_check_branch
        %278 = sbr.rel (%p276) target = $region36
      $region35: #{mesh_regressor_forward.2} parent=11 // pred_region
        _
      $region36: #{mesh_regressor_forward.2} parent=11 // pred_fallthru
        _
    $region12: #{mesh_regressor_forward.2} parent=5 // pred_fallthru
      _
    %p279 = scmp.lt.s32.totalorder %s16, 2
    // Predicated region
    $region37: #{mesh_regressor_forward.2} parent=5 // pred_check
      %p280 = pneg %p279
    $region38: #{mesh_regressor_forward.2} parent=5 // pred_check_branch
      %282 = sbr.rel (%p280) target = $region40
    $region39: #{mesh_regressor_forward.2} parent=5 // pred_region
      // Predicated region
      $region41: #{mesh_regressor_forward.2} parent=39 // pred_check
        %p283 = pneg %p36
      $region42: #{mesh_regressor_forward.2} parent=39 // pred_check_branch
        %285 = sbr.rel (%p283) target = $region44
      $region43: #{mesh_regressor_forward.2} parent=39 // pred_region
        %p286 = scmp.lt.s32.totalorder %s16, 1
        %s287 = scalar_select %p286, %s16, 1
        %s288 = smul.addr %s287, 6
        %s289 = smul.addr %s288, 4
        %s290 = scalar_lea.vmem %s0, %s289
      $region44: #{mesh_regressor_forward.2} parent=39 // pred_fallthru
        _
      // Predicated region
      $region45: #{mesh_regressor_forward.2} parent=39 // pred_check
        %p291 = pneg %p62
      $region46: #{mesh_regressor_forward.2} parent=39 // pred_check_branch
        %293 = sbr.rel (%p291) target = $region48
      $region47: #{mesh_regressor_forward.2} parent=39 // pred_region
        %p294 = scmp.lt.s32.totalorder %s16, 1
        %s295 = scalar_select %p294, %s16, 1
        %s296 = smul.addr %s295, 3
        %s297 = smul.addr %s296, 4
        %s298 = scalar_lea.vmem %s1, %s297
      $region48: #{mesh_regressor_forward.2} parent=39 // pred_fallthru
        _
    $region40: #{mesh_regressor_forward.2} parent=5 // pred_fallthru
      _
    %p299 = scmp.le.s32.totalorder 1, %s16
    %p300 = scmp.lt.s32.totalorder %s16, 3
    %p301 = pnand %p299, %p300
    %p302 = pneg %p301
    // Predicated region
    $region49: #{mesh_regressor_forward.2} parent=5 // pred_check
      _
    $region50: #{mesh_regressor_forward.2} parent=5 // pred_check_branch
      %304 = sbr.rel (%p301) target = $region52
    $region51: #{mesh_regressor_forward.2} parent=5 // pred_region
      %s305 = ssub.s32 %s16, 1
      %p306 = scmp.lt.s32.totalorder %s21, 1
      %s307 = scalar_select %p306, %s21, 1
      %s308 = smul.addr %s307, 6
      %s309 = smul.addr %s308, 4
      %s310 = scalar_lea.vmem %s0, %s309
      %p311 = pneg %p42
      %p312 = pneg %p39
      %p313 = scmp.lt.s32.totalorder %s21, 1
      %s314 = scalar_select %p313, %s21, 1
      %s315 = smul.addr %s314, 3
      %s316 = smul.addr %s315, 4
      %s317 = scalar_lea.vmem %s1, %s316
      %p318 = pneg %p68
      %p319 = pneg %p65
      %p320 = pneg %p89
      %p321 = pneg %p86
      %p322 = pneg %p110
      %p323 = pneg %p107
      %p324 = pneg %p131
      %p325 = pneg %p128
      %p326 = pneg %p152
      %p327 = pneg %p149
      %p328 = pneg %p173
      %p329 = pneg %p170
      %p330 = pneg %p194
      %p331 = pneg %p191
      %p332 = pneg %p220
      %p333 = pneg %p217
      %p334 = scmp.lt.s32.totalorder %s21, 1
      %s335 = scalar_select %p334, %s21, 1
      %s336 = smul.addr %s335, 8
      %s337 = smul.addr %s336, 8
      %s338 = scalar_lea.vmem %s8, %s337
      %p339 = pneg %p246
      %p340 = pneg %p243
      %p341 = scmp.lt.s32.totalorder %s21, 1
      %s342 = scalar_select %p341, %s21, 1
      %s343 = smul.addr %s342, 8
      %s344 = smul.addr %s343, 8
      %s345 = scalar_lea.vmem %s9, %s344
      %p346 = scmp.lt.s32.totalorder %s21, 1
      %s347 = scalar_select %p346, %s21, 1
      %s348 = smul.addr %s347, 6
      %s349 = smul.addr %s348, 4
      %s350 = scalar_lea.vmem %s0, %s349
      %p351 = scmp.lt.s32.totalorder %s21, 1
      %s352 = scalar_select %p351, %s21, 1
      %s353 = smul.addr %s352, 3
      %s354 = smul.addr %s353, 4
      %s355 = scalar_lea.vmem %s1, %s354
      %p356 = scmp.lt.s32.totalorder %s21, 1
      %s357 = scalar_select %p356, %s21, 1
      %s358 = smul.addr %s357, 8
      %s359 = smul.addr %s358, 8
      %s360 = scalar_lea.vmem %s8, %s359
      %p361 = scmp.lt.s32.totalorder %s21, 1
      %s362 = scalar_select %p361, %s21, 1
      %s363 = smul.addr %s362, 8
      %s364 = smul.addr %s363, 8
      %s365 = scalar_lea.vmem %s9, %s364
      %v367 = vld [vmem:[%s350] sm:$0xff]
      %v368 = vld [vmem:[%s350 + $0x8] sm:$0xff]
      %v369 = vld [vmem:[%s350 + $0x10] sm:$0xff]
      %v370 = vld [vmem:[%s2] sm:$0xf]
      %v371 = vld [vmem:[%s2 + $0x4] sm:$0xf]
      %v372 = vld [vmem:[%s2 + $0x8] sm:$0xf]
      %v373 = vld [vmem:[%s2 + $0xc] sm:$0xf]
      %v374 = vld [vmem:[%s2 + $0x10] sm:$0xf]
      %v375 = vld [vmem:[%s2 + $0x14] sm:$0xf]
      %v376 = vld [vmem:[%s2 + $0x18] sm:$0xf]
      %v377 = vld [vmem:[%s2 + $0x1c] sm:$0xf]
      %v378 = vld [vmem:[%s2 + $0x20] sm:$0xf]
      %v379 = vld [vmem:[%s2 + $0x24] sm:$0xf]
      %v380 = vld [vmem:[%s2 + $0x28] sm:$0xf]
      %v381 = vld [vmem:[%s2 + $0x2c] sm:$0xf]
      %v382 = vld [vmem:[%s2 + $0x30] sm:$0xf]
      %v383 = vld [vmem:[%s2 + $0x34] sm:$0xf]
      %v384 = vld [vmem:[%s2 + $0x38] sm:$0xf]
      %v385 = vld [vmem:[%s2 + $0x3c] sm:$0xf]
      %v386 = vld [vmem:[%s2 + $0x40] sm:$0xf]
      %v387 = vld [vmem:[%s2 + $0x44] sm:$0xf]
      %v388 = vld [vmem:[%s2 + $0x48] sm:$0xf]
      %v389 = vld [vmem:[%s2 + $0x4c] sm:$0xf]
      %v390 = vld [vmem:[%s2 + $0x50] sm:$0xf]
      %v391 = vld [vmem:[%s2 + $0x54] sm:$0xf]
      %v392 = vld [vmem:[%s2 + $0x58] sm:$0xf]
      %v393 = vld [vmem:[%s2 + $0x5c] sm:$0xf]
      %v394 = vld [vmem:[%s2 + $0x60] sm:$0xf]
      %v395 = vld [vmem:[%s2 + $0x64] sm:$0xf]
      %v396 = vld [vmem:[%s2 + $0x68] sm:$0xf]
      %v397 = vld [vmem:[%s2 + $0x6c] sm:$0xf]
      %v398 = vld [vmem:[%s2 + $0x70] sm:$0xf]
      %v399 = vld [vmem:[%s2 + $0x74] sm:$0xf]
      %v400 = vld [vmem:[%s2 + $0x78] sm:$0xf]
      %v401 = vld [vmem:[%s2 + $0x7c] sm:$0xf]
      %v405 = vunpack.c.l.b16 %v367
      %v406 = vunpack.c.h.b16 %v367
      %v407 = vunpack.c.l.b16 %v368
      %v408 = vunpack.c.h.b16 %v368
      %v409 = vunpack.c.l.b16 %v369
      %v410 = vunpack.c.h.b16 %v369
      %v411 = vpack.c.b16 %v407, %v405
      %v412 = vpack.c.b16 %v408, %v406
      %v413 = vpack.c.b16 %v409, %v409
      %v414 = vpack.c.b16 %v410, %v410
      %v451 = vunpack.c.l.b16 %v370
      %v452 = vunpack.c.l.b16 %v371
      %v453 = vunpack.c.l.b16 %v372
      %v454 = vunpack.c.l.b16 %v373
      %v455 = vunpack.c.l.b16 %v374
      %v456 = vunpack.c.l.b16 %v375
      %v457 = vunpack.c.l.b16 %v376
      %v458 = vunpack.c.l.b16 %v377
      %v459 = vunpack.c.l.b16 %v378
      %v460 = vunpack.c.l.b16 %v379
      %v461 = vunpack.c.l.b16 %v380
      %v462 = vunpack.c.l.b16 %v381
      %v463 = vunpack.c.l.b16 %v382
      %v464 = vunpack.c.l.b16 %v383
      %v465 = vunpack.c.l.b16 %v384
      %v466 = vunpack.c.l.b16 %v385
      %v467 = vunpack.c.l.b16 %v386
      %v468 = vunpack.c.l.b16 %v387
      %v469 = vunpack.c.l.b16 %v388
      %v470 = vunpack.c.l.b16 %v389
      %v471 = vunpack.c.l.b16 %v390
      %v472 = vunpack.c.l.b16 %v391
      %v473 = vunpack.c.l.b16 %v392
      %v474 = vunpack.c.l.b16 %v393
      %v475 = vunpack.c.l.b16 %v394
      %v476 = vunpack.c.l.b16 %v395
      %v477 = vunpack.c.l.b16 %v396
      %v478 = vunpack.c.l.b16 %v397
      %v479 = vunpack.c.l.b16 %v398
      %v480 = vunpack.c.l.b16 %v399
      %v481 = vunpack.c.l.b16 %v400
      %v482 = vunpack.c.l.b16 %v401
      %v483 = vpack.c.b16 %v452, %v451
      %v484 = vpack.c.b16 %v454, %v453
      %v485 = vpack.c.b16 %v456, %v455
      %v486 = vpack.c.b16 %v458, %v457
      %v487 = vpack.c.b16 %v460, %v459
      %v488 = vpack.c.b16 %v462, %v461
      %v489 = vpack.c.b16 %v464, %v463
      %v490 = vpack.c.b16 %v466, %v465
      %v491 = vpack.c.b16 %v468, %v467
      %v492 = vpack.c.b16 %v470, %v469
      %v493 = vpack.c.b16 %v472, %v471
      %v494 = vpack.c.b16 %v474, %v473
      %v495 = vpack.c.b16 %v476, %v475
      %v496 = vpack.c.b16 %v478, %v477
      %v497 = vpack.c.b16 %v480, %v479
      %v498 = vpack.c.b16 %v482, %v481
      %515 = vmatprep.subr.bf16.mxu0 0
      %516 = vmatpush1.bf16.msra.mxu0 %v490
      %517 = vmatprep.subr.bf16.mxu0 0
      %518 = vmatpush1.bf16.msra.mxu0 %v489
      %519 = vmatprep.subr.bf16.mxu0 0
      %520 = vmatpush1.bf16.msra.mxu0 %v488
      %521 = vmatprep.subr.bf16.mxu0 0
      %522 = vmatpush1.bf16.msra.mxu0 %v487
      %523 = vmatprep.subr.bf16.mxu0 0
      %524 = vmatpush1.bf16.msra.mxu0 %v486
      %525 = vmatprep.subr.bf16.mxu0 0
      %526 = vmatpush1.bf16.msra.mxu0 %v485
      %527 = vmatprep.subr.bf16.mxu0 0
      %528 = vmatpush1.bf16.msra.mxu0 %v484
      %529 = vmatprep.subr.bf16.mxu0 0
      %530 = vmatpush1.bf16.msra.mxu0 %v483
      %531 = vmatprep.subr.bf16.mxu0 0
      %532 = vmatpush2.bf16.msra.mxu0 %v498
      %533 = vmatprep.subr.bf16.mxu0 0
      %534 = vmatpush2.bf16.msra.mxu0 %v497
      %535 = vmatprep.subr.bf16.mxu0 0
      %536 = vmatpush2.bf16.msra.mxu0 %v496
      %537 = vmatprep.subr.bf16.mxu0 0
      %538 = vmatpush2.bf16.msra.mxu0 %v495
      %539 = vmatprep.subr.bf16.mxu0 0
      %540 = vmatpush2.bf16.msra.mxu0 %v494
      %541 = vmatprep.subr.bf16.mxu0 0
      %542 = vmatpush2.bf16.msra.mxu0 %v493
      %543 = vmatprep.subr.bf16.mxu0 0
      %544 = vmatpush2.bf16.msra.mxu0 %v492
      %545 = vmatprep.subr.bf16.mxu0 0
      %546 = vmatpush2.bf16.msra.mxu0 %v491
      %547 = vmatprep.mubr.bf16.mxu0 %v412
      %548 = vmatmul.mubr.bf16.gmra.mxu0 %v411
      %v549 = vpop.f32.mrf.mxu0
      %v550 = vadd.f32 0.0, %v549
      %v551 = vpop.f32.mrf.mxu0
      %v552 = vpop.f32.mrf.mxu0
      %v553 = vadd.f32 0.0, %v552
      %v554 = vpop.f32.mrf.mxu0
      %555 = vmatprep.mubr.bf16.mxu0 %v414
      %556 = vmatmul.mubr.bf16.gmra.mxu0 %v413
      %v557 = vpop.f32.mrf.mxu0
      %v558 = vadd.f32 0.0, %v557
      %v559 = vpop.f32.mrf.mxu0
      %v560 = vpop.f32.mrf.mxu0
      %v561 = vpop.f32.mrf.mxu0
      %562 = vdwg.mxu0
      %v563 = vld [vmem:[%s3] sm:$0xf]
      %v564 = vld [vmem:[%s3 + $0x4] sm:$0xf]
      %v565 = vld [vmem:[%s3 + $0x8] sm:$0xf]
      %v566 = vld [vmem:[%s3 + $0xc] sm:$0xf]
      %v567 = vld [vmem:[%s3 + $0x10] sm:$0xf]
      %v568 = vld [vmem:[%s3 + $0x14] sm:$0xf]
      %v569 = vld [vmem:[%s3 + $0x18] sm:$0xf]
      %v570 = vld [vmem:[%s3 + $0x1c] sm:$0xf]
      %v571 = vpack.c.bf16 %v553, %v550
      %v572 = vpack.c.bf16 %v558, %v558
      %v573 = vld [vmem:[%s4] sm:$0xff]
      %v574 = vld [vmem:[%s4 + $0x8] sm:$0xff]
      %v575 = vld [vmem:[%s4 + $0x10] sm:$0xff]
      %v576 = vld [vmem:[%s4 + $0x18] sm:$0xff]
      %v577 = vld [vmem:[%s4 + $0x20] sm:$0xff]
      %v578 = vld [vmem:[%s4 + $0x28] sm:$0xff]
      %v579 = vld [vmem:[%s4 + $0x30] sm:$0xff]
      %v580 = vld [vmem:[%s4 + $0x38] sm:$0xff]
      %v589 = vunpack.c.l.b16 %v563
      %v590 = vunpack.c.l.b16 %v564
      %v591 = vunpack.c.l.b16 %v565
      %v592 = vunpack.c.l.b16 %v566
      %v593 = vunpack.c.l.b16 %v567
      %v594 = vunpack.c.l.b16 %v568
      %v595 = vunpack.c.l.b16 %v569
      %v596 = vunpack.c.l.b16 %v570
      %v597 = vpack.c.b16 %v590, %v589
      %v598 = vpack.c.b16 %v592, %v591
      %v599 = vpack.c.b16 %v594, %v593
      %v600 = vpack.c.b16 %v596, %v595
      %vm601 = vcmask 195584
      %v603 = vsel %vm601, %v597, 0
      %v606 = vsel %vm601, %v598, 0
      %v609 = vsel %vm601, %v599, 0
      %v612 = vsel %vm601, %v600, 0
      %vm614 = vcmask 1043456
      %v616 = vsel %vm614, %v572, 0
      %618 = vmatprep.subr.bf16.mxu0 0
      %619 = vmatpush1.bf16.msra.mxu0 0
      %620 = vmatprep.subr.bf16.mxu0 0
      %621 = vmatpush1.bf16.msra.mxu0 0
      %622 = vmatprep.subr.bf16.mxu0 0
      %623 = vmatpush1.bf16.msra.mxu0 0
      %624 = vmatprep.subr.bf16.mxu0 0
      %625 = vmatpush1.bf16.msra.mxu0 0
      %626 = vmatprep.subr.bf16.mxu0 0
      %627 = vmatpush1.bf16.msra.mxu0 0
      %628 = vmatprep.subr.bf16.mxu0 0
      %629 = vmatpush1.bf16.msra.mxu0 0
      %630 = vmatprep.subr.bf16.mxu0 0
      %631 = vmatpush1.bf16.msra.mxu0 %v616
      %632 = vmatprep.subr.bf16.mxu0 0
      %633 = vmatpush1.bf16.msra.mxu0 %v571
      %634 = vmatprep.subr.bf16.mxu0 0
      %635 = vmatpush2.bf16.msra.mxu0 0
      %636 = vmatprep.subr.bf16.mxu0 0
      %637 = vmatpush2.bf16.msra.mxu0 0
      %638 = vmatprep.subr.bf16.mxu0 0
      %639 = vmatpush2.bf16.msra.mxu0 0
      %640 = vmatprep.subr.bf16.mxu0 0
      %641 = vmatpush2.bf16.msra.mxu0 0
      %642 = vmatprep.subr.bf16.mxu0 0
      %643 = vmatpush2.bf16.msra.mxu0 0
      %644 = vmatprep.subr.bf16.mxu0 0
      %645 = vmatpush2.bf16.msra.mxu0 0
      %646 = vmatprep.subr.bf16.mxu0 0
      %647 = vmatpush2.bf16.msra.mxu0 0
      %648 = vmatprep.subr.bf16.mxu0 0
      %649 = vmatpush2.bf16.msra.mxu0 0
      %650 = vmatprep.mubr.bf16.mxu0 0
      %651 = vmatmul.mubr.bf16.gmra.mxu0 %v603
      %v652 = vpop.f32.mrf.mxu0
      %v653 = vadd.f32 %v573, %v652
      %v654 = vpop.f32.mrf.mxu0
      %v655 = vpop.f32.mrf.mxu0
      %v656 = vadd.f32 %v574, %v655
      %v657 = vpop.f32.mrf.mxu0
      %658 = vmatprep.mubr.bf16.mxu0 0
      %659 = vmatmul.mubr.bf16.gmra.mxu0 %v606
      %v660 = vpop.f32.mrf.mxu0
      %v661 = vadd.f32 %v575, %v660
      %v662 = vpop.f32.mrf.mxu0
      %v663 = vpop.f32.mrf.mxu0
      %v664 = vadd.f32 %v576, %v663
      %v665 = vpop.f32.mrf.mxu0
      %666 = vmatprep.mubr.bf16.mxu0 0
      %667 = vmatmul.mubr.bf16.gmra.mxu0 %v609
      %v668 = vpop.f32.mrf.mxu0
      %v669 = vadd.f32 %v577, %v668
      %v670 = vpop.f32.mrf.mxu0
      %v671 = vpop.f32.mrf.mxu0
      %v672 = vadd.f32 %v578, %v671
      %v673 = vpop.f32.mrf.mxu0
      %674 = vmatprep.mubr.bf16.mxu0 0
      %675 = vmatmul.mubr.bf16.gmra.mxu0 %v612
      %v676 = vpop.f32.mrf.mxu0
      %v677 = vadd.f32 %v579, %v676
      %v678 = vpop.f32.mrf.mxu0
      %v679 = vpop.f32.mrf.mxu0
      %v680 = vadd.f32 %v580, %v679
      %v681 = vpop.f32.mrf.mxu0
      %682 = vdwg.mxu0
      %683 = vst [vmem:[%s360] sm:$0xff] %v653
      %684 = vst [vmem:[%s360 + $0x8] sm:$0xff] %v656
      %685 = vst [vmem:[%s360 + $0x10] sm:$0xff] %v661
      %686 = vst [vmem:[%s360 + $0x18] sm:$0xff] %v664
      %687 = vst [vmem:[%s360 + $0x20] sm:$0xff] %v669
      %688 = vst [vmem:[%s360 + $0x28] sm:$0xff] %v672
      %689 = vst [vmem:[%s360 + $0x30] sm:$0xff] %v677
      %690 = vst [vmem:[%s360 + $0x38] sm:$0xff] %v680
      %v691 = vld [vmem:[%s355] sm:$0xf]
      %v692 = vld [vmem:[%s355 + $0x4] sm:$0xf]
      %v693 = vld [vmem:[%s355 + $0x8] sm:$0xf]
      %v694 = vld [vmem:[%s5] sm:$0xf]
      %v695 = vld [vmem:[%s5 + $0x4] sm:$0xf]
      %v696 = vld [vmem:[%s5 + $0x8] sm:$0xf]
      %v697 = vld [vmem:[%s5 + $0xc] sm:$0xf]
      %v698 = vld [vmem:[%s5 + $0x10] sm:$0xf]
      %v699 = vld [vmem:[%s5 + $0x14] sm:$0xf]
      %v700 = vld [vmem:[%s5 + $0x18] sm:$0xf]
      %v701 = vld [vmem:[%s5 + $0x1c] sm:$0xf]
      %v705 = vunpack.c.l.b16 %v691
      %v706 = vunpack.c.l.b16 %v692
      %v707 = vunpack.c.l.b16 %v693
      %v708 = vpack.c.b16 %v706, %v705
      %v709 = vpack.c.b16 %v707, %v707
      %v718 = vunpack.c.l.b16 %v694
      %v719 = vunpack.c.l.b16 %v695
      %v720 = vunpack.c.l.b16 %v696
      %v721 = vunpack.c.l.b16 %v697
      %v722 = vunpack.c.l.b16 %v698
      %v723 = vunpack.c.l.b16 %v699
      %v724 = vunpack.c.l.b16 %v700
      %v725 = vunpack.c.l.b16 %v701
      %v726 = vpack.c.b16 %v719, %v718
      %v727 = vpack.c.b16 %v721, %v720
      %v728 = vpack.c.b16 %v723, %v722
      %v729 = vpack.c.b16 %v725, %v724
      %vm734 = vcmask 523264
      %v736 = vsel %vm734, %v708, 0
      %v739 = vsel %vm734, %v709, 0
      %741 = vmatprep.subr.bf16.mxu0 0
      %742 = vmatpush1.bf16.msra.mxu0 0
      %743 = vmatprep.subr.bf16.mxu0 0
      %744 = vmatpush1.bf16.msra.mxu0 0
      %745 = vmatprep.subr.bf16.mxu0 0
      %746 = vmatpush1.bf16.msra.mxu0 0
      %747 = vmatprep.subr.bf16.mxu0 0
      %748 = vmatpush1.bf16.msra.mxu0 0
      %749 = vmatprep.subr.bf16.mxu0 0
      %750 = vmatpush1.bf16.msra.mxu0 %v729
      %751 = vmatprep.subr.bf16.mxu0 0
      %752 = vmatpush1.bf16.msra.mxu0 %v728
      %753 = vmatprep.subr.bf16.mxu0 0
      %754 = vmatpush1.bf16.msra.mxu0 %v727
      %755 = vmatprep.subr.bf16.mxu0 0
      %756 = vmatpush1.bf16.msra.mxu0 %v726
      %757 = vmatprep.subr.bf16.mxu0 0
      %758 = vmatpush2.bf16.msra.mxu0 0
      %759 = vmatprep.subr.bf16.mxu0 0
      %760 = vmatpush2.bf16.msra.mxu0 0
      %761 = vmatprep.subr.bf16.mxu0 0
      %762 = vmatpush2.bf16.msra.mxu0 0
      %763 = vmatprep.subr.bf16.mxu0 0
      %764 = vmatpush2.bf16.msra.mxu0 0
      %765 = vmatprep.subr.bf16.mxu0 0
      %766 = vmatpush2.bf16.msra.mxu0 0
      %767 = vmatprep.subr.bf16.mxu0 0
      %768 = vmatpush2.bf16.msra.mxu0 0
      %769 = vmatprep.subr.bf16.mxu0 0
      %770 = vmatpush2.bf16.msra.mxu0 0
      %771 = vmatprep.subr.bf16.mxu0 0
      %772 = vmatpush2.bf16.msra.mxu0 0
      %773 = vmatprep.mubr.bf16.mxu0 0
      %774 = vmatmul.mubr.bf16.gmra.mxu0 %v736
      %v775 = vpop.f32.mrf.mxu0
      %v776 = vadd.f32 0.0, %v775
      %v777 = vpop.f32.mrf.mxu0
      %v778 = vpop.f32.mrf.mxu0
      %v779 = vadd.f32 0.0, %v778
      %v780 = vpop.f32.mrf.mxu0
      %781 = vmatprep.mubr.bf16.mxu0 0
      %782 = vmatmul.mubr.bf16.gmra.mxu0 %v739
      %v783 = vpop.f32.mrf.mxu0
      %v784 = vadd.f32 0.0, %v783
      %v785 = vpop.f32.mrf.mxu0
      %v786 = vpop.f32.mrf.mxu0
      %v787 = vpop.f32.mrf.mxu0
      %788 = vdwg.mxu0
      %v789 = vld [vmem:[%s6] sm:$0xf]
      %v790 = vld [vmem:[%s6 + $0x4] sm:$0xf]
      %v791 = vld [vmem:[%s6 + $0x8] sm:$0xf]
      %v792 = vld [vmem:[%s6 + $0xc] sm:$0xf]
      %v793 = vld [vmem:[%s6 + $0x10] sm:$0xf]
      %v794 = vld [vmem:[%s6 + $0x14] sm:$0xf]
      %v795 = vld [vmem:[%s6 + $0x18] sm:$0xf]
      %v796 = vld [vmem:[%s6 + $0x1c] sm:$0xf]
      %v797 = vpack.c.bf16 %v779, %v776
      %v798 = vpack.c.bf16 %v784, %v784
      %v799 = vld [vmem:[%s7] sm:$0xff]
      %v800 = vld [vmem:[%s7 + $0x8] sm:$0xff]
      %v801 = vld [vmem:[%s7 + $0x10] sm:$0xff]
      %v802 = vld [vmem:[%s7 + $0x18] sm:$0xff]
      %v803 = vld [vmem:[%s7 + $0x20] sm:$0xff]
      %v804 = vld [vmem:[%s7 + $0x28] sm:$0xff]
      %v805 = vld [vmem:[%s7 + $0x30] sm:$0xff]
      %v806 = vld [vmem:[%s7 + $0x38] sm:$0xff]
      %v815 = vunpack.c.l.b16 %v789
      %v816 = vunpack.c.l.b16 %v790
      %v817 = vunpack.c.l.b16 %v791
      %v818 = vunpack.c.l.b16 %v792
      %v819 = vunpack.c.l.b16 %v793
      %v820 = vunpack.c.l.b16 %v794
      %v821 = vunpack.c.l.b16 %v795
      %v822 = vunpack.c.l.b16 %v796
      %v823 = vpack.c.b16 %v816, %v815
      %v824 = vpack.c.b16 %v818, %v817
      %v825 = vpack.c.b16 %v820, %v819
      %v826 = vpack.c.b16 %v822, %v821
      %v828 = vsel %vm601, %v823, 0
      %v831 = vsel %vm601, %v824, 0
      %v834 = vsel %vm601, %v825, 0
      %v837 = vsel %vm601, %v826, 0
      %v840 = vsel %vm614, %v798, 0
      %842 = vmatprep.subr.bf16.mxu0 0
      %843 = vmatpush1.bf16.msra.mxu0 0
      %844 = vmatprep.subr.bf16.mxu0 0
      %845 = vmatpush1.bf16.msra.mxu0 0
      %846 = vmatprep.subr.bf16.mxu0 0
      %847 = vmatpush1.bf16.msra.mxu0 0
      %848 = vmatprep.subr.bf16.mxu0 0
      %849 = vmatpush1.bf16.msra.mxu0 0
      %850 = vmatprep.subr.bf16.mxu0 0
      %851 = vmatpush1.bf16.msra.mxu0 0
      %852 = vmatprep.subr.bf16.mxu0 0
      %853 = vmatpush1.bf16.msra.mxu0 0
      %854 = vmatprep.subr.bf16.mxu0 0
      %855 = vmatpush1.bf16.msra.mxu0 %v840
      %856 = vmatprep.subr.bf16.mxu0 0
      %857 = vmatpush1.bf16.msra.mxu0 %v797
      %858 = vmatprep.subr.bf16.mxu0 0
      %859 = vmatpush2.bf16.msra.mxu0 0
      %860 = vmatprep.subr.bf16.mxu0 0
      %861 = vmatpush2.bf16.msra.mxu0 0
      %862 = vmatprep.subr.bf16.mxu0 0
      %863 = vmatpush2.bf16.msra.mxu0 0
      %864 = vmatprep.subr.bf16.mxu0 0
      %865 = vmatpush2.bf16.msra.mxu0 0
      %866 = vmatprep.subr.bf16.mxu0 0
      %867 = vmatpush2.bf16.msra.mxu0 0
      %868 = vmatprep.subr.bf16.mxu0 0
      %869 = vmatpush2.bf16.msra.mxu0 0
      %870 = vmatprep.subr.bf16.mxu0 0
      %871 = vmatpush2.bf16.msra.mxu0 0
      %872 = vmatprep.subr.bf16.mxu0 0
      %873 = vmatpush2.bf16.msra.mxu0 0
      %874 = vmatprep.mubr.bf16.mxu0 0
      %875 = vmatmul.mubr.bf16.gmra.mxu0 %v828
      %v876 = vpop.f32.mrf.mxu0
      %v877 = vadd.f32 %v799, %v876
      %v878 = vpop.f32.mrf.mxu0
      %v879 = vpop.f32.mrf.mxu0
      %v880 = vadd.f32 %v800, %v879
      %v881 = vpop.f32.mrf.mxu0
      %882 = vmatprep.mubr.bf16.mxu0 0
      %883 = vmatmul.mubr.bf16.gmra.mxu0 %v831
      %v884 = vpop.f32.mrf.mxu0
      %v885 = vadd.f32 %v801, %v884
      %v886 = vpop.f32.mrf.mxu0
      %v887 = vpop.f32.mrf.mxu0
      %v888 = vadd.f32 %v802, %v887
      %v889 = vpop.f32.mrf.mxu0
      %890 = vmatprep.mubr.bf16.mxu0 0
      %891 = vmatmul.mubr.bf16.gmra.mxu0 %v834
      %v892 = vpop.f32.mrf.mxu0
      %v893 = vadd.f32 %v803, %v892
      %v894 = vpop.f32.mrf.mxu0
      %v895 = vpop.f32.mrf.mxu0
      %v896 = vadd.f32 %v804, %v895
      %v897 = vpop.f32.mrf.mxu0
      %898 = vmatprep.mubr.bf16.mxu0 0
      %899 = vmatmul.mubr.bf16.gmra.mxu0 %v837
      %v900 = vpop.f32.mrf.mxu0
      %v901 = vadd.f32 %v805, %v900
      %v902 = vpop.f32.mrf.mxu0
      %v903 = vpop.f32.mrf.mxu0
      %v904 = vadd.f32 %v806, %v903
      %v905 = vpop.f32.mrf.mxu0
      %906 = vdwg.mxu0
      %907 = vst [vmem:[%s365] sm:$0xff] %v877
      %908 = vst [vmem:[%s365 + $0x8] sm:$0xff] %v880
      %909 = vst [vmem:[%s365 + $0x10] sm:$0xff] %v885
      %910 = vst [vmem:[%s365 + $0x18] sm:$0xff] %v888
      %911 = vst [vmem:[%s365 + $0x20] sm:$0xff] %v893
      %912 = vst [vmem:[%s365 + $0x28] sm:$0xff] %v896
      %913 = vst [vmem:[%s365 + $0x30] sm:$0xff] %v901
      %914 = vst [vmem:[%s365 + $0x38] sm:$0xff] %v904
      %p915 = scmp.lt.s32.totalorder %s21, 1
      %s916 = scalar_select %p915, %s21, 1
      %s917 = smul.addr %s916, 8
      %s918 = smul.addr %s917, 8
      %s919 = scalar_lea.vmem %s8, %s918
      %p920 = scmp.lt.s32.totalorder %s21, 1
      %s921 = scalar_select %p920, %s21, 1
      %s922 = smul.addr %s921, 8
      %s923 = smul.addr %s922, 8
      %s924 = scalar_lea.vmem %s9, %s923
      // Predicated region
      $region53: #{mesh_regressor_forward.2} parent=51 // pred_check
        %p925 = pneg %p217
      $region54: #{mesh_regressor_forward.2} parent=51 // pred_check_branch
        %927 = sbr.rel (%p925) target = $region56
      $region55: #{mesh_regressor_forward.2} parent=51 // pred_region
        _
      $region56: #{mesh_regressor_forward.2} parent=51 // pred_fallthru
        _
      // Predicated region
      $region57: #{mesh_regressor_forward.2} parent=51 // pred_check
        %p928 = pneg %p243
      $region58: #{mesh_regressor_forward.2} parent=51 // pred_check_branch
        %930 = sbr.rel (%p928) target = $region60
      $region59: #{mesh_regressor_forward.2} parent=51 // pred_region
        _
      $region60: #{mesh_regressor_forward.2} parent=51 // pred_fallthru
        _
    $region52: #{mesh_regressor_forward.2} parent=5 // pred_fallthru
      _
    %p931 = scmp.le.s32.totalorder 2, %s16
    // Predicated region
    $region61: #{mesh_regressor_forward.2} parent=5 // pred_check
      %p932 = pneg %p931
    $region62: #{mesh_regressor_forward.2} parent=5 // pred_check_branch
      %934 = sbr.rel (%p932) target = $region64
    $region63: #{mesh_regressor_forward.2} parent=5 // pred_region
      %s935 = ssub.s32 %s16, 2
      // Predicated region
      $region65: #{mesh_regressor_forward.2} parent=63 // pred_check
        %p936 = pneg %p223
      $region66: #{mesh_regressor_forward.2} parent=63 // pred_check_branch
        %938 = sbr.rel (%p936) target = $region68
      $region67: #{mesh_regressor_forward.2} parent=63 // pred_region
        %p939 = scmp.lt.s32.totalorder %s22, 1
        %s940 = scalar_select %p939, %s22, 1
        %s941 = smul.addr %s940, 8
        %s942 = smul.addr %s941, 8
        %s943 = scalar_lea.vmem %s8, %s942
      $region68: #{mesh_regressor_forward.2} parent=63 // pred_fallthru
        _
      // Predicated region
      $region69: #{mesh_regressor_forward.2} parent=63 // pred_check
        %p944 = pneg %p249
      $region70: #{mesh_regressor_forward.2} parent=63 // pred_check_branch
        %946 = sbr.rel (%p944) target = $region72
      $region71: #{mesh_regressor_forward.2} parent=63 // pred_region
        %p947 = scmp.lt.s32.totalorder %s22, 1
        %s948 = scalar_select %p947, %s22, 1
        %s949 = smul.addr %s948, 8
        %s950 = smul.addr %s949, 8
        %s951 = scalar_lea.vmem %s9, %s950
      $region72: #{mesh_regressor_forward.2} parent=63 // pred_fallthru
        _
    $region64: #{mesh_regressor_forward.2} parent=5 // pred_fallthru
      _
  $region6: #{mesh_regressor_forward.2} parent=0 // loop_footer
    %s20 = sadd.s32 1, %s16
  $region7: #{mesh_regressor_forward.2} parent=0 // loop_footer_branch
    %15 = sbr.rel target = $region3
  $region8: #{mesh_regressor_forward.2} parent=0 // loop_exit
    _

// kernel: mesh_regressor_forward.3
$region0: #{mesh_regressor_forward.3}
  #allocation0 [shape = 'u32[]', space=smem, size = 0x4, offset = 0x4, fixed_abs, tag = 'smem constant byte address 0x4 - core index']
  #allocation1 [shape = 'u32[144,128]{1,0:T(1,128)}', space=vmem, size = 0x12000, scoped, tag = 'internal scratch']
  #allocation2 [shape = 'f32[64,128]{1,0:T(8,128)}', space=vmem, size = 0x8000, scoped, tag = 'scratch operand']
  %s0 = inlined_call_operand.vmem [shape: f32[2,64,128], index: 0, kind: input, shape index: {}]
  %s1 = inlined_call_operand.vmem [shape: f32[2,64,128], index: 1, kind: input, shape index: {}]
  %s2 = inlined_call_operand.vmem [shape: bf16[2,128,384], index: 2, kind: input, shape index: {}]
  %s3 = inlined_call_operand.vmem [shape: f32[2,1,384], index: 3, kind: input, shape index: {}]
  %s4 = inlined_call_operand.vmem [shape: bf16[2,128,128], index: 4, kind: input, shape index: {}]
  %s5 = inlined_call_operand.vmem [shape: f32[2,1,128], index: 5, kind: input, shape index: {}]
  %s6 = inlined_call_operand.vmem [shape: f32[2,1,128], index: 6, kind: input, shape index: {}]
  %s7 = inlined_call_operand.vmem [shape: f32[2,1,128], index: 7, kind: input, shape index: {}]
  %s8 = inlined_call_operand.vmem [shape: bf16[2,128,512], index: 8, kind: input, shape index: {}]
  %s9 = inlined_call_operand.vmem [shape: f32[2,1,512], index: 9, kind: input, shape index: {}]
  %s10 = inlined_call_operand.vmem [shape: bf16[2,512,128], index: 10, kind: input, shape index: {}]
  %s11 = inlined_call_operand.vmem [shape: f32[2,1,128], index: 11, kind: input, shape index: {}]
  %s12 = inlined_call_operand.vmem [shape: f32[2,1,128], index: 12, kind: input, shape index: {}]
  %s13 = inlined_call_operand.vmem [shape: f32[2,1,128], index: 13, kind: input, shape index: {}]
  %s14 = inlined_call_operand.hbm [shape: f32[2,64,128], index: 14, kind: output, shape index: {}]
  %s15 = sld [smem:[#allocation0]]
  $region101: #{mesh_regressor_forward.3} parent=0
    _
  %s17 = ssub.s32 1, %s15
  %s18 = scalar_select 0, %s17, %s15
  $region1: #{mesh_regressor_forward.3} parent=0
    #allocation3 [shape = 'u8[65536]{0}', space=vmem, size = 0x10000, scoped, tag = 'output window, operand 0']
    #allocation4 [shape = 's32[2]{0}', space=sflag, size = 0x8, scoped, tag = 'scoped memory for mesh_regressor_forward.3']
    %19 = vsyncpa [#allocation4], 0
    %s20 = scalar_lea.sflag [#allocation4], 1
    %21 = vsyncpa %s20, 0
    loop: start=0, step=1, limit=6
    $region2: #{mesh_regressor_forward.3} parent=1 // loop_pre_header
      _
    $region3: #{mesh_regressor_forward.3} parent=1 // loop_header
      %s23 = sphi 0, %s27
      %p24 = scmp.ge.s32.totalorder %s23, 6
      %s30 = sphi 0, %s42
      %s31 = sphi 0, %s38
      %s32 = sphi 0, %s30
      %s33 = sphi 0, %s31
      %s34 = sphi 0, %s32
      %s35 = sphi 0, %s33
      %s45 = sphi 0, %s47
      %s48 = sphi 0, %s45
      %s49 = sphi 0, %s48
      %s65 = sphi 0, %s49
      %s71 = sphi 0, %s73
      %s74 = sphi 0, %s71
      %s75 = sphi 0, %s74
      %s91 = sphi 0, %s75
      %s97 = sphi 0, %s99
      %s100 = sphi 0, %s97
      %s101 = sphi 0, %s100
      %s117 = sphi 0, %s101
      %s123 = sphi 0, %s125
      %s126 = sphi 0, %s123
      %s127 = sphi 0, %s126
      %s143 = sphi 0, %s127
      %s149 = sphi 0, %s151
      %s152 = sphi 0, %s149
      %s153 = sphi 0, %s152
      %s169 = sphi 0, %s153
      %s175 = sphi 0, %s177
      %s178 = sphi 0, %s175
      %s179 = sphi 0, %s178
      %s195 = sphi 0, %s179
      %s201 = sphi 0, %s203
      %s204 = sphi 0, %s201
      %s205 = sphi 0, %s204
      %s221 = sphi 0, %s205
      %s227 = sphi 0, %s229
      %s230 = sphi 0, %s227
      %s231 = sphi 0, %s230
      %s247 = sphi 0, %s231
      %s253 = sphi 0, %s255
      %s256 = sphi 0, %s253
      %s257 = sphi 0, %s256
      %s273 = sphi 0, %s257
      %s279 = sphi 0, %s281
      %s282 = sphi 0, %s279
      %s283 = sphi 0, %s282
      %s299 = sphi 0, %s283
      %s305 = sphi 0, %s307
      %s308 = sphi 0, %s305
      %s309 = sphi 0, %s308
      %s325 = sphi 0, %s309
      %s331 = sphi 0, %s333
      %s334 = sphi 0, %s331
      %s335 = sphi 0, %s334
      %s351 = sphi 0, %s335
      %s357 = sphi 0, %s359
      %s360 = sphi 0, %s357
      %s361 = sphi 0, %s360
      %s377 = sphi 0, %s361
      %s383 = sphi 0, %s385
      %s386 = sphi 0, %s383
      %s387 = sphi 0, %s386
      %s403 = sphi 0, %s387
      %s409 = sphi 0, %s411
      %s412 = sphi 0, %s409
      %s413 = sphi 0, %s412
      %s429 = sphi 0, %s413
    $region4: #{mesh_regressor_forward.3} parent=1 // loop_header_branch
      %26 = sbr.rel (%p24) target = $region8
    $region5: #{mesh_regressor_forward.3} parent=1 // loop_body
      %s28 = ssub.s32 %s23, 1
      %s29 = ssub.s32 %s23, 2
      %s36 = sadd.s32 1, %s31
      %p37 = scmp.ge.s32.totalorder %s36, 2
      %s38 = scalar_select %p37, 0, %s36
      %s39 = sadd.s32 1, %s30
      %s40 = scalar_select %p37, %s39, %s30
      %p41 = scmp.ge.s32.totalorder %s40, 2
      %s42 = scalar_select %p41, 0, %s40
      %s43 = ssub.s32 %s30, %s42
      %p44 = scmp.eq.s32.totalorder %s43, 0
      %s46 = sadd.s32 %s45, 1
      %s47 = scalar_select %p44, %s45, %s46
      %p50 = pneg %p44
      %p51 = scmp.eq.s32.totalorder %s23, 3
      %p52 = por %p50, %p51
      %p53 = scmp.ne.s32.totalorder %s45, %s48
      %p54 = scmp.eq.s32.totalorder %s23, 0
      %p55 = por %p53, %p54
      %p56 = scmp.ne.s32.totalorder %s45, %s48
      %p57 = scmp.eq.s32.totalorder %s28, 3
      %p58 = por %p56, %p57
      %p59 = scmp.ne.s32.totalorder %s48, %s49
      %p60 = scmp.eq.s32.totalorder %s28, 0
      %p61 = por %p59, %p60
      %p62 = scmp.ne.s32.totalorder %s48, %s49
      %p63 = scmp.eq.s32.totalorder %s29, 3
      %p64 = por %p62, %p63
      %p66 = scmp.ne.s32.totalorder %s49, %s65
      %p67 = scmp.eq.s32.totalorder %s29, 0
      %p68 = por %p66, %p67
      %s69 = ssub.s32 %s30, %s42
      %p70 = scmp.eq.s32.totalorder %s69, 0
      %s72 = sadd.s32 %s71, 1
      %s73 = scalar_select %p70, %s71, %s72
      %p76 = pneg %p70
      %p77 = scmp.eq.s32.totalorder %s23, 3
      %p78 = por %p76, %p77
      %p79 = scmp.ne.s32.totalorder %s71, %s74
      %p80 = scmp.eq.s32.totalorder %s23, 0
      %p81 = por %p79, %p80
      %p82 = scmp.ne.s32.totalorder %s71, %s74
      %p83 = scmp.eq.s32.totalorder %s28, 3
      %p84 = por %p82, %p83
      %p85 = scmp.ne.s32.totalorder %s74, %s75
      %p86 = scmp.eq.s32.totalorder %s28, 0
      %p87 = por %p85, %p86
      %p88 = scmp.ne.s32.totalorder %s74, %s75
      %p89 = scmp.eq.s32.totalorder %s29, 3
      %p90 = por %p88, %p89
      %p92 = scmp.ne.s32.totalorder %s75, %s91
      %p93 = scmp.eq.s32.totalorder %s29, 0
      %p94 = por %p92, %p93
      %s95 = ssub.s32 %s31, %s38
      %p96 = scmp.eq.s32.totalorder %s95, 0
      %s98 = sadd.s32 %s97, 1
      %s99 = scalar_select %p96, %s97, %s98
      %p102 = pneg %p96
      %p103 = scmp.eq.s32.totalorder %s23, 3
      %p104 = por %p102, %p103
      %p105 = scmp.ne.s32.totalorder %s97, %s100
      %p106 = scmp.eq.s32.totalorder %s23, 0
      %p107 = por %p105, %p106
      %p108 = scmp.ne.s32.totalorder %s97, %s100
      %p109 = scmp.eq.s32.totalorder %s28, 3
      %p110 = por %p108, %p109
      %p111 = scmp.ne.s32.totalorder %s100, %s101
      %p112 = scmp.eq.s32.totalorder %s28, 0
      %p113 = por %p111, %p112
      %p114 = scmp.ne.s32.totalorder %s100, %s101
      %p115 = scmp.eq.s32.totalorder %s29, 3
      %p116 = por %p114, %p115
      %p118 = scmp.ne.s32.totalorder %s101, %s117
      %p119 = scmp.eq.s32.totalorder %s29, 0
      %p120 = por %p118, %p119
      %s121 = ssub.s32 %s31, %s38
      %p122 = scmp.eq.s32.totalorder %s121, 0
      %s124 = sadd.s32 %s123, 1
      %s125 = scalar_select %p122, %s123, %s124
      %p128 = pneg %p122
      %p129 = scmp.eq.s32.totalorder %s23, 3
      %p130 = por %p128, %p129
      %p131 = scmp.ne.s32.totalorder %s123, %s126
      %p132 = scmp.eq.s32.totalorder %s23, 0
      %p133 = por %p131, %p132
      %p134 = scmp.ne.s32.totalorder %s123, %s126
      %p135 = scmp.eq.s32.totalorder %s28, 3
      %p136 = por %p134, %p135
      %p137 = scmp.ne.s32.totalorder %s126, %s127
      %p138 = scmp.eq.s32.totalorder %s28, 0
      %p139 = por %p137, %p138
      %p140 = scmp.ne.s32.totalorder %s126, %s127
      %p141 = scmp.eq.s32.totalorder %s29, 3
      %p142 = por %p140, %p141
      %p144 = scmp.ne.s32.totalorder %s127, %s143
      %p145 = scmp.eq.s32.totalorder %s29, 0
      %p146 = por %p144, %p145
      %s147 = ssub.s32 %s31, %s38
      %p148 = scmp.eq.s32.totalorder %s147, 0
      %s150 = sadd.s32 %s149, 1
      %s151 = scalar_select %p148, %s149, %s150
      %p154 = pneg %p148
      %p155 = scmp.eq.s32.totalorder %s23, 3
      %p156 = por %p154, %p155
      %p157 = scmp.ne.s32.totalorder %s149, %s152
      %p158 = scmp.eq.s32.totalorder %s23, 0
      %p159 = por %p157, %p158
      %p160 = scmp.ne.s32.totalorder %s149, %s152
      %p161 = scmp.eq.s32.totalorder %s28, 3
      %p162 = por %p160, %p161
      %p163 = scmp.ne.s32.totalorder %s152, %s153
      %p164 = scmp.eq.s32.totalorder %s28, 0
      %p165 = por %p163, %p164
      %p166 = scmp.ne.s32.totalorder %s152, %s153
      %p167 = scmp.eq.s32.totalorder %s29, 3
      %p168 = por %p166, %p167
      %p170 = scmp.ne.s32.totalorder %s153, %s169
      %p171 = scmp.eq.s32.totalorder %s29, 0
      %p172 = por %p170, %p171
      %s173 = ssub.s32 %s31, %s38
      %p174 = scmp.eq.s32.totalorder %s173, 0
      %s176 = sadd.s32 %s175, 1
      %s177 = scalar_select %p174, %s175, %s176
      %p180 = pneg %p174
      %p181 = scmp.eq.s32.totalorder %s23, 3
      %p182 = por %p180, %p181
      %p183 = scmp.ne.s32.totalorder %s175, %s178
      %p184 = scmp.eq.s32.totalorder %s23, 0
      %p185 = por %p183, %p184
      %p186 = scmp.ne.s32.totalorder %s175, %s178
      %p187 = scmp.eq.s32.totalorder %s28, 3
      %p188 = por %p186, %p187
      %p189 = scmp.ne.s32.totalorder %s178, %s179
      %p190 = scmp.eq.s32.totalorder %s28, 0
      %p191 = por %p189, %p190
      %p192 = scmp.ne.s32.totalorder %s178, %s179
      %p193 = scmp.eq.s32.totalorder %s29, 3
      %p194 = por %p192, %p193
      %p196 = scmp.ne.s32.totalorder %s179, %s195
      %p197 = scmp.eq.s32.totalorder %s29, 0
      %p198 = por %p196, %p197
      %s199 = ssub.s32 %s31, %s38
      %p200 = scmp.eq.s32.totalorder %s199, 0
      %s202 = sadd.s32 %s201, 1
      %s203 = scalar_select %p200, %s201, %s202
      %p206 = pneg %p200
      %p207 = scmp.eq.s32.totalorder %s23, 3
      %p208 = por %p206, %p207
      %p209 = scmp.ne.s32.totalorder %s201, %s204
      %p210 = scmp.eq.s32.totalorder %s23, 0
      %p211 = por %p209, %p210
      %p212 = scmp.ne.s32.totalorder %s201, %s204
      %p213 = scmp.eq.s32.totalorder %s28, 3
      %p214 = por %p212, %p213
      %p215 = scmp.ne.s32.totalorder %s204, %s205
      %p216 = scmp.eq.s32.totalorder %s28, 0
      %p217 = por %p215, %p216
      %p218 = scmp.ne.s32.totalorder %s204, %s205
      %p219 = scmp.eq.s32.totalorder %s29, 3
      %p220 = por %p218, %p219
      %p222 = scmp.ne.s32.totalorder %s205, %s221
      %p223 = scmp.eq.s32.totalorder %s29, 0
      %p224 = por %p222, %p223
      %s225 = ssub.s32 %s31, %s38
      %p226 = scmp.eq.s32.totalorder %s225, 0
      %s228 = sadd.s32 %s227, 1
      %s229 = scalar_select %p226, %s227, %s228
      %p232 = pneg %p226
      %p233 = scmp.eq.s32.totalorder %s23, 3
      %p234 = por %p232, %p233
      %p235 = scmp.ne.s32.totalorder %s227, %s230
      %p236 = scmp.eq.s32.totalorder %s23, 0
      %p237 = por %p235, %p236
      %p238 = scmp.ne.s32.totalorder %s227, %s230
      %p239 = scmp.eq.s32.totalorder %s28, 3
      %p240 = por %p238, %p239
      %p241 = scmp.ne.s32.totalorder %s230, %s231
      %p242 = scmp.eq.s32.totalorder %s28, 0
      %p243 = por %p241, %p242
      %p244 = scmp.ne.s32.totalorder %s230, %s231
      %p245 = scmp.eq.s32.totalorder %s29, 3
      %p246 = por %p244, %p245
      %p248 = scmp.ne.s32.totalorder %s231, %s247
      %p249 = scmp.eq.s32.totalorder %s29, 0
      %p250 = por %p248, %p249
      %s251 = ssub.s32 %s31, %s38
      %p252 = scmp.eq.s32.totalorder %s251, 0
      %s254 = sadd.s32 %s253, 1
      %s255 = scalar_select %p252, %s253, %s254
      %p258 = pneg %p252
      %p259 = scmp.eq.s32.totalorder %s23, 3
      %p260 = por %p258, %p259
      %p261 = scmp.ne.s32.totalorder %s253, %s256
      %p262 = scmp.eq.s32.totalorder %s23, 0
      %p263 = por %p261, %p262
      %p264 = scmp.ne.s32.totalorder %s253, %s256
      %p265 = scmp.eq.s32.totalorder %s28, 3
      %p266 = por %p264, %p265
      %p267 = scmp.ne.s32.totalorder %s256, %s257
      %p268 = scmp.eq.s32.totalorder %s28, 0
      %p269 = por %p267, %p268
      %p270 = scmp.ne.s32.totalorder %s256, %s257
      %p271 = scmp.eq.s32.totalorder %s29, 3
      %p272 = por %p270, %p271
      %p274 = scmp.ne.s32.totalorder %s257, %s273
      %p275 = scmp.eq.s32.totalorder %s29, 0
      %p276 = por %p274, %p275
      %s277 = ssub.s32 %s31, %s38
      %p278 = scmp.eq.s32.totalorder %s277, 0
      %s280 = sadd.s32 %s279, 1
      %s281 = scalar_select %p278, %s279, %s280
      %p284 = pneg %p278
      %p285 = scmp.eq.s32.totalorder %s23, 3
      %p286 = por %p284, %p285
      %p287 = scmp.ne.s32.totalorder %s279, %s282
      %p288 = scmp.eq.s32.totalorder %s23, 0
      %p289 = por %p287, %p288
      %p290 = scmp.ne.s32.totalorder %s279, %s282
      %p291 = scmp.eq.s32.totalorder %s28, 3
      %p292 = por %p290, %p291
      %p293 = scmp.ne.s32.totalorder %s282, %s283
      %p294 = scmp.eq.s32.totalorder %s28, 0
      %p295 = por %p293, %p294
      %p296 = scmp.ne.s32.totalorder %s282, %s283
      %p297 = scmp.eq.s32.totalorder %s29, 3
      %p298 = por %p296, %p297
      %p300 = scmp.ne.s32.totalorder %s283, %s299
      %p301 = scmp.eq.s32.totalorder %s29, 0
      %p302 = por %p300, %p301
      %s303 = ssub.s32 %s31, %s38
      %p304 = scmp.eq.s32.totalorder %s303, 0
      %s306 = sadd.s32 %s305, 1
      %s307 = scalar_select %p304, %s305, %s306
      %p310 = pneg %p304
      %p311 = scmp.eq.s32.totalorder %s23, 3
      %p312 = por %p310, %p311
      %p313 = scmp.ne.s32.totalorder %s305, %s308
      %p314 = scmp.eq.s32.totalorder %s23, 0
      %p315 = por %p313, %p314
      %p316 = scmp.ne.s32.totalorder %s305, %s308
      %p317 = scmp.eq.s32.totalorder %s28, 3
      %p318 = por %p316, %p317
      %p319 = scmp.ne.s32.totalorder %s308, %s309
      %p320 = scmp.eq.s32.totalorder %s28, 0
      %p321 = por %p319, %p320
      %p322 = scmp.ne.s32.totalorder %s308, %s309
      %p323 = scmp.eq.s32.totalorder %s29, 3
      %p324 = por %p322, %p323
      %p326 = scmp.ne.s32.totalorder %s309, %s325
      %p327 = scmp.eq.s32.totalorder %s29, 0
      %p328 = por %p326, %p327
      %s329 = ssub.s32 %s31, %s38
      %p330 = scmp.eq.s32.totalorder %s329, 0
      %s332 = sadd.s32 %s331, 1
      %s333 = scalar_select %p330, %s331, %s332
      %p336 = pneg %p330
      %p337 = scmp.eq.s32.totalorder %s23, 3
      %p338 = por %p336, %p337
      %p339 = scmp.ne.s32.totalorder %s331, %s334
      %p340 = scmp.eq.s32.totalorder %s23, 0
      %p341 = por %p339, %p340
      %p342 = scmp.ne.s32.totalorder %s331, %s334
      %p343 = scmp.eq.s32.totalorder %s28, 3
      %p344 = por %p342, %p343
      %p345 = scmp.ne.s32.totalorder %s334, %s335
      %p346 = scmp.eq.s32.totalorder %s28, 0
      %p347 = por %p345, %p346
      %p348 = scmp.ne.s32.totalorder %s334, %s335
      %p349 = scmp.eq.s32.totalorder %s29, 3
      %p350 = por %p348, %p349
      %p352 = scmp.ne.s32.totalorder %s335, %s351
      %p353 = scmp.eq.s32.totalorder %s29, 0
      %p354 = por %p352, %p353
      %s355 = ssub.s32 %s31, %s38
      %p356 = scmp.eq.s32.totalorder %s355, 0
      %s358 = sadd.s32 %s357, 1
      %s359 = scalar_select %p356, %s357, %s358
      %p362 = pneg %p356
      %p363 = scmp.eq.s32.totalorder %s23, 3
      %p364 = por %p362, %p363
      %p365 = scmp.ne.s32.totalorder %s357, %s360
      %p366 = scmp.eq.s32.totalorder %s23, 0
      %p367 = por %p365, %p366
      %p368 = scmp.ne.s32.totalorder %s357, %s360
      %p369 = scmp.eq.s32.totalorder %s28, 3
      %p370 = por %p368, %p369
      %p371 = scmp.ne.s32.totalorder %s360, %s361
      %p372 = scmp.eq.s32.totalorder %s28, 0
      %p373 = por %p371, %p372
      %p374 = scmp.ne.s32.totalorder %s360, %s361
      %p375 = scmp.eq.s32.totalorder %s29, 3
      %p376 = por %p374, %p375
      %p378 = scmp.ne.s32.totalorder %s361, %s377
      %p379 = scmp.eq.s32.totalorder %s29, 0
      %p380 = por %p378, %p379
      %s381 = ssub.s32 %s31, %s38
      %p382 = scmp.eq.s32.totalorder %s381, 0
      %s384 = sadd.s32 %s383, 1
      %s385 = scalar_select %p382, %s383, %s384
      %p388 = pneg %p382
      %p389 = scmp.eq.s32.totalorder %s23, 3
      %p390 = por %p388, %p389
      %p391 = scmp.ne.s32.totalorder %s383, %s386
      %p392 = scmp.eq.s32.totalorder %s23, 0
      %p393 = por %p391, %p392
      %p394 = scmp.ne.s32.totalorder %s383, %s386
      %p395 = scmp.eq.s32.totalorder %s28, 3
      %p396 = por %p394, %p395
      %p397 = scmp.ne.s32.totalorder %s386, %s387
      %p398 = scmp.eq.s32.totalorder %s28, 0
      %p399 = por %p397, %p398
      %p400 = scmp.ne.s32.totalorder %s386, %s387
      %p401 = scmp.eq.s32.totalorder %s29, 3
      %p402 = por %p400, %p401
      %p404 = scmp.ne.s32.totalorder %s387, %s403
      %p405 = scmp.eq.s32.totalorder %s29, 0
      %p406 = por %p404, %p405
      %s407 = ssub.s32 %s30, %s42
      %p408 = scmp.eq.s32.totalorder %s407, 0
      %s410 = sadd.s32 %s409, 1
      %s411 = scalar_select %p408, %s409, %s410
      %p414 = pneg %p408
      %p415 = scmp.eq.s32.totalorder %s23, 3
      %p416 = por %p414, %p415
      %p417 = scmp.ne.s32.totalorder %s409, %s412
      %p418 = scmp.eq.s32.totalorder %s23, 0
      %p419 = por %p417, %p418
      %p420 = scmp.ne.s32.totalorder %s409, %s412
      %p421 = scmp.eq.s32.totalorder %s28, 3
      %p422 = por %p420, %p421
      %p423 = scmp.ne.s32.totalorder %s412, %s413
      %p424 = scmp.eq.s32.totalorder %s28, 0
      %p425 = por %p423, %p424
      %p426 = scmp.ne.s32.totalorder %s412, %s413
      %p427 = scmp.eq.s32.totalorder %s29, 3
      %p428 = por %p426, %p427
      %p430 = scmp.ne.s32.totalorder %s413, %s429
      %p431 = scmp.eq.s32.totalorder %s29, 0
      %p432 = por %p430, %p431
      %p433 = scmp.le.s32.totalorder 1, %s23
      %p434 = scmp.lt.s32.totalorder %s23, 5
      %p435 = pnand %p433, %p434
      %p436 = pneg %p435
      // Predicated region
      $region9: #{mesh_regressor_forward.3} parent=5 // pred_check
        _
      $region10: #{mesh_regressor_forward.3} parent=5 // pred_check_branch
        %438 = sbr.rel (%p435) target = $region12
      $region11: #{mesh_regressor_forward.3} parent=5 // pred_region
        %s439 = ssub.s32 %s23, 1
      $region12: #{mesh_regressor_forward.3} parent=5 // pred_fallthru
        _
      %p440 = scmp.lt.s32.totalorder %s23, 4
      // Predicated region
      $region13: #{mesh_regressor_forward.3} parent=5 // pred_check
        %p441 = pneg %p440
      $region14: #{mesh_regressor_forward.3} parent=5 // pred_check_branch
        %443 = sbr.rel (%p441) target = $region16
      $region15: #{mesh_regressor_forward.3} parent=5 // pred_region
        // Predicated region
        $region17: #{mesh_regressor_forward.3} parent=15 // pred_check
          %p444 = pneg %p55
        $region18: #{mesh_regressor_forward.3} parent=15 // pred_check_branch
          %446 = sbr.rel (%p444) target = $region20
        $region19: #{mesh_regressor_forward.3} parent=15 // pred_region
          %p447 = scmp.lt.s32.totalorder %s30, 1
          %s448 = scalar_select %p447, %s30, 1
          %s449 = smul.addr %s448, 8
          %s450 = smul.addr %s449, 8
          %s451 = scalar_lea.vmem %s0, %s450
        $region20: #{mesh_regressor_forward.3} parent=15 // pred_fallthru
          _
        // Predicated region
        $region21: #{mesh_regressor_forward.3} parent=15 // pred_check
          %p452 = pneg %p81
        $region22: #{mesh_regressor_forward.3} parent=15 // pred_check_branch
          %454 = sbr.rel (%p452) target = $region24
        $region23: #{mesh_regressor_forward.3} parent=15 // pred_region
          %p455 = scmp.lt.s32.totalorder %s30, 1
          %s456 = scalar_select %p455, %s30, 1
          %s457 = smul.addr %s456, 8
          %s458 = smul.addr %s457, 8
          %s459 = scalar_lea.vmem %s1, %s458
        $region24: #{mesh_regressor_forward.3} parent=15 // pred_fallthru
          _
        // Predicated region
        $region25: #{mesh_regressor_forward.3} parent=15 // pred_check
          %p460 = pneg %p107
        $region26: #{mesh_regressor_forward.3} parent=15 // pred_check_branch
          %462 = sbr.rel (%p460) target = $region28
        $region27: #{mesh_regressor_forward.3} parent=15 // pred_region
          %p463 = scmp.lt.s32.totalorder %s31, 1
          %s464 = scalar_select %p463, %s31, 1
          %s465 = smul.addr %s464, 48
          %s466 = smul.addr %s465, 4
          %s467 = scalar_lea.vmem %s2, %s466
        $region28: #{mesh_regressor_forward.3} parent=15 // pred_fallthru
          _
        // Predicated region
        $region29: #{mesh_regressor_forward.3} parent=15 // pred_check
          %p468 = pneg %p133
        $region30: #{mesh_regressor_forward.3} parent=15 // pred_check_branch
          %470 = sbr.rel (%p468) target = $region32
        $region31: #{mesh_regressor_forward.3} parent=15 // pred_region
          %p471 = scmp.lt.s32.totalorder %s31, 1
          %s472 = scalar_select %p471, %s31, 1
          %s473 = smul.addr %s472, 3
          %s474 = scalar_lea.vmem %s3, %s473
        $region32: #{mesh_regressor_forward.3} parent=15 // pred_fallthru
          _
        // Predicated region
        $region33: #{mesh_regressor_forward.3} parent=15 // pred_check
          %p475 = pneg %p159
        $region34: #{mesh_regressor_forward.3} parent=15 // pred_check_branch
          %477 = sbr.rel (%p475) target = $region36
        $region35: #{mesh_regressor_forward.3} parent=15 // pred_region
          %p478 = scmp.lt.s32.totalorder %s31, 1
          %s479 = scalar_select %p478, %s31, 1
          %s480 = smul.addr %s479, 16
          %s481 = smul.addr %s480, 4
          %s482 = scalar_lea.vmem %s4, %s481
        $region36: #{mesh_regressor_forward.3} parent=15 // pred_fallthru
          _
        // Predicated region
        $region37: #{mesh_regressor_forward.3} parent=15 // pred_check
          %p483 = pneg %p185
        $region38: #{mesh_regressor_forward.3} parent=15 // pred_check_branch
          %485 = sbr.rel (%p483) target = $region40
        $region39: #{mesh_regressor_forward.3} parent=15 // pred_region
          %p486 = scmp.lt.s32.totalorder %s31, 1
          %s487 = scalar_select %p486, %s31, 1
          %s488 = scalar_lea.vmem %s5, %s487
        $region40: #{mesh_regressor_forward.3} parent=15 // pred_fallthru
          _
        // Predicated region
        $region41: #{mesh_regressor_forward.3} parent=15 // pred_check
          %p489 = pneg %p211
        $region42: #{mesh_regressor_forward.3} parent=15 // pred_check_branch
          %491 = sbr.rel (%p489) target = $region44
        $region43: #{mesh_regressor_forward.3} parent=15 // pred_region
          %p492 = scmp.lt.s32.totalorder %s31, 1
          %s493 = scalar_select %p492, %s31, 1
          %s494 = scalar_lea.vmem %s6, %s493
        $region44: #{mesh_regressor_forward.3} parent=15 // pred_fallthru
          _
        // Predicated region
        $region45: #{mesh_regressor_forward.3} parent=15 // pred_check
          %p495 = pneg %p237
        $region46: #{mesh_regressor_forward.3} parent=15 // pred_check_branch
          %497 = sbr.rel (%p495) target = $region48
        $region47: #{mesh_regressor_forward.3} parent=15 // pred_region
          %p498 = scmp.lt.s32.totalorder %s31, 1
          %s499 = scalar_select %p498, %s31, 1
          %s500 = scalar_lea.vmem %s7, %s499
        $region48: #{mesh_regressor_forward.3} parent=15 // pred_fallthru
          _
        // Predicated region
        $region49: #{mesh_regressor_forward.3} parent=15 // pred_check
          %p501 = pneg %p263
        $region50: #{mesh_regressor_forward.3} parent=15 // pred_check_branch
          %503 = sbr.rel (%p501) target = $region52
        $region51: #{mesh_regressor_forward.3} parent=15 // pred_region
          %p504 = scmp.lt.s32.totalorder %s31, 1
          %s505 = scalar_select %p504, %s31, 1
          %s506 = smul.addr %s505, 64
          %s507 = smul.addr %s506, 4
          %s508 = scalar_lea.vmem %s8, %s507
        $region52: #{mesh_regressor_forward.3} parent=15 // pred_fallthru
          _
        // Predicated region
        $region53: #{mesh_regressor_forward.3} parent=15 // pred_check
          %p509 = pneg %p289
        $region54: #{mesh_regressor_forward.3} parent=15 // pred_check_branch
          %511 = sbr.rel (%p509) target = $region56
        $region55: #{mesh_regressor_forward.3} parent=15 // pred_region
          %p512 = scmp.lt.s32.totalorder %s31, 1
          %s513 = scalar_select %p512, %s31, 1
          %s514 = smul.addr %s513, 4
          %s515 = scalar_lea.vmem %s9, %s514
        $region56: #{mesh_regressor_forward.3} parent=15 // pred_fallthru
          _
        // Predicated region
        $region57: #{mesh_regressor_forward.3} parent=15 // pred_check
          %p516 = pneg %p315
        $region58: #{mesh_regressor_forward.3} parent=15 // pred_check_branch
          %518 = sbr.rel (%p516) target = $region60
        $region59: #{mesh_regressor_forward.3} parent=15 // pred_region
          %p519 = scmp.lt.s32.totalorder %s31, 1
          %s520 = scalar_select %p519, %s31, 1
          %s521 = smul.addr %s520, 64
          %s522 = smul.addr %s521, 4
          %s523 = scalar_lea.vmem %s10, %s522
        $region60: #{mesh_regressor_forward.3} parent=15 // pred_fallthru
          _
        // Predicated region
        $region61: #{mesh_regressor_forward.3} parent=15 // pred_check
          %p524 = pneg %p341
        $region62: #{mesh_regressor_forward.3} parent=15 // pred_check_branch
          %526 = sbr.rel (%p524) target = $region64
        $region63: #{mesh_regressor_forward.3} parent=15 // pred_region
          %p527 = scmp.lt.s32.totalorder %s31, 1
          %s528 = scalar_select %p527, %s31, 1
          %s529 = scalar_lea.vmem %s11, %s528
        $region64: #{mesh_regressor_forward.3} parent=15 // pred_fallthru
          _
        // Predicated region
        $region65: #{mesh_regressor_forward.3} parent=15 // pred_check
          %p530 = pneg %p367
        $region66: #{mesh_regressor_forward.3} parent=15 // pred_check_branch
          %532 = sbr.rel (%p530) target = $region68
        $region67: #{mesh_regressor_forward.3} parent=15 // pred_region
          %p533 = scmp.lt.s32.totalorder %s31, 1
          %s534 = scalar_select %p533, %s31, 1
          %s535 = scalar_lea.vmem %s12, %s534
        $region68: #{mesh_regressor_forward.3} parent=15 // pred_fallthru
          _
        // Predicated region
        $region69: #{mesh_regressor_forward.3} parent=15 // pred_check
          %p536 = pneg %p393
        $region70: #{mesh_regressor_forward.3} parent=15 // pred_check_branch
          %538 = sbr.rel (%p536) target = $region72
        $region71: #{mesh_regressor_forward.3} parent=15 // pred_region
          %p539 = scmp.lt.s32.totalorder %s31, 1
          %s540 = scalar_select %p539, %s31, 1
          %s541 = scalar_lea.vmem %s13, %s540
        $region72: #{mesh_regressor_forward.3} parent=15 // pred_fallthru
          _
      $region16: #{mesh_regressor_forward.3} parent=5 // pred_fallthru
        _
      %p542 = scmp.le.s32.totalorder 1, %s23
      %p543 = scmp.lt.s32.totalorder %s23, 5
      %p544 = pnand %p542, %p543
      %p545 = pneg %p544
      // Predicated region
      $region73: #{mesh_regressor_forward.3} parent=5 // pred_check
        _
      $region74: #{mesh_regressor_forward.3} parent=5 // pred_check_branch
        %547 = sbr.rel (%p544) target = $region76
      $region75: #{mesh_regressor_forward.3} parent=5 // pred_region
        %s548 = ssub.s32 %s23, 1
        %p549 = scmp.lt.s32.totalorder %s32, 1
        %s550 = scalar_select %p549, %s32, 1
        %s551 = smul.addr %s550, 8
        %s552 = smul.addr %s551, 8
        %s553 = scalar_lea.vmem %s0, %s552
        %p554 = pneg %p61
        %p555 = pneg %p58
        %p556 = scmp.lt.s32.totalorder %s32, 1
        %s557 = scalar_select %p556, %s32, 1
        %s558 = smul.addr %s557, 8
        %s559 = smul.addr %s558, 8
        %s560 = scalar_lea.vmem %s1, %s559
        %p561 = pneg %p87
        %p562 = pneg %p84
        %p563 = scmp.lt.s32.totalorder %s33, 1
        %s564 = scalar_select %p563, %s33, 1
        %s565 = smul.addr %s564, 48
        %s566 = smul.addr %s565, 4
        %s567 = scalar_lea.vmem %s2, %s566
        %p568 = pneg %p113
        %p569 = pneg %p110
        %p570 = scmp.lt.s32.totalorder %s33, 1
        %s571 = scalar_select %p570, %s33, 1
        %s572 = smul.addr %s571, 3
        %s573 = scalar_lea.vmem %s3, %s572
        %p574 = pneg %p139
        %p575 = pneg %p136
        %p576 = scmp.lt.s32.totalorder %s33, 1
        %s577 = scalar_select %p576, %s33, 1
        %s578 = smul.addr %s577, 16
        %s579 = smul.addr %s578, 4
        %s580 = scalar_lea.vmem %s4, %s579
        %p581 = pneg %p165
        %p582 = pneg %p162
        %p583 = scmp.lt.s32.totalorder %s33, 1
        %s584 = scalar_select %p583, %s33, 1
        %s585 = scalar_lea.vmem %s5, %s584
        %p586 = pneg %p191
        %p587 = pneg %p188
        %p588 = scmp.lt.s32.totalorder %s33, 1
        %s589 = scalar_select %p588, %s33, 1
        %s590 = scalar_lea.vmem %s6, %s589
        %p591 = pneg %p217
        %p592 = pneg %p214
        %p593 = scmp.lt.s32.totalorder %s33, 1
        %s594 = scalar_select %p593, %s33, 1
        %s595 = scalar_lea.vmem %s7, %s594
        %p596 = pneg %p243
        %p597 = pneg %p240
        %p598 = scmp.lt.s32.totalorder %s33, 1
        %s599 = scalar_select %p598, %s33, 1
        %s600 = smul.addr %s599, 64
        %s601 = smul.addr %s600, 4
        %s602 = scalar_lea.vmem %s8, %s601
        %p603 = pneg %p269
        %p604 = pneg %p266
        %p605 = scmp.lt.s32.totalorder %s33, 1
        %s606 = scalar_select %p605, %s33, 1
        %s607 = smul.addr %s606, 4
        %s608 = scalar_lea.vmem %s9, %s607
        %p609 = pneg %p295
        %p610 = pneg %p292
        %p611 = scmp.lt.s32.totalorder %s33, 1
        %s612 = scalar_select %p611, %s33, 1
        %s613 = smul.addr %s612, 64
        %s614 = smul.addr %s613, 4
        %s615 = scalar_lea.vmem %s10, %s614
        %p616 = pneg %p321
        %p617 = pneg %p318
        %p618 = scmp.lt.s32.totalorder %s33, 1
        %s619 = scalar_select %p618, %s33, 1
        %s620 = scalar_lea.vmem %s11, %s619
        %p621 = pneg %p347
        %p622 = pneg %p344
        %p623 = scmp.lt.s32.totalorder %s33, 1
        %s624 = scalar_select %p623, %s33, 1
        %s625 = scalar_lea.vmem %s12, %s624
        %p626 = pneg %p373
        %p627 = pneg %p370
        %p628 = scmp.lt.s32.totalorder %s33, 1
        %s629 = scalar_select %p628, %s33, 1
        %s630 = scalar_lea.vmem %s13, %s629
        %p631 = pneg %p399
        %p632 = pneg %p396
        %p633 = pneg %p425
        %p634 = pneg %p422
        %s635 = sand.u32 %s412, 1
        %s636 = scalar_lea.sflag [#allocation4], %s635
        %s637 = sand.u32 %s412, 1
        %s638 = smul.addr %s637, 64
        %s639 = scalar_lea.vmem [#allocation3], %s638
        %p640 = scmp.lt.s32.totalorder %s32, 1
        %s641 = scalar_select %p640, %s32, 1
        %s642 = smul.addr %s641, 8
        %s643 = smul.addr %s642, 8
        %s644 = scalar_lea.vmem %s0, %s643
        %p645 = scmp.lt.s32.totalorder %s32, 1
        %s646 = scalar_select %p645, %s32, 1
        %s647 = smul.addr %s646, 8
        %s648 = smul.addr %s647, 8
        %s649 = scalar_lea.vmem %s1, %s648
        %p650 = scmp.lt.s32.totalorder %s33, 1
        %s651 = scalar_select %p650, %s33, 1
        %s652 = smul.addr %s651, 48
        %s653 = smul.addr %s652, 4
        %s654 = scalar_lea.vmem %s2, %s653
        %p655 = scmp.lt.s32.totalorder %s33, 1
        %s656 = scalar_select %p655, %s33, 1
        %s657 = smul.addr %s656, 3
        %s658 = scalar_lea.vmem %s3, %s657
        %p659 = scmp.lt.s32.totalorder %s33, 1
        %s660 = scalar_select %p659, %s33, 1
        %s661 = smul.addr %s660, 16
        %s662 = smul.addr %s661, 4
        %s663 = scalar_lea.vmem %s4, %s662
        %p664 = scmp.lt.s32.totalorder %s33, 1
        %s665 = scalar_select %p664, %s33, 1
        %s666 = scalar_lea.vmem %s5, %s665
        %p667 = scmp.lt.s32.totalorder %s33, 1
        %s668 = scalar_select %p667, %s33, 1
        %s669 = scalar_lea.vmem %s6, %s668
        %p670 = scmp.lt.s32.totalorder %s33, 1
        %s671 = scalar_select %p670, %s33, 1
        %s672 = scalar_lea.vmem %s7, %s671
        %p673 = scmp.lt.s32.totalorder %s33, 1
        %s674 = scalar_select %p673, %s33, 1
        %s675 = smul.addr %s674, 64
        %s676 = smul.addr %s675, 4
        %s677 = scalar_lea.vmem %s8, %s676
        %p678 = scmp.lt.s32.totalorder %s33, 1
        %s679 = scalar_select %p678, %s33, 1
        %s680 = smul.addr %s679, 4
        %s681 = scalar_lea.vmem %s9, %s680
        %p682 = scmp.lt.s32.totalorder %s33, 1
        %s683 = scalar_select %p682, %s33, 1
        %s684 = smul.addr %s683, 64
        %s685 = smul.addr %s684, 4
        %s686 = scalar_lea.vmem %s10, %s685
        %p687 = scmp.lt.s32.totalorder %s33, 1
        %s688 = scalar_select %p687, %s33, 1
        %s689 = scalar_lea.vmem %s11, %s688
        %p690 = scmp.lt.s32.totalorder %s33, 1
        %s691 = scalar_select %p690, %s33, 1
        %s692 = scalar_lea.vmem %s12, %s691
        %p693 = scmp.lt.s32.totalorder %s33, 1
        %s694 = scalar_select %p693, %s33, 1
        %s695 = scalar_lea.vmem %s13, %s694
        %p697 = scmp.eq.s32.totalorder %s33, 0
        // Predicated region
        $region77: #{mesh_regressor_forward.3} parent=75 // pred_check
          %p698 = pneg %p697
        $region78: #{mesh_regressor_forward.3} parent=75 // pred_check_branch
          %700 = sbr.rel (%p698) target = $region80
        $region79: #{mesh_regressor_forward.3} parent=75 // pred_region
          %v701 = vld [vmem:[%s644] sm:$0xff]
          %v702 = vld [vmem:[%s644 + $0x8] sm:$0xff]
          %v703 = vld [vmem:[%s644 + $0x10] sm:$0xff]
          %v704 = vld [vmem:[%s644 + $0x18] sm:$0xff]
          %v705 = vld [vmem:[%s644 + $0x20] sm:$0xff]
          %v706 = vld [vmem:[%s644 + $0x28] sm:$0xff]
          %v707 = vld [vmem:[%s644 + $0x30] sm:$0xff]
          %v708 = vld [vmem:[%s644 + $0x38] sm:$0xff]
          %709 = vst [vmem:[%s639] sm:$0xff] %v701
          %710 = vst [vmem:[%s639 + $0x8] sm:$0xff] %v702
          %711 = vst [vmem:[%s639 + $0x10] sm:$0xff] %v703
          %712 = vst [vmem:[%s639 + $0x18] sm:$0xff] %v704
          %713 = vst [vmem:[%s639 + $0x20] sm:$0xff] %v705
          %714 = vst [vmem:[%s639 + $0x28] sm:$0xff] %v706
          %715 = vst [vmem:[%s639 + $0x30] sm:$0xff] %v707
          %716 = vst [vmem:[%s639 + $0x38] sm:$0xff] %v708
        $region80: #{mesh_regressor_forward.3} parent=75 // pred_fallthru
          _
        %v717 = vld [vmem:[%s639] sm:$0xff]
        %v718 = vld [vmem:[%s639 + $0x8] sm:$0xff]
        %v719 = vld [vmem:[%s639 + $0x10] sm:$0xff]
        %v720 = vld [vmem:[%s639 + $0x18] sm:$0xff]
        %v721 = vld [vmem:[%s639 + $0x20] sm:$0xff]
        %v722 = vld [vmem:[%s639 + $0x28] sm:$0xff]
        %v723 = vld [vmem:[%s639 + $0x30] sm:$0xff]
        %v724 = vld [vmem:[%s639 + $0x38] sm:$0xff]
        %v725 = vpack.c.bf16 %v718, %v717
        %v726 = vpack.c.bf16 %v720, %v719
        %v727 = vpack.c.bf16 %v722, %v721
        %v728 = vpack.c.bf16 %v724, %v723
        %v729 = vld [vmem:[%s654] sm:$0xff]
        %v730 = vld [vmem:[%s654 + $0x8] sm:$0xf]
        %v731 = vld [vmem:[%s654 + $0xc] sm:$0xff]
        %v732 = vld [vmem:[%s654 + $0x14] sm:$0xf]
        %v733 = vld [vmem:[%s654 + $0x18] sm:$0xff]
        %v734 = vld [vmem:[%s654 + $0x20] sm:$0xf]
        %v735 = vld [vmem:[%s654 + $0x24] sm:$0xff]
        %v736 = vld [vmem:[%s654 + $0x2c] sm:$0xf]
        %v737 = vld [vmem:[%s654 + $0x30] sm:$0xff]
        %v738 = vld [vmem:[%s654 + $0x38] sm:$0xf]
        %v739 = vld [vmem:[%s654 + $0x3c] sm:$0xff]
        %v740 = vld [vmem:[%s654 + $0x44] sm:$0xf]
        %v741 = vld [vmem:[%s654 + $0x48] sm:$0xff]
        %v742 = vld [vmem:[%s654 + $0x50] sm:$0xf]
        %v743 = vld [vmem:[%s654 + $0x54] sm:$0xff]
        %v744 = vld [vmem:[%s654 + $0x5c] sm:$0xf]
        %v745 = vld [vmem:[%s654 + $0x60] sm:$0xff]
        %v746 = vld [vmem:[%s654 + $0x68] sm:$0xf]
        %v747 = vld [vmem:[%s654 + $0x6c] sm:$0xff]
        %v748 = vld [vmem:[%s654 + $0x74] sm:$0xf]
        %v749 = vld [vmem:[%s654 + $0x78] sm:$0xff]
        %v750 = vld [vmem:[%s654 + $0x80] sm:$0xf]
        %v751 = vld [vmem:[%s654 + $0x84] sm:$0xff]
        %v752 = vld [vmem:[%s654 + $0x8c] sm:$0xf]
        %v753 = vld [vmem:[%s654 + $0x90] sm:$0xff]
        %v754 = vld [vmem:[%s654 + $0x98] sm:$0xf]
        %v755 = vld [vmem:[%s654 + $0x9c] sm:$0xff]
        %v756 = vld [vmem:[%s654 + $0xa4] sm:$0xf]
        %v757 = vld [vmem:[%s654 + $0xa8] sm:$0xff]
        %v758 = vld [vmem:[%s654 + $0xb0] sm:$0xf]
        %v759 = vld [vmem:[%s654 + $0xb4] sm:$0xff]
        %v760 = vld [vmem:[%s654 + $0xbc] sm:$0xf]
        %v761 = vld [vmem:[%s658] sm:$0x7]
        %v763 = vlaneseq
        %v764 = vshrl.u32 %v763, 7
        %v765 = vsub.s32 0, %v764
        %v766 = vrot.slane %v761, %v765
        %v767 = vlaneseq
        %v768 = vshrl.u32 %v767, 7
        %v769 = vsub.s32 1, %v768
        %v770 = vrot.slane %v761, %v769
        %v771 = vlaneseq
        %v772 = vshrl.u32 %v771, 7
        %v773 = vsub.s32 2, %v772
        %v774 = vrot.slane %v761, %v773
        %v810 = vunpack.c.l.b16 %v729
        %v811 = vunpack.c.h.b16 %v729
        %v812 = vunpack.c.l.b16 %v730
        %v813 = vunpack.c.l.b16 %v731
        %v814 = vunpack.c.h.b16 %v731
        %v815 = vunpack.c.l.b16 %v732
        %v816 = vunpack.c.l.b16 %v733
        %v817 = vunpack.c.h.b16 %v733
        %v818 = vunpack.c.l.b16 %v734
        %v819 = vunpack.c.l.b16 %v735
        %v820 = vunpack.c.h.b16 %v735
        %v821 = vunpack.c.l.b16 %v736
        %v822 = vunpack.c.l.b16 %v737
        %v823 = vunpack.c.h.b16 %v737
        %v824 = vunpack.c.l.b16 %v738
        %v825 = vunpack.c.l.b16 %v739
        %v826 = vunpack.c.h.b16 %v739
        %v827 = vunpack.c.l.b16 %v740
        %v828 = vunpack.c.l.b16 %v741
        %v829 = vunpack.c.h.b16 %v741
        %v830 = vunpack.c.l.b16 %v742
        %v831 = vunpack.c.l.b16 %v743
        %v832 = vunpack.c.h.b16 %v743
        %v833 = vunpack.c.l.b16 %v744
        %v834 = vunpack.c.l.b16 %v745
        %v835 = vunpack.c.h.b16 %v745
        %v836 = vunpack.c.l.b16 %v746
        %v837 = vunpack.c.l.b16 %v747
        %v838 = vunpack.c.h.b16 %v747
        %v839 = vunpack.c.l.b16 %v748
        %v840 = vunpack.c.l.b16 %v749
        %v841 = vunpack.c.h.b16 %v749
        %v842 = vunpack.c.l.b16 %v750
        %v843 = vunpack.c.l.b16 %v751
        %v844 = vunpack.c.h.b16 %v751
        %v845 = vunpack.c.l.b16 %v752
        %v846 = vunpack.c.l.b16 %v753
        %v847 = vunpack.c.h.b16 %v753
        %v848 = vunpack.c.l.b16 %v754
        %v849 = vunpack.c.l.b16 %v755
        %v850 = vunpack.c.h.b16 %v755
        %v851 = vunpack.c.l.b16 %v756
        %v852 = vunpack.c.l.b16 %v757
        %v853 = vunpack.c.h.b16 %v757
        %v854 = vunpack.c.l.b16 %v758
        %v855 = vunpack.c.l.b16 %v759
        %v856 = vunpack.c.h.b16 %v759
        %v857 = vunpack.c.l.b16 %v760
        %v858 = vpack.c.b16 %v813, %v810
        %v859 = vpack.c.b16 %v814, %v811
        %v860 = vpack.c.b16 %v815, %v812
        %v861 = vpack.c.b16 %v819, %v816
        %v862 = vpack.c.b16 %v820, %v817
        %v863 = vpack.c.b16 %v821, %v818
        %v864 = vpack.c.b16 %v825, %v822
        %v865 = vpack.c.b16 %v826, %v823
        %v866 = vpack.c.b16 %v827, %v824
        %v867 = vpack.c.b16 %v831, %v828
        %v868 = vpack.c.b16 %v832, %v829
        %v869 = vpack.c.b16 %v833, %v830
        %v870 = vpack.c.b16 %v837, %v834
        %v871 = vpack.c.b16 %v838, %v835
        %v872 = vpack.c.b16 %v839, %v836
        %v873 = vpack.c.b16 %v843, %v840
        %v874 = vpack.c.b16 %v844, %v841
        %v875 = vpack.c.b16 %v845, %v842
        %v876 = vpack.c.b16 %v849, %v846
        %v877 = vpack.c.b16 %v850, %v847
        %v878 = vpack.c.b16 %v851, %v848
        %v879 = vpack.c.b16 %v855, %v852
        %v880 = vpack.c.b16 %v856, %v853
        %v881 = vpack.c.b16 %v857, %v854
        %906 = vmatprep.subr.bf16.mxu0 %v880
        %907 = vmatpush1.bf16.msra.mxu0 %v879
        %908 = vmatprep.subr.bf16.mxu0 %v877
        %909 = vmatpush1.bf16.msra.mxu0 %v876
        %910 = vmatprep.subr.bf16.mxu0 %v874
        %911 = vmatpush1.bf16.msra.mxu0 %v873
        %912 = vmatprep.subr.bf16.mxu0 %v871
        %913 = vmatpush1.bf16.msra.mxu0 %v870
        %914 = vmatprep.subr.bf16.mxu0 %v868
        %915 = vmatpush1.bf16.msra.mxu0 %v867
        %916 = vmatprep.subr.bf16.mxu0 %v865
        %917 = vmatpush1.bf16.msra.mxu0 %v864
        %918 = vmatprep.subr.bf16.mxu0 %v862
        %919 = vmatpush1.bf16.msra.mxu0 %v861
        %920 = vmatprep.subr.bf16.mxu0 %v859
        %921 = vmatpush1.bf16.msra.mxu0 %v858
        %922 = vmatprep.subr.bf16.mxu0 0
        %923 = vmatpush2.bf16.msra.mxu0 0
        %924 = vmatprep.subr.bf16.mxu0 0
        %925 = vmatpush2.bf16.msra.mxu0 0
        %926 = vmatprep.subr.bf16.mxu0 0
        %927 = vmatpush2.bf16.msra.mxu0 0
        %928 = vmatprep.subr.bf16.mxu0 0
        %929 = vmatpush2.bf16.msra.mxu0 0
        %930 = vmatprep.subr.bf16.mxu0 0
        %931 = vmatpush2.bf16.msra.mxu0 0
        %932 = vmatprep.subr.bf16.mxu0 0
        %933 = vmatpush2.bf16.msra.mxu0 0
        %934 = vmatprep.subr.bf16.mxu0 0
        %935 = vmatpush2.bf16.msra.mxu0 0
        %936 = vmatprep.subr.bf16.mxu0 0
        %937 = vmatpush2.bf16.msra.mxu0 0
        %938 = vmatprep.mubr.bf16.mxu0 0
        %939 = vmatmul.mubr.bf16.gmra.mxu0 %v725
        %v940 = vpop.f32.mrf.mxu0
        %v941 = vadd.f32 %v766, %v940
        %v942 = vpop.f32.mrf.mxu0
        %v943 = vadd.f32 %v770, %v942
        %v944 = vpop.f32.mrf.mxu0
        %v945 = vadd.f32 %v766, %v944
        %v946 = vpop.f32.mrf.mxu0
        %v947 = vadd.f32 %v770, %v946
        %948 = vmatprep.mubr.bf16.mxu0 0
        %949 = vmatmul.mubr.bf16.gmra.mxu0 %v726
        %v950 = vpop.f32.mrf.mxu0
        %v951 = vadd.f32 %v766, %v950
        %v952 = vpop.f32.mrf.mxu0
        %v953 = vadd.f32 %v770, %v952
        %v954 = vpop.f32.mrf.mxu0
        %v955 = vadd.f32 %v766, %v954
        %v956 = vpop.f32.mrf.mxu0
        %v957 = vadd.f32 %v770, %v956
        %958 = vmatprep.mubr.bf16.mxu0 0
        %959 = vmatmul.mubr.bf16.gmra.mxu0 %v727
        %v960 = vpop.f32.mrf.mxu0
        %v961 = vadd.f32 %v766, %v960
        %v962 = vpop.f32.mrf.mxu0
        %v963 = vadd.f32 %v770, %v962
        %v964 = vpop.f32.mrf.mxu0
        %v965 = vadd.f32 %v766, %v964
        %v966 = vpop.f32.mrf.mxu0
        %v967 = vadd.f32 %v770, %v966
        %968 = vmatprep.mubr.bf16.mxu0 0
        %969 = vmatmul.mubr.bf16.gmra.mxu0 %v728
        %v970 = vpop.f32.mrf.mxu0
        %v971 = vadd.f32 %v766, %v970
        %v972 = vpop.f32.mrf.mxu0
        %v973 = vadd.f32 %v770, %v972
        %v974 = vpop.f32.mrf.mxu0
        %v975 = vadd.f32 %v766, %v974
        %v976 = vpop.f32.mrf.mxu0
        %v977 = vadd.f32 %v770, %v976
        %978 = vdwg.mxu0
        %979 = vmatprep.subr.bf16.mxu0 0
        %980 = vmatpush1.bf16.msra.mxu0 %v881
        %981 = vmatprep.subr.bf16.mxu0 0
        %982 = vmatpush1.bf16.msra.mxu0 %v878
        %983 = vmatprep.subr.bf16.mxu0 0
        %984 = vmatpush1.bf16.msra.mxu0 %v875
        %985 = vmatprep.subr.bf16.mxu0 0
        %986 = vmatpush1.bf16.msra.mxu0 %v872
        %987 = vmatprep.subr.bf16.mxu0 0
        %988 = vmatpush1.bf16.msra.mxu0 %v869
        %989 = vmatprep.subr.bf16.mxu0 0
        %990 = vmatpush1.bf16.msra.mxu0 %v866
        %991 = vmatprep.subr.bf16.mxu0 0
        %992 = vmatpush1.bf16.msra.mxu0 %v863
        %993 = vmatprep.subr.bf16.mxu0 0
        %994 = vmatpush1.bf16.msra.mxu0 %v860
        %995 = vmatprep.subr.bf16.mxu0 0
        %996 = vmatpush2.bf16.msra.mxu0 0
        %997 = vmatprep.subr.bf16.mxu0 0
        %998 = vmatpush2.bf16.msra.mxu0 0
        %999 = vmatprep.subr.bf16.mxu0 0
        %1000 = vmatpush2.bf16.msra.mxu0 0
        %1001 = vmatprep.subr.bf16.mxu0 0
        %1002 = vmatpush2.bf16.msra.mxu0 0
        %1003 = vmatprep.subr.bf16.mxu0 0
        %1004 = vmatpush2.bf16.msra.mxu0 0
        %1005 = vmatprep.subr.bf16.mxu0 0
        %1006 = vmatpush2.bf16.msra.mxu0 0
        %1007 = vmatprep.subr.bf16.mxu0 0
        %1008 = vmatpush2.bf16.msra.mxu0 0
        %1009 = vmatprep.subr.bf16.mxu0 0
        %1010 = vmatpush2.bf16.msra.mxu0 0
        %1011 = vmatprep.mubr.bf16.mxu0 0
        %1012 = vmatmul.mubr.bf16.gmra.mxu0 %v725
        %v1013 = vpop.f32.mrf.mxu0
        %v1014 = vadd.f32 %v774, %v1013
        %v1015 = vpop.f32.mrf.mxu0
        %v1016 = vpop.f32.mrf.mxu0
        %v1017 = vadd.f32 %v774, %v1016
        %v1018 = vpop.f32.mrf.mxu0
        %1019 = vmatprep.mubr.bf16.mxu0 0
        %1020 = vmatmul.mubr.bf16.gmra.mxu0 %v726
        %v1021 = vpop.f32.mrf.mxu0
        %v1022 = vadd.f32 %v774, %v1021
        %v1023 = vpop.f32.mrf.mxu0
        %v1024 = vpop.f32.mrf.mxu0
        %v1025 = vadd.f32 %v774, %v1024
        %v1026 = vpop.f32.mrf.mxu0
        %1027 = vmatprep.mubr.bf16.mxu0 0
        %1028 = vmatmul.mubr.bf16.gmra.mxu0 %v727
        %v1029 = vpop.f32.mrf.mxu0
        %v1030 = vadd.f32 %v774, %v1029
        %v1031 = vpop.f32.mrf.mxu0
        %v1032 = vpop.f32.mrf.mxu0
        %v1033 = vadd.f32 %v774, %v1032
        %v1034 = vpop.f32.mrf.mxu0
        %1035 = vmatprep.mubr.bf16.mxu0 0
        %1036 = vmatmul.mubr.bf16.gmra.mxu0 %v728
        %v1037 = vpop.f32.mrf.mxu0
        %v1038 = vadd.f32 %v774, %v1037
        %v1039 = vpop.f32.mrf.mxu0
        %v1040 = vpop.f32.mrf.mxu0
        %v1041 = vadd.f32 %v774, %v1040
        %v1042 = vpop.f32.mrf.mxu0
        %1043 = vdwg.mxu0
        %v1044 = vpack.c.bf16 %v945, %v941
        %v1045 = vpack.c.bf16 %v955, %v951
        %v1046 = vpack.c.bf16 %v965, %v961
        %v1047 = vpack.c.bf16 %v975, %v971
        %v1048 = vpack.c.bf16 %v947, %v943
        %v1049 = vpack.c.bf16 %v957, %v953
        %v1050 = vpack.c.bf16 %v967, %v963
        %v1051 = vpack.c.bf16 %v977, %v973
        %v1052 = vpack.c.bf16 %v1017, %v1014
        %v1053 = vpack.c.bf16 %v1025, %v1022
        %v1054 = vpack.c.bf16 %v1033, %v1030
        %v1055 = vpack.c.bf16 %v1041, %v1038
        %vm1056 = vcmask 130048
        %v1058 = vsel %vm1056, %v1044, 0
        %v1061 = vsel %vm1056, %v1045, 0
        %v1064 = vsel %vm1056, %v1046, 0
        %v1067 = vsel %vm1056, %v1047, 0
        %v1070 = vsel %vm1056, %v1048, 0
        %v1073 = vsel %vm1056, %v1049, 0
        %v1076 = vsel %vm1056, %v1050, 0
        %v1079 = vsel %vm1056, %v1051, 0
        %1081 = vmatprep.subr.bf16.mxu0 0
        %1082 = vmatpush1.bf16.xpose.msra.mxu0 0
        %1083 = vmatprep.subr.bf16.mxu0 0
        %1084 = vmatpush1.bf16.xpose.msra.mxu0 0
        %1085 = vmatprep.subr.bf16.mxu0 0
        %1086 = vmatpush1.bf16.xpose.msra.mxu0 0
        %1087 = vmatprep.subr.bf16.mxu0 0
        %1088 = vmatpush1.bf16.xpose.msra.mxu0 0
        %1089 = vmatprep.subr.bf16.mxu0 0
        %1090 = vmatpush1.bf16.xpose.msra.mxu0 %v1079
        %1091 = vmatprep.subr.bf16.mxu0 0
        %1092 = vmatpush1.bf16.xpose.msra.mxu0 %v1076
        %1093 = vmatprep.subr.bf16.mxu0 0
        %1094 = vmatpush1.bf16.xpose.msra.mxu0 %v1073
        %1095 = vmatprep.subr.bf16.mxu0 0
        %1096 = vmatpush1.bf16.xpose.msra.mxu0 %v1070
        %1097 = vmatprep.subr.bf16.mxu0 0
        %1098 = vmatpush2.bf16.xpose.msra.mxu0 0
        %1099 = vmatprep.subr.bf16.mxu0 0
        %1100 = vmatpush2.bf16.xpose.msra.mxu0 0
        %1101 = vmatprep.subr.bf16.mxu0 0
        %1102 = vmatpush2.bf16.xpose.msra.mxu0 0
        %1103 = vmatprep.subr.bf16.mxu0 0
        %1104 = vmatpush2.bf16.xpose.msra.mxu0 0
        %1105 = vmatprep.subr.bf16.mxu0 0
        %1106 = vmatpush2.bf16.xpose.msra.mxu0 0
        %1107 = vmatprep.subr.bf16.mxu0 0
        %1108 = vmatpush2.bf16.xpose.msra.mxu0 0
        %1109 = vmatprep.subr.bf16.mxu0 0
        %1110 = vmatpush2.bf16.xpose.msra.mxu0 0
        %1111 = vmatprep.subr.bf16.mxu0 0
        %1112 = vmatpush2.bf16.xpose.msra.mxu0 0
        %1113 = vmatprep.mubr.bf16.mxu0 0
        %1114 = vmatmul.mubr.bf16.gmra.mxu0 %v1058
        %v1115 = vpop.f32.mrf.mxu0
        %v1116 = vadd.f32 0.0, %v1115
        %v1117 = vpop.f32.mrf.mxu0
        %v1118 = vpop.f32.mrf.mxu0
        %v1119 = vadd.f32 0.0, %v1118
        %v1120 = vpop.f32.mrf.mxu0
        %1121 = vmatprep.mubr.bf16.mxu0 0
        %1122 = vmatmul.mubr.bf16.gmra.mxu0 %v1061
        %v1123 = vpop.f32.mrf.mxu0
        %v1124 = vadd.f32 0.0, %v1123
        %v1125 = vpop.f32.mrf.mxu0
        %v1126 = vpop.f32.mrf.mxu0
        %v1127 = vadd.f32 0.0, %v1126
        %v1128 = vpop.f32.mrf.mxu0
        %1129 = vmatprep.mubr.bf16.mxu0 0
        %1130 = vmatmul.mubr.bf16.gmra.mxu0 %v1064
        %v1131 = vpop.f32.mrf.mxu0
        %v1132 = vadd.f32 0.0, %v1131
        %v1133 = vpop.f32.mrf.mxu0
        %v1134 = vpop.f32.mrf.mxu0
        %v1135 = vadd.f32 0.0, %v1134
        %v1136 = vpop.f32.mrf.mxu0
        %1137 = vmatprep.mubr.bf16.mxu0 0
        %1138 = vmatmul.mubr.bf16.gmra.mxu0 %v1067
        %v1139 = vpop.f32.mrf.mxu0
        %v1140 = vadd.f32 0.0, %v1139
        %v1141 = vpop.f32.mrf.mxu0
        %v1142 = vpop.f32.mrf.mxu0
        %v1143 = vadd.f32 0.0, %v1142
        %v1144 = vpop.f32.mrf.mxu0
        %1145 = vdwg.mxu0
        %v1146 = vmul.f32 %v1116, 0.25
        %v1147 = vmul.f32 %v1119, 0.25
        %v1148 = vmul.f32 %v1124, 0.25
        %v1149 = vmul.f32 %v1127, 0.25
        %v1150 = vmul.f32 %v1132, 0.25
        %v1151 = vmul.f32 %v1135, 0.25
        %v1152 = vmul.f32 %v1140, 0.25
        %v1153 = vmul.f32 %v1143, 0.25
        %vm1154 = vcmask 523264
        %v1155 = vsel %vm1154, %v1146, -inf
        %1156 = vmax.xlane.f32.xlu0 %v1155
        %v1157 = vpop.xlane.xlu0 %1156
        %v1158 = vsel %vm1154, %v1147, -inf
        %1159 = vmax.xlane.f32.xlu0 %v1158
        %v1160 = vpop.xlane.xlu0 %1159
        %v1161 = vsel %vm1154, %v1148, -inf
        %1162 = vmax.xlane.f32.xlu0 %v1161
        %v1163 = vpop.xlane.xlu0 %1162
        %v1164 = vsel %vm1154, %v1149, -inf
        %1165 = vmax.xlane.f32.xlu0 %v1164
        %v1166 = vpop.xlane.xlu0 %1165
        %v1167 = vsel %vm1154, %v1150, -inf
        %1168 = vmax.xlane.f32.xlu0 %v1167
        %v1169 = vpop.xlane.xlu0 %1168
        %v1170 = vsel %vm1154, %v1151, -inf
        %1171 = vmax.xlane.f32.xlu0 %v1170
        %v1172 = vpop.xlane.xlu0 %1171
        %v1173 = vsel %vm1154, %v1152, -inf
        %1174 = vmax.xlane.f32.xlu0 %v1173
        %v1175 = vpop.xlane.xlu0 %1174
        %v1176 = vsel %vm1154, %v1153, -inf
        %1177 = vmax.xlane.f32.xlu0 %v1176
        %v1178 = vpop.xlane.xlu0 %1177
        %v1179 = vsub.f32 %v1146, %v1157
        %v1180 = vsub.f32 %v1147, %v1160
        %v1181 = vsub.f32 %v1148, %v1163
        %v1182 = vsub.f32 %v1149, %v1166
        %v1183 = vsub.f32 %v1150, %v1169
        %v1184 = vsub.f32 %v1151, %v1172
        %v1185 = vsub.f32 %v1152, %v1175
        %v1186 = vsub.f32 %v1153, %v1178
        %v1187 = vmul.f32 %v1179, 1.442695
        %v1188 = vpow.pop %v1187
        %v1189 = vmul.f32 %v1180, 1.442695
        %v1190 = vpow.pop %v1189
        %v1191 = vmul.f32 %v1181, 1.442695
        %v1192 = vpow.pop %v1191
        %v1193 = vmul.f32 %v1182, 1.442695
        %v1194 = vpow.pop %v1193
        %v1195 = vmul.f32 %v1183, 1.442695
        %v1196 = vpow.pop %v1195
        %v1197 = vmul.f32 %v1184, 1.442695
        %v1198 = vpow.pop %v1197
        %v1199 = vmul.f32 %v1185, 1.442695
        %v1200 = vpow.pop %v1199
        %v1201 = vmul.f32 %v1186, 1.442695
        %v1202 = vpow.pop %v1201
        %v1203 = vsel %vm1154, %v1188, 0.0
        %1204 = vadd.xlane.f32.xlu0 %v1203
        %v1205 = vpop.xlane.xlu0 %1204
        %v1206 = vsel %vm1154, %v1190, 0.0
        %1207 = vadd.xlane.f32.xlu0 %v1206
        %v1208 = vpop.xlane.xlu0 %1207
        %v1209 = vsel %vm1154, %v1192, 0.0
        %1210 = vadd.xlane.f32.xlu0 %v1209
        %v1211 = vpop.xlane.xlu0 %1210
        %v1212 = vsel %vm1154, %v1194, 0.0
        %1213 = vadd.xlane.f32.xlu0 %v1212
        %v1214 = vpop.xlane.xlu0 %1213
        %v1215 = vsel %vm1154, %v1196, 0.0
        %1216 = vadd.xlane.f32.xlu0 %v1215
        %v1217 = vpop.xlane.xlu0 %1216
        %v1218 = vsel %vm1154, %v1198, 0.0
        %1219 = vadd.xlane.f32.xlu0 %v1218
        %v1220 = vpop.xlane.xlu0 %1219
        %v1221 = vsel %vm1154, %v1200, 0.0
        %1222 = vadd.xlane.f32.xlu0 %v1221
        %v1223 = vpop.xlane.xlu0 %1222
        %v1224 = vsel %vm1154, %v1202, 0.0
        %1225 = vadd.xlane.f32.xlu0 %v1224
        %v1226 = vpop.xlane.xlu0 %1225
        %v1227 = vpack.c.bf16 %v1190, %v1188
        %v1228 = vpack.c.bf16 %v1194, %v1192
        %v1229 = vpack.c.bf16 %v1198, %v1196
        %v1230 = vpack.c.bf16 %v1202, %v1200
        %v1232 = vsel %vm1154, %v1227, 0
        %v1235 = vsel %vm1154, %v1228, 0
        %v1238 = vsel %vm1154, %v1229, 0
        %v1241 = vsel %vm1154, %v1230, 0
        %1243 = vmatprep.subr.bf16.mxu0 0
        %1244 = vmatpush1.bf16.msra.mxu0 0
        %1245 = vmatprep.subr.bf16.mxu0 0
        %1246 = vmatpush1.bf16.msra.mxu0 0
        %1247 = vmatprep.subr.bf16.mxu0 0
        %1248 = vmatpush1.bf16.msra.mxu0 0
        %1249 = vmatprep.subr.bf16.mxu0 0
        %1250 = vmatpush1.bf16.msra.mxu0 0
        %1251 = vmatprep.subr.bf16.mxu0 0
        %1252 = vmatpush1.bf16.msra.mxu0 %v1055
        %1253 = vmatprep.subr.bf16.mxu0 0
        %1254 = vmatpush1.bf16.msra.mxu0 %v1054
        %1255 = vmatprep.subr.bf16.mxu0 0
        %1256 = vmatpush1.bf16.msra.mxu0 %v1053
        %1257 = vmatprep.subr.bf16.mxu0 0
        %1258 = vmatpush1.bf16.msra.mxu0 %v1052
        %1259 = vmatprep.subr.bf16.mxu0 0
        %1260 = vmatpush2.bf16.msra.mxu0 0
        %1261 = vmatprep.subr.bf16.mxu0 0
        %1262 = vmatpush2.bf16.msra.mxu0 0
        %1263 = vmatprep.subr.bf16.mxu0 0
        %1264 = vmatpush2.bf16.msra.mxu0 0
        %1265 = vmatprep.subr.bf16.mxu0 0
        %1266 = vmatpush2.bf16.msra.mxu0 0
        %1267 = vmatprep.subr.bf16.mxu0 0
        %1268 = vmatpush2.bf16.msra.mxu0 0
        %1269 = vmatprep.subr.bf16.mxu0 0
        %1270 = vmatpush2.bf16.msra.mxu0 0
        %1271 = vmatprep.subr.bf16.mxu0 0
        %1272 = vmatpush2.bf16.msra.mxu0 0
        %1273 = vmatprep.subr.bf16.mxu0 0
        %1274 = vmatpush2.bf16.msra.mxu0 0
        %1275 = vmatprep.mubr.bf16.mxu0 0
        %1276 = vmatmul.mubr.bf16.gmra.mxu0 %v1232
        %v1277 = vpop.f32.mrf.mxu0
        %v1278 = vadd.f32 0.0, %v1277
        %v1279 = vpop.f32.mrf.mxu0
        %v1280 = vpop.f32.mrf.mxu0
        %v1281 = vadd.f32 0.0, %v1280
        %v1282 = vpop.f32.mrf.mxu0
        %1283 = vmatprep.mubr.bf16.mxu0 0
        %1284 = vmatmul.mubr.bf16.gmra.mxu0 %v1235
        %v1285 = vpop.f32.mrf.mxu0
        %v1286 = vadd.f32 0.0, %v1285
        %v1287 = vpop.f32.mrf.mxu0
        %v1288 = vpop.f32.mrf.mxu0
        %v1289 = vadd.f32 0.0, %v1288
        %v1290 = vpop.f32.mrf.mxu0
        %1291 = vmatprep.mubr.bf16.mxu0 0
        %1292 = vmatmul.mubr.bf16.gmra.mxu0 %v1238
        %v1293 = vpop.f32.mrf.mxu0
        %v1294 = vadd.f32 0.0, %v1293
        %v1295 = vpop.f32.mrf.mxu0
        %v1296 = vpop.f32.mrf.mxu0
        %v1297 = vadd.f32 0.0, %v1296
        %v1298 = vpop.f32.mrf.mxu0
        %1299 = vmatprep.mubr.bf16.mxu0 0
        %1300 = vmatmul.mubr.bf16.gmra.mxu0 %v1241
        %v1301 = vpop.f32.mrf.mxu0
        %v1302 = vadd.f32 0.0, %v1301
        %v1303 = vpop.f32.mrf.mxu0
        %v1304 = vpop.f32.mrf.mxu0
        %v1305 = vadd.f32 0.0, %v1304
        %v1306 = vpop.f32.mrf.mxu0
        %1307 = vdwg.mxu0
        %v1308 = vrcp.pop %v1205
        %v1309 = vrcp.pop %v1208
        %v1310 = vrcp.pop %v1211
        %v1311 = vrcp.pop %v1214
        %v1312 = vrcp.pop %v1217
        %v1313 = vrcp.pop %v1220
        %v1314 = vrcp.pop %v1223
        %v1315 = vrcp.pop %v1226
        %v1316 = vmul.f32 %v1278, %v1308
        %v1317 = vmul.f32 %v1281, %v1309
        %v1318 = vmul.f32 %v1286, %v1310
        %v1319 = vmul.f32 %v1289, %v1311
        %v1320 = vmul.f32 %v1294, %v1312
        %v1321 = vmul.f32 %v1297, %v1313
        %v1322 = vmul.f32 %v1302, %v1314
        %v1323 = vmul.f32 %v1305, %v1315
        %1324 = vst.msk [vmem:[#allocation2] sm:$0xff] %vm1056, %v1316
        %1325 = vst.msk [vmem:[#allocation2 + $0x8] sm:$0xff] %vm1056, %v1317
        %1326 = vst.msk [vmem:[#allocation2 + $0x10] sm:$0xff] %vm1056, %v1318
        %1327 = vst.msk [vmem:[#allocation2 + $0x18] sm:$0xff] %vm1056, %v1319
        %1328 = vst.msk [vmem:[#allocation2 + $0x20] sm:$0xff] %vm1056, %v1320
        %1329 = vst.msk [vmem:[#allocation2 + $0x28] sm:$0xff] %vm1056, %v1321
        %1330 = vst.msk [vmem:[#allocation2 + $0x30] sm:$0xff] %vm1056, %v1322
        %1331 = vst.msk [vmem:[#allocation2 + $0x38] sm:$0xff] %vm1056, %v1323
        %1336 = vrot.lane.b32.xlu0 %v1044, 112
        %v1337 = vpop.permute.xlu0 %1336
        %1338 = vrot.lane.b32.xlu0 %v1045, 112
        %v1339 = vpop.permute.xlu0 %1338
        %1340 = vrot.lane.b32.xlu0 %v1046, 112
        %v1341 = vpop.permute.xlu0 %1340
        %1342 = vrot.lane.b32.xlu0 %v1047, 112
        %v1343 = vpop.permute.xlu0 %1342
        %1348 = vrot.lane.b32.xlu0 %v1048, 112
        %v1349 = vpop.permute.xlu0 %1348
        %1350 = vrot.lane.b32.xlu0 %v1049, 112
        %v1351 = vpop.permute.xlu0 %1350
        %1352 = vrot.lane.b32.xlu0 %v1050, 112
        %v1353 = vpop.permute.xlu0 %1352
        %1354 = vrot.lane.b32.xlu0 %v1051, 112
        %v1355 = vpop.permute.xlu0 %1354
        %v1357 = vsel %vm1056, %v1337, 0
        %v1360 = vsel %vm1056, %v1339, 0
        %v1363 = vsel %vm1056, %v1341, 0
        %v1366 = vsel %vm1056, %v1343, 0
        %v1369 = vsel %vm1056, %v1349, 0
        %v1372 = vsel %vm1056, %v1351, 0
        %v1375 = vsel %vm1056, %v1353, 0
        %v1378 = vsel %vm1056, %v1355, 0
        %1380 = vmatprep.subr.bf16.mxu0 0
        %1381 = vmatpush1.bf16.xpose.msra.mxu0 0
        %1382 = vmatprep.subr.bf16.mxu0 0
        %1383 = vmatpush1.bf16.xpose.msra.mxu0 0
        %1384 = vmatprep.subr.bf16.mxu0 0
        %1385 = vmatpush1.bf16.xpose.msra.mxu0 0
        %1386 = vmatprep.subr.bf16.mxu0 0
        %1387 = vmatpush1.bf16.xpose.msra.mxu0 0
        %1388 = vmatprep.subr.bf16.mxu0 0
        %1389 = vmatpush1.bf16.xpose.msra.mxu0 %v1378
        %1390 = vmatprep.subr.bf16.mxu0 0
        %1391 = vmatpush1.bf16.xpose.msra.mxu0 %v1375
        %1392 = vmatprep.subr.bf16.mxu0 0
        %1393 = vmatpush1.bf16.xpose.msra.mxu0 %v1372
        %1394 = vmatprep.subr.bf16.mxu0 0
        %1395 = vmatpush1.bf16.xpose.msra.mxu0 %v1369
        %1396 = vmatprep.subr.bf16.mxu0 0
        %1397 = vmatpush2.bf16.xpose.msra.mxu0 0
        %1398 = vmatprep.subr.bf16.mxu0 0
        %1399 = vmatpush2.bf16.xpose.msra.mxu0 0
        %1400 = vmatprep.subr.bf16.mxu0 0
        %1401 = vmatpush2.bf16.xpose.msra.mxu0 0
        %1402 = vmatprep.subr.bf16.mxu0 0
        %1403 = vmatpush2.bf16.xpose.msra.mxu0 0
        %1404 = vmatprep.subr.bf16.mxu0 0
        %1405 = vmatpush2.bf16.xpose.msra.mxu0 0
        %1406 = vmatprep.subr.bf16.mxu0 0
        %1407 = vmatpush2.bf16.xpose.msra.mxu0 0
        %1408 = vmatprep.subr.bf16.mxu0 0
        %1409 = vmatpush2.bf16.xpose.msra.mxu0 0
        %1410 = vmatprep.subr.bf16.mxu0 0
        %1411 = vmatpush2.bf16.xpose.msra.mxu0 0
        %1412 = vmatprep.mubr.bf16.mxu0 0
        %1413 = vmatmul.mubr.bf16.gmra.mxu0 %v1357
        %v1414 = vpop.f32.mrf.mxu0
        %v1415 = vadd.f32 0.0, %v1414
        %v1416 = vpop.f32.mrf.mxu0
        %v1417 = vpop.f32.mrf.mxu0
        %v1418 = vadd.f32 0.0, %v1417
        %v1419 = vpop.f32.mrf.mxu0
        %1420 = vmatprep.mubr.bf16.mxu0 0
        %1421 = vmatmul.mubr.bf16.gmra.mxu0 %v1360
        %v1422 = vpop.f32.mrf.mxu0
        %v1423 = vadd.f32 0.0, %v1422
        %v1424 = vpop.f32.mrf.mxu0
        %v1425 = vpop.f32.mrf.mxu0
        %v1426 = vadd.f32 0.0, %v1425
        %v1427 = vpop.f32.mrf.mxu0
        %1428 = vmatprep.mubr.bf16.mxu0 0
        %1429 = vmatmul.mubr.bf16.gmra.mxu0 %v1363
        %v1430 = vpop.f32.mrf.mxu0
        %v1431 = vadd.f32 0.0, %v1430
        %v1432 = vpop.f32.mrf.mxu0
        %v1433 = vpop.f32.mrf.mxu0
        %v1434 = vadd.f32 0.0, %v1433
        %v1435 = vpop.f32.mrf.mxu0
        %1436 = vmatprep.mubr.bf16.mxu0 0
        %1437 = vmatmul.mubr.bf16.gmra.mxu0 %v1366
        %v1438 = vpop.f32.mrf.mxu0
        %v1439 = vadd.f32 0.0, %v1438
        %v1440 = vpop.f32.mrf.mxu0
        %v1441 = vpop.f32.mrf.mxu0
        %v1442 = vadd.f32 0.0, %v1441
        %v1443 = vpop.f32.mrf.mxu0
        %1444 = vdwg.mxu0
        %v1445 = vmul.f32 %v1415, 0.25
        %v1446 = vmul.f32 %v1418, 0.25
        %v1447 = vmul.f32 %v1423, 0.25
        %v1448 = vmul.f32 %v1426, 0.25
        %v1449 = vmul.f32 %v1431, 0.25
        %v1450 = vmul.f32 %v1434, 0.25
        %v1451 = vmul.f32 %v1439, 0.25
        %v1452 = vmul.f32 %v1442, 0.25
        %v1453 = vsel %vm1154, %v1445, -inf
        %1454 = vmax.xlane.f32.xlu0 %v1453
        %v1455 = vpop.xlane.xlu0 %1454
        %v1456 = vsel %vm1154, %v1446, -inf
        %1457 = vmax.xlane.f32.xlu0 %v1456
        %v1458 = vpop.xlane.xlu0 %1457
        %v1459 = vsel %vm1154, %v1447, -inf
        %1460 = vmax.xlane.f32.xlu0 %v1459
        %v1461 = vpop.xlane.xlu0 %1460
        %v1462 = vsel %vm1154, %v1448, -inf
        %1463 = vmax.xlane.f32.xlu0 %v1462
        %v1464 = vpop.xlane.xlu0 %1463
        %v1465 = vsel %vm1154, %v1449, -inf
        %1466 = vmax.xlane.f32.xlu0 %v1465
        %v1467 = vpop.xlane.xlu0 %1466
        %v1468 = vsel %vm1154, %v1450, -inf
        %1469 = vmax.xlane.f32.xlu0 %v1468
        %v1470 = vpop.xlane.xlu0 %1469
        %v1471 = vsel %vm1154, %v1451, -inf
        %1472 = vmax.xlane.f32.xlu0 %v1471
        %v1473 = vpop.xlane.xlu0 %1472
        %v1474 = vsel %vm1154, %v1452, -inf
        %1475 = vmax.xlane.f32.xlu0 %v1474
        %v1476 = vpop.xlane.xlu0 %1475
        %v1477 = vsub.f32 %v1445, %v1455
        %v1478 = vsub.f32 %v1446, %v1458
        %v1479 = vsub.f32 %v1447, %v1461
        %v1480 = vsub.f32 %v1448, %v1464
        %v1481 = vsub.f32 %v1449, %v1467
        %v1482 = vsub.f32 %v1450, %v1470
        %v1483 = vsub.f32 %v1451, %v1473
        %v1484 = vsub.f32 %v1452, %v1476
        %v1485 = vmul.f32 %v1477, 1.442695
        %v1486 = vpow.pop %v1485
        %v1487 = vmul.f32 %v1478, 1.442695
        %v1488 = vpow.pop %v1487
        %v1489 = vmul.f32 %v1479, 1.442695
        %v1490 = vpow.pop %v1489
        %v1491 = vmul.f32 %v1480, 1.442695
        %v1492 = vpow.pop %v1491
        %v1493 = vmul.f32 %v1481, 1.442695
        %v1494 = vpow.pop %v1493
        %v1495 = vmul.f32 %v1482, 1.442695
        %v1496 = vpow.pop %v1495
        %v1497 = vmul.f32 %v1483, 1.442695
        %v1498 = vpow.pop %v1497
        %v1499 = vmul.f32 %v1484, 1.442695
        %v1500 = vpow.pop %v1499
        %v1501 = vsel %vm1154, %v1486, 0.0
        %1502 = vadd.xlane.f32.xlu0 %v1501
        %v1503 = vpop.xlane.xlu0 %1502
        %v1504 = vsel %vm1154, %v1488, 0.0
        %1505 = vadd.xlane.f32.xlu0 %v1504
        %v1506 = vpop.xlane.xlu0 %1505
        %v1507 = vsel %vm1154, %v1490, 0.0
        %1508 = vadd.xlane.f32.xlu0 %v1507
        %v1509 = vpop.xlane.xlu0 %1508
        %v1510 = vsel %vm1154, %v1492, 0.0
        %1511 = vadd.xlane.f32.xlu0 %v1510
        %v1512 = vpop.xlane.xlu0 %1511
        %v1513 = vsel %vm1154, %v1494, 0.0
        %1514 = vadd.xlane.f32.xlu0 %v1513
        %v1515 = vpop.xlane.xlu0 %1514
        %v1516 = vsel %vm1154, %v1496, 0.0
        %1517 = vadd.xlane.f32.xlu0 %v1516
        %v1518 = vpop.xlane.xlu0 %1517
        %v1519 = vsel %vm1154, %v1498, 0.0
        %1520 = vadd.xlane.f32.xlu0 %v1519
        %v1521 = vpop.xlane.xlu0 %1520
        %v1522 = vsel %vm1154, %v1500, 0.0
        %1523 = vadd.xlane.f32.xlu0 %v1522
        %v1524 = vpop.xlane.xlu0 %1523
        %v1525 = vpack.c.bf16 %v1488, %v1486
        %v1526 = vpack.c.bf16 %v1492, %v1490
        %v1527 = vpack.c.bf16 %v1496, %v1494
        %v1528 = vpack.c.bf16 %v1500, %v1498
        %1533 = vrot.lane.b32.xlu0 %v1052, 112
        %v1534 = vpop.permute.xlu0 %1533
        %1535 = vrot.lane.b32.xlu0 %v1053, 112
        %v1536 = vpop.permute.xlu0 %1535
        %1537 = vrot.lane.b32.xlu0 %v1054, 112
        %v1538 = vpop.permute.xlu0 %1537
        %1539 = vrot.lane.b32.xlu0 %v1055, 112
        %v1540 = vpop.permute.xlu0 %1539
        %v1546 = vsel %vm1154, %v1525, 0
        %v1549 = vsel %vm1154, %v1526, 0
        %v1552 = vsel %vm1154, %v1527, 0
        %v1555 = vsel %vm1154, %v1528, 0
        %1557 = vmatprep.subr.bf16.mxu0 0
        %1558 = vmatpush1.bf16.msra.mxu0 0
        %1559 = vmatprep.subr.bf16.mxu0 0
        %1560 = vmatpush1.bf16.msra.mxu0 0
        %1561 = vmatprep.subr.bf16.mxu0 0
        %1562 = vmatpush1.bf16.msra.mxu0 0
        %1563 = vmatprep.subr.bf16.mxu0 0
        %1564 = vmatpush1.bf16.msra.mxu0 0
        %1565 = vmatprep.subr.bf16.mxu0 0
        %1566 = vmatpush1.bf16.msra.mxu0 %v1540
        %1567 = vmatprep.subr.bf16.mxu0 0
        %1568 = vmatpush1.bf16.msra.mxu0 %v1538
        %1569 = vmatprep.subr.bf16.mxu0 0
        %1570 = vmatpush1.bf16.msra.mxu0 %v1536
        %1571 = vmatprep.subr.bf16.mxu0 0
        %1572 = vmatpush1.bf16.msra.mxu0 %v1534
        %1573 = vmatprep.subr.bf16.mxu0 0
        %1574 = vmatpush2.bf16.msra.mxu0 0
        %1575 = vmatprep.subr.bf16.mxu0 0
        %1576 = vmatpush2.bf16.msra.mxu0 0
        %1577 = vmatprep.subr.bf16.mxu0 0
        %1578 = vmatpush2.bf16.msra.mxu0 0
        %1579 = vmatprep.subr.bf16.mxu0 0
        %1580 = vmatpush2.bf16.msra.mxu0 0
        %1581 = vmatprep.subr.bf16.mxu0 0
        %1582 = vmatpush2.bf16.msra.mxu0 0
        %1583 = vmatprep.subr.bf16.mxu0 0
        %1584 = vmatpush2.bf16.msra.mxu0 0
        %1585 = vmatprep.subr.bf16.mxu0 0
        %1586 = vmatpush2.bf16.msra.mxu0 0
        %1587 = vmatprep.subr.bf16.mxu0 0
        %1588 = vmatpush2.bf16.msra.mxu0 0
        %1589 = vmatprep.mubr.bf16.mxu0 0
        %1590 = vmatmul.mubr.bf16.gmra.mxu0 %v1546
        %v1591 = vpop.f32.mrf.mxu0
        %v1592 = vadd.f32 0.0, %v1591
        %v1593 = vpop.f32.mrf.mxu0
        %v1594 = vpop.f32.mrf.mxu0
        %v1595 = vadd.f32 0.0, %v1594
        %v1596 = vpop.f32.mrf.mxu0
        %1597 = vmatprep.mubr.bf16.mxu0 0
        %1598 = vmatmul.mubr.bf16.gmra.mxu0 %v1549
        %v1599 = vpop.f32.mrf.mxu0
        %v1600 = vadd.f32 0.0, %v1599
        %v1601 = vpop.f32.mrf.mxu0
        %v1602 = vpop.f32.mrf.mxu0
        %v1603 = vadd.f32 0.0, %v1602
        %v1604 = vpop.f32.mrf.mxu0
        %1605 = vmatprep.mubr.bf16.mxu0 0
        %1606 = vmatmul.mubr.bf16.gmra.mxu0 %v1552
        %v1607 = vpop.f32.mrf.mxu0
        %v1608 = vadd.f32 0.0, %v1607
        %v1609 = vpop.f32.mrf.mxu0
        %v1610 = vpop.f32.mrf.mxu0
        %v1611 = vadd.f32 0.0, %v1610
        %v1612 = vpop.f32.mrf.mxu0
        %1613 = vmatprep.mubr.bf16.mxu0 0
        %1614 = vmatmul.mubr.bf16.gmra.mxu0 %v1555
        %v1615 = vpop.f32.mrf.mxu0
        %v1616 = vadd.f32 0.0, %v1615
        %v1617 = vpop.f32.mrf.mxu0
        %v1618 = vpop.f32.mrf.mxu0
        %v1619 = vadd.f32 0.0, %v1618
        %v1620 = vpop.f32.mrf.mxu0
        %1621 = vdwg.mxu0
        %v1622 = vrcp.pop %v1503
        %v1623 = vrcp.pop %v1506
        %v1624 = vrcp.pop %v1509
        %v1625 = vrcp.pop %v1512
        %v1626 = vrcp.pop %v1515
        %v1627 = vrcp.pop %v1518
        %v1628 = vrcp.pop %v1521
        %v1629 = vrcp.pop %v1524
        %v1630 = vmul.f32 %v1592, %v1622
        %v1631 = vmul.f32 %v1595, %v1623
        %v1632 = vmul.f32 %v1600, %v1624
        %v1633 = vmul.f32 %v1603, %v1625
        %v1634 = vmul.f32 %v1608, %v1626
        %v1635 = vmul.f32 %v1611, %v1627
        %v1636 = vmul.f32 %v1616, %v1628
        %v1637 = vmul.f32 %v1619, %v1629
        %1646 = vrot.lane.b32.xlu0 %v1630, 16
        %v1647 = vpop.permute.xlu0 %1646
        %1648 = vrot.lane.b32.xlu0 %v1631, 16
        %v1649 = vpop.permute.xlu0 %1648
        %1650 = vrot.lane.b32.xlu0 %v1632, 16
        %v1651 = vpop.permute.xlu0 %1650
        %1652 = vrot.lane.b32.xlu0 %v1633, 16
        %v1653 = vpop.permute.xlu0 %1652
        %1654 = vrot.lane.b32.xlu0 %v1634, 16
        %v1655 = vpop.permute.xlu0 %1654
        %1656 = vrot.lane.b32.xlu0 %v1635, 16
        %v1657 = vpop.permute.xlu0 %1656
        %1658 = vrot.lane.b32.xlu0 %v1636, 16
        %v1659 = vpop.permute.xlu0 %1658
        %1660 = vrot.lane.b32.xlu0 %v1637, 16
        %v1661 = vpop.permute.xlu0 %1660
        %vm1670 = vcmask 261248
        %1671 = vst.msk [vmem:[#allocation2] sm:$0xff] %vm1670, %v1647
        %1672 = vst.msk [vmem:[#allocation2 + $0x8] sm:$0xff] %vm1670, %v1649
        %1673 = vst.msk [vmem:[#allocation2 + $0x10] sm:$0xff] %vm1670, %v1651
        %1674 = vst.msk [vmem:[#allocation2 + $0x18] sm:$0xff] %vm1670, %v1653
        %1675 = vst.msk [vmem:[#allocation2 + $0x20] sm:$0xff] %vm1670, %v1655
        %1676 = vst.msk [vmem:[#allocation2 + $0x28] sm:$0xff] %vm1670, %v1657
        %1677 = vst.msk [vmem:[#allocation2 + $0x30] sm:$0xff] %vm1670, %v1659
        %1678 = vst.msk [vmem:[#allocation2 + $0x38] sm:$0xff] %vm1670, %v1661
        %1679 = vrot.lane.b32.xlu0 %v1044, 96
        %v1680 = vpop.permute.xlu0 %1679
        %1681 = vrot.lane.b32.xlu0 %v1045, 96
        %v1682 = vpop.permute.xlu0 %1681
        %1683 = vrot.lane.b32.xlu0 %v1046, 96
        %v1684 = vpop.permute.xlu0 %1683
        %1685 = vrot.lane.b32.xlu0 %v1047, 96
        %v1686 = vpop.permute.xlu0 %1685
        %1687 = vrot.lane.b32.xlu0 %v1048, 96
        %v1688 = vpop.permute.xlu0 %1687
        %1689 = vrot.lane.b32.xlu0 %v1049, 96
        %v1690 = vpop.permute.xlu0 %1689
        %1691 = vrot.lane.b32.xlu0 %v1050, 96
        %v1692 = vpop.permute.xlu0 %1691
        %1693 = vrot.lane.b32.xlu0 %v1051, 96
        %v1694 = vpop.permute.xlu0 %1693
        %v1696 = vsel %vm1056, %v1680, 0
        %v1699 = vsel %vm1056, %v1682, 0
        %v1702 = vsel %vm1056, %v1684, 0
        %v1705 = vsel %vm1056, %v1686, 0
        %v1708 = vsel %vm1056, %v1688, 0
        %v1711 = vsel %vm1056, %v1690, 0
        %v1714 = vsel %vm1056, %v1692, 0
        %v1717 = vsel %vm1056, %v1694, 0
        %1719 = vmatprep.subr.bf16.mxu0 0
        %1720 = vmatpush1.bf16.xpose.msra.mxu0 0
        %1721 = vmatprep.subr.bf16.mxu0 0
        %1722 = vmatpush1.bf16.xpose.msra.mxu0 0
        %1723 = vmatprep.subr.bf16.mxu0 0
        %1724 = vmatpush1.bf16.xpose.msra.mxu0 0
        %1725 = vmatprep.subr.bf16.mxu0 0
        %1726 = vmatpush1.bf16.xpose.msra.mxu0 0
        %1727 = vmatprep.subr.bf16.mxu0 0
        %1728 = vmatpush1.bf16.xpose.msra.mxu0 %v1717
        %1729 = vmatprep.subr.bf16.mxu0 0
        %1730 = vmatpush1.bf16.xpose.msra.mxu0 %v1714
        %1731 = vmatprep.subr.bf16.mxu0 0
        %1732 = vmatpush1.bf16.xpose.msra.mxu0 %v1711
        %1733 = vmatprep.subr.bf16.mxu0 0
        %1734 = vmatpush1.bf16.xpose.msra.mxu0 %v1708
        %1735 = vmatprep.subr.bf16.mxu0 0
        %1736 = vmatpush2.bf16.xpose.msra.mxu0 0
        %1737 = vmatprep.subr.bf16.mxu0 0
        %1738 = vmatpush2.bf16.xpose.msra.mxu0 0
        %1739 = vmatprep.subr.bf16.mxu0 0
        %1740 = vmatpush2.bf16.xpose.msra.mxu0 0
        %1741 = vmatprep.subr.bf16.mxu0 0
        %1742 = vmatpush2.bf16.xpose.msra.mxu0 0
        %1743 = vmatprep.subr.bf16.mxu0 0
        %1744 = vmatpush2.bf16.xpose.msra.mxu0 0
        %1745 = vmatprep.subr.bf16.mxu0 0
        %1746 = vmatpush2.bf16.xpose.msra.mxu0 0
        %1747 = vmatprep.subr.bf16.mxu0 0
        %1748 = vmatpush2.bf16.xpose.msra.mxu0 0
        %1749 = vmatprep.subr.bf16.mxu0 0
        %1750 = vmatpush2.bf16.xpose.msra.mxu0 0
        %1751 = vmatprep.mubr.bf16.mxu0 0
        %1752 = vmatmul.mubr.bf16.gmra.mxu0 %v1696
        %v1753 = vpop.f32.mrf.mxu0
        %v1754 = vadd.f32 0.0, %v1753
        %v1755 = vpop.f32.mrf.mxu0
        %v1756 = vpop.f32.mrf.mxu0
        %v1757 = vadd.f32 0.0, %v1756
        %v1758 = vpop.f32.mrf.mxu0
        %1759 = vmatprep.mubr.bf16.mxu0 0
        %1760 = vmatmul.mubr.bf16.gmra.mxu0 %v1699
        %v1761 = vpop.f32.mrf.mxu0
        %v1762 = vadd.f32 0.0, %v1761
        %v1763 = vpop.f32.mrf.mxu0
        %v1764 = vpop.f32.mrf.mxu0
        %v1765 = vadd.f32 0.0, %v1764
        %v1766 = vpop.f32.mrf.mxu0
        %1767 = vmatprep.mubr.bf16.mxu0 0
        %1768 = vmatmul.mubr.bf16.gmra.mxu0 %v1702
        %v1769 = vpop.f32.mrf.mxu0
        %v1770 = vadd.f32 0.0, %v1769
        %v1771 = vpop.f32.mrf.mxu0
        %v1772 = vpop.f32.mrf.mxu0
        %v1773 = vadd.f32 0.0, %v1772
        %v1774 = vpop.f32.mrf.mxu0
        %1775 = vmatprep.mubr.bf16.mxu0 0
        %1776 = vmatmul.mubr.bf16.gmra.mxu0 %v1705
        %v1777 = vpop.f32.mrf.mxu0
        %v1778 = vadd.f32 0.0, %v1777
        %v1779 = vpop.f32.mrf.mxu0
        %v1780 = vpop.f32.mrf.mxu0
        %v1781 = vadd.f32 0.0, %v1780
        %v1782 = vpop.f32.mrf.mxu0
        %1783 = vdwg.mxu0
        %v1784 = vmul.f32 %v1754, 0.25
        %v1785 = vmul.f32 %v1757, 0.25
        %v1786 = vmul.f32 %v1762, 0.25
        %v1787 = vmul.f32 %v1765, 0.25
        %v1788 = vmul.f32 %v1770, 0.25
        %v1789 = vmul.f32 %v1773, 0.25
        %v1790 = vmul.f32 %v1778, 0.25
        %v1791 = vmul.f32 %v1781, 0.25
        %v1792 = vsel %vm1154, %v1784, -inf
        %1793 = vmax.xlane.f32.xlu0 %v1792
        %v1794 = vpop.xlane.xlu0 %1793
        %v1795 = vsel %vm1154, %v1785, -inf
        %1796 = vmax.xlane.f32.xlu0 %v1795
        %v1797 = vpop.xlane.xlu0 %1796
        %v1798 = vsel %vm1154, %v1786, -inf
        %1799 = vmax.xlane.f32.xlu0 %v1798
        %v1800 = vpop.xlane.xlu0 %1799
        %v1801 = vsel %vm1154, %v1787, -inf
        %1802 = vmax.xlane.f32.xlu0 %v1801
        %v1803 = vpop.xlane.xlu0 %1802
        %v1804 = vsel %vm1154, %v1788, -inf
        %1805 = vmax.xlane.f32.xlu0 %v1804
        %v1806 = vpop.xlane.xlu0 %1805
        %v1807 = vsel %vm1154, %v1789, -inf
        %1808 = vmax.xlane.f32.xlu0 %v1807
        %v1809 = vpop.xlane.xlu0 %1808
        %v1810 = vsel %vm1154, %v1790, -inf
        %1811 = vmax.xlane.f32.xlu0 %v1810
        %v1812 = vpop.xlane.xlu0 %1811
        %v1813 = vsel %vm1154, %v1791, -inf
        %1814 = vmax.xlane.f32.xlu0 %v1813
        %v1815 = vpop.xlane.xlu0 %1814
        %v1816 = vsub.f32 %v1784, %v1794
        %v1817 = vsub.f32 %v1785, %v1797
        %v1818 = vsub.f32 %v1786, %v1800
        %v1819 = vsub.f32 %v1787, %v1803
        %v1820 = vsub.f32 %v1788, %v1806
        %v1821 = vsub.f32 %v1789, %v1809
        %v1822 = vsub.f32 %v1790, %v1812
        %v1823 = vsub.f32 %v1791, %v1815
        %v1824 = vmul.f32 %v1816, 1.442695
        %v1825 = vpow.pop %v1824
        %v1826 = vmul.f32 %v1817, 1.442695
        %v1827 = vpow.pop %v1826
        %v1828 = vmul.f32 %v1818, 1.442695
        %v1829 = vpow.pop %v1828
        %v1830 = vmul.f32 %v1819, 1.442695
        %v1831 = vpow.pop %v1830
        %v1832 = vmul.f32 %v1820, 1.442695
        %v1833 = vpow.pop %v1832
        %v1834 = vmul.f32 %v1821, 1.442695
        %v1835 = vpow.pop %v1834
        %v1836 = vmul.f32 %v1822, 1.442695
        %v1837 = vpow.pop %v1836
        %v1838 = vmul.f32 %v1823, 1.442695
        %v1839 = vpow.pop %v1838
        %v1840 = vsel %vm1154, %v1825, 0.0
        %1841 = vadd.xlane.f32.xlu0 %v1840
        %v1842 = vpop.xlane.xlu0 %1841
        %v1843 = vsel %vm1154, %v1827, 0.0
        %1844 = vadd.xlane.f32.xlu0 %v1843
        %v1845 = vpop.xlane.xlu0 %1844
        %v1846 = vsel %vm1154, %v1829, 0.0
        %1847 = vadd.xlane.f32.xlu0 %v1846
        %v1848 = vpop.xlane.xlu0 %1847
        %v1849 = vsel %vm1154, %v1831, 0.0
        %1850 = vadd.xlane.f32.xlu0 %v1849
        %v1851 = vpop.xlane.xlu0 %1850
        %v1852 = vsel %vm1154, %v1833, 0.0
        %1853 = vadd.xlane.f32.xlu0 %v1852
        %v1854 = vpop.xlane.xlu0 %1853
        %v1855 = vsel %vm1154, %v1835, 0.0
        %1856 = vadd.xlane.f32.xlu0 %v1855
        %v1857 = vpop.xlane.xlu0 %1856
        %v1858 = vsel %vm1154, %v1837, 0.0
        %1859 = vadd.xlane.f32.xlu0 %v1858
        %v1860 = vpop.xlane.xlu0 %1859
        %v1861 = vsel %vm1154, %v1839, 0.0
        %1862 = vadd.xlane.f32.xlu0 %v1861
        %v1863 = vpop.xlane.xlu0 %1862
        %v1864 = vpack.c.bf16 %v1827, %v1825
        %v1865 = vpack.c.bf16 %v1831, %v1829
        %v1866 = vpack.c.bf16 %v1835, %v1833
        %v1867 = vpack.c.bf16 %v1839, %v1837
        %1868 = vrot.lane.b32.xlu0 %v1052, 96
        %v1869 = vpop.permute.xlu0 %1868
        %1870 = vrot.lane.b32.xlu0 %v1053, 96
        %v1871 = vpop.permute.xlu0 %1870
        %1872 = vrot.lane.b32.xlu0 %v1054, 96
        %v1873 = vpop.permute.xlu0 %1872
        %1874 = vrot.lane.b32.xlu0 %v1055, 96
        %v1875 = vpop.permute.xlu0 %1874
        %v1881 = vsel %vm1154, %v1864, 0
        %v1884 = vsel %vm1154, %v1865, 0
        %v1887 = vsel %vm1154, %v1866, 0
        %v1890 = vsel %vm1154, %v1867, 0
        %1892 = vmatprep.subr.bf16.mxu0 0
        %1893 = vmatpush1.bf16.msra.mxu0 0
        %1894 = vmatprep.subr.bf16.mxu0 0
        %1895 = vmatpush1.bf16.msra.mxu0 0
        %1896 = vmatprep.subr.bf16.mxu0 0
        %1897 = vmatpush1.bf16.msra.mxu0 0
        %1898 = vmatprep.subr.bf16.mxu0 0
        %1899 = vmatpush1.bf16.msra.mxu0 0
        %1900 = vmatprep.subr.bf16.mxu0 0
        %1901 = vmatpush1.bf16.msra.mxu0 %v1875
        %1902 = vmatprep.subr.bf16.mxu0 0
        %1903 = vmatpush1.bf16.msra.mxu0 %v1873
        %1904 = vmatprep.subr.bf16.mxu0 0
        %1905 = vmatpush1.bf16.msra.mxu0 %v1871
        %1906 = vmatprep.subr.bf16.mxu0 0
        %1907 = vmatpush1.bf16.msra.mxu0 %v1869
        %1908 = vmatprep.subr.bf16.mxu0 0
        %1909 = vmatpush2.bf16.msra.mxu0 0
        %1910 = vmatprep.subr.bf16.mxu0 0
        %1911 = vmatpush2.bf16.msra.mxu0 0
        %1912 = vmatprep.subr.bf16.mxu0 0
        %1913 = vmatpush2.bf16.msra.mxu0 0
        %1914 = vmatprep.subr.bf16.mxu0 0
        %1915 = vmatpush2.bf16.msra.mxu0 0
        %1916 = vmatprep.subr.bf16.mxu0 0
        %1917 = vmatpush2.bf16.msra.mxu0 0
        %1918 = vmatprep.subr.bf16.mxu0 0
        %1919 = vmatpush2.bf16.msra.mxu0 0
        %1920 = vmatprep.subr.bf16.mxu0 0
        %1921 = vmatpush2.bf16.msra.mxu0 0
        %1922 = vmatprep.subr.bf16.mxu0 0
        %1923 = vmatpush2.bf16.msra.mxu0 0
        %1924 = vmatprep.mubr.bf16.mxu0 0
        %1925 = vmatmul.mubr.bf16.gmra.mxu0 %v1881
        %v1926 = vpop.f32.mrf.mxu0
        %v1927 = vadd.f32 0.0, %v1926
        %v1928 = vpop.f32.mrf.mxu0
        %v1929 = vpop.f32.mrf.mxu0
        %v1930 = vadd.f32 0.0, %v1929
        %v1931 = vpop.f32.mrf.mxu0
        %1932 = vmatprep.mubr.bf16.mxu0 0
        %1933 = vmatmul.mubr.bf16.gmra.mxu0 %v1884
        %v1934 = vpop.f32.mrf.mxu0
        %v1935 = vadd.f32 0.0, %v1934
        %v1936 = vpop.f32.mrf.mxu0
        %v1937 = vpop.f32.mrf.mxu0
        %v1938 = vadd.f32 0.0, %v1937
        %v1939 = vpop.f32.mrf.mxu0
        %1940 = vmatprep.mubr.bf16.mxu0 0
        %1941 = vmatmul.mubr.bf16.gmra.mxu0 %v1887
        %v1942 = vpop.f32.mrf.mxu0
        %v1943 = vadd.f32 0.0, %v1942
        %v1944 = vpop.f32.mrf.mxu0
        %v1945 = vpop.f32.mrf.mxu0
        %v1946 = vadd.f32 0.0, %v1945
        %v1947 = vpop.f32.mrf.mxu0
        %1948 = vmatprep.mubr.bf16.mxu0 0
        %1949 = vmatmul.mubr.bf16.gmra.mxu0 %v1890
        %v1950 = vpop.f32.mrf.mxu0
        %v1951 = vadd.f32 0.0, %v1950
        %v1952 = vpop.f32.mrf.mxu0
        %v1953 = vpop.f32.mrf.mxu0
        %v1954 = vadd.f32 0.0, %v1953
        %v1955 = vpop.f32.mrf.mxu0
        %1956 = vdwg.mxu0
        %v1957 = vrcp.pop %v1842
        %v1958 = vrcp.pop %v1845
        %v1959 = vrcp.pop %v1848
        %v1960 = vrcp.pop %v1851
        %v1961 = vrcp.pop %v1854
        %v1962 = vrcp.pop %v1857
        %v1963 = vrcp.pop %v1860
        %v1964 = vrcp.pop %v1863
        %v1965 = vmul.f32 %v1927, %v1957
        %v1966 = vmul.f32 %v1930, %v1958
        %v1967 = vmul.f32 %v1935, %v1959
        %v1968 = vmul.f32 %v1938, %v1960
        %v1969 = vmul.f32 %v1943, %v1961
        %v1970 = vmul.f32 %v1946, %v1962
        %v1971 = vmul.f32 %v1951, %v1963
        %v1972 = vmul.f32 %v1954, %v1964
        %1981 = vrot.lane.b32.xlu0 %v1965, 32
        %v1982 = vpop.permute.xlu0 %1981
        %1983 = vrot.lane.b32.xlu0 %v1966, 32
        %v1984 = vpop.permute.xlu0 %1983
        %1985 = vrot.lane.b32.xlu0 %v1967, 32
        %v1986 = vpop.permute.xlu0 %1985
        %1987 = vrot.lane.b32.xlu0 %v1968, 32
        %v1988 = vpop.permute.xlu0 %1987
        %1989 = vrot.lane.b32.xlu0 %v1969, 32
        %v1990 = vpop.permute.xlu0 %1989
        %1991 = vrot.lane.b32.xlu0 %v1970, 32
        %v1992 = vpop.permute.xlu0 %1991
        %1993 = vrot.lane.b32.xlu0 %v1971, 32
        %v1994 = vpop.permute.xlu0 %1993
        %1995 = vrot.lane.b32.xlu0 %v1972, 32
        %v1996 = vpop.permute.xlu0 %1995
        %vm2005 = vcmask 392448
        %2006 = vst.msk [vmem:[#allocation2] sm:$0xff] %vm2005, %v1982
        %2007 = vst.msk [vmem:[#allocation2 + $0x8] sm:$0xff] %vm2005, %v1984
        %2008 = vst.msk [vmem:[#allocation2 + $0x10] sm:$0xff] %vm2005, %v1986
        %2009 = vst.msk [vmem:[#allocation2 + $0x18] sm:$0xff] %vm2005, %v1988
        %2010 = vst.msk [vmem:[#allocation2 + $0x20] sm:$0xff] %vm2005, %v1990
        %2011 = vst.msk [vmem:[#allocation2 + $0x28] sm:$0xff] %vm2005, %v1992
        %2012 = vst.msk [vmem:[#allocation2 + $0x30] sm:$0xff] %vm2005, %v1994
        %2013 = vst.msk [vmem:[#allocation2 + $0x38] sm:$0xff] %vm2005, %v1996
        %2014 = vrot.lane.b32.xlu0 %v1044, 80
        %v2015 = vpop.permute.xlu0 %2014
        %2016 = vrot.lane.b32.xlu0 %v1045, 80
        %v2017 = vpop.permute.xlu0 %2016
        %2018 = vrot.lane.b32.xlu0 %v1046, 80
        %v2019 = vpop.permute.xlu0 %2018
        %2020 = vrot.lane.b32.xlu0 %v1047, 80
        %v2021 = vpop.permute.xlu0 %2020
        %2022 = vrot.lane.b32.xlu0 %v1048, 80
        %v2023 = vpop.permute.xlu0 %2022
        %2024 = vrot.lane.b32.xlu0 %v1049, 80
        %v2025 = vpop.permute.xlu0 %2024
        %2026 = vrot.lane.b32.xlu0 %v1050, 80
        %v2027 = vpop.permute.xlu0 %2026
        %2028 = vrot.lane.b32.xlu0 %v1051, 80
        %v2029 = vpop.permute.xlu0 %2028
        %v2031 = vsel %vm1056, %v2015, 0
        %v2034 = vsel %vm1056, %v2017, 0
        %v2037 = vsel %vm1056, %v2019, 0
        %v2040 = vsel %vm1056, %v2021, 0
        %v2043 = vsel %vm1056, %v2023, 0
        %v2046 = vsel %vm1056, %v2025, 0
        %v2049 = vsel %vm1056, %v2027, 0
        %v2052 = vsel %vm1056, %v2029, 0
        %2054 = vmatprep.subr.bf16.mxu0 0
        %2055 = vmatpush1.bf16.xpose.msra.mxu0 0
        %2056 = vmatprep.subr.bf16.mxu0 0
        %2057 = vmatpush1.bf16.xpose.msra.mxu0 0
        %2058 = vmatprep.subr.bf16.mxu0 0
        %2059 = vmatpush1.bf16.xpose.msra.mxu0 0
        %2060 = vmatprep.subr.bf16.mxu0 0
        %2061 = vmatpush1.bf16.xpose.msra.mxu0 0
        %2062 = vmatprep.subr.bf16.mxu0 0
        %2063 = vmatpush1.bf16.xpose.msra.mxu0 %v2052
        %2064 = vmatprep.subr.bf16.mxu0 0
        %2065 = vmatpush1.bf16.xpose.msra.mxu0 %v2049
        %2066 = vmatprep.subr.bf16.mxu0 0
        %2067 = vmatpush1.bf16.xpose.msra.mxu0 %v2046
        %2068 = vmatprep.subr.bf16.mxu0 0
        %2069 = vmatpush1.bf16.xpose.msra.mxu0 %v2043
        %2070 = vmatprep.subr.bf16.mxu0 0
        %2071 = vmatpush2.bf16.xpose.msra.mxu0 0
        %2072 = vmatprep.subr.bf16.mxu0 0
        %2073 = vmatpush2.bf16.xpose.msra.mxu0 0
        %2074 = vmatprep.subr.bf16.mxu0 0
        %2075 = vmatpush2.bf16.xpose.msra.mxu0 0
        %2076 = vmatprep.subr.bf16.mxu0 0
        %2077 = vmatpush2.bf16.xpose.msra.mxu0 0
        %2078 = vmatprep.subr.bf16.mxu0 0
        %2079 = vmatpush2.bf16.xpose.msra.mxu0 0
        %2080 = vmatprep.subr.bf16.mxu0 0
        %2081 = vmatpush2.bf16.xpose.msra.mxu0 0
        %2082 = vmatprep.subr.bf16.mxu0 0
        %2083 = vmatpush2.bf16.xpose.msra.mxu0 0
        %2084 = vmatprep.subr.bf16.mxu0 0
        %2085 = vmatpush2.bf16.xpose.msra.mxu0 0
        %2086 = vmatprep.mubr.bf16.mxu0 0
        %2087 = vmatmul.mubr.bf16.gmra.mxu0 %v2031
        %v2088 = vpop.f32.mrf.mxu0
        %v2089 = vadd.f32 0.0, %v2088
        %v2090 = vpop.f32.mrf.mxu0
        %v2091 = vpop.f32.mrf.mxu0
        %v2092 = vadd.f32 0.0, %v2091
        %v2093 = vpop.f32.mrf.mxu0
        %2094 = vmatprep.mubr.bf16.mxu0 0
        %2095 = vmatmul.mubr.bf16.gmra.mxu0 %v2034
        %v2096 = vpop.f32.mrf.mxu0
        %v2097 = vadd.f32 0.0, %v2096
        %v2098 = vpop.f32.mrf.mxu0
        %v2099 = vpop.f32.mrf.mxu0
        %v2100 = vadd.f32 0.0, %v2099
        %v2101 = vpop.f32.mrf.mxu0
        %2102 = vmatprep.mubr.bf16.mxu0 0
        %2103 = vmatmul.mubr.bf16.gmra.mxu0 %v2037
        %v2104 = vpop.f32.mrf.mxu0
        %v2105 = vadd.f32 0.0, %v2104
        %v2106 = vpop.f32.mrf.mxu0
        %v2107 = vpop.f32.mrf.mxu0
        %v2108 = vadd.f32 0.0, %v2107
        %v2109 = vpop.f32.mrf.mxu0
        %2110 = vmatprep.mubr.bf16.mxu0 0
        %2111 = vmatmul.mubr.bf16.gmra.mxu0 %v2040
        %v2112 = vpop.f32.mrf.mxu0
        %v2113 = vadd.f32 0.0, %v2112
        %v2114 = vpop.f32.mrf.mxu0
        %v2115 = vpop.f32.mrf.mxu0
        %v2116 = vadd.f32 0.0, %v2115
        %v2117 = vpop.f32.mrf.mxu0
        %2118 = vdwg.mxu0
        %v2119 = vmul.f32 %v2089, 0.25
        %v2120 = vmul.f32 %v2092, 0.25
        %v2121 = vmul.f32 %v2097, 0.25
        %v2122 = vmul.f32 %v2100, 0.25
        %v2123 = vmul.f32 %v2105, 0.25
        %v2124 = vmul.f32 %v2108, 0.25
        %v2125 = vmul.f32 %v2113, 0.25
        %v2126 = vmul.f32 %v2116, 0.25
        %v2127 = vsel %vm1154, %v2119, -inf
        %2128 = vmax.xlane.f32.xlu0 %v2127
        %v2129 = vpop.xlane.xlu0 %2128
        %v2130 = vsel %vm1154, %v2120, -inf
        %2131 = vmax.xlane.f32.xlu0 %v2130
        %v2132 = vpop.xlane.xlu0 %2131
        %v2133 = vsel %vm1154, %v2121, -inf
        %2134 = vmax.xlane.f32.xlu0 %v2133
        %v2135 = vpop.xlane.xlu0 %2134
        %v2136 = vsel %vm1154, %v2122, -inf
        %2137 = vmax.xlane.f32.xlu0 %v2136
        %v2138 = vpop.xlane.xlu0 %2137
        %v2139 = vsel %vm1154, %v2123, -inf
        %2140 = vmax.xlane.f32.xlu0 %v2139
        %v2141 = vpop.xlane.xlu0 %2140
        %v2142 = vsel %vm1154, %v2124, -inf
        %2143 = vmax.xlane.f32.xlu0 %v2142
        %v2144 = vpop.xlane.xlu0 %2143
        %v2145 = vsel %vm1154, %v2125, -inf
        %2146 = vmax.xlane.f32.xlu0 %v2145
        %v2147 = vpop.xlane.xlu0 %2146
        %v2148 = vsel %vm1154, %v2126, -inf
        %2149 = vmax.xlane.f32.xlu0 %v2148
        %v2150 = vpop.xlane.xlu0 %2149
        %v2151 = vsub.f32 %v2119, %v2129
        %v2152 = vsub.f32 %v2120, %v2132
        %v2153 = vsub.f32 %v2121, %v2135
        %v2154 = vsub.f32 %v2122, %v2138
        %v2155 = vsub.f32 %v2123, %v2141
        %v2156 = vsub.f32 %v2124, %v2144
        %v2157 = vsub.f32 %v2125, %v2147
        %v2158 = vsub.f32 %v2126, %v2150
        %v2159 = vmul.f32 %v2151, 1.442695
        %v2160 = vpow.pop %v2159
        %v2161 = vmul.f32 %v2152, 1.442695
        %v2162 = vpow.pop %v2161
        %v2163 = vmul.f32 %v2153, 1.442695
        %v2164 = vpow.pop %v2163
        %v2165 = vmul.f32 %v2154, 1.442695
        %v2166 = vpow.pop %v2165
        %v2167 = vmul.f32 %v2155, 1.442695
        %v2168 = vpow.pop %v2167
        %v2169 = vmul.f32 %v2156, 1.442695
        %v2170 = vpow.pop %v2169
        %v2171 = vmul.f32 %v2157, 1.442695
        %v2172 = vpow.pop %v2171
        %v2173 = vmul.f32 %v2158, 1.442695
        %v2174 = vpow.pop %v2173
        %v2175 = vsel %vm1154, %v2160, 0.0
        %2176 = vadd.xlane.f32.xlu0 %v2175
        %v2177 = vpop.xlane.xlu0 %2176
        %v2178 = vsel %vm1154, %v2162, 0.0
        %2179 = vadd.xlane.f32.xlu0 %v2178
        %v2180 = vpop.xlane.xlu0 %2179
        %v2181 = vsel %vm1154, %v2164, 0.0
        %2182 = vadd.xlane.f32.xlu0 %v2181
        %v2183 = vpop.xlane.xlu0 %2182
        %v2184 = vsel %vm1154, %v2166, 0.0
        %2185 = vadd.xlane.f32.xlu0 %v2184
        %v2186 = vpop.xlane.xlu0 %2185
        %v2187 = vsel %vm1154, %v2168, 0.0
        %2188 = vadd.xlane.f32.xlu0 %v2187
        %v2189 = vpop.xlane.xlu0 %2188
        %v2190 = vsel %vm1154, %v2170, 0.0
        %2191 = vadd.xlane.f32.xlu0 %v2190
        %v2192 = vpop.xlane.xlu0 %2191
        %v2193 = vsel %vm1154, %v2172, 0.0
        %2194 = vadd.xlane.f32.xlu0 %v2193
        %v2195 = vpop.xlane.xlu0 %2194
        %v2196 = vsel %vm1154, %v2174, 0.0
        %2197 = vadd.xlane.f32.xlu0 %v2196
        %v2198 = vpop.xlane.xlu0 %2197
        %v2199 = vpack.c.bf16 %v2162, %v2160
        %v2200 = vpack.c.bf16 %v2166, %v2164
        %v2201 = vpack.c.bf16 %v2170, %v2168
        %v2202 = vpack.c.bf16 %v2174, %v2172
        %2203 = vrot.lane.b32.xlu0 %v1052, 80
        %v2204 = vpop.permute.xlu0 %2203
        %2205 = vrot.lane.b32.xlu0 %v1053, 80
        %v2206 = vpop.permute.xlu0 %2205
        %2207 = vrot.lane.b32.xlu0 %v1054, 80
        %v2208 = vpop.permute.xlu0 %2207
        %2209 = vrot.lane.b32.xlu0 %v1055, 80
        %v2210 = vpop.permute.xlu0 %2209
        %v2216 = vsel %vm1154, %v2199, 0
        %v2219 = vsel %vm1154, %v2200, 0
        %v2222 = vsel %vm1154, %v2201, 0
        %v2225 = vsel %vm1154, %v2202, 0
        %2227 = vmatprep.subr.bf16.mxu0 0
        %2228 = vmatpush1.bf16.msra.mxu0 0
        %2229 = vmatprep.subr.bf16.mxu0 0
        %2230 = vmatpush1.bf16.msra.mxu0 0
        %2231 = vmatprep.subr.bf16.mxu0 0
        %2232 = vmatpush1.bf16.msra.mxu0 0
        %2233 = vmatprep.subr.bf16.mxu0 0
        %2234 = vmatpush1.bf16.msra.mxu0 0
        %2235 = vmatprep.subr.bf16.mxu0 0
        %2236 = vmatpush1.bf16.msra.mxu0 %v2210
        %2237 = vmatprep.subr.bf16.mxu0 0
        %2238 = vmatpush1.bf16.msra.mxu0 %v2208
        %2239 = vmatprep.subr.bf16.mxu0 0
        %2240 = vmatpush1.bf16.msra.mxu0 %v2206
        %2241 = vmatprep.subr.bf16.mxu0 0
        %2242 = vmatpush1.bf16.msra.mxu0 %v2204
        %2243 = vmatprep.subr.bf16.mxu0 0
        %2244 = vmatpush2.bf16.msra.mxu0 0
        %2245 = vmatprep.subr.bf16.mxu0 0
        %2246 = vmatpush2.bf16.msra.mxu0 0
        %2247 = vmatprep.subr.bf16.mxu0 0
        %2248 = vmatpush2.bf16.msra.mxu0 0
        %2249 = vmatprep.subr.bf16.mxu0 0
        %2250 = vmatpush2.bf16.msra.mxu0 0
        %2251 = vmatprep.subr.bf16.mxu0 0
        %2252 = vmatpush2.bf16.msra.mxu0 0
        %2253 = vmatprep.subr.bf16.mxu0 0
        %2254 = vmatpush2.bf16.msra.mxu0 0
        %2255 = vmatprep.subr.bf16.mxu0 0
        %2256 = vmatpush2.bf16.msra.mxu0 0
        %2257 = vmatprep.subr.bf16.mxu0 0
        %2258 = vmatpush2.bf16.msra.mxu0 0
        %2259 = vmatprep.mubr.bf16.mxu0 0
        %2260 = vmatmul.mubr.bf16.gmra.mxu0 %v2216
        %v2261 = vpop.f32.mrf.mxu0
        %v2262 = vadd.f32 0.0, %v2261
        %v2263 = vpop.f32.mrf.mxu0
        %v2264 = vpop.f32.mrf.mxu0
        %v2265 = vadd.f32 0.0, %v2264
        %v2266 = vpop.f32.mrf.mxu0
        %2267 = vmatprep.mubr.bf16.mxu0 0
        %2268 = vmatmul.mubr.bf16.gmra.mxu0 %v2219
        %v2269 = vpop.f32.mrf.mxu0
        %v2270 = vadd.f32 0.0, %v2269
        %v2271 = vpop.f32.mrf.mxu0
        %v2272 = vpop.f32.mrf.mxu0
        %v2273 = vadd.f32 0.0, %v2272
        %v2274 = vpop.f32.mrf.mxu0
        %2275 = vmatprep.mubr.bf16.mxu0 0
        %2276 = vmatmul.mubr.bf16.gmra.mxu0 %v2222
        %v2277 = vpop.f32.mrf.mxu0
        %v2278 = vadd.f32 0.0, %v2277
        %v2279 = vpop.f32.mrf.mxu0
        %v2280 = vpop.f32.mrf.mxu0
        %v2281 = vadd.f32 0.0, %v2280
        %v2282 = vpop.f32.mrf.mxu0
        %2283 = vmatprep.mubr.bf16.mxu0 0
        %2284 = vmatmul.mubr.bf16.gmra.mxu0 %v2225
        %v2285 = vpop.f32.mrf.mxu0
        %v2286 = vadd.f32 0.0, %v2285
        %v2287 = vpop.f32.mrf.mxu0
        %v2288 = vpop.f32.mrf.mxu0
        %v2289 = vadd.f32 0.0, %v2288
        %v2290 = vpop.f32.mrf.mxu0
        %2291 = vdwg.mxu0
        %v2292 = vrcp.pop %v2177
        %v2293 = vrcp.pop %v2180
        %v2294 = vrcp.pop %v2183
        %v2295 = vrcp.pop %v2186
        %v2296 = vrcp.pop %v2189
        %v2297 = vrcp.pop %v2192
        %v2298 = vrcp.pop %v2195
        %v2299 = vrcp.pop %v2198
        %v2300 = vmul.f32 %v2262, %v2292
        %v2301 = vmul.f32 %v2265, %v2293
        %v2302 = vmul.f32 %v2270, %v2294
        %v2303 = vmul.f32 %v2273, %v2295
        %v2304 = vmul.f32 %v2278, %v2296
        %v2305 = vmul.f32 %v2281, %v2297
        %v2306 = vmul.f32 %v2286, %v2298
        %v2307 = vmul.f32 %v2289, %v2299
        %2316 = vrot.lane.b32.xlu0 %v2300, 48
        %v2317 = vpop.permute.xlu0 %2316
        %2318 = vrot.lane.b32.xlu0 %v2301, 48
        %v2319 = vpop.permute.xlu0 %2318
        %2320 = vrot.lane.b32.xlu0 %v2302, 48
        %v2321 = vpop.permute.xlu0 %2320
        %2322 = vrot.lane.b32.xlu0 %v2303, 48
        %v2323 = vpop.permute.xlu0 %2322
        %2324 = vrot.lane.b32.xlu0 %v2304, 48
        %v2325 = vpop.permute.xlu0 %2324
        %2326 = vrot.lane.b32.xlu0 %v2305, 48
        %v2327 = vpop.permute.xlu0 %2326
        %2328 = vrot.lane.b32.xlu0 %v2306, 48
        %v2329 = vpop.permute.xlu0 %2328
        %2330 = vrot.lane.b32.xlu0 %v2307, 48
        %v2331 = vpop.permute.xlu0 %2330
        %vm2340 = vcmask 523648
        %2341 = vst.msk [vmem:[#allocation2] sm:$0xff] %vm2340, %v2317
        %2342 = vst.msk [vmem:[#allocation2 + $0x8] sm:$0xff] %vm2340, %v2319
        %2343 = vst.msk [vmem:[#allocation2 + $0x10] sm:$0xff] %vm2340, %v2321
        %2344 = vst.msk [vmem:[#allocation2 + $0x18] sm:$0xff] %vm2340, %v2323
        %2345 = vst.msk [vmem:[#allocation2 + $0x20] sm:$0xff] %vm2340, %v2325
        %2346 = vst.msk [vmem:[#allocation2 + $0x28] sm:$0xff] %vm2340, %v2327
        %2347 = vst.msk [vmem:[#allocation2 + $0x30] sm:$0xff] %vm2340, %v2329
        %2348 = vst.msk [vmem:[#allocation2 + $0x38] sm:$0xff] %vm2340, %v2331
        %2349 = vrot.lane.b32.xlu0 %v1044, 64
        %v2350 = vpop.permute.xlu0 %2349
        %2351 = vrot.lane.b32.xlu0 %v1045, 64
        %v2352 = vpop.permute.xlu0 %2351
        %2353 = vrot.lane.b32.xlu0 %v1046, 64
        %v2354 = vpop.permute.xlu0 %2353
        %2355 = vrot.lane.b32.xlu0 %v1047, 64
        %v2356 = vpop.permute.xlu0 %2355
        %2357 = vrot.lane.b32.xlu0 %v1048, 64
        %v2358 = vpop.permute.xlu0 %2357
        %2359 = vrot.lane.b32.xlu0 %v1049, 64
        %v2360 = vpop.permute.xlu0 %2359
        %2361 = vrot.lane.b32.xlu0 %v1050, 64
        %v2362 = vpop.permute.xlu0 %2361
        %2363 = vrot.lane.b32.xlu0 %v1051, 64
        %v2364 = vpop.permute.xlu0 %2363
        %v2366 = vsel %vm1056, %v2350, 0
        %v2369 = vsel %vm1056, %v2352, 0
        %v2372 = vsel %vm1056, %v2354, 0
        %v2375 = vsel %vm1056, %v2356, 0
        %v2378 = vsel %vm1056, %v2358, 0
        %v2381 = vsel %vm1056, %v2360, 0
        %v2384 = vsel %vm1056, %v2362, 0
        %v2387 = vsel %vm1056, %v2364, 0
        %2389 = vmatprep.subr.bf16.mxu0 0
        %2390 = vmatpush1.bf16.xpose.msra.mxu0 0
        %2391 = vmatprep.subr.bf16.mxu0 0
        %2392 = vmatpush1.bf16.xpose.msra.mxu0 0
        %2393 = vmatprep.subr.bf16.mxu0 0
        %2394 = vmatpush1.bf16.xpose.msra.mxu0 0
        %2395 = vmatprep.subr.bf16.mxu0 0
        %2396 = vmatpush1.bf16.xpose.msra.mxu0 0
        %2397 = vmatprep.subr.bf16.mxu0 0
        %2398 = vmatpush1.bf16.xpose.msra.mxu0 %v2387
        %2399 = vmatprep.subr.bf16.mxu0 0
        %2400 = vmatpush1.bf16.xpose.msra.mxu0 %v2384
        %2401 = vmatprep.subr.bf16.mxu0 0
        %2402 = vmatpush1.bf16.xpose.msra.mxu0 %v2381
        %2403 = vmatprep.subr.bf16.mxu0 0
        %2404 = vmatpush1.bf16.xpose.msra.mxu0 %v2378
        %2405 = vmatprep.subr.bf16.mxu0 0
        %2406 = vmatpush2.bf16.xpose.msra.mxu0 0
        %2407 = vmatprep.subr.bf16.mxu0 0
        %2408 = vmatpush2.bf16.xpose.msra.mxu0 0
        %2409 = vmatprep.subr.bf16.mxu0 0
        %2410 = vmatpush2.bf16.xpose.msra.mxu0 0
        %2411 = vmatprep.subr.bf16.mxu0 0
        %2412 = vmatpush2.bf16.xpose.msra.mxu0 0
        %2413 = vmatprep.subr.bf16.mxu0 0
        %2414 = vmatpush2.bf16.xpose.msra.mxu0 0
        %2415 = vmatprep.subr.bf16.mxu0 0
        %2416 = vmatpush2.bf16.xpose.msra.mxu0 0
        %2417 = vmatprep.subr.bf16.mxu0 0
        %2418 = vmatpush2.bf16.xpose.msra.mxu0 0
        %2419 = vmatprep.subr.bf16.mxu0 0
        %2420 = vmatpush2.bf16.xpose.msra.mxu0 0
        %2421 = vmatprep.mubr.bf16.mxu0 0
        %2422 = vmatmul.mubr.bf16.gmra.mxu0 %v2366
        %v2423 = vpop.f32.mrf.mxu0
        %v2424 = vadd.f32 0.0, %v2423
        %v2425 = vpop.f32.mrf.mxu0
        %v2426 = vpop.f32.mrf.mxu0
        %v2427 = vadd.f32 0.0, %v2426
        %v2428 = vpop.f32.mrf.mxu0
        %2429 = vmatprep.mubr.bf16.mxu0 0
        %2430 = vmatmul.mubr.bf16.gmra.mxu0 %v2369
        %v2431 = vpop.f32.mrf.mxu0
        %v2432 = vadd.f32 0.0, %v2431
        %v2433 = vpop.f32.mrf.mxu0
        %v2434 = vpop.f32.mrf.mxu0
        %v2435 = vadd.f32 0.0, %v2434
        %v2436 = vpop.f32.mrf.mxu0
        %2437 = vmatprep.mubr.bf16.mxu0 0
        %2438 = vmatmul.mubr.bf16.gmra.mxu0 %v2372
        %v2439 = vpop.f32.mrf.mxu0
        %v2440 = vadd.f32 0.0, %v2439
        %v2441 = vpop.f32.mrf.mxu0
        %v2442 = vpop.f32.mrf.mxu0
        %v2443 = vadd.f32 0.0, %v2442
        %v2444 = vpop.f32.mrf.mxu0
        %2445 = vmatprep.mubr.bf16.mxu0 0
        %2446 = vmatmul.mubr.bf16.gmra.mxu0 %v2375
        %v2447 = vpop.f32.mrf.mxu0
        %v2448 = vadd.f32 0.0, %v2447
        %v2449 = vpop.f32.mrf.mxu0
        %v2450 = vpop.f32.mrf.mxu0
        %v2451 = vadd.f32 0.0, %v2450
        %v2452 = vpop.f32.mrf.mxu0
        %2453 = vdwg.mxu0
        %v2454 = vmul.f32 %v2424, 0.25
        %v2455 = vmul.f32 %v2427, 0.25
        %v2456 = vmul.f32 %v2432, 0.25
        %v2457 = vmul.f32 %v2435, 0.25
        %v2458 = vmul.f32 %v2440, 0.25
        %v2459 = vmul.f32 %v2443, 0.25
        %v2460 = vmul.f32 %v2448, 0.25
        %v2461 = vmul.f32 %v2451, 0.25
        %v2462 = vsel %vm1154, %v2454, -inf
        %2463 = vmax.xlane.f32.xlu0 %v2462
        %v2464 = vpop.xlane.xlu0 %2463
        %v2465 = vsel %vm1154, %v2455, -inf
        %2466 = vmax.xlane.f32.xlu0 %v2465
        %v2467 = vpop.xlane.xlu0 %2466
        %v2468 = vsel %vm1154, %v2456, -inf
        %2469 = vmax.xlane.f32.xlu0 %v2468
        %v2470 = vpop.xlane.xlu0 %2469
        %v2471 = vsel %vm1154, %v2457, -inf
        %2472 = vmax.xlane.f32.xlu0 %v2471
        %v2473 = vpop.xlane.xlu0 %2472
        %v2474 = vsel %vm1154, %v2458, -inf
        %2475 = vmax.xlane.f32.xlu0 %v2474
        %v2476 = vpop.xlane.xlu0 %2475
        %v2477 = vsel %vm1154, %v2459, -inf
        %2478 = vmax.xlane.f32.xlu0 %v2477
        %v2479 = vpop.xlane.xlu0 %2478
        %v2480 = vsel %vm1154, %v2460, -inf
        %2481 = vmax.xlane.f32.xlu0 %v2480
        %v2482 = vpop.xlane.xlu0 %2481
        %v2483 = vsel %vm1154, %v2461, -inf
        %2484 = vmax.xlane.f32.xlu0 %v2483
        %v2485 = vpop.xlane.xlu0 %2484
        %v2486 = vsub.f32 %v2454, %v2464
        %v2487 = vsub.f32 %v2455, %v2467
        %v2488 = vsub.f32 %v2456, %v2470
        %v2489 = vsub.f32 %v2457, %v2473
        %v2490 = vsub.f32 %v2458, %v2476
        %v2491 = vsub.f32 %v2459, %v2479
        %v2492 = vsub.f32 %v2460, %v2482
        %v2493 = vsub.f32 %v2461, %v2485
        %v2494 = vmul.f32 %v2486, 1.442695
        %v2495 = vpow.pop %v2494
        %v2496 = vmul.f32 %v2487, 1.442695
        %v2497 = vpow.pop %v2496
        %v2498 = vmul.f32 %v2488, 1.442695
        %v2499 = vpow.pop %v2498
        %v2500 = vmul.f32 %v2489, 1.442695
        %v2501 = vpow.pop %v2500
        %v2502 = vmul.f32 %v2490, 1.442695
        %v2503 = vpow.pop %v2502
        %v2504 = vmul.f32 %v2491, 1.442695
        %v2505 = vpow.pop %v2504
        %v2506 = vmul.f32 %v2492, 1.442695
        %v2507 = vpow.pop %v2506
        %v2508 = vmul.f32 %v2493, 1.442695
        %v2509 = vpow.pop %v2508
        %v2510 = vsel %vm1154, %v2495, 0.0
        %2511 = vadd.xlane.f32.xlu0 %v2510
        %v2512 = vpop.xlane.xlu0 %2511
        %v2513 = vsel %vm1154, %v2497, 0.0
        %2514 = vadd.xlane.f32.xlu0 %v2513
        %v2515 = vpop.xlane.xlu0 %2514
        %v2516 = vsel %vm1154, %v2499, 0.0
        %2517 = vadd.xlane.f32.xlu0 %v2516
        %v2518 = vpop.xlane.xlu0 %2517
        %v2519 = vsel %vm1154, %v2501, 0.0
        %2520 = vadd.xlane.f32.xlu0 %v2519
        %v2521 = vpop.xlane.xlu0 %2520
        %v2522 = vsel %vm1154, %v2503, 0.0
        %2523 = vadd.xlane.f32.xlu0 %v2522
        %v2524 = vpop.xlane.xlu0 %2523
        %v2525 = vsel %vm1154, %v2505, 0.0
        %2526 = vadd.xlane.f32.xlu0 %v2525
        %v2527 = vpop.xlane.xlu0 %2526
        %v2528 = vsel %vm1154, %v2507, 0.0
        %2529 = vadd.xlane.f32.xlu0 %v2528
        %v2530 = vpop.xlane.xlu0 %2529
        %v2531 = vsel %vm1154, %v2509, 0.0
        %2532 = vadd.xlane.f32.xlu0 %v2531
        %v2533 = vpop.xlane.xlu0 %2532
        %v2534 = vpack.c.bf16 %v2497, %v2495
        %v2535 = vpack.c.bf16 %v2501, %v2499
        %v2536 = vpack.c.bf16 %v2505, %v2503
        %v2537 = vpack.c.bf16 %v2509, %v2507
        %2538 = vrot.lane.b32.xlu0 %v1052, 64
        %v2539 = vpop.permute.xlu0 %2538
        %2540 = vrot.lane.b32.xlu0 %v1053, 64
        %v2541 = vpop.permute.xlu0 %2540
        %2542 = vrot.lane.b32.xlu0 %v1054, 64
        %v2543 = vpop.permute.xlu0 %2542
        %2544 = vrot.lane.b32.xlu0 %v1055, 64
        %v2545 = vpop.permute.xlu0 %2544
        %v2551 = vsel %vm1154, %v2534, 0
        %v2554 = vsel %vm1154, %v2535, 0
        %v2557 = vsel %vm1154, %v2536, 0
        %v2560 = vsel %vm1154, %v2537, 0
        %2562 = vmatprep.subr.bf16.mxu0 0
        %2563 = vmatpush1.bf16.msra.mxu0 0
        %2564 = vmatprep.subr.bf16.mxu0 0
        %2565 = vmatpush1.bf16.msra.mxu0 0
        %2566 = vmatprep.subr.bf16.mxu0 0
        %2567 = vmatpush1.bf16.msra.mxu0 0
        %2568 = vmatprep.subr.bf16.mxu0 0
        %2569 = vmatpush1.bf16.msra.mxu0 0
        %2570 = vmatprep.subr.bf16.mxu0 0
        %2571 = vmatpush1.bf16.msra.mxu0 %v2545
        %2572 = vmatprep.subr.bf16.mxu0 0
        %2573 = vmatpush1.bf16.msra.mxu0 %v2543
        %2574 = vmatprep.subr.bf16.mxu0 0
        %2575 = vmatpush1.bf16.msra.mxu0 %v2541
        %2576 = vmatprep.subr.bf16.mxu0 0
        %2577 = vmatpush1.bf16.msra.mxu0 %v2539
        %2578 = vmatprep.subr.bf16.mxu0 0
        %2579 = vmatpush2.bf16.msra.mxu0 0
        %2580 = vmatprep.subr.bf16.mxu0 0
        %2581 = vmatpush2.bf16.msra.mxu0 0
        %2582 = vmatprep.subr.bf16.mxu0 0
        %2583 = vmatpush2.bf16.msra.mxu0 0
        %2584 = vmatprep.subr.bf16.mxu0 0
        %2585 = vmatpush2.bf16.msra.mxu0 0
        %2586 = vmatprep.subr.bf16.mxu0 0
        %2587 = vmatpush2.bf16.msra.mxu0 0
        %2588 = vmatprep.subr.bf16.mxu0 0
        %2589 = vmatpush2.bf16.msra.mxu0 0
        %2590 = vmatprep.subr.bf16.mxu0 0
        %2591 = vmatpush2.bf16.msra.mxu0 0
        %2592 = vmatprep.subr.bf16.mxu0 0
        %2593 = vmatpush2.bf16.msra.mxu0 0
        %2594 = vmatprep.mubr.bf16.mxu0 0
        %2595 = vmatmul.mubr.bf16.gmra.mxu0 %v2551
        %v2596 = vpop.f32.mrf.mxu0
        %v2597 = vadd.f32 0.0, %v2596
        %v2598 = vpop.f32.mrf.mxu0
        %v2599 = vpop.f32.mrf.mxu0
        %v2600 = vadd.f32 0.0, %v2599
        %v2601 = vpop.f32.mrf.mxu0
        %2602 = vmatprep.mubr.bf16.mxu0 0
        %2603 = vmatmul.mubr.bf16.gmra.mxu0 %v2554
        %v2604 = vpop.f32.mrf.mxu0
        %v2605 = vadd.f32 0.0, %v2604
        %v2606 = vpop.f32.mrf.mxu0
        %v2607 = vpop.f32.mrf.mxu0
        %v2608 = vadd.f32 0.0, %v2607
        %v2609 = vpop.f32.mrf.mxu0
        %2610 = vmatprep.mubr.bf16.mxu0 0
        %2611 = vmatmul.mubr.bf16.gmra.mxu0 %v2557
        %v2612 = vpop.f32.mrf.mxu0
        %v2613 = vadd.f32 0.0, %v2612
        %v2614 = vpop.f32.mrf.mxu0
        %v2615 = vpop.f32.mrf.mxu0
        %v2616 = vadd.f32 0.0, %v2615
        %v2617 = vpop.f32.mrf.mxu0
        %2618 = vmatprep.mubr.bf16.mxu0 0
        %2619 = vmatmul.mubr.bf16.gmra.mxu0 %v2560
        %v2620 = vpop.f32.mrf.mxu0
        %v2621 = vadd.f32 0.0, %v2620
        %v2622 = vpop.f32.mrf.mxu0
        %v2623 = vpop.f32.mrf.mxu0
        %v2624 = vadd.f32 0.0, %v2623
        %v2625 = vpop.f32.mrf.mxu0
        %2626 = vdwg.mxu0
        %v2627 = vrcp.pop %v2512
        %v2628 = vrcp.pop %v2515
        %v2629 = vrcp.pop %v2518
        %v2630 = vrcp.pop %v2521
        %v2631 = vrcp.pop %v2524
        %v2632 = vrcp.pop %v2527
        %v2633 = vrcp.pop %v2530
        %v2634 = vrcp.pop %v2533
        %v2635 = vmul.f32 %v2597, %v2627
        %v2636 = vmul.f32 %v2600, %v2628
        %v2637 = vmul.f32 %v2605, %v2629
        %v2638 = vmul.f32 %v2608, %v2630
        %v2639 = vmul.f32 %v2613, %v2631
        %v2640 = vmul.f32 %v2616, %v2632
        %v2641 = vmul.f32 %v2621, %v2633
        %v2642 = vmul.f32 %v2624, %v2634
        %2651 = vrot.lane.b32.xlu0 %v2635, 64
        %v2652 = vpop.permute.xlu0 %2651
        %2653 = vrot.lane.b32.xlu0 %v2636, 64
        %v2654 = vpop.permute.xlu0 %2653
        %2655 = vrot.lane.b32.xlu0 %v2637, 64
        %v2656 = vpop.permute.xlu0 %2655
        %2657 = vrot.lane.b32.xlu0 %v2638, 64
        %v2658 = vpop.permute.xlu0 %2657
        %2659 = vrot.lane.b32.xlu0 %v2639, 64
        %v2660 = vpop.permute.xlu0 %2659
        %2661 = vrot.lane.b32.xlu0 %v2640, 64
        %v2662 = vpop.permute.xlu0 %2661
        %2663 = vrot.lane.b32.xlu0 %v2641, 64
        %v2664 = vpop.permute.xlu0 %2663
        %2665 = vrot.lane.b32.xlu0 %v2642, 64
        %v2666 = vpop.permute.xlu0 %2665
        %vm2675 = vcmask 654848
        %2676 = vst.msk [vmem:[#allocation2] sm:$0xff] %vm2675, %v2652
        %2677 = vst.msk [vmem:[#allocation2 + $0x8] sm:$0xff] %vm2675, %v2654
        %2678 = vst.msk [vmem:[#allocation2 + $0x10] sm:$0xff] %vm2675, %v2656
        %2679 = vst.msk [vmem:[#allocation2 + $0x18] sm:$0xff] %vm2675, %v2658
        %2680 = vst.msk [vmem:[#allocation2 + $0x20] sm:$0xff] %vm2675, %v2660
        %2681 = vst.msk [vmem:[#allocation2 + $0x28] sm:$0xff] %vm2675, %v2662
        %2682 = vst.msk [vmem:[#allocation2 + $0x30] sm:$0xff] %vm2675, %v2664
        %2683 = vst.msk [vmem:[#allocation2 + $0x38] sm:$0xff] %vm2675, %v2666
        %2684 = vrot.lane.b32.xlu0 %v1044, 48
        %v2685 = vpop.permute.xlu0 %2684
        %2686 = vrot.lane.b32.xlu0 %v1045, 48
        %v2687 = vpop.permute.xlu0 %2686
        %2688 = vrot.lane.b32.xlu0 %v1046, 48
        %v2689 = vpop.permute.xlu0 %2688
        %2690 = vrot.lane.b32.xlu0 %v1047, 48
        %v2691 = vpop.permute.xlu0 %2690
        %2692 = vrot.lane.b32.xlu0 %v1048, 48
        %v2693 = vpop.permute.xlu0 %2692
        %2694 = vrot.lane.b32.xlu0 %v1049, 48
        %v2695 = vpop.permute.xlu0 %2694
        %2696 = vrot.lane.b32.xlu0 %v1050, 48
        %v2697 = vpop.permute.xlu0 %2696
        %2698 = vrot.lane.b32.xlu0 %v1051, 48
        %v2699 = vpop.permute.xlu0 %2698
        %v2701 = vsel %vm1056, %v2685, 0
        %v2704 = vsel %vm1056, %v2687, 0
        %v2707 = vsel %vm1056, %v2689, 0
        %v2710 = vsel %vm1056, %v2691, 0
        %v2713 = vsel %vm1056, %v2693, 0
        %v2716 = vsel %vm1056, %v2695, 0
        %v2719 = vsel %vm1056, %v2697, 0
        %v2722 = vsel %vm1056, %v2699, 0
        %2724 = vmatprep.subr.bf16.mxu0 0
        %2725 = vmatpush1.bf16.xpose.msra.mxu0 0
        %2726 = vmatprep.subr.bf16.mxu0 0
        %2727 = vmatpush1.bf16.xpose.msra.mxu0 0
        %2728 = vmatprep.subr.bf16.mxu0 0
        %2729 = vmatpush1.bf16.xpose.msra.mxu0 0
        %2730 = vmatprep.subr.bf16.mxu0 0
        %2731 = vmatpush1.bf16.xpose.msra.mxu0 0
        %2732 = vmatprep.subr.bf16.mxu0 0
        %2733 = vmatpush1.bf16.xpose.msra.mxu0 %v2722
        %2734 = vmatprep.subr.bf16.mxu0 0
        %2735 = vmatpush1.bf16.xpose.msra.mxu0 %v2719
        %2736 = vmatprep.subr.bf16.mxu0 0
        %2737 = vmatpush1.bf16.xpose.msra.mxu0 %v2716
        %2738 = vmatprep.subr.bf16.mxu0 0
        %2739 = vmatpush1.bf16.xpose.msra.mxu0 %v2713
        %2740 = vmatprep.subr.bf16.mxu0 0
        %2741 = vmatpush2.bf16.xpose.msra.mxu0 0
        %2742 = vmatprep.subr.bf16.mxu0 0
        %2743 = vmatpush2.bf16.xpose.msra.mxu0 0
        %2744 = vmatprep.subr.bf16.mxu0 0
        %2745 = vmatpush2.bf16.xpose.msra.mxu0 0
        %2746 = vmatprep.subr.bf16.mxu0 0
        %2747 = vmatpush2.bf16.xpose.msra.mxu0 0
        %2748 = vmatprep.subr.bf16.mxu0 0
        %2749 = vmatpush2.bf16.xpose.msra.mxu0 0
        %2750 = vmatprep.subr.bf16.mxu0 0
        %2751 = vmatpush2.bf16.xpose.msra.mxu0 0
        %2752 = vmatprep.subr.bf16.mxu0 0
        %2753 = vmatpush2.bf16.xpose.msra.mxu0 0
        %2754 = vmatprep.subr.bf16.mxu0 0
        %2755 = vmatpush2.bf16.xpose.msra.mxu0 0
        %2756 = vmatprep.mubr.bf16.mxu0 0
        %2757 = vmatmul.mubr.bf16.gmra.mxu0 %v2701
        %v2758 = vpop.f32.mrf.mxu0
        %v2759 = vadd.f32 0.0, %v2758
        %v2760 = vpop.f32.mrf.mxu0
        %v2761 = vpop.f32.mrf.mxu0
        %v2762 = vadd.f32 0.0, %v2761
        %v2763 = vpop.f32.mrf.mxu0
        %2764 = vmatprep.mubr.bf16.mxu0 0
        %2765 = vmatmul.mubr.bf16.gmra.mxu0 %v2704
        %v2766 = vpop.f32.mrf.mxu0
        %v2767 = vadd.f32 0.0, %v2766
        %v2768 = vpop.f32.mrf.mxu0
        %v2769 = vpop.f32.mrf.mxu0
        %v2770 = vadd.f32 0.0, %v2769
        %v2771 = vpop.f32.mrf.mxu0
        %2772 = vmatprep.mubr.bf16.mxu0 0
        %2773 = vmatmul.mubr.bf16.gmra.mxu0 %v2707
        %v2774 = vpop.f32.mrf.mxu0
        %v2775 = vadd.f32 0.0, %v2774
        %v2776 = vpop.f32.mrf.mxu0
        %v2777 = vpop.f32.mrf.mxu0
        %v2778 = vadd.f32 0.0, %v2777
        %v2779 = vpop.f32.mrf.mxu0
        %2780 = vmatprep.mubr.bf16.mxu0 0
        %2781 = vmatmul.mubr.bf16.gmra.mxu0 %v2710
        %v2782 = vpop.f32.mrf.mxu0
        %v2783 = vadd.f32 0.0, %v2782
        %v2784 = vpop.f32.mrf.mxu0
        %v2785 = vpop.f32.mrf.mxu0
        %v2786 = vadd.f32 0.0, %v2785
        %v2787 = vpop.f32.mrf.mxu0
        %2788 = vdwg.mxu0
        %v2789 = vmul.f32 %v2759, 0.25
        %v2790 = vmul.f32 %v2762, 0.25
        %v2791 = vmul.f32 %v2767, 0.25
        %v2792 = vmul.f32 %v2770, 0.25
        %v2793 = vmul.f32 %v2775, 0.25
        %v2794 = vmul.f32 %v2778, 0.25
        %v2795 = vmul.f32 %v2783, 0.25
        %v2796 = vmul.f32 %v2786, 0.25
        %v2797 = vsel %vm1154, %v2789, -inf
        %2798 = vmax.xlane.f32.xlu0 %v2797
        %v2799 = vpop.xlane.xlu0 %2798
        %v2800 = vsel %vm1154, %v2790, -inf
        %2801 = vmax.xlane.f32.xlu0 %v2800
        %v2802 = vpop.xlane.xlu0 %2801
        %v2803 = vsel %vm1154, %v2791, -inf
        %2804 = vmax.xlane.f32.xlu0 %v2803
        %v2805 = vpop.xlane.xlu0 %2804
        %v2806 = vsel %vm1154, %v2792, -inf
        %2807 = vmax.xlane.f32.xlu0 %v2806
        %v2808 = vpop.xlane.xlu0 %2807
        %v2809 = vsel %vm1154, %v2793, -inf
        %2810 = vmax.xlane.f32.xlu0 %v2809
        %v2811 = vpop.xlane.xlu0 %2810
        %v2812 = vsel %vm1154, %v2794, -inf
        %2813 = vmax.xlane.f32.xlu0 %v2812
        %v2814 = vpop.xlane.xlu0 %2813
        %v2815 = vsel %vm1154, %v2795, -inf
        %2816 = vmax.xlane.f32.xlu0 %v2815
        %v2817 = vpop.xlane.xlu0 %2816
        %v2818 = vsel %vm1154, %v2796, -inf
        %2819 = vmax.xlane.f32.xlu0 %v2818
        %v2820 = vpop.xlane.xlu0 %2819
        %v2821 = vsub.f32 %v2789, %v2799
        %v2822 = vsub.f32 %v2790, %v2802
        %v2823 = vsub.f32 %v2791, %v2805
        %v2824 = vsub.f32 %v2792, %v2808
        %v2825 = vsub.f32 %v2793, %v2811
        %v2826 = vsub.f32 %v2794, %v2814
        %v2827 = vsub.f32 %v2795, %v2817
        %v2828 = vsub.f32 %v2796, %v2820
        %v2829 = vmul.f32 %v2821, 1.442695
        %v2830 = vpow.pop %v2829
        %v2831 = vmul.f32 %v2822, 1.442695
        %v2832 = vpow.pop %v2831
        %v2833 = vmul.f32 %v2823, 1.442695
        %v2834 = vpow.pop %v2833
        %v2835 = vmul.f32 %v2824, 1.442695
        %v2836 = vpow.pop %v2835
        %v2837 = vmul.f32 %v2825, 1.442695
        %v2838 = vpow.pop %v2837
        %v2839 = vmul.f32 %v2826, 1.442695
        %v2840 = vpow.pop %v2839
        %v2841 = vmul.f32 %v2827, 1.442695
        %v2842 = vpow.pop %v2841
        %v2843 = vmul.f32 %v2828, 1.442695
        %v2844 = vpow.pop %v2843
        %v2845 = vsel %vm1154, %v2830, 0.0
        %2846 = vadd.xlane.f32.xlu0 %v2845
        %v2847 = vpop.xlane.xlu0 %2846
        %v2848 = vsel %vm1154, %v2832, 0.0
        %2849 = vadd.xlane.f32.xlu0 %v2848
        %v2850 = vpop.xlane.xlu0 %2849
        %v2851 = vsel %vm1154, %v2834, 0.0
        %2852 = vadd.xlane.f32.xlu0 %v2851
        %v2853 = vpop.xlane.xlu0 %2852
        %v2854 = vsel %vm1154, %v2836, 0.0
        %2855 = vadd.xlane.f32.xlu0 %v2854
        %v2856 = vpop.xlane.xlu0 %2855
        %v2857 = vsel %vm1154, %v2838, 0.0
        %2858 = vadd.xlane.f32.xlu0 %v2857
        %v2859 = vpop.xlane.xlu0 %2858
        %v2860 = vsel %vm1154, %v2840, 0.0
        %2861 = vadd.xlane.f32.xlu0 %v2860
        %v2862 = vpop.xlane.xlu0 %2861
        %v2863 = vsel %vm1154, %v2842, 0.0
        %2864 = vadd.xlane.f32.xlu0 %v2863
        %v2865 = vpop.xlane.xlu0 %2864
        %v2866 = vsel %vm1154, %v2844, 0.0
        %2867 = vadd.xlane.f32.xlu0 %v2866
        %v2868 = vpop.xlane.xlu0 %2867
        %v2869 = vpack.c.bf16 %v2832, %v2830
        %v2870 = vpack.c.bf16 %v2836, %v2834
        %v2871 = vpack.c.bf16 %v2840, %v2838
        %v2872 = vpack.c.bf16 %v2844, %v2842
        %2873 = vrot.lane.b32.xlu0 %v1052, 48
        %v2874 = vpop.permute.xlu0 %2873
        %2875 = vrot.lane.b32.xlu0 %v1053, 48
        %v2876 = vpop.permute.xlu0 %2875
        %2877 = vrot.lane.b32.xlu0 %v1054, 48
        %v2878 = vpop.permute.xlu0 %2877
        %2879 = vrot.lane.b32.xlu0 %v1055, 48
        %v2880 = vpop.permute.xlu0 %2879
        %v2886 = vsel %vm1154, %v2869, 0
        %v2889 = vsel %vm1154, %v2870, 0
        %v2892 = vsel %vm1154, %v2871, 0
        %v2895 = vsel %vm1154, %v2872, 0
        %2897 = vmatprep.subr.bf16.mxu0 0
        %2898 = vmatpush1.bf16.msra.mxu0 0
        %2899 = vmatprep.subr.bf16.mxu0 0
        %2900 = vmatpush1.bf16.msra.mxu0 0
        %2901 = vmatprep.subr.bf16.mxu0 0
        %2902 = vmatpush1.bf16.msra.mxu0 0
        %2903 = vmatprep.subr.bf16.mxu0 0
        %2904 = vmatpush1.bf16.msra.mxu0 0
        %2905 = vmatprep.subr.bf16.mxu0 0
        %2906 = vmatpush1.bf16.msra.mxu0 %v2880
        %2907 = vmatprep.subr.bf16.mxu0 0
        %2908 = vmatpush1.bf16.msra.mxu0 %v2878
        %2909 = vmatprep.subr.bf16.mxu0 0
        %2910 = vmatpush1.bf16.msra.mxu0 %v2876
        %2911 = vmatprep.subr.bf16.mxu0 0
        %2912 = vmatpush1.bf16.msra.mxu0 %v2874
        %2913 = vmatprep.subr.bf16.mxu0 0
        %2914 = vmatpush2.bf16.msra.mxu0 0
        %2915 = vmatprep.subr.bf16.mxu0 0
        %2916 = vmatpush2.bf16.msra.mxu0 0
        %2917 = vmatprep.subr.bf16.mxu0 0
        %2918 = vmatpush2.bf16.msra.mxu0 0
        %2919 = vmatprep.subr.bf16.mxu0 0
        %2920 = vmatpush2.bf16.msra.mxu0 0
        %2921 = vmatprep.subr.bf16.mxu0 0
        %2922 = vmatpush2.bf16.msra.mxu0 0
        %2923 = vmatprep.subr.bf16.mxu0 0
        %2924 = vmatpush2.bf16.msra.mxu0 0
        %2925 = vmatprep.subr.bf16.mxu0 0
        %2926 = vmatpush2.bf16.msra.mxu0 0
        %2927 = vmatprep.subr.bf16.mxu0 0
        %2928 = vmatpush2.bf16.msra.mxu0 0
        %2929 = vmatprep.mubr.bf16.mxu0 0
        %2930 = vmatmul.mubr.bf16.gmra.mxu0 %v2886
        %v2931 = vpop.f32.mrf.mxu0
        %v2932 = vadd.f32 0.0, %v2931
        %v2933 = vpop.f32.mrf.mxu0
        %v2934 = vpop.f32.mrf.mxu0
        %v2935 = vadd.f32 0.0, %v2934
        %v2936 = vpop.f32.mrf.mxu0
        %2937 = vmatprep.mubr.bf16.mxu0 0
        %2938 = vmatmul.mubr.bf16.gmra.mxu0 %v2889
        %v2939 = vpop.f32.mrf.mxu0
        %v2940 = vadd.f32 0.0, %v2939
        %v2941 = vpop.f32.mrf.mxu0
        %v2942 = vpop.f32.mrf.mxu0
        %v2943 = vadd.f32 0.0, %v2942
        %v2944 = vpop.f32.mrf.mxu0
        %2945 = vmatprep.mubr.bf16.mxu0 0
        %2946 = vmatmul.mubr.bf16.gmra.mxu0 %v2892
        %v2947 = vpop.f32.mrf.mxu0
        %v2948 = vadd.f32 0.0, %v2947
        %v2949 = vpop.f32.mrf.mxu0
        %v2950 = vpop.f32.mrf.mxu0
        %v2951 = vadd.f32 0.0, %v2950
        %v2952 = vpop.f32.mrf.mxu0
        %2953 = vmatprep.mubr.bf16.mxu0 0
        %2954 = vmatmul.mubr.bf16.gmra.mxu0 %v2895
        %v2955 = vpop.f32.mrf.mxu0
        %v2956 = vadd.f32 0.0, %v2955
        %v2957 = vpop.f32.mrf.mxu0
        %v2958 = vpop.f32.mrf.mxu0
        %v2959 = vadd.f32 0.0, %v2958
        %v2960 = vpop.f32.mrf.mxu0
        %2961 = vdwg.mxu0
        %v2962 = vrcp.pop %v2847
        %v2963 = vrcp.pop %v2850
        %v2964 = vrcp.pop %v2853
        %v2965 = vrcp.pop %v2856
        %v2966 = vrcp.pop %v2859
        %v2967 = vrcp.pop %v2862
        %v2968 = vrcp.pop %v2865
        %v2969 = vrcp.pop %v2868
        %v2970 = vmul.f32 %v2932, %v2962
        %v2971 = vmul.f32 %v2935, %v2963
        %v2972 = vmul.f32 %v2940, %v2964
        %v2973 = vmul.f32 %v2943, %v2965
        %v2974 = vmul.f32 %v2948, %v2966
        %v2975 = vmul.f32 %v2951, %v2967
        %v2976 = vmul.f32 %v2956, %v2968
        %v2977 = vmul.f32 %v2959, %v2969
        %2986 = vrot.lane.b32.xlu0 %v2970, 80
        %v2987 = vpop.permute.xlu0 %2986
        %2988 = vrot.lane.b32.xlu0 %v2971, 80
        %v2989 = vpop.permute.xlu0 %2988
        %2990 = vrot.lane.b32.xlu0 %v2972, 80
        %v2991 = vpop.permute.xlu0 %2990
        %2992 = vrot.lane.b32.xlu0 %v2973, 80
        %v2993 = vpop.permute.xlu0 %2992
        %2994 = vrot.lane.b32.xlu0 %v2974, 80
        %v2995 = vpop.permute.xlu0 %2994
        %2996 = vrot.lane.b32.xlu0 %v2975, 80
        %v2997 = vpop.permute.xlu0 %2996
        %2998 = vrot.lane.b32.xlu0 %v2976, 80
        %v2999 = vpop.permute.xlu0 %2998
        %3000 = vrot.lane.b32.xlu0 %v2977, 80
        %v3001 = vpop.permute.xlu0 %3000
        %vm3010 = vcmask 786048
        %3011 = vst.msk [vmem:[#allocation2] sm:$0xff] %vm3010, %v2987
        %3012 = vst.msk [vmem:[#allocation2 + $0x8] sm:$0xff] %vm3010, %v2989
        %3013 = vst.msk [vmem:[#allocation2 + $0x10] sm:$0xff] %vm3010, %v2991
        %3014 = vst.msk [vmem:[#allocation2 + $0x18] sm:$0xff] %vm3010, %v2993
        %3015 = vst.msk [vmem:[#allocation2 + $0x20] sm:$0xff] %vm3010, %v2995
        %3016 = vst.msk [vmem:[#allocation2 + $0x28] sm:$0xff] %vm3010, %v2997
        %3017 = vst.msk [vmem:[#allocation2 + $0x30] sm:$0xff] %vm3010, %v2999
        %3018 = vst.msk [vmem:[#allocation2 + $0x38] sm:$0xff] %vm3010, %v3001
        %3019 = vrot.lane.b32.xlu0 %v1044, 32
        %v3020 = vpop.permute.xlu0 %3019
        %3021 = vrot.lane.b32.xlu0 %v1045, 32
        %v3022 = vpop.permute.xlu0 %3021
        %3023 = vrot.lane.b32.xlu0 %v1046, 32
        %v3024 = vpop.permute.xlu0 %3023
        %3025 = vrot.lane.b32.xlu0 %v1047, 32
        %v3026 = vpop.permute.xlu0 %3025
        %3027 = vrot.lane.b32.xlu0 %v1048, 32
        %v3028 = vpop.permute.xlu0 %3027
        %3029 = vrot.lane.b32.xlu0 %v1049, 32
        %v3030 = vpop.permute.xlu0 %3029
        %3031 = vrot.lane.b32.xlu0 %v1050, 32
        %v3032 = vpop.permute.xlu0 %3031
        %3033 = vrot.lane.b32.xlu0 %v1051, 32
        %v3034 = vpop.permute.xlu0 %3033
        %v3036 = vsel %vm1056, %v3020, 0
        %v3039 = vsel %vm1056, %v3022, 0
        %v3042 = vsel %vm1056, %v3024, 0
        %v3045 = vsel %vm1056, %v3026, 0
        %v3048 = vsel %vm1056, %v3028, 0
        %v3051 = vsel %vm1056, %v3030, 0
        %v3054 = vsel %vm1056, %v3032, 0
        %v3057 = vsel %vm1056, %v3034, 0
        %3059 = vmatprep.subr.bf16.mxu0 0
        %3060 = vmatpush1.bf16.xpose.msra.mxu0 0
        %3061 = vmatprep.subr.bf16.mxu0 0
        %3062 = vmatpush1.bf16.xpose.msra.mxu0 0
        %3063 = vmatprep.subr.bf16.mxu0 0
        %3064 = vmatpush1.bf16.xpose.msra.mxu0 0
        %3065 = vmatprep.subr.bf16.mxu0 0
        %3066 = vmatpush1.bf16.xpose.msra.mxu0 0
        %3067 = vmatprep.subr.bf16.mxu0 0
        %3068 = vmatpush1.bf16.xpose.msra.mxu0 %v3057
        %3069 = vmatprep.subr.bf16.mxu0 0
        %3070 = vmatpush1.bf16.xpose.msra.mxu0 %v3054
        %3071 = vmatprep.subr.bf16.mxu0 0
        %3072 = vmatpush1.bf16.xpose.msra.mxu0 %v3051
        %3073 = vmatprep.subr.bf16.mxu0 0
        %3074 = vmatpush1.bf16.xpose.msra.mxu0 %v3048
        %3075 = vmatprep.subr.bf16.mxu0 0
        %3076 = vmatpush2.bf16.xpose.msra.mxu0 0
        %3077 = vmatprep.subr.bf16.mxu0 0
        %3078 = vmatpush2.bf16.xpose.msra.mxu0 0
        %3079 = vmatprep.subr.bf16.mxu0 0
        %3080 = vmatpush2.bf16.xpose.msra.mxu0 0
        %3081 = vmatprep.subr.bf16.mxu0 0
        %3082 = vmatpush2.bf16.xpose.msra.mxu0 0
        %3083 = vmatprep.subr.bf16.mxu0 0
        %3084 = vmatpush2.bf16.xpose.msra.mxu0 0
        %3085 = vmatprep.subr.bf16.mxu0 0
        %3086 = vmatpush2.bf16.xpose.msra.mxu0 0
        %3087 = vmatprep.subr.bf16.mxu0 0
        %3088 = vmatpush2.bf16.xpose.msra.mxu0 0
        %3089 = vmatprep.subr.bf16.mxu0 0
        %3090 = vmatpush2.bf16.xpose.msra.mxu0 0
        %3091 = vmatprep.mubr.bf16.mxu0 0
        %3092 = vmatmul.mubr.bf16.gmra.mxu0 %v3036
        %v3093 = vpop.f32.mrf.mxu0
        %v3094 = vadd.f32 0.0, %v3093
        %v3095 = vpop.f32.mrf.mxu0
        %v3096 = vpop.f32.mrf.mxu0
        %v3097 = vadd.f32 0.0, %v3096
        %v3098 = vpop.f32.mrf.mxu0
        %3099 = vmatprep.mubr.bf16.mxu0 0
        %3100 = vmatmul.mubr.bf16.gmra.mxu0 %v3039
        %v3101 = vpop.f32.mrf.mxu0
        %v3102 = vadd.f32 0.0, %v3101
        %v3103 = vpop.f32.mrf.mxu0
        %v3104 = vpop.f32.mrf.mxu0
        %v3105 = vadd.f32 0.0, %v3104
        %v3106 = vpop.f32.mrf.mxu0
        %3107 = vmatprep.mubr.bf16.mxu0 0
        %3108 = vmatmul.mubr.bf16.gmra.mxu0 %v3042
        %v3109 = vpop.f32.mrf.mxu0
        %v3110 = vadd.f32 0.0, %v3109
        %v3111 = vpop.f32.mrf.mxu0
        %v3112 = vpop.f32.mrf.mxu0
        %v3113 = vadd.f32 0.0, %v3112
        %v3114 = vpop.f32.mrf.mxu0
        %3115 = vmatprep.mubr.bf16.mxu0 0
        %3116 = vmatmul.mubr.bf16.gmra.mxu0 %v3045
        %v3117 = vpop.f32.mrf.mxu0
        %v3118 = vadd.f32 0.0, %v3117
        %v3119 = vpop.f32.mrf.mxu0
        %v3120 = vpop.f32.mrf.mxu0
        %v3121 = vadd.f32 0.0, %v3120
        %v3122 = vpop.f32.mrf.mxu0
        %3123 = vdwg.mxu0
        %v3124 = vmul.f32 %v3094, 0.25
        %v3125 = vmul.f32 %v3097, 0.25
        %v3126 = vmul.f32 %v3102, 0.25
        %v3127 = vmul.f32 %v3105, 0.25
        %v3128 = vmul.f32 %v3110, 0.25
        %v3129 = vmul.f32 %v3113, 0.25
        %v3130 = vmul.f32 %v3118, 0.25
        %v3131 = vmul.f32 %v3121, 0.25
        %v3132 = vsel %vm1154, %v3124, -inf
        %3133 = vmax.xlane.f32.xlu0 %v3132
        %v3134 = vpop.xlane.xlu0 %3133
        %v3135 = vsel %vm1154, %v3125, -inf
        %3136 = vmax.xlane.f32.xlu0 %v3135
        %v3137 = vpop.xlane.xlu0 %3136
        %v3138 = vsel %vm1154, %v3126, -inf
        %3139 = vmax.xlane.f32.xlu0 %v3138
        %v3140 = vpop.xlane.xlu0 %3139
        %v3141 = vsel %vm1154, %v3127, -inf
        %3142 = vmax.xlane.f32.xlu0 %v3141
        %v3143 = vpop.xlane.xlu0 %3142
        %v3144 = vsel %vm1154, %v3128, -inf
        %3145 = vmax.xlane.f32.xlu0 %v3144
        %v3146 = vpop.xlane.xlu0 %3145
        %v3147 = vsel %vm1154, %v3129, -inf
        %3148 = vmax.xlane.f32.xlu0 %v3147
        %v3149 = vpop.xlane.xlu0 %3148
        %v3150 = vsel %vm1154, %v3130, -inf
        %3151 = vmax.xlane.f32.xlu0 %v3150
        %v3152 = vpop.xlane.xlu0 %3151
        %v3153 = vsel %vm1154, %v3131, -inf
        %3154 = vmax.xlane.f32.xlu0 %v3153
        %v3155 = vpop.xlane.xlu0 %3154
        %v3156 = vsub.f32 %v3124, %v3134
        %v3157 = vsub.f32 %v3125, %v3137
        %v3158 = vsub.f32 %v3126, %v3140
        %v3159 = vsub.f32 %v3127, %v3143
        %v3160 = vsub.f32 %v3128, %v3146
        %v3161 = vsub.f32 %v3129, %v3149
        %v3162 = vsub.f32 %v3130, %v3152
        %v3163 = vsub.f32 %v3131, %v3155
        %v3164 = vmul.f32 %v3156, 1.442695
        %v3165 = vpow.pop %v3164
        %v3166 = vmul.f32 %v3157, 1.442695
        %v3167 = vpow.pop %v3166
        %v3168 = vmul.f32 %v3158, 1.442695
        %v3169 = vpow.pop %v3168
        %v3170 = vmul.f32 %v3159, 1.442695
        %v3171 = vpow.pop %v3170
        %v3172 = vmul.f32 %v3160, 1.442695
        %v3173 = vpow.pop %v3172
        %v3174 = vmul.f32 %v3161, 1.442695
        %v3175 = vpow.pop %v3174
        %v3176 = vmul.f32 %v3162, 1.442695
        %v3177 = vpow.pop %v3176
        %v3178 = vmul.f32 %v3163, 1.442695
        %v3179 = vpow.pop %v3178
        %v3180 = vsel %vm1154, %v3165, 0.0
        %3181 = vadd.xlane.f32.xlu0 %v3180
        %v3182 = vpop.xlane.xlu0 %3181
        %v3183 = vsel %vm1154, %v3167, 0.0
        %3184 = vadd.xlane.f32.xlu0 %v3183
        %v3185 = vpop.xlane.xlu0 %3184
        %v3186 = vsel %vm1154, %v3169, 0.0
        %3187 = vadd.xlane.f32.xlu0 %v3186
        %v3188 = vpop.xlane.xlu0 %3187
        %v3189 = vsel %vm1154, %v3171, 0.0
        %3190 = vadd.xlane.f32.xlu0 %v3189
        %v3191 = vpop.xlane.xlu0 %3190
        %v3192 = vsel %vm1154, %v3173, 0.0
        %3193 = vadd.xlane.f32.xlu0 %v3192
        %v3194 = vpop.xlane.xlu0 %3193
        %v3195 = vsel %vm1154, %v3175, 0.0
        %3196 = vadd.xlane.f32.xlu0 %v3195
        %v3197 = vpop.xlane.xlu0 %3196
        %v3198 = vsel %vm1154, %v3177, 0.0
        %3199 = vadd.xlane.f32.xlu0 %v3198
        %v3200 = vpop.xlane.xlu0 %3199
        %v3201 = vsel %vm1154, %v3179, 0.0
        %3202 = vadd.xlane.f32.xlu0 %v3201
        %v3203 = vpop.xlane.xlu0 %3202
        %v3204 = vpack.c.bf16 %v3167, %v3165
        %v3205 = vpack.c.bf16 %v3171, %v3169
        %v3206 = vpack.c.bf16 %v3175, %v3173
        %v3207 = vpack.c.bf16 %v3179, %v3177
        %3208 = vrot.lane.b32.xlu0 %v1052, 32
        %v3209 = vpop.permute.xlu0 %3208
        %3210 = vrot.lane.b32.xlu0 %v1053, 32
        %v3211 = vpop.permute.xlu0 %3210
        %3212 = vrot.lane.b32.xlu0 %v1054, 32
        %v3213 = vpop.permute.xlu0 %3212
        %3214 = vrot.lane.b32.xlu0 %v1055, 32
        %v3215 = vpop.permute.xlu0 %3214
        %v3221 = vsel %vm1154, %v3204, 0
        %v3224 = vsel %vm1154, %v3205, 0
        %v3227 = vsel %vm1154, %v3206, 0
        %v3230 = vsel %vm1154, %v3207, 0
        %3232 = vmatprep.subr.bf16.mxu0 0
        %3233 = vmatpush1.bf16.msra.mxu0 0
        %3234 = vmatprep.subr.bf16.mxu0 0
        %3235 = vmatpush1.bf16.msra.mxu0 0
        %3236 = vmatprep.subr.bf16.mxu0 0
        %3237 = vmatpush1.bf16.msra.mxu0 0
        %3238 = vmatprep.subr.bf16.mxu0 0
        %3239 = vmatpush1.bf16.msra.mxu0 0
        %3240 = vmatprep.subr.bf16.mxu0 0
        %3241 = vmatpush1.bf16.msra.mxu0 %v3215
        %3242 = vmatprep.subr.bf16.mxu0 0
        %3243 = vmatpush1.bf16.msra.mxu0 %v3213
        %3244 = vmatprep.subr.bf16.mxu0 0
        %3245 = vmatpush1.bf16.msra.mxu0 %v3211
        %3246 = vmatprep.subr.bf16.mxu0 0
        %3247 = vmatpush1.bf16.msra.mxu0 %v3209
        %3248 = vmatprep.subr.bf16.mxu0 0
        %3249 = vmatpush2.bf16.msra.mxu0 0
        %3250 = vmatprep.subr.bf16.mxu0 0
        %3251 = vmatpush2.bf16.msra.mxu0 0
        %3252 = vmatprep.subr.bf16.mxu0 0
        %3253 = vmatpush2.bf16.msra.mxu0 0
        %3254 = vmatprep.subr.bf16.mxu0 0
        %3255 = vmatpush2.bf16.msra.mxu0 0
        %3256 = vmatprep.subr.bf16.mxu0 0
        %3257 = vmatpush2.bf16.msra.mxu0 0
        %3258 = vmatprep.subr.bf16.mxu0 0
        %3259 = vmatpush2.bf16.msra.mxu0 0
        %3260 = vmatprep.subr.bf16.mxu0 0
        %3261 = vmatpush2.bf16.msra.mxu0 0
        %3262 = vmatprep.subr.bf16.mxu0 0
        %3263 = vmatpush2.bf16.msra.mxu0 0
        %3264 = vmatprep.mubr.bf16.mxu0 0
        %3265 = vmatmul.mubr.bf16.gmra.mxu0 %v3221
        %v3266 = vpop.f32.mrf.mxu0
        %v3267 = vadd.f32 0.0, %v3266
        %v3268 = vpop.f32.mrf.mxu0
        %v3269 = vpop.f32.mrf.mxu0
        %v3270 = vadd.f32 0.0, %v3269
        %v3271 = vpop.f32.mrf.mxu0
        %3272 = vmatprep.mubr.bf16.mxu0 0
        %3273 = vmatmul.mubr.bf16.gmra.mxu0 %v3224
        %v3274 = vpop.f32.mrf.mxu0
        %v3275 = vadd.f32 0.0, %v3274
        %v3276 = vpop.f32.mrf.mxu0
        %v3277 = vpop.f32.mrf.mxu0
        %v3278 = vadd.f32 0.0, %v3277
        %v3279 = vpop.f32.mrf.mxu0
        %3280 = vmatprep.mubr.bf16.mxu0 0
        %3281 = vmatmul.mubr.bf16.gmra.mxu0 %v3227
        %v3282 = vpop.f32.mrf.mxu0
        %v3283 = vadd.f32 0.0, %v3282
        %v3284 = vpop.f32.mrf.mxu0
        %v3285 = vpop.f32.mrf.mxu0
        %v3286 = vadd.f32 0.0, %v3285
        %v3287 = vpop.f32.mrf.mxu0
        %3288 = vmatprep.mubr.bf16.mxu0 0
        %3289 = vmatmul.mubr.bf16.gmra.mxu0 %v3230
        %v3290 = vpop.f32.mrf.mxu0
        %v3291 = vadd.f32 0.0, %v3290
        %v3292 = vpop.f32.mrf.mxu0
        %v3293 = vpop.f32.mrf.mxu0
        %v3294 = vadd.f32 0.0, %v3293
        %v3295 = vpop.f32.mrf.mxu0
        %3296 = vdwg.mxu0
        %v3297 = vrcp.pop %v3182
        %v3298 = vrcp.pop %v3185
        %v3299 = vrcp.pop %v3188
        %v3300 = vrcp.pop %v3191
        %v3301 = vrcp.pop %v3194
        %v3302 = vrcp.pop %v3197
        %v3303 = vrcp.pop %v3200
        %v3304 = vrcp.pop %v3203
        %v3305 = vmul.f32 %v3267, %v3297
        %v3306 = vmul.f32 %v3270, %v3298
        %v3307 = vmul.f32 %v3275, %v3299
        %v3308 = vmul.f32 %v3278, %v3300
        %v3309 = vmul.f32 %v3283, %v3301
        %v3310 = vmul.f32 %v3286, %v3302
        %v3311 = vmul.f32 %v3291, %v3303
        %v3312 = vmul.f32 %v3294, %v3304
        %3321 = vrot.lane.b32.xlu0 %v3305, 96
        %v3322 = vpop.permute.xlu0 %3321
        %3323 = vrot.lane.b32.xlu0 %v3306, 96
        %v3324 = vpop.permute.xlu0 %3323
        %3325 = vrot.lane.b32.xlu0 %v3307, 96
        %v3326 = vpop.permute.xlu0 %3325
        %3327 = vrot.lane.b32.xlu0 %v3308, 96
        %v3328 = vpop.permute.xlu0 %3327
        %3329 = vrot.lane.b32.xlu0 %v3309, 96
        %v3330 = vpop.permute.xlu0 %3329
        %3331 = vrot.lane.b32.xlu0 %v3310, 96
        %v3332 = vpop.permute.xlu0 %3331
        %3333 = vrot.lane.b32.xlu0 %v3311, 96
        %v3334 = vpop.permute.xlu0 %3333
        %3335 = vrot.lane.b32.xlu0 %v3312, 96
        %v3336 = vpop.permute.xlu0 %3335
        %vm3345 = vcmask 917248
        %3346 = vst.msk [vmem:[#allocation2] sm:$0xff] %vm3345, %v3322
        %3347 = vst.msk [vmem:[#allocation2 + $0x8] sm:$0xff] %vm3345, %v3324
        %3348 = vst.msk [vmem:[#allocation2 + $0x10] sm:$0xff] %vm3345, %v3326
        %3349 = vst.msk [vmem:[#allocation2 + $0x18] sm:$0xff] %vm3345, %v3328
        %3350 = vst.msk [vmem:[#allocation2 + $0x20] sm:$0xff] %vm3345, %v3330
        %3351 = vst.msk [vmem:[#allocation2 + $0x28] sm:$0xff] %vm3345, %v3332
        %3352 = vst.msk [vmem:[#allocation2 + $0x30] sm:$0xff] %vm3345, %v3334
        %3353 = vst.msk [vmem:[#allocation2 + $0x38] sm:$0xff] %vm3345, %v3336
        %3354 = vrot.lane.b32.xlu0 %v1044, 16
        %v3355 = vpop.permute.xlu0 %3354
        %3356 = vrot.lane.b32.xlu0 %v1045, 16
        %v3357 = vpop.permute.xlu0 %3356
        %3358 = vrot.lane.b32.xlu0 %v1046, 16
        %v3359 = vpop.permute.xlu0 %3358
        %3360 = vrot.lane.b32.xlu0 %v1047, 16
        %v3361 = vpop.permute.xlu0 %3360
        %3362 = vrot.lane.b32.xlu0 %v1048, 16
        %v3363 = vpop.permute.xlu0 %3362
        %3364 = vrot.lane.b32.xlu0 %v1049, 16
        %v3365 = vpop.permute.xlu0 %3364
        %3366 = vrot.lane.b32.xlu0 %v1050, 16
        %v3367 = vpop.permute.xlu0 %3366
        %3368 = vrot.lane.b32.xlu0 %v1051, 16
        %v3369 = vpop.permute.xlu0 %3368
        %v3371 = vsel %vm1056, %v3355, 0
        %v3374 = vsel %vm1056, %v3357, 0
        %v3377 = vsel %vm1056, %v3359, 0
        %v3380 = vsel %vm1056, %v3361, 0
        %v3383 = vsel %vm1056, %v3363, 0
        %v3386 = vsel %vm1056, %v3365, 0
        %v3389 = vsel %vm1056, %v3367, 0
        %v3392 = vsel %vm1056, %v3369, 0
        %3394 = vmatprep.subr.bf16.mxu0 0
        %3395 = vmatpush1.bf16.xpose.msra.mxu0 0
        %3396 = vmatprep.subr.bf16.mxu0 0
        %3397 = vmatpush1.bf16.xpose.msra.mxu0 0
        %3398 = vmatprep.subr.bf16.mxu0 0
        %3399 = vmatpush1.bf16.xpose.msra.mxu0 0
        %3400 = vmatprep.subr.bf16.mxu0 0
        %3401 = vmatpush1.bf16.xpose.msra.mxu0 0
        %3402 = vmatprep.subr.bf16.mxu0 0
        %3403 = vmatpush1.bf16.xpose.msra.mxu0 %v3392
        %3404 = vmatprep.subr.bf16.mxu0 0
        %3405 = vmatpush1.bf16.xpose.msra.mxu0 %v3389
        %3406 = vmatprep.subr.bf16.mxu0 0
        %3407 = vmatpush1.bf16.xpose.msra.mxu0 %v3386
        %3408 = vmatprep.subr.bf16.mxu0 0
        %3409 = vmatpush1.bf16.xpose.msra.mxu0 %v3383
        %3410 = vmatprep.subr.bf16.mxu0 0
        %3411 = vmatpush2.bf16.xpose.msra.mxu0 0
        %3412 = vmatprep.subr.bf16.mxu0 0
        %3413 = vmatpush2.bf16.xpose.msra.mxu0 0
        %3414 = vmatprep.subr.bf16.mxu0 0
        %3415 = vmatpush2.bf16.xpose.msra.mxu0 0
        %3416 = vmatprep.subr.bf16.mxu0 0
        %3417 = vmatpush2.bf16.xpose.msra.mxu0 0
        %3418 = vmatprep.subr.bf16.mxu0 0
        %3419 = vmatpush2.bf16.xpose.msra.mxu0 0
        %3420 = vmatprep.subr.bf16.mxu0 0
        %3421 = vmatpush2.bf16.xpose.msra.mxu0 0
        %3422 = vmatprep.subr.bf16.mxu0 0
        %3423 = vmatpush2.bf16.xpose.msra.mxu0 0
        %3424 = vmatprep.subr.bf16.mxu0 0
        %3425 = vmatpush2.bf16.xpose.msra.mxu0 0
        %3426 = vmatprep.mubr.bf16.mxu0 0
        %3427 = vmatmul.mubr.bf16.gmra.mxu0 %v3371
        %v3428 = vpop.f32.mrf.mxu0
        %v3429 = vadd.f32 0.0, %v3428
        %v3430 = vpop.f32.mrf.mxu0
        %v3431 = vpop.f32.mrf.mxu0
        %v3432 = vadd.f32 0.0, %v3431
        %v3433 = vpop.f32.mrf.mxu0
        %3434 = vmatprep.mubr.bf16.mxu0 0
        %3435 = vmatmul.mubr.bf16.gmra.mxu0 %v3374
        %v3436 = vpop.f32.mrf.mxu0
        %v3437 = vadd.f32 0.0, %v3436
        %v3438 = vpop.f32.mrf.mxu0
        %v3439 = vpop.f32.mrf.mxu0
        %v3440 = vadd.f32 0.0, %v3439
        %v3441 = vpop.f32.mrf.mxu0
        %3442 = vmatprep.mubr.bf16.mxu0 0
        %3443 = vmatmul.mubr.bf16.gmra.mxu0 %v3377
        %v3444 = vpop.f32.mrf.mxu0
        %v3445 = vadd.f32 0.0, %v3444
        %v3446 = vpop.f32.mrf.mxu0
        %v3447 = vpop.f32.mrf.mxu0
        %v3448 = vadd.f32 0.0, %v3447
        %v3449 = vpop.f32.mrf.mxu0
        %3450 = vmatprep.mubr.bf16.mxu0 0
        %3451 = vmatmul.mubr.bf16.gmra.mxu0 %v3380
        %v3452 = vpop.f32.mrf.mxu0
        %v3453 = vadd.f32 0.0, %v3452
        %v3454 = vpop.f32.mrf.mxu0
        %v3455 = vpop.f32.mrf.mxu0
        %v3456 = vadd.f32 0.0, %v3455
        %v3457 = vpop.f32.mrf.mxu0
        %3458 = vdwg.mxu0
        %v3459 = vmul.f32 %v3429, 0.25
        %v3460 = vmul.f32 %v3432, 0.25
        %v3461 = vmul.f32 %v3437, 0.25
        %v3462 = vmul.f32 %v3440, 0.25
        %v3463 = vmul.f32 %v3445, 0.25
        %v3464 = vmul.f32 %v3448, 0.25
        %v3465 = vmul.f32 %v3453, 0.25
        %v3466 = vmul.f32 %v3456, 0.25
        %v3467 = vsel %vm1154, %v3459, -inf
        %3468 = vmax.xlane.f32.xlu0 %v3467
        %v3469 = vpop.xlane.xlu0 %3468
        %v3470 = vsel %vm1154, %v3460, -inf
        %3471 = vmax.xlane.f32.xlu0 %v3470
        %v3472 = vpop.xlane.xlu0 %3471
        %v3473 = vsel %vm1154, %v3461, -inf
        %3474 = vmax.xlane.f32.xlu0 %v3473
        %v3475 = vpop.xlane.xlu0 %3474
        %v3476 = vsel %vm1154, %v3462, -inf
        %3477 = vmax.xlane.f32.xlu0 %v3476
        %v3478 = vpop.xlane.xlu0 %3477
        %v3479 = vsel %vm1154, %v3463, -inf
        %3480 = vmax.xlane.f32.xlu0 %v3479
        %v3481 = vpop.xlane.xlu0 %3480
        %v3482 = vsel %vm1154, %v3464, -inf
        %3483 = vmax.xlane.f32.xlu0 %v3482
        %v3484 = vpop.xlane.xlu0 %3483
        %v3485 = vsel %vm1154, %v3465, -inf
        %3486 = vmax.xlane.f32.xlu0 %v3485
        %v3487 = vpop.xlane.xlu0 %3486
        %v3488 = vsel %vm1154, %v3466, -inf
        %3489 = vmax.xlane.f32.xlu0 %v3488
        %v3490 = vpop.xlane.xlu0 %3489
        %v3491 = vsub.f32 %v3459, %v3469
        %v3492 = vsub.f32 %v3460, %v3472
        %v3493 = vsub.f32 %v3461, %v3475
        %v3494 = vsub.f32 %v3462, %v3478
        %v3495 = vsub.f32 %v3463, %v3481
        %v3496 = vsub.f32 %v3464, %v3484
        %v3497 = vsub.f32 %v3465, %v3487
        %v3498 = vsub.f32 %v3466, %v3490
        %v3499 = vmul.f32 %v3491, 1.442695
        %v3500 = vpow.pop %v3499
        %v3501 = vmul.f32 %v3492, 1.442695
        %v3502 = vpow.pop %v3501
        %v3503 = vmul.f32 %v3493, 1.442695
        %v3504 = vpow.pop %v3503
        %v3505 = vmul.f32 %v3494, 1.442695
        %v3506 = vpow.pop %v3505
        %v3507 = vmul.f32 %v3495, 1.442695
        %v3508 = vpow.pop %v3507
        %v3509 = vmul.f32 %v3496, 1.442695
        %v3510 = vpow.pop %v3509
        %v3511 = vmul.f32 %v3497, 1.442695
        %v3512 = vpow.pop %v3511
        %v3513 = vmul.f32 %v3498, 1.442695
        %v3514 = vpow.pop %v3513
        %v3515 = vsel %vm1154, %v3500, 0.0
        %3516 = vadd.xlane.f32.xlu0 %v3515
        %v3517 = vpop.xlane.xlu0 %3516
        %v3518 = vsel %vm1154, %v3502, 0.0
        %3519 = vadd.xlane.f32.xlu0 %v3518
        %v3520 = vpop.xlane.xlu0 %3519
        %v3521 = vsel %vm1154, %v3504, 0.0
        %3522 = vadd.xlane.f32.xlu0 %v3521
        %v3523 = vpop.xlane.xlu0 %3522
        %v3524 = vsel %vm1154, %v3506, 0.0
        %3525 = vadd.xlane.f32.xlu0 %v3524
        %v3526 = vpop.xlane.xlu0 %3525
        %v3527 = vsel %vm1154, %v3508, 0.0
        %3528 = vadd.xlane.f32.xlu0 %v3527
        %v3529 = vpop.xlane.xlu0 %3528
        %v3530 = vsel %vm1154, %v3510, 0.0
        %3531 = vadd.xlane.f32.xlu0 %v3530
        %v3532 = vpop.xlane.xlu0 %3531
        %v3533 = vsel %vm1154, %v3512, 0.0
        %3534 = vadd.xlane.f32.xlu0 %v3533
        %v3535 = vpop.xlane.xlu0 %3534
        %v3536 = vsel %vm1154, %v3514, 0.0
        %3537 = vadd.xlane.f32.xlu0 %v3536
        %v3538 = vpop.xlane.xlu0 %3537
        %v3539 = vpack.c.bf16 %v3502, %v3500
        %v3540 = vpack.c.bf16 %v3506, %v3504
        %v3541 = vpack.c.bf16 %v3510, %v3508
        %v3542 = vpack.c.bf16 %v3514, %v3512
        %3543 = vrot.lane.b32.xlu0 %v1052, 16
        %v3544 = vpop.permute.xlu0 %3543
        %3545 = vrot.lane.b32.xlu0 %v1053, 16
        %v3546 = vpop.permute.xlu0 %3545
        %3547 = vrot.lane.b32.xlu0 %v1054, 16
        %v3548 = vpop.permute.xlu0 %3547
        %3549 = vrot.lane.b32.xlu0 %v1055, 16
        %v3550 = vpop.permute.xlu0 %3549
        %v3556 = vsel %vm1154, %v3539, 0
        %v3559 = vsel %vm1154, %v3540, 0
        %v3562 = vsel %vm1154, %v3541, 0
        %v3565 = vsel %vm1154, %v3542, 0
        %3567 = vmatprep.subr.bf16.mxu0 0
        %3568 = vmatpush1.bf16.msra.mxu0 0
        %3569 = vmatprep.subr.bf16.mxu0 0
        %3570 = vmatpush1.bf16.msra.mxu0 0
        %3571 = vmatprep.subr.bf16.mxu0 0
        %3572 = vmatpush1.bf16.msra.mxu0 0
        %3573 = vmatprep.subr.bf16.mxu0 0
        %3574 = vmatpush1.bf16.msra.mxu0 0
        %3575 = vmatprep.subr.bf16.mxu0 0
        %3576 = vmatpush1.bf16.msra.mxu0 %v3550
        %3577 = vmatprep.subr.bf16.mxu0 0
        %3578 = vmatpush1.bf16.msra.mxu0 %v3548
        %3579 = vmatprep.subr.bf16.mxu0 0
        %3580 = vmatpush1.bf16.msra.mxu0 %v3546
        %3581 = vmatprep.subr.bf16.mxu0 0
        %3582 = vmatpush1.bf16.msra.mxu0 %v3544
        %3583 = vmatprep.subr.bf16.mxu0 0
        %3584 = vmatpush2.bf16.msra.mxu0 0
        %3585 = vmatprep.subr.bf16.mxu0 0
        %3586 = vmatpush2.bf16.msra.mxu0 0
        %3587 = vmatprep.subr.bf16.mxu0 0
        %3588 = vmatpush2.bf16.msra.mxu0 0
        %3589 = vmatprep.subr.bf16.mxu0 0
        %3590 = vmatpush2.bf16.msra.mxu0 0
        %3591 = vmatprep.subr.bf16.mxu0 0
        %3592 = vmatpush2.bf16.msra.mxu0 0
        %3593 = vmatprep.subr.bf16.mxu0 0
        %3594 = vmatpush2.bf16.msra.mxu0 0
        %3595 = vmatprep.subr.bf16.mxu0 0
        %3596 = vmatpush2.bf16.msra.mxu0 0
        %3597 = vmatprep.subr.bf16.mxu0 0
        %3598 = vmatpush2.bf16.msra.mxu0 0
        %3599 = vmatprep.mubr.bf16.mxu0 0
        %3600 = vmatmul.mubr.bf16.gmra.mxu0 %v3556
        %v3601 = vpop.f32.mrf.mxu0
        %v3602 = vadd.f32 0.0, %v3601
        %v3603 = vpop.f32.mrf.mxu0
        %v3604 = vpop.f32.mrf.mxu0
        %v3605 = vadd.f32 0.0, %v3604
        %v3606 = vpop.f32.mrf.mxu0
        %3607 = vmatprep.mubr.bf16.mxu0 0
        %3608 = vmatmul.mubr.bf16.gmra.mxu0 %v3559
        %v3609 = vpop.f32.mrf.mxu0
        %v3610 = vadd.f32 0.0, %v3609
        %v3611 = vpop.f32.mrf.mxu0
        %v3612 = vpop.f32.mrf.mxu0
        %v3613 = vadd.f32 0.0, %v3612
        %v3614 = vpop.f32.mrf.mxu0
        %3615 = vmatprep.mubr.bf16.mxu0 0
        %3616 = vmatmul.mubr.bf16.gmra.mxu0 %v3562
        %v3617 = vpop.f32.mrf.mxu0
        %v3618 = vadd.f32 0.0, %v3617
        %v3619 = vpop.f32.mrf.mxu0
        %v3620 = vpop.f32.mrf.mxu0
        %v3621 = vadd.f32 0.0, %v3620
        %v3622 = vpop.f32.mrf.mxu0
        %3623 = vmatprep.mubr.bf16.mxu0 0
        %3624 = vmatmul.mubr.bf16.gmra.mxu0 %v3565
        %v3625 = vpop.f32.mrf.mxu0
        %v3626 = vadd.f32 0.0, %v3625
        %v3627 = vpop.f32.mrf.mxu0
        %v3628 = vpop.f32.mrf.mxu0
        %v3629 = vadd.f32 0.0, %v3628
        %v3630 = vpop.f32.mrf.mxu0
        %3631 = vdwg.mxu0
        %v3632 = vrcp.pop %v3517
        %v3633 = vrcp.pop %v3520
        %v3634 = vrcp.pop %v3523
        %v3635 = vrcp.pop %v3526
        %v3636 = vrcp.pop %v3529
        %v3637 = vrcp.pop %v3532
        %v3638 = vrcp.pop %v3535
        %v3639 = vrcp.pop %v3538
        %v3640 = vmul.f32 %v3602, %v3632
        %v3641 = vmul.f32 %v3605, %v3633
        %v3642 = vmul.f32 %v3610, %v3634
        %v3643 = vmul.f32 %v3613, %v3635
        %v3644 = vmul.f32 %v3618, %v3636
        %v3645 = vmul.f32 %v3621, %v3637
        %v3646 = vmul.f32 %v3626, %v3638
        %v3647 = vmul.f32 %v3629, %v3639
        %3656 = vrot.lane.b32.xlu0 %v3640, 112
        %v3657 = vpop.permute.xlu0 %3656
        %3658 = vrot.lane.b32.xlu0 %v3641, 112
        %v3659 = vpop.permute.xlu0 %3658
        %3660 = vrot.lane.b32.xlu0 %v3642, 112
        %v3661 = vpop.permute.xlu0 %3660
        %3662 = vrot.lane.b32.xlu0 %v3643, 112
        %v3663 = vpop.permute.xlu0 %3662
        %3664 = vrot.lane.b32.xlu0 %v3644, 112
        %v3665 = vpop.permute.xlu0 %3664
        %3666 = vrot.lane.b32.xlu0 %v3645, 112
        %v3667 = vpop.permute.xlu0 %3666
        %3668 = vrot.lane.b32.xlu0 %v3646, 112
        %v3669 = vpop.permute.xlu0 %3668
        %3670 = vrot.lane.b32.xlu0 %v3647, 112
        %v3671 = vpop.permute.xlu0 %3670
        %vm3680 = vcmask 1048448
        %3681 = vst.msk [vmem:[#allocation2] sm:$0xff] %vm3680, %v3657
        %3682 = vst.msk [vmem:[#allocation2 + $0x8] sm:$0xff] %vm3680, %v3659
        %3683 = vst.msk [vmem:[#allocation2 + $0x10] sm:$0xff] %vm3680, %v3661
        %3684 = vst.msk [vmem:[#allocation2 + $0x18] sm:$0xff] %vm3680, %v3663
        %3685 = vst.msk [vmem:[#allocation2 + $0x20] sm:$0xff] %vm3680, %v3665
        %3686 = vst.msk [vmem:[#allocation2 + $0x28] sm:$0xff] %vm3680, %v3667
        %3687 = vst.msk [vmem:[#allocation2 + $0x30] sm:$0xff] %vm3680, %v3669
        %3688 = vst.msk [vmem:[#allocation2 + $0x38] sm:$0xff] %vm3680, %v3671
        %v3689 = vld [vmem:[#allocation2] sm:$0xff]
        %v3690 = vld [vmem:[#allocation2 + $0x8] sm:$0xff]
        %v3691 = vld [vmem:[#allocation2 + $0x10] sm:$0xff]
        %v3692 = vld [vmem:[#allocation2 + $0x18] sm:$0xff]
        %v3693 = vld [vmem:[#allocation2 + $0x20] sm:$0xff]
        %v3694 = vld [vmem:[#allocation2 + $0x28] sm:$0xff]
        %v3695 = vld [vmem:[#allocation2 + $0x30] sm:$0xff]
        %v3696 = vld [vmem:[#allocation2 + $0x38] sm:$0xff]
        %v3697 = vpack.c.bf16 %v3690, %v3689
        %v3698 = vpack.c.bf16 %v3692, %v3691
        %v3699 = vpack.c.bf16 %v3694, %v3693
        %v3700 = vpack.c.bf16 %v3696, %v3695
        %v3701 = vld [vmem:[%s663] sm:$0xf]
        %v3702 = vld [vmem:[%s663 + $0x4] sm:$0xf]
        %v3703 = vld [vmem:[%s663 + $0x8] sm:$0xf]
        %v3704 = vld [vmem:[%s663 + $0xc] sm:$0xf]
        %v3705 = vld [vmem:[%s663 + $0x10] sm:$0xf]
        %v3706 = vld [vmem:[%s663 + $0x14] sm:$0xf]
        %v3707 = vld [vmem:[%s663 + $0x18] sm:$0xf]
        %v3708 = vld [vmem:[%s663 + $0x1c] sm:$0xf]
        %v3709 = vld [vmem:[%s663 + $0x20] sm:$0xf]
        %v3710 = vld [vmem:[%s663 + $0x24] sm:$0xf]
        %v3711 = vld [vmem:[%s663 + $0x28] sm:$0xf]
        %v3712 = vld [vmem:[%s663 + $0x2c] sm:$0xf]
        %v3713 = vld [vmem:[%s663 + $0x30] sm:$0xf]
        %v3714 = vld [vmem:[%s663 + $0x34] sm:$0xf]
        %v3715 = vld [vmem:[%s663 + $0x38] sm:$0xf]
        %v3716 = vld [vmem:[%s663 + $0x3c] sm:$0xf]
        %v3717 = vld [vmem:[%s666] sm:$0x1]
        %v3719 = vlaneseq
        %v3720 = vshrl.u32 %v3719, 7
        %v3721 = vsub.s32 0, %v3720
        %v3722 = vrot.slane %v3717, %v3721
        %v3740 = vunpack.c.l.b16 %v3701
        %v3741 = vunpack.c.l.b16 %v3702
        %v3742 = vunpack.c.l.b16 %v3703
        %v3743 = vunpack.c.l.b16 %v3704
        %v3744 = vunpack.c.l.b16 %v3705
        %v3745 = vunpack.c.l.b16 %v3706
        %v3746 = vunpack.c.l.b16 %v3707
        %v3747 = vunpack.c.l.b16 %v3708
        %v3748 = vunpack.c.l.b16 %v3709
        %v3749 = vunpack.c.l.b16 %v3710
        %v3750 = vunpack.c.l.b16 %v3711
        %v3751 = vunpack.c.l.b16 %v3712
        %v3752 = vunpack.c.l.b16 %v3713
        %v3753 = vunpack.c.l.b16 %v3714
        %v3754 = vunpack.c.l.b16 %v3715
        %v3755 = vunpack.c.l.b16 %v3716
        %v3756 = vpack.c.b16 %v3741, %v3740
        %v3757 = vpack.c.b16 %v3743, %v3742
        %v3758 = vpack.c.b16 %v3745, %v3744
        %v3759 = vpack.c.b16 %v3747, %v3746
        %v3760 = vpack.c.b16 %v3749, %v3748
        %v3761 = vpack.c.b16 %v3751, %v3750
        %v3762 = vpack.c.b16 %v3753, %v3752
        %v3763 = vpack.c.b16 %v3755, %v3754
        %3772 = vmatprep.subr.bf16.mxu0 0
        %3773 = vmatpush1.bf16.msra.mxu0 %v3763
        %3774 = vmatprep.subr.bf16.mxu0 0
        %3775 = vmatpush1.bf16.msra.mxu0 %v3762
        %3776 = vmatprep.subr.bf16.mxu0 0
        %3777 = vmatpush1.bf16.msra.mxu0 %v3761
        %3778 = vmatprep.subr.bf16.mxu0 0
        %3779 = vmatpush1.bf16.msra.mxu0 %v3760
        %3780 = vmatprep.subr.bf16.mxu0 0
        %3781 = vmatpush1.bf16.msra.mxu0 %v3759
        %3782 = vmatprep.subr.bf16.mxu0 0
        %3783 = vmatpush1.bf16.msra.mxu0 %v3758
        %3784 = vmatprep.subr.bf16.mxu0 0
        %3785 = vmatpush1.bf16.msra.mxu0 %v3757
        %3786 = vmatprep.subr.bf16.mxu0 0
        %3787 = vmatpush1.bf16.msra.mxu0 %v3756
        %3788 = vmatprep.subr.bf16.mxu0 0
        %3789 = vmatpush2.bf16.msra.mxu0 0
        %3790 = vmatprep.subr.bf16.mxu0 0
        %3791 = vmatpush2.bf16.msra.mxu0 0
        %3792 = vmatprep.subr.bf16.mxu0 0
        %3793 = vmatpush2.bf16.msra.mxu0 0
        %3794 = vmatprep.subr.bf16.mxu0 0
        %3795 = vmatpush2.bf16.msra.mxu0 0
        %3796 = vmatprep.subr.bf16.mxu0 0
        %3797 = vmatpush2.bf16.msra.mxu0 0
        %3798 = vmatprep.subr.bf16.mxu0 0
        %3799 = vmatpush2.bf16.msra.mxu0 0
        %3800 = vmatprep.subr.bf16.mxu0 0
        %3801 = vmatpush2.bf16.msra.mxu0 0
        %3802 = vmatprep.subr.bf16.mxu0 0
        %3803 = vmatpush2.bf16.msra.mxu0 0
        %3804 = vmatprep.mubr.bf16.mxu0 0
        %3805 = vmatmul.mubr.bf16.gmra.mxu0 %v3697
        %v3806 = vpop.f32.mrf.mxu0
        %v3807 = vadd.f32 %v3722, %v3806
        %v3808 = vpop.f32.mrf.mxu0
        %v3809 = vpop.f32.mrf.mxu0
        %v3810 = vadd.f32 %v3722, %v3809
        %v3811 = vpop.f32.mrf.mxu0
        %3812 = vmatprep.mubr.bf16.mxu0 0
        %3813 = vmatmul.mubr.bf16.gmra.mxu0 %v3698
        %v3814 = vpop.f32.mrf.mxu0
        %v3815 = vadd.f32 %v3722, %v3814
        %v3816 = vpop.f32.mrf.mxu0
        %v3817 = vpop.f32.mrf.mxu0
        %v3818 = vadd.f32 %v3722, %v3817
        %v3819 = vpop.f32.mrf.mxu0
        %3820 = vmatprep.mubr.bf16.mxu0 0
        %3821 = vmatmul.mubr.bf16.gmra.mxu0 %v3699
        %v3822 = vpop.f32.mrf.mxu0
        %v3823 = vadd.f32 %v3722, %v3822
        %v3824 = vpop.f32.mrf.mxu0
        %v3825 = vpop.f32.mrf.mxu0
        %v3826 = vadd.f32 %v3722, %v3825
        %v3827 = vpop.f32.mrf.mxu0
        %3828 = vmatprep.mubr.bf16.mxu0 0
        %3829 = vmatmul.mubr.bf16.gmra.mxu0 %v3700
        %v3830 = vpop.f32.mrf.mxu0
        %v3831 = vadd.f32 %v3722, %v3830
        %v3832 = vpop.f32.mrf.mxu0
        %v3833 = vpop.f32.mrf.mxu0
        %v3834 = vadd.f32 %v3722, %v3833
        %v3835 = vpop.f32.mrf.mxu0
        %3836 = vdwg.mxu0
        %v3837 = vadd.f32 %v3807, %v717
        %v3838 = vadd.f32 %v3810, %v718
        %v3839 = vadd.f32 %v3815, %v719
        %v3840 = vadd.f32 %v3818, %v720
        %v3841 = vadd.f32 %v3823, %v721
        %v3842 = vadd.f32 %v3826, %v722
        %v3843 = vadd.f32 %v3831, %v723
        %v3844 = vadd.f32 %v3834, %v724
        %v3845 = vld [vmem:[%s669] sm:$0x1]
        %v3846 = vld [vmem:[%s672] sm:$0x1]
        %3847 = vadd.xlane.f32.xlu0 %v3837
        %v3848 = vpop.xlane.xlu0 %3847
        %3849 = vadd.xlane.f32.xlu0 %v3838
        %v3850 = vpop.xlane.xlu0 %3849
        %3851 = vadd.xlane.f32.xlu0 %v3839
        %v3852 = vpop.xlane.xlu0 %3851
        %3853 = vadd.xlane.f32.xlu0 %v3840
        %v3854 = vpop.xlane.xlu0 %3853
        %3855 = vadd.xlane.f32.xlu0 %v3841
        %v3856 = vpop.xlane.xlu0 %3855
        %3857 = vadd.xlane.f32.xlu0 %v3842
        %v3858 = vpop.xlane.xlu0 %3857
        %3859 = vadd.xlane.f32.xlu0 %v3843
        %v3860 = vpop.xlane.xlu0 %3859
        %3861 = vadd.xlane.f32.xlu0 %v3844
        %v3862 = vpop.xlane.xlu0 %3861
        %v3863 = vrcp.pop 128.0
        %v3864 = vmul.f32 %v3848, %v3863
        %v3865 = vmul.f32 %v3850, %v3863
        %v3866 = vmul.f32 %v3852, %v3863
        %v3867 = vmul.f32 %v3854, %v3863
        %v3868 = vmul.f32 %v3856, %v3863
        %v3869 = vmul.f32 %v3858, %v3863
        %v3870 = vmul.f32 %v3860, %v3863
        %v3871 = vmul.f32 %v3862, %v3863
        %v3872 = vsub.f32 %v3837, %v3864
        %v3873 = vsub.f32 %v3838, %v3865
        %v3874 = vsub.f32 %v3839, %v3866
        %v3875 = vsub.f32 %v3840, %v3867
        %v3876 = vsub.f32 %v3841, %v3868
        %v3877 = vsub.f32 %v3842, %v3869
        %v3878 = vsub.f32 %v3843, %v3870
        %v3879 = vsub.f32 %v3844, %v3871
        %v3880 = vmul.f32 %v3872, %v3872
        %v3881 = vmul.f32 %v3873, %v3873
        %v3882 = vmul.f32 %v3874, %v3874
        %v3883 = vmul.f32 %v3875, %v3875
        %v3884 = vmul.f32 %v3876, %v3876
        %v3885 = vmul.f32 %v3877, %v3877
        %v3886 = vmul.f32 %v3878, %v3878
        %v3887 = vmul.f32 %v3879, %v3879
        %3888 = vadd.xlane.f32.xlu0 %v3880
        %v3889 = vpop.xlane.xlu0 %3888
        %3890 = vadd.xlane.f32.xlu0 %v3881
        %v3891 = vpop.xlane.xlu0 %3890
        %3892 = vadd.xlane.f32.xlu0 %v3882
        %v3893 = vpop.xlane.xlu0 %3892
        %3894 = vadd.xlane.f32.xlu0 %v3883
        %v3895 = vpop.xlane.xlu0 %3894
        %3896 = vadd.xlane.f32.xlu0 %v3884
        %v3897 = vpop.xlane.xlu0 %3896
        %3898 = vadd.xlane.f32.xlu0 %v3885
        %v3899 = vpop.xlane.xlu0 %3898
        %3900 = vadd.xlane.f32.xlu0 %v3886
        %v3901 = vpop.xlane.xlu0 %3900
        %3902 = vadd.xlane.f32.xlu0 %v3887
        %v3903 = vpop.xlane.xlu0 %3902
        %v3904 = vmul.f32 %v3889, %v3863
        %v3905 = vmul.f32 %v3891, %v3863
        %v3906 = vmul.f32 %v3893, %v3863
        %v3907 = vmul.f32 %v3895, %v3863
        %v3908 = vmul.f32 %v3897, %v3863
        %v3909 = vmul.f32 %v3899, %v3863
        %v3910 = vmul.f32 %v3901, %v3863
        %v3911 = vmul.f32 %v3903, %v3863
        %v3912 = vadd.f32 %v3904, 1e-05
        %v3913 = vadd.f32 %v3905, 1e-05
        %v3914 = vadd.f32 %v3906, 1e-05
        %v3915 = vadd.f32 %v3907, 1e-05
        %v3916 = vadd.f32 %v3908, 1e-05
        %v3917 = vadd.f32 %v3909, 1e-05
        %v3918 = vadd.f32 %v3910, 1e-05
        %v3919 = vadd.f32 %v3911, 1e-05
        %v3920 = vrsqrt.pop %v3912
        %v3921 = vrsqrt.pop %v3913
        %v3922 = vrsqrt.pop %v3914
        %v3923 = vrsqrt.pop %v3915
        %v3924 = vrsqrt.pop %v3916
        %v3925 = vrsqrt.pop %v3917
        %v3926 = vrsqrt.pop %v3918
        %v3927 = vrsqrt.pop %v3919
        %v3928 = vmul.f32 %v3872, %v3920
        %v3929 = vmul.f32 %v3873, %v3921
        %v3930 = vmul.f32 %v3874, %v3922
        %v3931 = vmul.f32 %v3875, %v3923
        %v3932 = vmul.f32 %v3876, %v3924
        %v3933 = vmul.f32 %v3877, %v3925
        %v3934 = vmul.f32 %v3878, %v3926
        %v3935 = vmul.f32 %v3879, %v3927
        %v3937 = vlaneseq
        %v3938 = vshrl.u32 %v3937, 7
        %v3939 = vsub.s32 0, %v3938
        %v3940 = vrot.slane %v3845, %v3939
        %v3942 = vmul.f32 %v3928, %v3940
        %v3943 = vmul.f32 %v3929, %v3940
        %v3944 = vmul.f32 %v3930, %v3940
        %v3945 = vmul.f32 %v3931, %v3940
        %v3946 = vmul.f32 %v3932, %v3940
        %v3947 = vmul.f32 %v3933, %v3940
        %v3948 = vmul.f32 %v3934, %v3940
        %v3949 = vmul.f32 %v3935, %v3940
        %v3951 = vlaneseq
        %v3952 = vshrl.u32 %v3951, 7
        %v3953 = vsub.s32 0, %v3952
        %v3954 = vrot.slane %v3846, %v3953
        %v3956 = vadd.f32 %v3942, %v3954
        %v3957 = vadd.f32 %v3943, %v3954
        %v3958 = vadd.f32 %v3944, %v3954
        %v3959 = vadd.f32 %v3945, %v3954
        %v3960 = vadd.f32 %v3946, %v3954
        %v3961 = vadd.f32 %v3947, %v3954
        %v3962 = vadd.f32 %v3948, %v3954
        %v3963 = vadd.f32 %v3949, %v3954
        %v3964 = vpack.c.bf16 %v3957, %v3956
        %v3965 = vpack.c.bf16 %v3959, %v3958
        %v3966 = vpack.c.bf16 %v3961, %v3960
        %v3967 = vpack.c.bf16 %v3963, %v3962
        %v3968 = vld [vmem:[%s677] sm:$0xff]
        %v3969 = vld [vmem:[%s677 + $0x8] sm:$0xff]
        %v3970 = vld [vmem:[%s677 + $0x10] sm:$0xff]
        %v3971 = vld [vmem:[%s677 + $0x18] sm:$0xff]
        %v3972 = vld [vmem:[%s677 + $0x20] sm:$0xff]
        %v3973 = vld [vmem:[%s677 + $0x28] sm:$0xff]
        %v3974 = vld [vmem:[%s677 + $0x30] sm:$0xff]
        %v3975 = vld [vmem:[%s677 + $0x38] sm:$0xff]
        %v3976 = vld [vmem:[%s677 + $0x40] sm:$0xff]
        %v3977 = vld [vmem:[%s677 + $0x48] sm:$0xff]
        %v3978 = vld [vmem:[%s677 + $0x50] sm:$0xff]
        %v3979 = vld [vmem:[%s677 + $0x58] sm:$0xff]
        %v3980 = vld [vmem:[%s677 + $0x60] sm:$0xff]
        %v3981 = vld [vmem:[%s677 + $0x68] sm:$0xff]
        %v3982 = vld [vmem:[%s677 + $0x70] sm:$0xff]
        %v3983 = vld [vmem:[%s677 + $0x78] sm:$0xff]
        %v3984 = vld [vmem:[%s677 + $0x80] sm:$0xff]
        %v3985 = vld [vmem:[%s677 + $0x88] sm:$0xff]
        %v3986 = vld [vmem:[%s677 + $0x90] sm:$0xff]
        %v3987 = vld [vmem:[%s677 + $0x98] sm:$0xff]
        %v3988 = vld [vmem:[%s677 + $0xa0] sm:$0xff]
        %v3989 = vld [vmem:[%s677 + $0xa8] sm:$0xff]
        %v3990 = vld [vmem:[%s677 + $0xb0] sm:$0xff]
        %v3991 = vld [vmem:[%s677 + $0xb8] sm:$0xff]
        %v3992 = vld [vmem:[%s677 + $0xc0] sm:$0xff]
        %v3993 = vld [vmem:[%s677 + $0xc8] sm:$0xff]
        %v3994 = vld [vmem:[%s677 + $0xd0] sm:$0xff]
        %v3995 = vld [vmem:[%s677 + $0xd8] sm:$0xff]
        %v3996 = vld [vmem:[%s677 + $0xe0] sm:$0xff]
        %v3997 = vld [vmem:[%s677 + $0xe8] sm:$0xff]
        %v3998 = vld [vmem:[%s677 + $0xf0] sm:$0xff]
        %v3999 = vld [vmem:[%s677 + $0xf8] sm:$0xff]
        %v4000 = vld [vmem:[%s681] sm:$0xf]
        %v4002 = vlaneseq
        %v4003 = vshrl.u32 %v4002, 7
        %v4004 = vsub.s32 0, %v4003
        %v4005 = vrot.slane %v4000, %v4004
        %v4006 = vlaneseq
        %v4007 = vshrl.u32 %v4006, 7
        %v4008 = vsub.s32 1, %v4007
        %v4009 = vrot.slane %v4000, %v4008
        %v4010 = vlaneseq
        %v4011 = vshrl.u32 %v4010, 7
        %v4012 = vsub.s32 2, %v4011
        %v4013 = vrot.slane %v4000, %v4012
        %v4014 = vlaneseq
        %v4015 = vshrl.u32 %v4014, 7
        %v4016 = vsub.s32 3, %v4015
        %v4017 = vrot.slane %v4000, %v4016
        %v4054 = vunpack.c.l.b16 %v3968
        %v4055 = vunpack.c.h.b16 %v3968
        %v4056 = vunpack.c.l.b16 %v3969
        %v4057 = vunpack.c.h.b16 %v3969
        %v4058 = vunpack.c.l.b16 %v3970
        %v4059 = vunpack.c.h.b16 %v3970
        %v4060 = vunpack.c.l.b16 %v3971
        %v4061 = vunpack.c.h.b16 %v3971
        %v4062 = vunpack.c.l.b16 %v3972
        %v4063 = vunpack.c.h.b16 %v3972
        %v4064 = vunpack.c.l.b16 %v3973
        %v4065 = vunpack.c.h.b16 %v3973
        %v4066 = vunpack.c.l.b16 %v3974
        %v4067 = vunpack.c.h.b16 %v3974
        %v4068 = vunpack.c.l.b16 %v3975
        %v4069 = vunpack.c.h.b16 %v3975
        %v4070 = vunpack.c.l.b16 %v3976
        %v4071 = vunpack.c.h.b16 %v3976
        %v4072 = vunpack.c.l.b16 %v3977
        %v4073 = vunpack.c.h.b16 %v3977
        %v4074 = vunpack.c.l.b16 %v3978
        %v4075 = vunpack.c.h.b16 %v3978
        %v4076 = vunpack.c.l.b16 %v3979
        %v4077 = vunpack.c.h.b16 %v3979
        %v4078 = vunpack.c.l.b16 %v3980
        %v4079 = vunpack.c.h.b16 %v3980
        %v4080 = vunpack.c.l.b16 %v3981
        %v4081 = vunpack.c.h.b16 %v3981
        %v4082 = vunpack.c.l.b16 %v3982
        %v4083 = vunpack.c.h.b16 %v3982
        %v4084 = vunpack.c.l.b16 %v3983
        %v4085 = vunpack.c.h.b16 %v3983
        %v4086 = vunpack.c.l.b16 %v3984
        %v4087 = vunpack.c.h.b16 %v3984
        %v4088 = vunpack.c.l.b16 %v3985
        %v4089 = vunpack.c.h.b16 %v3985
        %v4090 = vunpack.c.l.b16 %v3986
        %v4091 = vunpack.c.h.b16 %v3986
        %v4092 = vunpack.c.l.b16 %v3987
        %v4093 = vunpack.c.h.b16 %v3987
        %v4094 = vunpack.c.l.b16 %v3988
        %v4095 = vunpack.c.h.b16 %v3988
        %v4096 = vunpack.c.l.b16 %v3989
        %v4097 = vunpack.c.h.b16 %v3989
        %v4098 = vunpack.c.l.b16 %v3990
        %v4099 = vunpack.c.h.b16 %v3990
        %v4100 = vunpack.c.l.b16 %v3991
        %v4101 = vunpack.c.h.b16 %v3991
        %v4102 = vunpack.c.l.b16 %v3992
        %v4103 = vunpack.c.h.b16 %v3992
        %v4104 = vunpack.c.l.b16 %v3993
        %v4105 = vunpack.c.h.b16 %v3993
        %v4106 = vunpack.c.l.b16 %v3994
        %v4107 = vunpack.c.h.b16 %v3994
        %v4108 = vunpack.c.l.b16 %v3995
        %v4109 = vunpack.c.h.b16 %v3995
        %v4110 = vunpack.c.l.b16 %v3996
        %v4111 = vunpack.c.h.b16 %v3996
        %v4112 = vunpack.c.l.b16 %v3997
        %v4113 = vunpack.c.h.b16 %v3997
        %v4114 = vunpack.c.l.b16 %v3998
        %v4115 = vunpack.c.h.b16 %v3998
        %v4116 = vunpack.c.l.b16 %v3999
        %v4117 = vunpack.c.h.b16 %v3999
        %v4118 = vpack.c.b16 %v4058, %v4054
        %v4119 = vpack.c.b16 %v4059, %v4055
        %v4120 = vpack.c.b16 %v4060, %v4056
        %v4121 = vpack.c.b16 %v4061, %v4057
        %v4122 = vpack.c.b16 %v4066, %v4062
        %v4123 = vpack.c.b16 %v4067, %v4063
        %v4124 = vpack.c.b16 %v4068, %v4064
        %v4125 = vpack.c.b16 %v4069, %v4065
        %v4126 = vpack.c.b16 %v4074, %v4070
        %v4127 = vpack.c.b16 %v4075, %v4071
        %v4128 = vpack.c.b16 %v4076, %v4072
        %v4129 = vpack.c.b16 %v4077, %v4073
        %v4130 = vpack.c.b16 %v4082, %v4078
        %v4131 = vpack.c.b16 %v4083, %v4079
        %v4132 = vpack.c.b16 %v4084, %v4080
        %v4133 = vpack.c.b16 %v4085, %v4081
        %v4134 = vpack.c.b16 %v4090, %v4086
        %v4135 = vpack.c.b16 %v4091, %v4087
        %v4136 = vpack.c.b16 %v4092, %v4088
        %v4137 = vpack.c.b16 %v4093, %v4089
        %v4138 = vpack.c.b16 %v4098, %v4094
        %v4139 = vpack.c.b16 %v4099, %v4095
        %v4140 = vpack.c.b16 %v4100, %v4096
        %v4141 = vpack.c.b16 %v4101, %v4097
        %v4142 = vpack.c.b16 %v4106, %v4102
        %v4143 = vpack.c.b16 %v4107, %v4103
        %v4144 = vpack.c.b16 %v4108, %v4104
        %v4145 = vpack.c.b16 %v4109, %v4105
        %v4146 = vpack.c.b16 %v4114, %v4110
        %v4147 = vpack.c.b16 %v4115, %v4111
        %v4148 = vpack.c.b16 %v4116, %v4112
        %v4149 = vpack.c.b16 %v4117, %v4113
        %4182 = vmatprep.subr.bf16.mxu0 %v4147
        %4183 = vmatpush1.bf16.msra.mxu0 %v4146
        %4184 = vmatprep.subr.bf16.mxu0 %v4143
        %4185 = vmatpush1.bf16.msra.mxu0 %v4142
        %4186 = vmatprep.subr.bf16.mxu0 %v4139
        %4187 = vmatpush1.bf16.msra.mxu0 %v4138
        %4188 = vmatprep.subr.bf16.mxu0 %v4135
        %4189 = vmatpush1.bf16.msra.mxu0 %v4134
        %4190 = vmatprep.subr.bf16.mxu0 %v4131
        %4191 = vmatpush1.bf16.msra.mxu0 %v4130
        %4192 = vmatprep.subr.bf16.mxu0 %v4127
        %4193 = vmatpush1.bf16.msra.mxu0 %v4126
        %4194 = vmatprep.subr.bf16.mxu0 %v4123
        %4195 = vmatpush1.bf16.msra.mxu0 %v4122
        %4196 = vmatprep.subr.bf16.mxu0 %v4119
        %4197 = vmatpush1.bf16.msra.mxu0 %v4118
        %4198 = vmatprep.subr.bf16.mxu0 0
        %4199 = vmatpush2.bf16.msra.mxu0 0
        %4200 = vmatprep.subr.bf16.mxu0 0
        %4201 = vmatpush2.bf16.msra.mxu0 0
        %4202 = vmatprep.subr.bf16.mxu0 0
        %4203 = vmatpush2.bf16.msra.mxu0 0
        %4204 = vmatprep.subr.bf16.mxu0 0
        %4205 = vmatpush2.bf16.msra.mxu0 0
        %4206 = vmatprep.subr.bf16.mxu0 0
        %4207 = vmatpush2.bf16.msra.mxu0 0
        %4208 = vmatprep.subr.bf16.mxu0 0
        %4209 = vmatpush2.bf16.msra.mxu0 0
        %4210 = vmatprep.subr.bf16.mxu0 0
        %4211 = vmatpush2.bf16.msra.mxu0 0
        %4212 = vmatprep.subr.bf16.mxu0 0
        %4213 = vmatpush2.bf16.msra.mxu0 0
        %4214 = vmatprep.mubr.bf16.mxu0 0
        %4215 = vmatmul.mubr.bf16.gmra.mxu0 %v3964
        %v4216 = vpop.f32.mrf.mxu0
        %v4217 = vadd.f32 %v4005, %v4216
        %v4218 = vpop.f32.mrf.mxu0
        %v4219 = vadd.f32 %v4009, %v4218
        %v4220 = vpop.f32.mrf.mxu0
        %v4221 = vadd.f32 %v4005, %v4220
        %v4222 = vpop.f32.mrf.mxu0
        %v4223 = vadd.f32 %v4009, %v4222
        %4224 = vmatprep.mubr.bf16.mxu0 0
        %4225 = vmatmul.mubr.bf16.gmra.mxu0 %v3965
        %v4226 = vpop.f32.mrf.mxu0
        %v4227 = vadd.f32 %v4005, %v4226
        %v4228 = vpop.f32.mrf.mxu0
        %v4229 = vadd.f32 %v4009, %v4228
        %v4230 = vpop.f32.mrf.mxu0
        %v4231 = vadd.f32 %v4005, %v4230
        %v4232 = vpop.f32.mrf.mxu0
        %v4233 = vadd.f32 %v4009, %v4232
        %4234 = vmatprep.mubr.bf16.mxu0 0
        %4235 = vmatmul.mubr.bf16.gmra.mxu0 %v3966
        %v4236 = vpop.f32.mrf.mxu0
        %v4237 = vadd.f32 %v4005, %v4236
        %v4238 = vpop.f32.mrf.mxu0
        %v4239 = vadd.f32 %v4009, %v4238
        %v4240 = vpop.f32.mrf.mxu0
        %v4241 = vadd.f32 %v4005, %v4240
        %v4242 = vpop.f32.mrf.mxu0
        %v4243 = vadd.f32 %v4009, %v4242
        %4244 = vmatprep.mubr.bf16.mxu0 0
        %4245 = vmatmul.mubr.bf16.gmra.mxu0 %v3967
        %v4246 = vpop.f32.mrf.mxu0
        %v4247 = vadd.f32 %v4005, %v4246
        %v4248 = vpop.f32.mrf.mxu0
        %v4249 = vadd.f32 %v4009, %v4248
        %v4250 = vpop.f32.mrf.mxu0
        %v4251 = vadd.f32 %v4005, %v4250
        %v4252 = vpop.f32.mrf.mxu0
        %v4253 = vadd.f32 %v4009, %v4252
        %4254 = vdwg.mxu0
        %4255 = vmatprep.subr.bf16.mxu0 %v4149
        %4256 = vmatpush1.bf16.msra.mxu0 %v4148
        %4257 = vmatprep.subr.bf16.mxu0 %v4145
        %4258 = vmatpush1.bf16.msra.mxu0 %v4144
        %4259 = vmatprep.subr.bf16.mxu0 %v4141
        %4260 = vmatpush1.bf16.msra.mxu0 %v4140
        %4261 = vmatprep.subr.bf16.mxu0 %v4137
        %4262 = vmatpush1.bf16.msra.mxu0 %v4136
        %4263 = vmatprep.subr.bf16.mxu0 %v4133
        %4264 = vmatpush1.bf16.msra.mxu0 %v4132
        %4265 = vmatprep.subr.bf16.mxu0 %v4129
        %4266 = vmatpush1.bf16.msra.mxu0 %v4128
        %4267 = vmatprep.subr.bf16.mxu0 %v4125
        %4268 = vmatpush1.bf16.msra.mxu0 %v4124
        %4269 = vmatprep.subr.bf16.mxu0 %v4121
        %4270 = vmatpush1.bf16.msra.mxu0 %v4120
        %4271 = vmatprep.subr.bf16.mxu0 0
        %4272 = vmatpush2.bf16.msra.mxu0 0
        %4273 = vmatprep.subr.bf16.mxu0 0
        %4274 = vmatpush2.bf16.msra.mxu0 0
        %4275 = vmatprep.subr.bf16.mxu0 0
        %4276 = vmatpush2.bf16.msra.mxu0 0
        %4277 = vmatprep.subr.bf16.mxu0 0
        %4278 = vmatpush2.bf16.msra.mxu0 0
        %4279 = vmatprep.subr.bf16.mxu0 0
        %4280 = vmatpush2.bf16.msra.mxu0 0
        %4281 = vmatprep.subr.bf16.mxu0 0
        %4282 = vmatpush2.bf16.msra.mxu0 0
        %4283 = vmatprep.subr.bf16.mxu0 0
        %4284 = vmatpush2.bf16.msra.mxu0 0
        %4285 = vmatprep.subr.bf16.mxu0 0
        %4286 = vmatpush2.bf16.msra.mxu0 0
        %4287 = vmatprep.mubr.bf16.mxu0 0
        %4288 = vmatmul.mubr.bf16.gmra.mxu0 %v3964
        %v4289 = vpop.f32.mrf.mxu0
        %v4290 = vadd.f32 %v4013, %v4289
        %v4291 = vpop.f32.mrf.mxu0
        %v4292 = vadd.f32 %v4017, %v4291
        %v4293 = vpop.f32.mrf.mxu0
        %v4294 = vadd.f32 %v4013, %v4293
        %v4295 = vpop.f32.mrf.mxu0
        %v4296 = vadd.f32 %v4017, %v4295
        %4297 = vmatprep.mubr.bf16.mxu0 0
        %4298 = vmatmul.mubr.bf16.gmra.mxu0 %v3965
        %v4299 = vpop.f32.mrf.mxu0
        %v4300 = vadd.f32 %v4013, %v4299
        %v4301 = vpop.f32.mrf.mxu0
        %v4302 = vadd.f32 %v4017, %v4301
        %v4303 = vpop.f32.mrf.mxu0
        %v4304 = vadd.f32 %v4013, %v4303
        %v4305 = vpop.f32.mrf.mxu0
        %v4306 = vadd.f32 %v4017, %v4305
        %4307 = vmatprep.mubr.bf16.mxu0 0
        %4308 = vmatmul.mubr.bf16.gmra.mxu0 %v3966
        %v4309 = vpop.f32.mrf.mxu0
        %v4310 = vadd.f32 %v4013, %v4309
        %v4311 = vpop.f32.mrf.mxu0
        %v4312 = vadd.f32 %v4017, %v4311
        %v4313 = vpop.f32.mrf.mxu0
        %v4314 = vadd.f32 %v4013, %v4313
        %v4315 = vpop.f32.mrf.mxu0
        %v4316 = vadd.f32 %v4017, %v4315
        %4317 = vmatprep.mubr.bf16.mxu0 0
        %4318 = vmatmul.mubr.bf16.gmra.mxu0 %v3967
        %v4319 = vpop.f32.mrf.mxu0
        %v4320 = vadd.f32 %v4013, %v4319
        %v4321 = vpop.f32.mrf.mxu0
        %v4322 = vadd.f32 %v4017, %v4321
        %v4323 = vpop.f32.mrf.mxu0
        %v4324 = vadd.f32 %v4013, %v4323
        %v4325 = vpop.f32.mrf.mxu0
        %v4326 = vadd.f32 %v4017, %v4325
        %4327 = vdwg.mxu0
        %v4328 = vmax.f32 %v4217, 0.0
        %v4329 = vmax.f32 %v4219, 0.0
        %v4330 = vmax.f32 %v4290, 0.0
        %v4331 = vmax.f32 %v4292, 0.0
        %v4332 = vmax.f32 %v4221, 0.0
        %v4333 = vmax.f32 %v4223, 0.0
        %v4334 = vmax.f32 %v4294, 0.0
        %v4335 = vmax.f32 %v4296, 0.0
        %v4336 = vmax.f32 %v4227, 0.0
        %v4337 = vmax.f32 %v4229, 0.0
        %v4338 = vmax.f32 %v4300, 0.0
        %v4339 = vmax.f32 %v4302, 0.0
        %v4340 = vmax.f32 %v4231, 0.0
        %v4341 = vmax.f32 %v4233, 0.0
        %v4342 = vmax.f32 %v4304, 0.0
        %v4343 = vmax.f32 %v4306, 0.0
        %v4344 = vmax.f32 %v4237, 0.0
        %v4345 = vmax.f32 %v4239, 0.0
        %v4346 = vmax.f32 %v4310, 0.0
        %v4347 = vmax.f32 %v4312, 0.0
        %v4348 = vmax.f32 %v4241, 0.0
        %v4349 = vmax.f32 %v4243, 0.0
        %v4350 = vmax.f32 %v4314, 0.0
        %v4351 = vmax.f32 %v4316, 0.0
        %v4352 = vmax.f32 %v4247, 0.0
        %v4353 = vmax.f32 %v4249, 0.0
        %v4354 = vmax.f32 %v4320, 0.0
        %v4355 = vmax.f32 %v4322, 0.0
        %v4356 = vmax.f32 %v4251, 0.0
        %v4357 = vmax.f32 %v4253, 0.0
        %v4358 = vmax.f32 %v4324, 0.0
        %v4359 = vmax.f32 %v4326, 0.0
        %v4360 = vpack.c.bf16 %v4332, %v4328
        %v4361 = vpack.c.bf16 %v4333, %v4329
        %v4362 = vpack.c.bf16 %v4334, %v4330
        %v4363 = vpack.c.bf16 %v4335, %v4331
        %v4364 = vpack.c.bf16 %v4340, %v4336
        %v4365 = vpack.c.bf16 %v4341, %v4337
        %v4366 = vpack.c.bf16 %v4342, %v4338
        %v4367 = vpack.c.bf16 %v4343, %v4339
        %v4368 = vpack.c.bf16 %v4348, %v4344
        %v4369 = vpack.c.bf16 %v4349, %v4345
        %v4370 = vpack.c.bf16 %v4350, %v4346
        %v4371 = vpack.c.bf16 %v4351, %v4347
        %v4372 = vpack.c.bf16 %v4356, %v4352
        %v4373 = vpack.c.bf16 %v4357, %v4353
        %v4374 = vpack.c.bf16 %v4358, %v4354
        %v4375 = vpack.c.bf16 %v4359, %v4355
        %v4376 = vld [vmem:[%s686] sm:$0xf]
        %v4377 = vld [vmem:[%s686 + $0x4] sm:$0xf]
        %v4378 = vld [vmem:[%s686 + $0x8] sm:$0xf]
        %v4379 = vld [vmem:[%s686 + $0xc] sm:$0xf]
        %v4380 = vld [vmem:[%s686 + $0x10] sm:$0xf]
        %v4381 = vld [vmem:[%s686 + $0x14] sm:$0xf]
        %v4382 = vld [vmem:[%s686 + $0x18] sm:$0xf]
        %v4383 = vld [vmem:[%s686 + $0x1c] sm:$0xf]
        %v4384 = vld [vmem:[%s686 + $0x20] sm:$0xf]
        %v4385 = vld [vmem:[%s686 + $0x24] sm:$0xf]
        %v4386 = vld [vmem:[%s686 + $0x28] sm:$0xf]
        %v4387 = vld [vmem:[%s686 + $0x2c] sm:$0xf]
        %v4388 = vld [vmem:[%s686 + $0x30] sm:$0xf]
        %v4389 = vld [vmem:[%s686 + $0x34] sm:$0xf]
        %v4390 = vld [vmem:[%s686 + $0x38] sm:$0xf]
        %v4391 = vld [vmem:[%s686 + $0x3c] sm:$0xf]
        %v4392 = vld [vmem:[%s686 + $0x40] sm:$0xf]
        %v4393 = vld [vmem:[%s686 + $0x44] sm:$0xf]
        %v4394 = vld [vmem:[%s686 + $0x48] sm:$0xf]
        %v4395 = vld [vmem:[%s686 + $0x4c] sm:$0xf]
        %v4396 = vld [vmem:[%s686 + $0x50] sm:$0xf]
        %v4397 = vld [vmem:[%s686 + $0x54] sm:$0xf]
        %v4398 = vld [vmem:[%s686 + $0x58] sm:$0xf]
        %v4399 = vld [vmem:[%s686 + $0x5c] sm:$0xf]
        %v4400 = vld [vmem:[%s686 + $0x60] sm:$0xf]
        %v4401 = vld [vmem:[%s686 + $0x64] sm:$0xf]
        %v4402 = vld [vmem:[%s686 + $0x68] sm:$0xf]
        %v4403 = vld [vmem:[%s686 + $0x6c] sm:$0xf]
        %v4404 = vld [vmem:[%s686 + $0x70] sm:$0xf]
        %v4405 = vld [vmem:[%s686 + $0x74] sm:$0xf]
        %v4406 = vld [vmem:[%s686 + $0x78] sm:$0xf]
        %v4407 = vld [vmem:[%s686 + $0x7c] sm:$0xf]
        %v4408 = vld [vmem:[%s686 + $0x80] sm:$0xf]
        %v4409 = vld [vmem:[%s686 + $0x84] sm:$0xf]
        %v4410 = vld [vmem:[%s686 + $0x88] sm:$0xf]
        %v4411 = vld [vmem:[%s686 + $0x8c] sm:$0xf]
        %v4412 = vld [vmem:[%s686 + $0x90] sm:$0xf]
        %v4413 = vld [vmem:[%s686 + $0x94] sm:$0xf]
        %v4414 = vld [vmem:[%s686 + $0x98] sm:$0xf]
        %v4415 = vld [vmem:[%s686 + $0x9c] sm:$0xf]
        %v4416 = vld [vmem:[%s686 + $0xa0] sm:$0xf]
        %v4417 = vld [vmem:[%s686 + $0xa4] sm:$0xf]
        %v4418 = vld [vmem:[%s686 + $0xa8] sm:$0xf]
        %v4419 = vld [vmem:[%s686 + $0xac] sm:$0xf]
        %v4420 = vld [vmem:[%s686 + $0xb0] sm:$0xf]
        %v4421 = vld [vmem:[%s686 + $0xb4] sm:$0xf]
        %v4422 = vld [vmem:[%s686 + $0xb8] sm:$0xf]
        %v4423 = vld [vmem:[%s686 + $0xbc] sm:$0xf]
        %v4424 = vld [vmem:[%s686 + $0xc0] sm:$0xf]
        %v4425 = vld [vmem:[%s686 + $0xc4] sm:$0xf]
        %v4426 = vld [vmem:[%s686 + $0xc8] sm:$0xf]
        %v4427 = vld [vmem:[%s686 + $0xcc] sm:$0xf]
        %v4428 = vld [vmem:[%s686 + $0xd0] sm:$0xf]
        %v4429 = vld [vmem:[%s686 + $0xd4] sm:$0xf]
        %v4430 = vld [vmem:[%s686 + $0xd8] sm:$0xf]
        %v4431 = vld [vmem:[%s686 + $0xdc] sm:$0xf]
        %v4432 = vld [vmem:[%s686 + $0xe0] sm:$0xf]
        %v4433 = vld [vmem:[%s686 + $0xe4] sm:$0xf]
        %v4434 = vld [vmem:[%s686 + $0xe8] sm:$0xf]
        %v4435 = vld [vmem:[%s686 + $0xec] sm:$0xf]
        %v4436 = vld [vmem:[%s686 + $0xf0] sm:$0xf]
        %v4437 = vld [vmem:[%s686 + $0xf4] sm:$0xf]
        %v4438 = vld [vmem:[%s686 + $0xf8] sm:$0xf]
        %v4439 = vld [vmem:[%s686 + $0xfc] sm:$0xf]
        %v4440 = vld [vmem:[%s689] sm:$0x1]
        %v4442 = vlaneseq
        %v4443 = vshrl.u32 %v4442, 7
        %v4444 = vsub.s32 0, %v4443
        %v4445 = vrot.slane %v4440, %v4444
        %v4511 = vunpack.c.l.b16 %v4376
        %v4512 = vunpack.c.l.b16 %v4377
        %v4513 = vunpack.c.l.b16 %v4378
        %v4514 = vunpack.c.l.b16 %v4379
        %v4515 = vunpack.c.l.b16 %v4380
        %v4516 = vunpack.c.l.b16 %v4381
        %v4517 = vunpack.c.l.b16 %v4382
        %v4518 = vunpack.c.l.b16 %v4383
        %v4519 = vunpack.c.l.b16 %v4384
        %v4520 = vunpack.c.l.b16 %v4385
        %v4521 = vunpack.c.l.b16 %v4386
        %v4522 = vunpack.c.l.b16 %v4387
        %v4523 = vunpack.c.l.b16 %v4388
        %v4524 = vunpack.c.l.b16 %v4389
        %v4525 = vunpack.c.l.b16 %v4390
        %v4526 = vunpack.c.l.b16 %v4391
        %v4527 = vunpack.c.l.b16 %v4392
        %v4528 = vunpack.c.l.b16 %v4393
        %v4529 = vunpack.c.l.b16 %v4394
        %v4530 = vunpack.c.l.b16 %v4395
        %v4531 = vunpack.c.l.b16 %v4396
        %v4532 = vunpack.c.l.b16 %v4397
        %v4533 = vunpack.c.l.b16 %v4398
        %v4534 = vunpack.c.l.b16 %v4399
        %v4535 = vunpack.c.l.b16 %v4400
        %v4536 = vunpack.c.l.b16 %v4401
        %v4537 = vunpack.c.l.b16 %v4402
        %v4538 = vunpack.c.l.b16 %v4403
        %v4539 = vunpack.c.l.b16 %v4404
        %v4540 = vunpack.c.l.b16 %v4405
        %v4541 = vunpack.c.l.b16 %v4406
        %v4542 = vunpack.c.l.b16 %v4407
        %v4543 = vunpack.c.l.b16 %v4408
        %v4544 = vunpack.c.l.b16 %v4409
        %v4545 = vunpack.c.l.b16 %v4410
        %v4546 = vunpack.c.l.b16 %v4411
        %v4547 = vunpack.c.l.b16 %v4412
        %v4548 = vunpack.c.l.b16 %v4413
        %v4549 = vunpack.c.l.b16 %v4414
        %v4550 = vunpack.c.l.b16 %v4415
        %v4551 = vunpack.c.l.b16 %v4416
        %v4552 = vunpack.c.l.b16 %v4417
        %v4553 = vunpack.c.l.b16 %v4418
        %v4554 = vunpack.c.l.b16 %v4419
        %v4555 = vunpack.c.l.b16 %v4420
        %v4556 = vunpack.c.l.b16 %v4421
        %v4557 = vunpack.c.l.b16 %v4422
        %v4558 = vunpack.c.l.b16 %v4423
        %v4559 = vunpack.c.l.b16 %v4424
        %v4560 = vunpack.c.l.b16 %v4425
        %v4561 = vunpack.c.l.b16 %v4426
        %v4562 = vunpack.c.l.b16 %v4427
        %v4563 = vunpack.c.l.b16 %v4428
        %v4564 = vunpack.c.l.b16 %v4429
        %v4565 = vunpack.c.l.b16 %v4430
        %v4566 = vunpack.c.l.b16 %v4431
        %v4567 = vunpack.c.l.b16 %v4432
        %v4568 = vunpack.c.l.b16 %v4433
        %v4569 = vunpack.c.l.b16 %v4434
        %v4570 = vunpack.c.l.b16 %v4435
        %v4571 = vunpack.c.l.b16 %v4436
        %v4572 = vunpack.c.l.b16 %v4437
        %v4573 = vunpack.c.l.b16 %v4438
        %v4574 = vunpack.c.l.b16 %v4439
        %v4575 = vpack.c.b16 %v4512, %v4511
        %v4576 = vpack.c.b16 %v4514, %v4513
        %v4577 = vpack.c.b16 %v4516, %v4515
        %v4578 = vpack.c.b16 %v4518, %v4517
        %v4579 = vpack.c.b16 %v4520, %v4519
        %v4580 = vpack.c.b16 %v4522, %v4521
        %v4581 = vpack.c.b16 %v4524, %v4523
        %v4582 = vpack.c.b16 %v4526, %v4525
        %v4583 = vpack.c.b16 %v4528, %v4527
        %v4584 = vpack.c.b16 %v4530, %v4529
        %v4585 = vpack.c.b16 %v4532, %v4531
        %v4586 = vpack.c.b16 %v4534, %v4533
        %v4587 = vpack.c.b16 %v4536, %v4535
        %v4588 = vpack.c.b16 %v4538, %v4537
        %v4589 = vpack.c.b16 %v4540, %v4539
        %v4590 = vpack.c.b16 %v4542, %v4541
        %v4591 = vpack.c.b16 %v4544, %v4543
        %v4592 = vpack.c.b16 %v4546, %v4545
        %v4593 = vpack.c.b16 %v4548, %v4547
        %v4594 = vpack.c.b16 %v4550, %v4549
        %v4595 = vpack.c.b16 %v4552, %v4551
        %v4596 = vpack.c.b16 %v4554, %v4553
        %v4597 = vpack.c.b16 %v4556, %v4555
        %v4598 = vpack.c.b16 %v4558, %v4557
        %v4599 = vpack.c.b16 %v4560, %v4559
        %v4600 = vpack.c.b16 %v4562, %v4561
        %v4601 = vpack.c.b16 %v4564, %v4563
        %v4602 = vpack.c.b16 %v4566, %v4565
        %v4603 = vpack.c.b16 %v4568, %v4567
        %v4604 = vpack.c.b16 %v4570, %v4569
        %v4605 = vpack.c.b16 %v4572, %v4571
        %v4606 = vpack.c.b16 %v4574, %v4573
        %4639 = vmatprep.subr.bf16.mxu0 0
        %4640 = vmatpush1.bf16.msra.mxu0 %v4582
        %4641 = vmatprep.subr.bf16.mxu0 0
        %4642 = vmatpush1.bf16.msra.mxu0 %v4581
        %4643 = vmatprep.subr.bf16.mxu0 0
        %4644 = vmatpush1.bf16.msra.mxu0 %v4580
        %4645 = vmatprep.subr.bf16.mxu0 0
        %4646 = vmatpush1.bf16.msra.mxu0 %v4579
        %4647 = vmatprep.subr.bf16.mxu0 0
        %4648 = vmatpush1.bf16.msra.mxu0 %v4578
        %4649 = vmatprep.subr.bf16.mxu0 0
        %4650 = vmatpush1.bf16.msra.mxu0 %v4577
        %4651 = vmatprep.subr.bf16.mxu0 0
        %4652 = vmatpush1.bf16.msra.mxu0 %v4576
        %4653 = vmatprep.subr.bf16.mxu0 0
        %4654 = vmatpush1.bf16.msra.mxu0 %v4575
        %4655 = vmatprep.subr.bf16.mxu0 0
        %4656 = vmatpush2.bf16.msra.mxu0 %v4590
        %4657 = vmatprep.subr.bf16.mxu0 0
        %4658 = vmatpush2.bf16.msra.mxu0 %v4589
        %4659 = vmatprep.subr.bf16.mxu0 0
        %4660 = vmatpush2.bf16.msra.mxu0 %v4588
        %4661 = vmatprep.subr.bf16.mxu0 0
        %4662 = vmatpush2.bf16.msra.mxu0 %v4587
        %4663 = vmatprep.subr.bf16.mxu0 0
        %4664 = vmatpush2.bf16.msra.mxu0 %v4586
        %4665 = vmatprep.subr.bf16.mxu0 0
        %4666 = vmatpush2.bf16.msra.mxu0 %v4585
        %4667 = vmatprep.subr.bf16.mxu0 0
        %4668 = vmatpush2.bf16.msra.mxu0 %v4584
        %4669 = vmatprep.subr.bf16.mxu0 0
        %4670 = vmatpush2.bf16.msra.mxu0 %v4583
        %4671 = vmatprep.mubr.bf16.mxu0 %v4361
        %4672 = vmatmul.mubr.bf16.gmra.mxu0 %v4360
        %v4673 = vpop.f32.mrf.mxu0
        %v4674 = vadd.f32 %v4445, %v4673
        %v4675 = vpop.f32.mrf.mxu0
        %v4676 = vpop.f32.mrf.mxu0
        %v4677 = vadd.f32 %v4445, %v4676
        %v4678 = vpop.f32.mrf.mxu0
        %4679 = vmatprep.mubr.bf16.mxu0 %v4365
        %4680 = vmatmul.mubr.bf16.gmra.mxu0 %v4364
        %v4681 = vpop.f32.mrf.mxu0
        %v4682 = vadd.f32 %v4445, %v4681
        %v4683 = vpop.f32.mrf.mxu0
        %v4684 = vpop.f32.mrf.mxu0
        %v4685 = vadd.f32 %v4445, %v4684
        %v4686 = vpop.f32.mrf.mxu0
        %4687 = vmatprep.mubr.bf16.mxu0 %v4369
        %4688 = vmatmul.mubr.bf16.gmra.mxu0 %v4368
        %v4689 = vpop.f32.mrf.mxu0
        %v4690 = vadd.f32 %v4445, %v4689
        %v4691 = vpop.f32.mrf.mxu0
        %v4692 = vpop.f32.mrf.mxu0
        %v4693 = vadd.f32 %v4445, %v4692
        %v4694 = vpop.f32.mrf.mxu0
        %4695 = vmatprep.mubr.bf16.mxu0 %v4373
        %4696 = vmatmul.mubr.bf16.gmra.mxu0 %v4372
        %v4697 = vpop.f32.mrf.mxu0
        %v4698 = vadd.f32 %v4445, %v4697
        %v4699 = vpop.f32.mrf.mxu0
        %v4700 = vpop.f32.mrf.mxu0
        %v4701 = vadd.f32 %v4445, %v4700
        %v4702 = vpop.f32.mrf.mxu0
        %4703 = vdwg.mxu0
        %4704 = vmatprep.subr.bf16.mxu0 0
        %4705 = vmatpush1.bf16.msra.mxu0 %v4598
        %4706 = vmatprep.subr.bf16.mxu0 0
        %4707 = vmatpush1.bf16.msra.mxu0 %v4597
        %4708 = vmatprep.subr.bf16.mxu0 0
        %4709 = vmatpush1.bf16.msra.mxu0 %v4596
        %4710 = vmatprep.subr.bf16.mxu0 0
        %4711 = vmatpush1.bf16.msra.mxu0 %v4595
        %4712 = vmatprep.subr.bf16.mxu0 0
        %4713 = vmatpush1.bf16.msra.mxu0 %v4594
        %4714 = vmatprep.subr.bf16.mxu0 0
        %4715 = vmatpush1.bf16.msra.mxu0 %v4593
        %4716 = vmatprep.subr.bf16.mxu0 0
        %4717 = vmatpush1.bf16.msra.mxu0 %v4592
        %4718 = vmatprep.subr.bf16.mxu0 0
        %4719 = vmatpush1.bf16.msra.mxu0 %v4591
        %4720 = vmatprep.subr.bf16.mxu0 0
        %4721 = vmatpush2.bf16.msra.mxu0 %v4606
        %4722 = vmatprep.subr.bf16.mxu0 0
        %4723 = vmatpush2.bf16.msra.mxu0 %v4605
        %4724 = vmatprep.subr.bf16.mxu0 0
        %4725 = vmatpush2.bf16.msra.mxu0 %v4604
        %4726 = vmatprep.subr.bf16.mxu0 0
        %4727 = vmatpush2.bf16.msra.mxu0 %v4603
        %4728 = vmatprep.subr.bf16.mxu0 0
        %4729 = vmatpush2.bf16.msra.mxu0 %v4602
        %4730 = vmatprep.subr.bf16.mxu0 0
        %4731 = vmatpush2.bf16.msra.mxu0 %v4601
        %4732 = vmatprep.subr.bf16.mxu0 0
        %4733 = vmatpush2.bf16.msra.mxu0 %v4600
        %4734 = vmatprep.subr.bf16.mxu0 0
        %4735 = vmatpush2.bf16.msra.mxu0 %v4599
        %4736 = vmatprep.mubr.bf16.mxu0 %v4363
        %4737 = vmatmul.mubr.bf16.gmra.mxu0 %v4362
        %v4738 = vpop.f32.mrf.mxu0
        %v4739 = vadd.f32 %v4674, %v4738
        %v4740 = vpop.f32.mrf.mxu0
        %v4741 = vpop.f32.mrf.mxu0
        %v4742 = vadd.f32 %v4677, %v4741
        %v4743 = vpop.f32.mrf.mxu0
        %4744 = vmatprep.mubr.bf16.mxu0 %v4367
        %4745 = vmatmul.mubr.bf16.gmra.mxu0 %v4366
        %v4746 = vpop.f32.mrf.mxu0
        %v4747 = vadd.f32 %v4682, %v4746
        %v4748 = vpop.f32.mrf.mxu0
        %v4749 = vpop.f32.mrf.mxu0
        %v4750 = vadd.f32 %v4685, %v4749
        %v4751 = vpop.f32.mrf.mxu0
        %4752 = vmatprep.mubr.bf16.mxu0 %v4371
        %4753 = vmatmul.mubr.bf16.gmra.mxu0 %v4370
        %v4754 = vpop.f32.mrf.mxu0
        %v4755 = vadd.f32 %v4690, %v4754
        %v4756 = vpop.f32.mrf.mxu0
        %v4757 = vpop.f32.mrf.mxu0
        %v4758 = vadd.f32 %v4693, %v4757
        %v4759 = vpop.f32.mrf.mxu0
        %4760 = vmatprep.mubr.bf16.mxu0 %v4375
        %4761 = vmatmul.mubr.bf16.gmra.mxu0 %v4374
        %v4762 = vpop.f32.mrf.mxu0
        %v4763 = vadd.f32 %v4698, %v4762
        %v4764 = vpop.f32.mrf.mxu0
        %v4765 = vpop.f32.mrf.mxu0
        %v4766 = vadd.f32 %v4701, %v4765
        %v4767 = vpop.f32.mrf.mxu0
        %4768 = vdwg.mxu0
        %v4769 = vadd.f32 %v4739, %v3956
        %v4770 = vadd.f32 %v4742, %v3957
        %v4771 = vadd.f32 %v4747, %v3958
        %v4772 = vadd.f32 %v4750, %v3959
        %v4773 = vadd.f32 %v4755, %v3960
        %v4774 = vadd.f32 %v4758, %v3961
        %v4775 = vadd.f32 %v4763, %v3962
        %v4776 = vadd.f32 %v4766, %v3963
        %v4777 = vld [vmem:[%s692] sm:$0x1]
        %v4778 = vld [vmem:[%s695] sm:$0x1]
        %4779 = vadd.xlane.f32.xlu0 %v4769
        %v4780 = vpop.xlane.xlu0 %4779
        %4781 = vadd.xlane.f32.xlu0 %v4770
        %v4782 = vpop.xlane.xlu0 %4781
        %4783 = vadd.xlane.f32.xlu0 %v4771
        %v4784 = vpop.xlane.xlu0 %4783
        %4785 = vadd.xlane.f32.xlu0 %v4772
        %v4786 = vpop.xlane.xlu0 %4785
        %4787 = vadd.xlane.f32.xlu0 %v4773
        %v4788 = vpop.xlane.xlu0 %4787
        %4789 = vadd.xlane.f32.xlu0 %v4774
        %v4790 = vpop.xlane.xlu0 %4789
        %4791 = vadd.xlane.f32.xlu0 %v4775
        %v4792 = vpop.xlane.xlu0 %4791
        %4793 = vadd.xlane.f32.xlu0 %v4776
        %v4794 = vpop.xlane.xlu0 %4793
        %v4795 = vmul.f32 %v4780, %v3863
        %v4796 = vmul.f32 %v4782, %v3863
        %v4797 = vmul.f32 %v4784, %v3863
        %v4798 = vmul.f32 %v4786, %v3863
        %v4799 = vmul.f32 %v4788, %v3863
        %v4800 = vmul.f32 %v4790, %v3863
        %v4801 = vmul.f32 %v4792, %v3863
        %v4802 = vmul.f32 %v4794, %v3863
        %v4803 = vsub.f32 %v4769, %v4795
        %v4804 = vsub.f32 %v4770, %v4796
        %v4805 = vsub.f32 %v4771, %v4797
        %v4806 = vsub.f32 %v4772, %v4798
        %v4807 = vsub.f32 %v4773, %v4799
        %v4808 = vsub.f32 %v4774, %v4800
        %v4809 = vsub.f32 %v4775, %v4801
        %v4810 = vsub.f32 %v4776, %v4802
        %v4811 = vmul.f32 %v4803, %v4803
        %v4812 = vmul.f32 %v4804, %v4804
        %v4813 = vmul.f32 %v4805, %v4805
        %v4814 = vmul.f32 %v4806, %v4806
        %v4815 = vmul.f32 %v4807, %v4807
        %v4816 = vmul.f32 %v4808, %v4808
        %v4817 = vmul.f32 %v4809, %v4809
        %v4818 = vmul.f32 %v4810, %v4810
        %4819 = vadd.xlane.f32.xlu0 %v4811
        %v4820 = vpop.xlane.xlu0 %4819
        %4821 = vadd.xlane.f32.xlu0 %v4812
        %v4822 = vpop.xlane.xlu0 %4821
        %4823 = vadd.xlane.f32.xlu0 %v4813
        %v4824 = vpop.xlane.xlu0 %4823
        %4825 = vadd.xlane.f32.xlu0 %v4814
        %v4826 = vpop.xlane.xlu0 %4825
        %4827 = vadd.xlane.f32.xlu0 %v4815
        %v4828 = vpop.xlane.xlu0 %4827
        %4829 = vadd.xlane.f32.xlu0 %v4816
        %v4830 = vpop.xlane.xlu0 %4829
        %4831 = vadd.xlane.f32.xlu0 %v4817
        %v4832 = vpop.xlane.xlu0 %4831
        %4833 = vadd.xlane.f32.xlu0 %v4818
        %v4834 = vpop.xlane.xlu0 %4833
        %v4835 = vmul.f32 %v4820, %v3863
        %v4836 = vmul.f32 %v4822, %v3863
        %v4837 = vmul.f32 %v4824, %v3863
        %v4838 = vmul.f32 %v4826, %v3863
        %v4839 = vmul.f32 %v4828, %v3863
        %v4840 = vmul.f32 %v4830, %v3863
        %v4841 = vmul.f32 %v4832, %v3863
        %v4842 = vmul.f32 %v4834, %v3863
        %v4843 = vadd.f32 %v4835, 1e-05
        %v4844 = vadd.f32 %v4836, 1e-05
        %v4845 = vadd.f32 %v4837, 1e-05
        %v4846 = vadd.f32 %v4838, 1e-05
        %v4847 = vadd.f32 %v4839, 1e-05
        %v4848 = vadd.f32 %v4840, 1e-05
        %v4849 = vadd.f32 %v4841, 1e-05
        %v4850 = vadd.f32 %v4842, 1e-05
        %v4851 = vrsqrt.pop %v4843
        %v4852 = vrsqrt.pop %v4844
        %v4853 = vrsqrt.pop %v4845
        %v4854 = vrsqrt.pop %v4846
        %v4855 = vrsqrt.pop %v4847
        %v4856 = vrsqrt.pop %v4848
        %v4857 = vrsqrt.pop %v4849
        %v4858 = vrsqrt.pop %v4850
        %v4859 = vmul.f32 %v4803, %v4851
        %v4860 = vmul.f32 %v4804, %v4852
        %v4861 = vmul.f32 %v4805, %v4853
        %v4862 = vmul.f32 %v4806, %v4854
        %v4863 = vmul.f32 %v4807, %v4855
        %v4864 = vmul.f32 %v4808, %v4856
        %v4865 = vmul.f32 %v4809, %v4857
        %v4866 = vmul.f32 %v4810, %v4858
        %v4868 = vlaneseq
        %v4869 = vshrl.u32 %v4868, 7
        %v4870 = vsub.s32 0, %v4869
        %v4871 = vrot.slane %v4777, %v4870
        %v4873 = vmul.f32 %v4859, %v4871
        %v4874 = vmul.f32 %v4860, %v4871
        %v4875 = vmul.f32 %v4861, %v4871
        %v4876 = vmul.f32 %v4862, %v4871
        %v4877 = vmul.f32 %v4863, %v4871
        %v4878 = vmul.f32 %v4864, %v4871
        %v4879 = vmul.f32 %v4865, %v4871
        %v4880 = vmul.f32 %v4866, %v4871
        %v4882 = vlaneseq
        %v4883 = vshrl.u32 %v4882, 7
        %v4884 = vsub.s32 0, %v4883
        %v4885 = vrot.slane %v4778, %v4884
        %v4887 = vadd.f32 %v4873, %v4885
        %v4888 = vadd.f32 %v4874, %v4885
        %v4889 = vadd.f32 %v4875, %v4885
        %v4890 = vadd.f32 %v4876, %v4885
        %v4891 = vadd.f32 %v4877, %v4885
        %v4892 = vadd.f32 %v4878, %v4885
        %v4893 = vadd.f32 %v4879, %v4885
        %v4894 = vadd.f32 %v4880, %v4885
        %p4895 = scmp.ne.s32.totalorder %s33, 1
        // Predicated region
        $region81: #{mesh_regressor_forward.3} parent=75 // pred_check
          %p4896 = pneg %p4895
        $region82: #{mesh_regressor_forward.3} parent=75 // pred_check_branch
          %4898 = sbr.rel (%p4896) target = $region84
        $region83: #{mesh_regressor_forward.3} parent=75 // pred_region
          %4899 = vst [vmem:[%s639] sm:$0xff] %v4887
          %4900 = vst [vmem:[%s639 + $0x8] sm:$0xff] %v4888
          %4901 = vst [vmem:[%s639 + $0x10] sm:$0xff] %v4889
          %4902 = vst [vmem:[%s639 + $0x18] sm:$0xff] %v4890
          %4903 = vst [vmem:[%s639 + $0x20] sm:$0xff] %v4891
          %4904 = vst [vmem:[%s639 + $0x28] sm:$0xff] %v4892
          %4905 = vst [vmem:[%s639 + $0x30] sm:$0xff] %v4893
          %4906 = vst [vmem:[%s639 + $0x38] sm:$0xff] %v4894
        $region84: #{mesh_regressor_forward.3} parent=75 // pred_fallthru
          _
        %p4907 = scmp.eq.s32.totalorder %s33, 1
        // Predicated region
        $region85: #{mesh_regressor_forward.3} parent=75 // pred_check
          %p4908 = pneg %p4907
        $region86: #{mesh_regressor_forward.3} parent=75 // pred_check_branch
          %4910 = sbr.rel (%p4908) target = $region88
        $region87: #{mesh_regressor_forward.3} parent=75 // pred_region
          %v4911 = vld [vmem:[%s649] sm:$0xff]
          %v4912 = vld [vmem:[%s649 + $0x8] sm:$0xff]
          %v4913 = vld [vmem:[%s649 + $0x10] sm:$0xff]
          %v4914 = vld [vmem:[%s649 + $0x18] sm:$0xff]
          %v4915 = vld [vmem:[%s649 + $0x20] sm:$0xff]
          %v4916 = vld [vmem:[%s649 + $0x28] sm:$0xff]
          %v4917 = vld [vmem:[%s649 + $0x30] sm:$0xff]
          %v4918 = vld [vmem:[%s649 + $0x38] sm:$0xff]
          %v4919 = vadd.f32 %v4887, %v4911
          %v4920 = vadd.f32 %v4888, %v4912
          %v4921 = vadd.f32 %v4889, %v4913
          %v4922 = vadd.f32 %v4890, %v4914
          %v4923 = vadd.f32 %v4891, %v4915
          %v4924 = vadd.f32 %v4892, %v4916
          %v4925 = vadd.f32 %v4893, %v4917
          %v4926 = vadd.f32 %v4894, %v4918
          %4927 = vst [vmem:[%s639] sm:$0xff] %v4919
          %4928 = vst [vmem:[%s639 + $0x8] sm:$0xff] %v4920
          %4929 = vst [vmem:[%s639 + $0x10] sm:$0xff] %v4921
          %4930 = vst [vmem:[%s639 + $0x18] sm:$0xff] %v4922
          %4931 = vst [vmem:[%s639 + $0x20] sm:$0xff] %v4923
          %4932 = vst [vmem:[%s639 + $0x28] sm:$0xff] %v4924
          %4933 = vst [vmem:[%s639 + $0x30] sm:$0xff] %v4925
          %4934 = vst [vmem:[%s639 + $0x38] sm:$0xff] %v4926
        $region88: #{mesh_regressor_forward.3} parent=75 // pred_fallthru
          _
        %s4935 = sand.u32 %s412, 1
        %s4936 = scalar_lea.sflag [#allocation4], %s4935
        %s4937 = sand.u32 %s412, 1
        %s4938 = smul.addr %s4937, 64
        %s4939 = scalar_lea.vmem [#allocation3], %s4938
        // Predicated region
        $region89: #{mesh_regressor_forward.3} parent=75 // pred_check
          %p4940 = pneg %p422
        $region90: #{mesh_regressor_forward.3} parent=75 // pred_check_branch
          %4942 = sbr.rel (%p4940) target = $region92
        $region91: #{mesh_regressor_forward.3} parent=75 // pred_region
          %s4944 = ssub.s32 1024, 1024
          %4945 = vsyncadd %s4936, %s4944
          %s4946 = smul.addr %s32, 8
          %s4947 = smul.addr %s4946, 128
          %s4948 = scalar_lea.hbm %s14, %s4947
          %s4949 = sshll.u32 %s4939, 4
          %s4950 = int_to_ptr.vmem [resolvable:$true] %s4949
          %4955 = dma.vmem_to_hbm [thread:$0]  %s4950, 1024, %s4948, %s4936, 128, 128, 8
        $region92: #{mesh_regressor_forward.3} parent=75 // pred_fallthru
          _
      $region76: #{mesh_regressor_forward.3} parent=5 // pred_fallthru
        _
      %p4956 = scmp.le.s32.totalorder 2, %s23
      // Predicated region
      $region93: #{mesh_regressor_forward.3} parent=5 // pred_check
        %p4957 = pneg %p4956
      $region94: #{mesh_regressor_forward.3} parent=5 // pred_check_branch
        %4959 = sbr.rel (%p4957) target = $region96
      $region95: #{mesh_regressor_forward.3} parent=5 // pred_region
        %s4960 = ssub.s32 %s23, 2
        // Predicated region
        $region97: #{mesh_regressor_forward.3} parent=95 // pred_check
          %p4961 = pneg %p428
        $region98: #{mesh_regressor_forward.3} parent=95 // pred_check_branch
          %4963 = sbr.rel (%p4961) target = $region100
        $region99: #{mesh_regressor_forward.3} parent=95 // pred_region
          %s4964 = sand.u32 %s413, 1
          %s4965 = scalar_lea.sflag [#allocation4], %s4964
          %s4966 = sand.u32 %s413, 1
          %s4967 = smul.addr %s4966, 64
          %s4968 = scalar_lea.vmem [#allocation3], %s4967
          %4969 = dma.done %s4965, 1024
        $region100: #{mesh_regressor_forward.3} parent=95 // pred_fallthru
          _
      $region96: #{mesh_regressor_forward.3} parent=5 // pred_fallthru
        _
    $region6: #{mesh_regressor_forward.3} parent=1 // loop_footer
      %s27 = sadd.s32 1, %s23
    $region7: #{mesh_regressor_forward.3} parent=1 // loop_footer_branch
      %22 = sbr.rel target = $region3
    $region8: #{mesh_regressor_forward.3} parent=1 // loop_exit
      _
    %4970 = vsyncpa [#allocation4], 1
    %s4971 = scalar_lea.sflag [#allocation4], 1
    %4972 = vsyncpa %s4971, 1

</llo_original>
